<compile_context>
chip_gen: v7x
topology: tpu7x:2x2x1
jax: 0.10.0
libtpu: 0.0.40
codegen_flags: <defaults>
</compile_context>

<pallas_src>
import numpy as np
import jax
import jax.numpy as jnp
from jax import lax
from jax.experimental import pallas as pl
from jax.experimental.pallas import tpu as pltpu


# --------------------------------------------------------------------------
# One fused kernel: runs the whole network for a tile of B images.
# Activation rows are ordered (spatial-row-major, image-minor): row = oh*B + b.
# --------------------------------------------------------------------------
def _net_kernel(a1_ref, t1_ref, b1_ref, t2_ref, b2_ref,
                w1_ref, fb1_ref, w2_ref, fb2_ref, out_ref):
    f32 = jnp.float32
    B = out_ref.shape[0]                                  # images in this tile

    # ---- conv1 (5x5 row taps folded into K=140) + bias + ReLU ----------------
    a1 = a1_ref[...].reshape(24 * B, 140)                 # rows: oh*B + b
    y1 = jnp.dot(a1, t1_ref[...], preferred_element_type=f32) + b1_ref[...]
    y1 = jnp.maximum(y1, 0.0)                             # (24B, 480) lanes [even|odd] ow

    # ---- 2x2 max-pool #1 : all on the VPU ------------------------------------
    yw1 = jnp.maximum(y1[:, :240], y1[:, 240:])           # width pairs   -> (24B, 240)
    y1p = yw1.reshape(12, 2 * B, 240)                     # row pairs = adjacent B-blocks
    p1 = jnp.maximum(y1p[:, :B, :], y1p[:, B:, :])        # (12, B, 240)
    p1 = p1.reshape(12 * B, 240)                          # rows: ph*B + b

    # ---- conv2 + bias + ReLU (each tap LHS is a contiguous aligned slice) ----
    y2 = b2_ref[...]                                      # (1, 400) broadcast
    for di in range(5):
        y2 = y2 + jnp.dot(p1[di * B:(di + 8) * B, :], t2_ref[di],
                          preferred_element_type=f32)
    y2 = jnp.maximum(y2, 0.0)                             # (8B, 400) lanes [even|odd] ow2

    # ---- 2x2 max-pool #2 : all on the VPU ------------------------------------
    yw2 = jnp.maximum(y2[:, :200], y2[:, 200:])           # (8B, 200)
    y2p = yw2.reshape(4, 2 * B, 200)
    p2 = jnp.maximum(y2p[:, :B, :], y2p[:, B:, :])        # (4, B, 200): fc1 row blocks

    # ---- fc1 + ReLU (PyTorch NCHW flatten folded into the weight layout) -----
    h1 = fb1_ref[...]                                     # (1, 512)
    for hh in range(4):
        h1 = h1 + jnp.dot(p2[hh], w1_ref[hh], preferred_element_type=f32)
    h1 = jnp.maximum(h1, 0.0)                             # (B, 512)

    # ---- fc2 + log-softmax (lane-dense 128-wide; pad lanes biased to -1e30) --
    logits = jnp.dot(h1, w2_ref[...], preferred_element_type=f32) + fb2_ref[...]
    m = jnp.max(logits, axis=-1, keepdims=True)
    s = logits - m
    lse = jnp.log(jnp.sum(jnp.exp(s), axis=-1, keepdims=True))
    out_ref[...] = s - lse                                # (B, 128)


# --------------------------------------------------------------------------
# One-time host-side weight preparation (Toeplitz fold, column parity grouping,
# flatten permutation, output padding).  Independent of the batch tile.
# --------------------------------------------------------------------------
def prepare_params(params):
    w1, b1, w2, b2, fw1, fb1, fw2, fb2 = [np.asarray(p, np.float32) for p in params]

    # conv1: folded over the 5 kernel rows; output columns parity-grouped:
    #   col1(ow=2k+e, oc) = e*240 + k*20 + oc
    col1 = np.zeros((24, 20), np.int64)
    for ow in range(24):
        k, e = ow // 2, ow % 2
        col1[ow] = e * 240 + k * 20 + np.arange(20)
    T1f = np.zeros((5 * 28, 480), np.float32)
    for di in range(5):
        for dj in range(5):
            for ow in range(24):
                T1f[di * 28 + (ow + dj), col1[ow]] = w1[:, 0, di, dj]
    b1g = np.zeros((1, 480), np.float32)
    for ow in range(24):
        b1g[0, col1[ow]] = b1

    # conv2: one (240, 400) weight per kernel row; LHS cols = k*20 + ic (pool1
    # width k, in-channel ic); output columns parity-grouped:
    #   col2(ow2=2m+e, oc) = e*200 + m*50 + oc
    col2 = np.zeros((8, 50), np.int64)
    for ow2 in range(8):
        m, e = ow2 // 2, ow2 % 2
        col2[ow2] = e * 200 + m * 50 + np.arange(50)
    T2g = np.zeros((5, 240, 400), np.float32)
    for di in range(5):
        for dj in range(5):
            for ow2 in range(8):
                k = ow2 + dj
                for ic in range(20):
                    T2g[di, k * 20 + ic, col2[ow2]] = w2[:, ic, di, dj]
    b2g = np.zeros((1, 400), np.float32)
    for ow2 in range(8):
        b2g[0, col2[ow2]] = b2

    # fc1: W1g[h, m*50+oc, j] = fw1[j, oc*16 + h*4 + m]  (PyTorch flatten order
    # c*16 + h*4 + w folded in); outputs padded 500 -> 512 lanes.
    W1g = np.zeros((4, 200, 512), np.float32)
    for h in range(4):
        for m in range(4):
            for oc in range(50):
                W1g[h, m * 50 + oc, :500] = fw1[:, oc * 16 + h * 4 + m]
    fb1p = np.zeros((1, 512), np.float32)
    fb1p[0, :500] = fb1

    # fc2: (10,500) -> (512,128) zero-padded; pad-lane biases -1e30 so they never
    # win the max and contribute exp()==0 to the log-softmax normalizer.
    W2p = np.zeros((512, 128), np.float32)
    W2p[:500, :10] = fw2.T
    fb2p = np.full((1, 128), -1e30, np.float32)
    fb2p[0, :10] = fb2

    return tuple(jnp.asarray(a) for a in (T1f, b1g, T2g, b2g, W1g, fb1p, W2p, fb2p))


# --------------------------------------------------------------------------
# Wrapper: one pallas_call, grid over batch tiles of B images.
# --------------------------------------------------------------------------
def net_forward(x_nchw, prepped, batch_tile=16):
    T1f, b1g, T2g, b2g, W1g, fb1p, W2p, fb2p = prepped
    B = batch_tile
    assert B % 8 == 0, "batch_tile must be a multiple of 8 (sublane tiling)"
    n = x_nchw.shape[0]
    n_pad = -(-n // B) * B
    x = x_nchw.reshape(n, 28, 28)
    if n_pad != n:
        x = jnp.concatenate([x, jnp.zeros((n_pad - n, 28, 28), x.dtype)], axis=0)

    # Fold the 5 conv1 kernel-row taps onto the lane/K dim (5*28=140) and make the
    # image index minor-most (row = oh*n + b) so in-kernel row pools are adjacent
    # aligned B-row blocks.  Pure layout plumbing, ~13 KB per image.
    a1 = jnp.concatenate([x[:, di:di + 24, :] for di in range(5)], axis=-1)
    a1 = jnp.transpose(a1, (1, 0, 2))                       # (24, n_pad, 140)

    out = pl.pallas_call(
        _net_kernel,
        out_shape=jax.ShapeDtypeStruct((n_pad, 128), jnp.float32),
        grid=(n_pad // B,),
        in_specs=[
            pl.BlockSpec((24, B, 140), lambda i: (0, i, 0)),   # conv1 LHS tile
            pl.BlockSpec((140, 480), lambda i: (0, 0)),        # conv1 weights (folded)
            pl.BlockSpec((1, 480), lambda i: (0, 0)),          # conv1 bias (tiled)
            pl.BlockSpec((5, 240, 400), lambda i: (0, 0, 0)),  # conv2 weights (5 taps)
            pl.BlockSpec((1, 400), lambda i: (0, 0)),          # conv2 bias (tiled)
            pl.BlockSpec((4, 200, 512), lambda i: (0, 0, 0)),  # fc1 weights (permuted)
            pl.BlockSpec((1, 512), lambda i: (0, 0)),          # fc1 bias (padded)
            pl.BlockSpec((512, 128), lambda i: (0, 0)),        # fc2 weights (padded)
            pl.BlockSpec((1, 128), lambda i: (0, 0)),          # fc2 bias (-1e30 pads)
        ],
        out_specs=pl.BlockSpec((B, 128), lambda i: (i, 0)),
        compiler_params=pltpu.CompilerParams(
            dimension_semantics=("parallel",),
            vmem_limit_bytes=32 * 1024 * 1024,
        ),
    )(a1, T1f, b1g, T2g, b2g, W1g, fb1p, W2p, fb2p)
    return out[:n, :10]


# --------------------------------------------------------------------------
# Pure-JAX reference (sanity check only)
# --------------------------------------------------------------------------
def reference_forward(x_nchw, params):
    w1, b1, w2, b2, fw1, fb1, fw2, fb2 = params
    dn = ("NCHW", "OIHW", "NCHW")
    y = lax.conv_general_dilated(x_nchw, w1, (1, 1), "VALID", dimension_numbers=dn)
    y = jnp.maximum(y + b1[None, :, None, None], 0.0)
    y = lax.reduce_window(y, -jnp.inf, lax.max, (1, 1, 2, 2), (1, 1, 2, 2), "VALID")
    y = lax.conv_general_dilated(y, w2, (1, 1), "VALID", dimension_numbers=dn)
    y = jnp.maximum(y + b2[None, :, None, None], 0.0)
    y = lax.reduce_window(y, -jnp.inf, lax.max, (1, 1, 2, 2), (1, 1, 2, 2), "VALID")
    y = y.reshape(y.shape[0], -1)
    y = jnp.maximum(y @ fw1.T + fb1, 0.0)
    y = y @ fw2.T + fb2
    return jax.nn.log_softmax(y, axis=1)


if __name__ == "__main__":
    key = jax.random.PRNGKey(0)
    ks = jax.random.split(key, 9)
    # deterministic synthetic parameters in PyTorch layouts:
    #   conv weights (OC, IC, KH, KW); linear weights (out, in)
    params = (
        0.10 * jax.random.normal(ks[0], (20, 1, 5, 5), jnp.float32),
        0.10 * jax.random.normal(ks[1], (20,), jnp.float32),
        0.05 * jax.random.normal(ks[2], (50, 20, 5, 5), jnp.float32),
        0.05 * jax.random.normal(ks[3], (50,), jnp.float32),
        0.03 * jax.random.normal(ks[4], (500, 800), jnp.float32),
        0.03 * jax.random.normal(ks[5], (500,), jnp.float32),
        0.05 * jax.random.normal(ks[6], (10, 500), jnp.float32),
        0.05 * jax.random.normal(ks[7], (10,), jnp.float32),
    )
    # batch=40 with batch_tile=16 -> grid of 3 steps (exercises batch padding and
    # leaves >=2 grid steps so v7x megacore can split the parallel batch axis).
    n, BT = 40, 16
    x = jax.random.normal(ks[8], (n, 1, 28, 28), jnp.float32)   # NCHW, MNIST-sized

    prepped = prepare_params(params)                 # one-time weight prep (host)
    fwd = jax.jit(lambda xx: net_forward(xx, prepped, batch_tile=BT))
    out = jax.block_until_ready(fwd(x))

    assert out.shape == (n, 10)
    # rows of exp(log_softmax) must sum to 1
    assert jnp.allclose(jnp.sum(jnp.exp(out), axis=1), 1.0, atol=1e-4)
    # cross-check against plain-JAX reference
    ref = reference_forward(x, params)
    assert jnp.allclose(out, ref, atol=1e-2, rtol=1e-2)
    print("KERNEL_OK")
</pallas_src>

<mosaic_0001>
module attributes {stable_mosaic.version = 11 : i64} {
  func.func @_net_kernel(%arg0: i32, %arg1: memref<24x16x140xf32, #tpu.memory_space<vmem>>, %arg2: memref<140x480xf32, #tpu.memory_space<vmem>>, %arg3: memref<1x480xf32, #tpu.memory_space<vmem>>, %arg4: memref<5x240x400xf32, #tpu.memory_space<vmem>>, %arg5: memref<1x400xf32, #tpu.memory_space<vmem>>, %arg6: memref<4x200x512xf32, #tpu.memory_space<vmem>>, %arg7: memref<1x512xf32, #tpu.memory_space<vmem>>, %arg8: memref<512x128xf32, #tpu.memory_space<vmem>>, %arg9: memref<1x128xf32, #tpu.memory_space<vmem>>, %arg10: memref<16x128xf32, #tpu.memory_space<vmem>>) attributes {dimension_semantics = [#tpu.dimension_semantics<parallel>], iteration_bounds = array<i64: 3>, scalar_prefetch = 0 : i64, scratch_operands = 0 : i64, tpu.core_type = #tpu.core_type<tc>, window_params = [{transform_indices = @transform_0, window_bounds = array<i64: 24, 16, 140>}, {pipeline_mode = #tpu.pipeline_mode<synchronous>, transform_indices = @transform_1, window_bounds = array<i64: 140, 480>}, {pipeline_mode = #tpu.pipeline_mode<synchronous>, transform_indices = @transform_2, window_bounds = array<i64: 1, 480>}, {pipeline_mode = #tpu.pipeline_mode<synchronous>, transform_indices = @transform_3, window_bounds = array<i64: 5, 240, 400>}, {pipeline_mode = #tpu.pipeline_mode<synchronous>, transform_indices = @transform_4, window_bounds = array<i64: 1, 400>}, {pipeline_mode = #tpu.pipeline_mode<synchronous>, transform_indices = @transform_5, window_bounds = array<i64: 4, 200, 512>}, {pipeline_mode = #tpu.pipeline_mode<synchronous>, transform_indices = @transform_6, window_bounds = array<i64: 1, 512>}, {pipeline_mode = #tpu.pipeline_mode<synchronous>, transform_indices = @transform_7, window_bounds = array<i64: 512, 128>}, {pipeline_mode = #tpu.pipeline_mode<synchronous>, transform_indices = @transform_8, window_bounds = array<i64: 1, 128>}, {transform_indices = @transform_9, window_bounds = array<i64: 16, 128>}]} {
    %c0 = arith.constant 0 : index
    %c0_0 = arith.constant 0 : index
    %c0_1 = arith.constant 0 : index
    %0 = vector.load %arg1[%c0, %c0_0, %c0_1] : memref<24x16x140xf32, #tpu.memory_space<vmem>>, vector<24x16x140xf32>
    %1 = vector.shape_cast %0 : vector<24x16x140xf32> to vector<384x140xf32>
    %c0_2 = arith.constant 0 : index
    %c0_3 = arith.constant 0 : index
    %2 = vector.load %arg2[%c0_2, %c0_3] : memref<140x480xf32, #tpu.memory_space<vmem>>, vector<140x480xf32>
    %cst = arith.constant dense<0.000000e+00> : vector<384x480xf32>
    %3 = tpu.matmul %1, %2, %cst {dimension_numbers = #tpu.dot_dimension_numbers<[1], [0], [0], [1], [0, 0, 1, 1], [], []>} : vector<384x140xf32>, vector<140x480xf32>, vector<384x480xf32> -> vector<384x480xf32>
    %c0_4 = arith.constant 0 : index
    %c0_5 = arith.constant 0 : index
    %4 = vector.load %arg3[%c0_4, %c0_5] : memref<1x480xf32, #tpu.memory_space<vmem>>, vector<1x480xf32>
    %5 = vector.broadcast %4 : vector<1x480xf32> to vector<384x480xf32>
    %6 = arith.addf %3, %5 : vector<384x480xf32>
    %cst_6 = arith.constant 0.000000e+00 : f32
    %7 = vector.broadcast %cst_6 : f32 to vector<384x480xf32>
    %8 = arith.maximumf %6, %7 : vector<384x480xf32>
    %9 = vector.extract_strided_slice %8 {offsets = [0, 0], sizes = [384, 240], strides = [1, 1]} : vector<384x480xf32> to vector<384x240xf32>
    %10 = vector.extract_strided_slice %8 {offsets = [0, 240], sizes = [384, 240], strides = [1, 1]} : vector<384x480xf32> to vector<384x240xf32>
    %11 = arith.maximumf %9, %10 : vector<384x240xf32>
    %12 = vector.shape_cast %11 : vector<384x240xf32> to vector<12x32x240xf32>
    %13 = vector.extract_strided_slice %12 {offsets = [0, 0, 0], sizes = [12, 16, 240], strides = [1, 1, 1]} : vector<12x32x240xf32> to vector<12x16x240xf32>
    %14 = vector.extract_strided_slice %12 {offsets = [0, 16, 0], sizes = [12, 16, 240], strides = [1, 1, 1]} : vector<12x32x240xf32> to vector<12x16x240xf32>
    %15 = arith.maximumf %13, %14 : vector<12x16x240xf32>
    %16 = vector.shape_cast %15 : vector<12x16x240xf32> to vector<192x240xf32>
    %c0_7 = arith.constant 0 : index
    %c0_8 = arith.constant 0 : index
    %17 = vector.load %arg5[%c0_7, %c0_8] : memref<1x400xf32, #tpu.memory_space<vmem>>, vector<1x400xf32>
    %18 = vector.extract_strided_slice %16 {offsets = [0, 0], sizes = [128, 240], strides = [1, 1]} : vector<192x240xf32> to vector<128x240xf32>
    %c0_9 = arith.constant 0 : index
    %c0_10 = arith.constant 0 : index
    %c0_11 = arith.constant 0 : index
    %19 = vector.load %arg4[%c0_9, %c0_10, %c0_11] : memref<5x240x400xf32, #tpu.memory_space<vmem>>, vector<1x240x400xf32>
    %20 = vector.shape_cast %19 : vector<1x240x400xf32> to vector<240x400xf32>
    %cst_12 = arith.constant dense<0.000000e+00> : vector<128x400xf32>
    %21 = tpu.matmul %18, %20, %cst_12 {dimension_numbers = #tpu.dot_dimension_numbers<[1], [0], [0], [1], [0, 0, 1, 1], [], []>} : vector<128x240xf32>, vector<240x400xf32>, vector<128x400xf32> -> vector<128x400xf32>
    %22 = vector.broadcast %17 : vector<1x400xf32> to vector<128x400xf32>
    %23 = arith.addf %22, %21 : vector<128x400xf32>
    %24 = vector.extract_strided_slice %16 {offsets = [16, 0], sizes = [128, 240], strides = [1, 1]} : vector<192x240xf32> to vector<128x240xf32>
    %c1 = arith.constant 1 : index
    %c0_13 = arith.constant 0 : index
    %c0_14 = arith.constant 0 : index
    %25 = vector.load %arg4[%c1, %c0_13, %c0_14] : memref<5x240x400xf32, #tpu.memory_space<vmem>>, vector<1x240x400xf32>
    %26 = vector.shape_cast %25 : vector<1x240x400xf32> to vector<240x400xf32>
    %cst_15 = arith.constant dense<0.000000e+00> : vector<128x400xf32>
    %27 = tpu.matmul %24, %26, %cst_15 {dimension_numbers = #tpu.dot_dimension_numbers<[1], [0], [0], [1], [0, 0, 1, 1], [], []>} : vector<128x240xf32>, vector<240x400xf32>, vector<128x400xf32> -> vector<128x400xf32>
    %28 = arith.addf %23, %27 : vector<128x400xf32>
    %29 = vector.extract_strided_slice %16 {offsets = [32, 0], sizes = [128, 240], strides = [1, 1]} : vector<192x240xf32> to vector<128x240xf32>
    %c2 = arith.constant 2 : index
    %c0_16 = arith.constant 0 : index
    %c0_17 = arith.constant 0 : index
    %30 = vector.load %arg4[%c2, %c0_16, %c0_17] : memref<5x240x400xf32, #tpu.memory_space<vmem>>, vector<1x240x400xf32>
    %31 = vector.shape_cast %30 : vector<1x240x400xf32> to vector<240x400xf32>
    %cst_18 = arith.constant dense<0.000000e+00> : vector<128x400xf32>
    %32 = tpu.matmul %29, %31, %cst_18 {dimension_numbers = #tpu.dot_dimension_numbers<[1], [0], [0], [1], [0, 0, 1, 1], [], []>} : vector<128x240xf32>, vector<240x400xf32>, vector<128x400xf32> -> vector<128x400xf32>
    %33 = arith.addf %28, %32 : vector<128x400xf32>
    %34 = vector.extract_strided_slice %16 {offsets = [48, 0], sizes = [128, 240], strides = [1, 1]} : vector<192x240xf32> to vector<128x240xf32>
    %c3 = arith.constant 3 : index
    %c0_19 = arith.constant 0 : index
    %c0_20 = arith.constant 0 : index
    %35 = vector.load %arg4[%c3, %c0_19, %c0_20] : memref<5x240x400xf32, #tpu.memory_space<vmem>>, vector<1x240x400xf32>
    %36 = vector.shape_cast %35 : vector<1x240x400xf32> to vector<240x400xf32>
    %cst_21 = arith.constant dense<0.000000e+00> : vector<128x400xf32>
    %37 = tpu.matmul %34, %36, %cst_21 {dimension_numbers = #tpu.dot_dimension_numbers<[1], [0], [0], [1], [0, 0, 1, 1], [], []>} : vector<128x240xf32>, vector<240x400xf32>, vector<128x400xf32> -> vector<128x400xf32>
    %38 = arith.addf %33, %37 : vector<128x400xf32>
    %39 = vector.extract_strided_slice %16 {offsets = [64, 0], sizes = [128, 240], strides = [1, 1]} : vector<192x240xf32> to vector<128x240xf32>
    %c4 = arith.constant 4 : index
    %c0_22 = arith.constant 0 : index
    %c0_23 = arith.constant 0 : index
    %40 = vector.load %arg4[%c4, %c0_22, %c0_23] : memref<5x240x400xf32, #tpu.memory_space<vmem>>, vector<1x240x400xf32>
    %41 = vector.shape_cast %40 : vector<1x240x400xf32> to vector<240x400xf32>
    %cst_24 = arith.constant dense<0.000000e+00> : vector<128x400xf32>
    %42 = tpu.matmul %39, %41, %cst_24 {dimension_numbers = #tpu.dot_dimension_numbers<[1], [0], [0], [1], [0, 0, 1, 1], [], []>} : vector<128x240xf32>, vector<240x400xf32>, vector<128x400xf32> -> vector<128x400xf32>
    %43 = arith.addf %38, %42 : vector<128x400xf32>
    %cst_25 = arith.constant 0.000000e+00 : f32
    %44 = vector.broadcast %cst_25 : f32 to vector<128x400xf32>
    %45 = arith.maximumf %43, %44 : vector<128x400xf32>
    %46 = vector.extract_strided_slice %45 {offsets = [0, 0], sizes = [128, 200], strides = [1, 1]} : vector<128x400xf32> to vector<128x200xf32>
    %47 = vector.extract_strided_slice %45 {offsets = [0, 200], sizes = [128, 200], strides = [1, 1]} : vector<128x400xf32> to vector<128x200xf32>
    %48 = arith.maximumf %46, %47 : vector<128x200xf32>
    %49 = vector.shape_cast %48 : vector<128x200xf32> to vector<4x32x200xf32>
    %50 = vector.extract_strided_slice %49 {offsets = [0, 0, 0], sizes = [4, 16, 200], strides = [1, 1, 1]} : vector<4x32x200xf32> to vector<4x16x200xf32>
    %51 = vector.extract_strided_slice %49 {offsets = [0, 16, 0], sizes = [4, 16, 200], strides = [1, 1, 1]} : vector<4x32x200xf32> to vector<4x16x200xf32>
    %52 = arith.maximumf %50, %51 : vector<4x16x200xf32>
    %c0_26 = arith.constant 0 : index
    %c0_27 = arith.constant 0 : index
    %53 = vector.load %arg7[%c0_26, %c0_27] : memref<1x512xf32, #tpu.memory_space<vmem>>, vector<1x512xf32>
    %54 = vector.extract_strided_slice %52 {offsets = [0, 0, 0], sizes = [1, 16, 200], strides = [1, 1, 1]} : vector<4x16x200xf32> to vector<1x16x200xf32>
    %55 = vector.shape_cast %54 : vector<1x16x200xf32> to vector<16x200xf32>
    %c0_28 = arith.constant 0 : index
    %c0_29 = arith.constant 0 : index
    %c0_30 = arith.constant 0 : index
    %56 = vector.load %arg6[%c0_28, %c0_29, %c0_30] : memref<4x200x512xf32, #tpu.memory_space<vmem>>, vector<1x200x512xf32>
    %57 = vector.shape_cast %56 : vector<1x200x512xf32> to vector<200x512xf32>
    %cst_31 = arith.constant dense<0.000000e+00> : vector<16x512xf32>
    %58 = tpu.matmul %55, %57, %cst_31 {dimension_numbers = #tpu.dot_dimension_numbers<[1], [0], [0], [1], [0, 0, 1, 1], [], []>} : vector<16x200xf32>, vector<200x512xf32>, vector<16x512xf32> -> vector<16x512xf32>
    %59 = vector.broadcast %53 : vector<1x512xf32> to vector<16x512xf32>
    %60 = arith.addf %59, %58 : vector<16x512xf32>
    %61 = vector.extract_strided_slice %52 {offsets = [1, 0, 0], sizes = [1, 16, 200], strides = [1, 1, 1]} : vector<4x16x200xf32> to vector<1x16x200xf32>
    %62 = vector.shape_cast %61 : vector<1x16x200xf32> to vector<16x200xf32>
    %c1_32 = arith.constant 1 : index
    %c0_33 = arith.constant 0 : index
    %c0_34 = arith.constant 0 : index
    %63 = vector.load %arg6[%c1_32, %c0_33, %c0_34] : memref<4x200x512xf32, #tpu.memory_space<vmem>>, vector<1x200x512xf32>
    %64 = vector.shape_cast %63 : vector<1x200x512xf32> to vector<200x512xf32>
    %cst_35 = arith.constant dense<0.000000e+00> : vector<16x512xf32>
    %65 = tpu.matmul %62, %64, %cst_35 {dimension_numbers = #tpu.dot_dimension_numbers<[1], [0], [0], [1], [0, 0, 1, 1], [], []>} : vector<16x200xf32>, vector<200x512xf32>, vector<16x512xf32> -> vector<16x512xf32>
    %66 = arith.addf %60, %65 : vector<16x512xf32>
    %67 = vector.extract_strided_slice %52 {offsets = [2, 0, 0], sizes = [1, 16, 200], strides = [1, 1, 1]} : vector<4x16x200xf32> to vector<1x16x200xf32>
    %68 = vector.shape_cast %67 : vector<1x16x200xf32> to vector<16x200xf32>
    %c2_36 = arith.constant 2 : index
    %c0_37 = arith.constant 0 : index
    %c0_38 = arith.constant 0 : index
    %69 = vector.load %arg6[%c2_36, %c0_37, %c0_38] : memref<4x200x512xf32, #tpu.memory_space<vmem>>, vector<1x200x512xf32>
    %70 = vector.shape_cast %69 : vector<1x200x512xf32> to vector<200x512xf32>
    %cst_39 = arith.constant dense<0.000000e+00> : vector<16x512xf32>
    %71 = tpu.matmul %68, %70, %cst_39 {dimension_numbers = #tpu.dot_dimension_numbers<[1], [0], [0], [1], [0, 0, 1, 1], [], []>} : vector<16x200xf32>, vector<200x512xf32>, vector<16x512xf32> -> vector<16x512xf32>
    %72 = arith.addf %66, %71 : vector<16x512xf32>
    %73 = vector.extract_strided_slice %52 {offsets = [3, 0, 0], sizes = [1, 16, 200], strides = [1, 1, 1]} : vector<4x16x200xf32> to vector<1x16x200xf32>
    %74 = vector.shape_cast %73 : vector<1x16x200xf32> to vector<16x200xf32>
    %c3_40 = arith.constant 3 : index
    %c0_41 = arith.constant 0 : index
    %c0_42 = arith.constant 0 : index
    %75 = vector.load %arg6[%c3_40, %c0_41, %c0_42] : memref<4x200x512xf32, #tpu.memory_space<vmem>>, vector<1x200x512xf32>
    %76 = vector.shape_cast %75 : vector<1x200x512xf32> to vector<200x512xf32>
    %cst_43 = arith.constant dense<0.000000e+00> : vector<16x512xf32>
    %77 = tpu.matmul %74, %76, %cst_43 {dimension_numbers = #tpu.dot_dimension_numbers<[1], [0], [0], [1], [0, 0, 1, 1], [], []>} : vector<16x200xf32>, vector<200x512xf32>, vector<16x512xf32> -> vector<16x512xf32>
    %78 = arith.addf %72, %77 : vector<16x512xf32>
    %cst_44 = arith.constant 0.000000e+00 : f32
    %79 = vector.broadcast %cst_44 : f32 to vector<16x512xf32>
    %80 = arith.maximumf %78, %79 : vector<16x512xf32>
    %c0_45 = arith.constant 0 : index
    %c0_46 = arith.constant 0 : index
    %81 = vector.load %arg8[%c0_45, %c0_46] : memref<512x128xf32, #tpu.memory_space<vmem>>, vector<512x128xf32>
    %cst_47 = arith.constant dense<0.000000e+00> : vector<16x128xf32>
    %82 = tpu.matmul %80, %81, %cst_47 {dimension_numbers = #tpu.dot_dimension_numbers<[1], [0], [0], [1], [0, 0, 1, 1], [], []>} : vector<16x512xf32>, vector<512x128xf32>, vector<16x128xf32> -> vector<16x128xf32>
    %c0_48 = arith.constant 0 : index
    %c0_49 = arith.constant 0 : index
    %83 = vector.load %arg9[%c0_48, %c0_49] : memref<1x128xf32, #tpu.memory_space<vmem>>, vector<1x128xf32>
    %84 = vector.broadcast %83 : vector<1x128xf32> to vector<16x128xf32>
    %85 = arith.addf %82, %84 : vector<16x128xf32>
    %cst_50 = arith.constant dense<0xFF800000> : vector<16xf32>
    %86 = vector.multi_reduction <maximumf>, %85, %cst_50 [1] : vector<16x128xf32> to vector<16xf32>
    %87 = vector.shape_cast %86 : vector<16xf32> to vector<16x1xf32>
    %88 = vector.broadcast %87 : vector<16x1xf32> to vector<16x128xf32>
    %89 = arith.subf %85, %88 : vector<16x128xf32>
    %90 = math.exp %89 : vector<16x128xf32>
    %cst_51 = arith.constant dense<0.000000e+00> : vector<16xf32>
    %91 = vector.multi_reduction <add>, %90, %cst_51 [1] : vector<16x128xf32> to vector<16xf32>
    %92 = vector.shape_cast %91 : vector<16xf32> to vector<16x1xf32>
    %93 = math.log %92 : vector<16x1xf32>
    %94 = vector.broadcast %93 : vector<16x1xf32> to vector<16x128xf32>
    %95 = arith.subf %89, %94 : vector<16x128xf32>
    %c0_52 = arith.constant 0 : index
    %c0_53 = arith.constant 0 : index
    %96 = vector.load %arg10[%c0_52, %c0_53] : memref<16x128xf32, #tpu.memory_space<vmem>>, vector<16x128xf32>
    tpu.vector_store %arg10[%c0_52, %c0_53], %95 {strides = array<i32>} : memref<16x128xf32, #tpu.memory_space<vmem>>, vector<16x128xf32>,
    return
  }
  func.func @transform_0(%arg0: i32) -> (i32, i32, i32) {
    %c0_i32 = arith.constant 0 : i32
    %c0_i32_0 = arith.constant 0 : i32
    %c0_i32_1 = arith.constant 0 : i32
    return %c0_i32, %arg0, %c0_i32_0 : i32, i32, i32
  }
  func.func @transform_1(%arg0: i32) -> (i32, i32) {
    %c0_i32 = arith.constant 0 : i32
    %c0_i32_0 = arith.constant 0 : i32
    %c0_i32_1 = arith.constant 0 : i32
    return %c0_i32, %c0_i32_0 : i32, i32
  }
  func.func @transform_2(%arg0: i32) -> (i32, i32) {
    %c0_i32 = arith.constant 0 : i32
    %c0_i32_0 = arith.constant 0 : i32
    %c0_i32_1 = arith.constant 0 : i32
    return %c0_i32, %c0_i32_0 : i32, i32
  }
  func.func @transform_3(%arg0: i32) -> (i32, i32, i32) {
    %c0_i32 = arith.constant 0 : i32
    %c0_i32_0 = arith.constant 0 : i32
    %c0_i32_1 = arith.constant 0 : i32
    %c0_i32_2 = arith.constant 0 : i32
    return %c0_i32, %c0_i32_0, %c0_i32_1 : i32, i32, i32
  }
  func.func @transform_4(%arg0: i32) -> (i32, i32) {
    %c0_i32 = arith.constant 0 : i32
    %c0_i32_0 = arith.constant 0 : i32
    %c0_i32_1 = arith.constant 0 : i32
    return %c0_i32, %c0_i32_0 : i32, i32
  }
  func.func @transform_5(%arg0: i32) -> (i32, i32, i32) {
    %c0_i32 = arith.constant 0 : i32
    %c0_i32_0 = arith.constant 0 : i32
    %c0_i32_1 = arith.constant 0 : i32
    %c0_i32_2 = arith.constant 0 : i32
    return %c0_i32, %c0_i32_0, %c0_i32_1 : i32, i32, i32
  }
  func.func @transform_6(%arg0: i32) -> (i32, i32) {
    %c0_i32 = arith.constant 0 : i32
    %c0_i32_0 = arith.constant 0 : i32
    %c0_i32_1 = arith.constant 0 : i32
    return %c0_i32, %c0_i32_0 : i32, i32
  }
  func.func @transform_7(%arg0: i32) -> (i32, i32) {
    %c0_i32 = arith.constant 0 : i32
    %c0_i32_0 = arith.constant 0 : i32
    %c0_i32_1 = arith.constant 0 : i32
    return %c0_i32, %c0_i32_0 : i32, i32
  }
  func.func @transform_8(%arg0: i32) -> (i32, i32) {
    %c0_i32 = arith.constant 0 : i32
    %c0_i32_0 = arith.constant 0 : i32
    %c0_i32_1 = arith.constant 0 : i32
    return %c0_i32, %c0_i32_0 : i32, i32
  }
  func.func @transform_9(%arg0: i32) -> (i32, i32) {
    %c0_i32 = arith.constant 0 : i32
    %c0_i32_0 = arith.constant 0 : i32
    return %arg0, %c0_i32 : i32, i32
  }
}

</mosaic_0001>

<llo_original>
// kernel: _lambda_.1
$region0: #{_lambda_.1}
  #allocation0 [shape = 'u32[]', space=smem, size = 0x4, offset = 0x4, fixed_abs, tag = 'smem constant byte address 0x4 - core index']
  #allocation1 [shape = 'u32[144,128]{1,0:T(1,128)}', space=vmem, size = 0x12000, scoped, tag = 'internal scratch']
  %s0 = inlined_call_operand.vmem [shape: f32[24,48,140], index: 0, kind: input, shape index: {}]
  %s1 = inlined_call_operand.vmem [shape: f32[140,480], index: 1, kind: input, shape index: {}]
  %s2 = inlined_call_operand.vmem [shape: f32[1,480], index: 2, kind: input, shape index: {}]
  %s3 = inlined_call_operand.vmem [shape: f32[5,240,400], index: 3, kind: input, shape index: {}]
  %s4 = inlined_call_operand.vmem [shape: f32[1,400], index: 4, kind: input, shape index: {}]
  %s5 = inlined_call_operand.vmem [shape: f32[4,200,512], index: 5, kind: input, shape index: {}]
  %s6 = inlined_call_operand.vmem [shape: f32[1,512], index: 6, kind: input, shape index: {}]
  %s7 = inlined_call_operand.vmem [shape: f32[512,128], index: 7, kind: input, shape index: {}]
  %s8 = inlined_call_operand.vmem [shape: f32[1,128], index: 8, kind: input, shape index: {}]
  %s9 = inlined_call_operand.vmem [shape: f32[48,128], index: 9, kind: output, shape index: {}]
  %s10 = sld [smem:[#allocation0]]
  $region92: #{_lambda_.1} parent=0
    _
  %s12 = ssub.s32 1, %s10
  %s13 = scalar_select 0, %s12, %s10
  $region1: #{_lambda_.1} parent=0
    #allocation2 [shape = 'u8[786432]{0}', space=vmem, size = 0xc0000, scoped, tag = 'input window, operand 0']
    loop: start=0, step=1, limit=5
    $region2: #{_lambda_.1} parent=1 // loop_pre_header
      _
    $region3: #{_lambda_.1} parent=1 // loop_header
      %s15 = sphi 0, %s19
      %p16 = scmp.ge.s32.totalorder %s15, 5
      %s25 = sphi 0, %s27
      %s28 = sphi 0, %s25
      %s29 = sphi 0, %s28
      %s45 = sphi 0, %s29
      %s49 = sphi 0, %s49
      %s51 = sphi 0, %s49
      %s52 = sphi 0, %s51
      %s66 = sphi 0, %s52
      %s70 = sphi 0, %s70
      %s72 = sphi 0, %s70
      %s73 = sphi 0, %s72
      %s87 = sphi 0, %s73
      %s91 = sphi 0, %s91
      %s93 = sphi 0, %s91
      %s94 = sphi 0, %s93
      %s108 = sphi 0, %s94
      %s112 = sphi 0, %s112
      %s114 = sphi 0, %s112
      %s115 = sphi 0, %s114
      %s129 = sphi 0, %s115
      %s133 = sphi 0, %s133
      %s135 = sphi 0, %s133
      %s136 = sphi 0, %s135
      %s150 = sphi 0, %s136
      %s154 = sphi 0, %s154
      %s156 = sphi 0, %s154
      %s157 = sphi 0, %s156
      %s171 = sphi 0, %s157
      %s175 = sphi 0, %s175
      %s177 = sphi 0, %s175
      %s178 = sphi 0, %s177
      %s192 = sphi 0, %s178
      %s196 = sphi 0, %s196
      %s198 = sphi 0, %s196
      %s199 = sphi 0, %s198
      %s213 = sphi 0, %s199
      %s219 = sphi 0, %s221
      %s222 = sphi 0, %s219
      %s223 = sphi 0, %s222
      %s239 = sphi 0, %s223
    $region4: #{_lambda_.1} parent=1 // loop_header_branch
      %18 = sbr.rel (%p16) target = $region8
    $region5: #{_lambda_.1} parent=1 // loop_body
      %s20 = ssub.s32 %s15, 1
      %s21 = ssub.s32 %s15, 2
      %s22 = sadd.s32 %s15, 1
      %s23 = ssub.s32 %s15, %s22
      %p24 = scmp.eq.s32.totalorder %s23, 0
      %s26 = sadd.s32 %s25, 1
      %s27 = scalar_select %p24, %s25, %s26
      %p30 = pneg %p24
      %p31 = scmp.eq.s32.totalorder %s15, 2
      %p32 = por %p30, %p31
      %p33 = scmp.ne.s32.totalorder %s25, %s28
      %p34 = scmp.eq.s32.totalorder %s15, 0
      %p35 = por %p33, %p34
      %p36 = scmp.ne.s32.totalorder %s25, %s28
      %p37 = scmp.eq.s32.totalorder %s20, 2
      %p38 = por %p36, %p37
      %p39 = scmp.ne.s32.totalorder %s28, %s29
      %p40 = scmp.eq.s32.totalorder %s20, 0
      %p41 = por %p39, %p40
      %p42 = scmp.ne.s32.totalorder %s28, %s29
      %p43 = scmp.eq.s32.totalorder %s21, 2
      %p44 = por %p42, %p43
      %p46 = scmp.ne.s32.totalorder %s29, %s45
      %p47 = scmp.eq.s32.totalorder %s21, 0
      %p48 = por %p46, %p47
      %s50 = sadd.s32 %s49, 1
      %p53 = scmp.eq.s32.totalorder %s15, 2
      %p54 = scmp.ne.s32.totalorder %s49, %s51
      %p55 = scmp.eq.s32.totalorder %s15, 0
      %p56 = por %p54, %p55
      %p57 = scmp.ne.s32.totalorder %s49, %s51
      %p58 = scmp.eq.s32.totalorder %s20, 2
      %p59 = por %p57, %p58
      %p60 = scmp.ne.s32.totalorder %s51, %s52
      %p61 = scmp.eq.s32.totalorder %s20, 0
      %p62 = por %p60, %p61
      %p63 = scmp.ne.s32.totalorder %s51, %s52
      %p64 = scmp.eq.s32.totalorder %s21, 2
      %p65 = por %p63, %p64
      %p67 = scmp.ne.s32.totalorder %s52, %s66
      %p68 = scmp.eq.s32.totalorder %s21, 0
      %p69 = por %p67, %p68
      %s71 = sadd.s32 %s70, 1
      %p74 = scmp.eq.s32.totalorder %s15, 2
      %p75 = scmp.ne.s32.totalorder %s70, %s72
      %p76 = scmp.eq.s32.totalorder %s15, 0
      %p77 = por %p75, %p76
      %p78 = scmp.ne.s32.totalorder %s70, %s72
      %p79 = scmp.eq.s32.totalorder %s20, 2
      %p80 = por %p78, %p79
      %p81 = scmp.ne.s32.totalorder %s72, %s73
      %p82 = scmp.eq.s32.totalorder %s20, 0
      %p83 = por %p81, %p82
      %p84 = scmp.ne.s32.totalorder %s72, %s73
      %p85 = scmp.eq.s32.totalorder %s21, 2
      %p86 = por %p84, %p85
      %p88 = scmp.ne.s32.totalorder %s73, %s87
      %p89 = scmp.eq.s32.totalorder %s21, 0
      %p90 = por %p88, %p89
      %s92 = sadd.s32 %s91, 1
      %p95 = scmp.eq.s32.totalorder %s15, 2
      %p96 = scmp.ne.s32.totalorder %s91, %s93
      %p97 = scmp.eq.s32.totalorder %s15, 0
      %p98 = por %p96, %p97
      %p99 = scmp.ne.s32.totalorder %s91, %s93
      %p100 = scmp.eq.s32.totalorder %s20, 2
      %p101 = por %p99, %p100
      %p102 = scmp.ne.s32.totalorder %s93, %s94
      %p103 = scmp.eq.s32.totalorder %s20, 0
      %p104 = por %p102, %p103
      %p105 = scmp.ne.s32.totalorder %s93, %s94
      %p106 = scmp.eq.s32.totalorder %s21, 2
      %p107 = por %p105, %p106
      %p109 = scmp.ne.s32.totalorder %s94, %s108
      %p110 = scmp.eq.s32.totalorder %s21, 0
      %p111 = por %p109, %p110
      %s113 = sadd.s32 %s112, 1
      %p116 = scmp.eq.s32.totalorder %s15, 2
      %p117 = scmp.ne.s32.totalorder %s112, %s114
      %p118 = scmp.eq.s32.totalorder %s15, 0
      %p119 = por %p117, %p118
      %p120 = scmp.ne.s32.totalorder %s112, %s114
      %p121 = scmp.eq.s32.totalorder %s20, 2
      %p122 = por %p120, %p121
      %p123 = scmp.ne.s32.totalorder %s114, %s115
      %p124 = scmp.eq.s32.totalorder %s20, 0
      %p125 = por %p123, %p124
      %p126 = scmp.ne.s32.totalorder %s114, %s115
      %p127 = scmp.eq.s32.totalorder %s21, 2
      %p128 = por %p126, %p127
      %p130 = scmp.ne.s32.totalorder %s115, %s129
      %p131 = scmp.eq.s32.totalorder %s21, 0
      %p132 = por %p130, %p131
      %s134 = sadd.s32 %s133, 1
      %p137 = scmp.eq.s32.totalorder %s15, 2
      %p138 = scmp.ne.s32.totalorder %s133, %s135
      %p139 = scmp.eq.s32.totalorder %s15, 0
      %p140 = por %p138, %p139
      %p141 = scmp.ne.s32.totalorder %s133, %s135
      %p142 = scmp.eq.s32.totalorder %s20, 2
      %p143 = por %p141, %p142
      %p144 = scmp.ne.s32.totalorder %s135, %s136
      %p145 = scmp.eq.s32.totalorder %s20, 0
      %p146 = por %p144, %p145
      %p147 = scmp.ne.s32.totalorder %s135, %s136
      %p148 = scmp.eq.s32.totalorder %s21, 2
      %p149 = por %p147, %p148
      %p151 = scmp.ne.s32.totalorder %s136, %s150
      %p152 = scmp.eq.s32.totalorder %s21, 0
      %p153 = por %p151, %p152
      %s155 = sadd.s32 %s154, 1
      %p158 = scmp.eq.s32.totalorder %s15, 2
      %p159 = scmp.ne.s32.totalorder %s154, %s156
      %p160 = scmp.eq.s32.totalorder %s15, 0
      %p161 = por %p159, %p160
      %p162 = scmp.ne.s32.totalorder %s154, %s156
      %p163 = scmp.eq.s32.totalorder %s20, 2
      %p164 = por %p162, %p163
      %p165 = scmp.ne.s32.totalorder %s156, %s157
      %p166 = scmp.eq.s32.totalorder %s20, 0
      %p167 = por %p165, %p166
      %p168 = scmp.ne.s32.totalorder %s156, %s157
      %p169 = scmp.eq.s32.totalorder %s21, 2
      %p170 = por %p168, %p169
      %p172 = scmp.ne.s32.totalorder %s157, %s171
      %p173 = scmp.eq.s32.totalorder %s21, 0
      %p174 = por %p172, %p173
      %s176 = sadd.s32 %s175, 1
      %p179 = scmp.eq.s32.totalorder %s15, 2
      %p180 = scmp.ne.s32.totalorder %s175, %s177
      %p181 = scmp.eq.s32.totalorder %s15, 0
      %p182 = por %p180, %p181
      %p183 = scmp.ne.s32.totalorder %s175, %s177
      %p184 = scmp.eq.s32.totalorder %s20, 2
      %p185 = por %p183, %p184
      %p186 = scmp.ne.s32.totalorder %s177, %s178
      %p187 = scmp.eq.s32.totalorder %s20, 0
      %p188 = por %p186, %p187
      %p189 = scmp.ne.s32.totalorder %s177, %s178
      %p190 = scmp.eq.s32.totalorder %s21, 2
      %p191 = por %p189, %p190
      %p193 = scmp.ne.s32.totalorder %s178, %s192
      %p194 = scmp.eq.s32.totalorder %s21, 0
      %p195 = por %p193, %p194
      %s197 = sadd.s32 %s196, 1
      %p200 = scmp.eq.s32.totalorder %s15, 2
      %p201 = scmp.ne.s32.totalorder %s196, %s198
      %p202 = scmp.eq.s32.totalorder %s15, 0
      %p203 = por %p201, %p202
      %p204 = scmp.ne.s32.totalorder %s196, %s198
      %p205 = scmp.eq.s32.totalorder %s20, 2
      %p206 = por %p204, %p205
      %p207 = scmp.ne.s32.totalorder %s198, %s199
      %p208 = scmp.eq.s32.totalorder %s20, 0
      %p209 = por %p207, %p208
      %p210 = scmp.ne.s32.totalorder %s198, %s199
      %p211 = scmp.eq.s32.totalorder %s21, 2
      %p212 = por %p210, %p211
      %p214 = scmp.ne.s32.totalorder %s199, %s213
      %p215 = scmp.eq.s32.totalorder %s21, 0
      %p216 = por %p214, %p215
      %s217 = ssub.s32 %s15, %s22
      %p218 = scmp.eq.s32.totalorder %s217, 0
      %s220 = sadd.s32 %s219, 1
      %s221 = scalar_select %p218, %s219, %s220
      %p224 = pneg %p218
      %p225 = scmp.eq.s32.totalorder %s15, 2
      %p226 = por %p224, %p225
      %p227 = scmp.ne.s32.totalorder %s219, %s222
      %p228 = scmp.eq.s32.totalorder %s15, 0
      %p229 = por %p227, %p228
      %p230 = scmp.ne.s32.totalorder %s219, %s222
      %p231 = scmp.eq.s32.totalorder %s20, 2
      %p232 = por %p230, %p231
      %p233 = scmp.ne.s32.totalorder %s222, %s223
      %p234 = scmp.eq.s32.totalorder %s20, 0
      %p235 = por %p233, %p234
      %p236 = scmp.ne.s32.totalorder %s222, %s223
      %p237 = scmp.eq.s32.totalorder %s21, 2
      %p238 = por %p236, %p237
      %p240 = scmp.ne.s32.totalorder %s223, %s239
      %p241 = scmp.eq.s32.totalorder %s21, 0
      %p242 = por %p240, %p241
      %p243 = scmp.le.s32.totalorder 1, %s15
      %p244 = scmp.lt.s32.totalorder %s15, 4
      %p245 = pnand %p243, %p244
      %p246 = pneg %p245
      // Predicated region
      $region9: #{_lambda_.1} parent=5 // pred_check
        _
      $region10: #{_lambda_.1} parent=5 // pred_check_branch
        %248 = sbr.rel (%p245) target = $region12
      $region11: #{_lambda_.1} parent=5 // pred_region
        %s249 = ssub.s32 %s15, 1
        // Predicated region
        $region13: #{_lambda_.1} parent=11 // pred_check
          %p250 = pneg %p62
        $region14: #{_lambda_.1} parent=11 // pred_check_branch
          %252 = sbr.rel (%p250) target = $region16
        $region15: #{_lambda_.1} parent=11 // pred_region
          _
        $region16: #{_lambda_.1} parent=11 // pred_fallthru
          _
        // Predicated region
        $region17: #{_lambda_.1} parent=11 // pred_check
          %p253 = pneg %p83
        $region18: #{_lambda_.1} parent=11 // pred_check_branch
          %255 = sbr.rel (%p253) target = $region20
        $region19: #{_lambda_.1} parent=11 // pred_region
          _
        $region20: #{_lambda_.1} parent=11 // pred_fallthru
          _
        // Predicated region
        $region21: #{_lambda_.1} parent=11 // pred_check
          %p256 = pneg %p104
        $region22: #{_lambda_.1} parent=11 // pred_check_branch
          %258 = sbr.rel (%p256) target = $region24
        $region23: #{_lambda_.1} parent=11 // pred_region
          _
        $region24: #{_lambda_.1} parent=11 // pred_fallthru
          _
        // Predicated region
        $region25: #{_lambda_.1} parent=11 // pred_check
          %p259 = pneg %p125
        $region26: #{_lambda_.1} parent=11 // pred_check_branch
          %261 = sbr.rel (%p259) target = $region28
        $region27: #{_lambda_.1} parent=11 // pred_region
          _
        $region28: #{_lambda_.1} parent=11 // pred_fallthru
          _
        // Predicated region
        $region29: #{_lambda_.1} parent=11 // pred_check
          %p262 = pneg %p146
        $region30: #{_lambda_.1} parent=11 // pred_check_branch
          %264 = sbr.rel (%p262) target = $region32
        $region31: #{_lambda_.1} parent=11 // pred_region
          _
        $region32: #{_lambda_.1} parent=11 // pred_fallthru
          _
        // Predicated region
        $region33: #{_lambda_.1} parent=11 // pred_check
          %p265 = pneg %p167
        $region34: #{_lambda_.1} parent=11 // pred_check_branch
          %267 = sbr.rel (%p265) target = $region36
        $region35: #{_lambda_.1} parent=11 // pred_region
          _
        $region36: #{_lambda_.1} parent=11 // pred_fallthru
          _
        // Predicated region
        $region37: #{_lambda_.1} parent=11 // pred_check
          %p268 = pneg %p188
        $region38: #{_lambda_.1} parent=11 // pred_check_branch
          %270 = sbr.rel (%p268) target = $region40
        $region39: #{_lambda_.1} parent=11 // pred_region
          _
        $region40: #{_lambda_.1} parent=11 // pred_fallthru
          _
        // Predicated region
        $region41: #{_lambda_.1} parent=11 // pred_check
          %p271 = pneg %p209
        $region42: #{_lambda_.1} parent=11 // pred_check_branch
          %273 = sbr.rel (%p271) target = $region44
        $region43: #{_lambda_.1} parent=11 // pred_region
          _
        $region44: #{_lambda_.1} parent=11 // pred_fallthru
          _
      $region12: #{_lambda_.1} parent=5 // pred_fallthru
        _
      %p274 = scmp.lt.s32.totalorder %s15, 3
      // Predicated region
      $region45: #{_lambda_.1} parent=5 // pred_check
        %p275 = pneg %p274
      $region46: #{_lambda_.1} parent=5 // pred_check_branch
        %277 = sbr.rel (%p275) target = $region48
      $region47: #{_lambda_.1} parent=5 // pred_region
        // Predicated region
        $region49: #{_lambda_.1} parent=47 // pred_check
          %p278 = pneg %p35
        $region50: #{_lambda_.1} parent=47 // pred_check_branch
          %280 = sbr.rel (%p278) target = $region52
        $region51: #{_lambda_.1} parent=47 // pred_region
          %s281 = sand.u32 %s25, 1
          %s282 = sand.u32 %s25, 1
          %s283 = smul.addr %s282, 768
          %s284 = scalar_lea.vmem [#allocation2], %s283
          %s285 = smul.u32 2, %s15
          %s286 = smul.addr %s285, 2
          %s287 = smul.addr %s286, 8
          %s288 = scalar_lea.vmem %s0, %s287
          // Predicated region
          $region53: #{_lambda_.1} parent=51 // pred_check
            _
          $region54: #{_lambda_.1} parent=51 // pred_check_branch
            %290 = sbr.rel (0) target = $region56
          $region55: #{_lambda_.1} parent=51 // pred_region
            // Predicated region
            $region57: #{_lambda_.1} parent=55 // pred_check
              _
            $region58: #{_lambda_.1} parent=55 // pred_check_branch
              %292 = sbr.rel (0) target = $region60
            $region59: #{_lambda_.1} parent=55 // pred_region
              loop: start=0, step=1, limit=1
              $region61: #{_lambda_.1} parent=59 // loop_pre_header
                _
              $region62: #{_lambda_.1} parent=59 // loop_header
                %s294 = sphi 0, %s298
                %p295 = scmp.ge.s32.totalorder %s294, 1
                %s299 = sphi %s288, %s288
                %s300 = sphi %s284, %s284
              $region63: #{_lambda_.1} parent=59 // loop_header_branch
                %297 = sbr.rel (%p295) target = $region67
              $region64: #{_lambda_.1} parent=59 // loop_body
                %v301 = vld [vmem:[%s299] sm:$0xff]
                %302 = vst [vmem:[%s300] sm:$0xff] %v301
                %v303 = vld [vmem:[%s299 + $0x8] sm:$0xff]
                %304 = vst [vmem:[%s300 + $0x8] sm:$0xff] %v303
                %v305 = vld [vmem:[%s299 + $0x10] sm:$0xff]
                %306 = vst [vmem:[%s300 + $0x10] sm:$0xff] %v305
                %v307 = vld [vmem:[%s299 + $0x18] sm:$0xff]
                %308 = vst [vmem:[%s300 + $0x18] sm:$0xff] %v307
                %v309 = vld [vmem:[%s299 + $0x60] sm:$0xff]
                %310 = vst [vmem:[%s300 + $0x20] sm:$0xff] %v309
                %v311 = vld [vmem:[%s299 + $0x68] sm:$0xff]
                %312 = vst [vmem:[%s300 + $0x28] sm:$0xff] %v311
                %v313 = vld [vmem:[%s299 + $0x70] sm:$0xff]
                %314 = vst [vmem:[%s300 + $0x30] sm:$0xff] %v313
                %v315 = vld [vmem:[%s299 + $0x78] sm:$0xff]
                %316 = vst [vmem:[%s300 + $0x38] sm:$0xff] %v315
                %v317 = vld [vmem:[%s299 + $0xc0] sm:$0xff]
                %318 = vst [vmem:[%s300 + $0x40] sm:$0xff] %v317
                %v319 = vld [vmem:[%s299 + $0xc8] sm:$0xff]
                %320 = vst [vmem:[%s300 + $0x48] sm:$0xff] %v319
                %v321 = vld [vmem:[%s299 + $0xd0] sm:$0xff]
                %322 = vst [vmem:[%s300 + $0x50] sm:$0xff] %v321
                %v323 = vld [vmem:[%s299 + $0xd8] sm:$0xff]
                %324 = vst [vmem:[%s300 + $0x58] sm:$0xff] %v323
                %v325 = vld [vmem:[%s299 + $0x120] sm:$0xff]
                %326 = vst [vmem:[%s300 + $0x60] sm:$0xff] %v325
                %v327 = vld [vmem:[%s299 + $0x128] sm:$0xff]
                %328 = vst [vmem:[%s300 + $0x68] sm:$0xff] %v327
                %v329 = vld [vmem:[%s299 + $0x130] sm:$0xff]
                %330 = vst [vmem:[%s300 + $0x70] sm:$0xff] %v329
                %v331 = vld [vmem:[%s299 + $0x138] sm:$0xff]
                %332 = vst [vmem:[%s300 + $0x78] sm:$0xff] %v331
                %v333 = vld [vmem:[%s299 + $0x180] sm:$0xff]
                %334 = vst [vmem:[%s300 + $0x80] sm:$0xff] %v333
                %v335 = vld [vmem:[%s299 + $0x188] sm:$0xff]
                %336 = vst [vmem:[%s300 + $0x88] sm:$0xff] %v335
                %v337 = vld [vmem:[%s299 + $0x190] sm:$0xff]
                %338 = vst [vmem:[%s300 + $0x90] sm:$0xff] %v337
                %v339 = vld [vmem:[%s299 + $0x198] sm:$0xff]
                %340 = vst [vmem:[%s300 + $0x98] sm:$0xff] %v339
                %v341 = vld [vmem:[%s299 + $0x1e0] sm:$0xff]
                %342 = vst [vmem:[%s300 + $0xa0] sm:$0xff] %v341
                %v343 = vld [vmem:[%s299 + $0x1e8] sm:$0xff]
                %344 = vst [vmem:[%s300 + $0xa8] sm:$0xff] %v343
                %v345 = vld [vmem:[%s299 + $0x1f0] sm:$0xff]
                %346 = vst [vmem:[%s300 + $0xb0] sm:$0xff] %v345
                %v347 = vld [vmem:[%s299 + $0x1f8] sm:$0xff]
                %348 = vst [vmem:[%s300 + $0xb8] sm:$0xff] %v347
                %v349 = vld [vmem:[%s299 + $0x240] sm:$0xff]
                %350 = vst [vmem:[%s300 + $0xc0] sm:$0xff] %v349
                %v351 = vld [vmem:[%s299 + $0x248] sm:$0xff]
                %352 = vst [vmem:[%s300 + $0xc8] sm:$0xff] %v351
                %v353 = vld [vmem:[%s299 + $0x250] sm:$0xff]
                %354 = vst [vmem:[%s300 + $0xd0] sm:$0xff] %v353
                %v355 = vld [vmem:[%s299 + $0x258] sm:$0xff]
                %356 = vst [vmem:[%s300 + $0xd8] sm:$0xff] %v355
                %v357 = vld [vmem:[%s299 + $0x2a0] sm:$0xff]
                %358 = vst [vmem:[%s300 + $0xe0] sm:$0xff] %v357
                %v359 = vld [vmem:[%s299 + $0x2a8] sm:$0xff]
                %360 = vst [vmem:[%s300 + $0xe8] sm:$0xff] %v359
                %v361 = vld [vmem:[%s299 + $0x2b0] sm:$0xff]
                %362 = vst [vmem:[%s300 + $0xf0] sm:$0xff] %v361
                %v363 = vld [vmem:[%s299 + $0x2b8] sm:$0xff]
                %364 = vst [vmem:[%s300 + $0xf8] sm:$0xff] %v363
                %v365 = vld [vmem:[%s299 + $0x300] sm:$0xff]
                %366 = vst [vmem:[%s300 + $0x100] sm:$0xff] %v365
                %v367 = vld [vmem:[%s299 + $0x308] sm:$0xff]
                %368 = vst [vmem:[%s300 + $0x108] sm:$0xff] %v367
                %v369 = vld [vmem:[%s299 + $0x310] sm:$0xff]
                %370 = vst [vmem:[%s300 + $0x110] sm:$0xff] %v369
                %v371 = vld [vmem:[%s299 + $0x318] sm:$0xff]
                %372 = vst [vmem:[%s300 + $0x118] sm:$0xff] %v371
                %v373 = vld [vmem:[%s299 + $0x360] sm:$0xff]
                %374 = vst [vmem:[%s300 + $0x120] sm:$0xff] %v373
                %v375 = vld [vmem:[%s299 + $0x368] sm:$0xff]
                %376 = vst [vmem:[%s300 + $0x128] sm:$0xff] %v375
                %v377 = vld [vmem:[%s299 + $0x370] sm:$0xff]
                %378 = vst [vmem:[%s300 + $0x130] sm:$0xff] %v377
                %v379 = vld [vmem:[%s299 + $0x378] sm:$0xff]
                %380 = vst [vmem:[%s300 + $0x138] sm:$0xff] %v379
                %v381 = vld [vmem:[%s299 + $0x3c0] sm:$0xff]
                %382 = vst [vmem:[%s300 + $0x140] sm:$0xff] %v381
                %v383 = vld [vmem:[%s299 + $0x3c8] sm:$0xff]
                %384 = vst [vmem:[%s300 + $0x148] sm:$0xff] %v383
                %v385 = vld [vmem:[%s299 + $0x3d0] sm:$0xff]
                %386 = vst [vmem:[%s300 + $0x150] sm:$0xff] %v385
                %v387 = vld [vmem:[%s299 + $0x3d8] sm:$0xff]
                %388 = vst [vmem:[%s300 + $0x158] sm:$0xff] %v387
                %v389 = vld [vmem:[%s299 + $0x420] sm:$0xff]
                %390 = vst [vmem:[%s300 + $0x160] sm:$0xff] %v389
                %v391 = vld [vmem:[%s299 + $0x428] sm:$0xff]
                %392 = vst [vmem:[%s300 + $0x168] sm:$0xff] %v391
                %v393 = vld [vmem:[%s299 + $0x430] sm:$0xff]
                %394 = vst [vmem:[%s300 + $0x170] sm:$0xff] %v393
                %v395 = vld [vmem:[%s299 + $0x438] sm:$0xff]
                %396 = vst [vmem:[%s300 + $0x178] sm:$0xff] %v395
                %v397 = vld [vmem:[%s299 + $0x480] sm:$0xff]
                %398 = vst [vmem:[%s300 + $0x180] sm:$0xff] %v397
                %v399 = vld [vmem:[%s299 + $0x488] sm:$0xff]
                %400 = vst [vmem:[%s300 + $0x188] sm:$0xff] %v399
                %v401 = vld [vmem:[%s299 + $0x490] sm:$0xff]
                %402 = vst [vmem:[%s300 + $0x190] sm:$0xff] %v401
                %v403 = vld [vmem:[%s299 + $0x498] sm:$0xff]
                %404 = vst [vmem:[%s300 + $0x198] sm:$0xff] %v403
                %v405 = vld [vmem:[%s299 + $0x4e0] sm:$0xff]
                %406 = vst [vmem:[%s300 + $0x1a0] sm:$0xff] %v405
                %v407 = vld [vmem:[%s299 + $0x4e8] sm:$0xff]
                %408 = vst [vmem:[%s300 + $0x1a8] sm:$0xff] %v407
                %v409 = vld [vmem:[%s299 + $0x4f0] sm:$0xff]
                %410 = vst [vmem:[%s300 + $0x1b0] sm:$0xff] %v409
                %v411 = vld [vmem:[%s299 + $0x4f8] sm:$0xff]
                %412 = vst [vmem:[%s300 + $0x1b8] sm:$0xff] %v411
                %v413 = vld [vmem:[%s299 + $0x540] sm:$0xff]
                %414 = vst [vmem:[%s300 + $0x1c0] sm:$0xff] %v413
                %v415 = vld [vmem:[%s299 + $0x548] sm:$0xff]
                %416 = vst [vmem:[%s300 + $0x1c8] sm:$0xff] %v415
                %v417 = vld [vmem:[%s299 + $0x550] sm:$0xff]
                %418 = vst [vmem:[%s300 + $0x1d0] sm:$0xff] %v417
                %v419 = vld [vmem:[%s299 + $0x558] sm:$0xff]
                %420 = vst [vmem:[%s300 + $0x1d8] sm:$0xff] %v419
                %v421 = vld [vmem:[%s299 + $0x5a0] sm:$0xff]
                %422 = vst [vmem:[%s300 + $0x1e0] sm:$0xff] %v421
                %v423 = vld [vmem:[%s299 + $0x5a8] sm:$0xff]
                %424 = vst [vmem:[%s300 + $0x1e8] sm:$0xff] %v423
                %v425 = vld [vmem:[%s299 + $0x5b0] sm:$0xff]
                %426 = vst [vmem:[%s300 + $0x1f0] sm:$0xff] %v425
                %v427 = vld [vmem:[%s299 + $0x5b8] sm:$0xff]
                %428 = vst [vmem:[%s300 + $0x1f8] sm:$0xff] %v427
                %v429 = vld [vmem:[%s299 + $0x600] sm:$0xff]
                %430 = vst [vmem:[%s300 + $0x200] sm:$0xff] %v429
                %v431 = vld [vmem:[%s299 + $0x608] sm:$0xff]
                %432 = vst [vmem:[%s300 + $0x208] sm:$0xff] %v431
                %v433 = vld [vmem:[%s299 + $0x610] sm:$0xff]
                %434 = vst [vmem:[%s300 + $0x210] sm:$0xff] %v433
                %v435 = vld [vmem:[%s299 + $0x618] sm:$0xff]
                %436 = vst [vmem:[%s300 + $0x218] sm:$0xff] %v435
                %v437 = vld [vmem:[%s299 + $0x660] sm:$0xff]
                %438 = vst [vmem:[%s300 + $0x220] sm:$0xff] %v437
                %v439 = vld [vmem:[%s299 + $0x668] sm:$0xff]
                %440 = vst [vmem:[%s300 + $0x228] sm:$0xff] %v439
                %v441 = vld [vmem:[%s299 + $0x670] sm:$0xff]
                %442 = vst [vmem:[%s300 + $0x230] sm:$0xff] %v441
                %v443 = vld [vmem:[%s299 + $0x678] sm:$0xff]
                %444 = vst [vmem:[%s300 + $0x238] sm:$0xff] %v443
                %v445 = vld [vmem:[%s299 + $0x6c0] sm:$0xff]
                %446 = vst [vmem:[%s300 + $0x240] sm:$0xff] %v445
                %v447 = vld [vmem:[%s299 + $0x6c8] sm:$0xff]
                %448 = vst [vmem:[%s300 + $0x248] sm:$0xff] %v447
                %v449 = vld [vmem:[%s299 + $0x6d0] sm:$0xff]
                %450 = vst [vmem:[%s300 + $0x250] sm:$0xff] %v449
                %v451 = vld [vmem:[%s299 + $0x6d8] sm:$0xff]
                %452 = vst [vmem:[%s300 + $0x258] sm:$0xff] %v451
                %v453 = vld [vmem:[%s299 + $0x720] sm:$0xff]
                %454 = vst [vmem:[%s300 + $0x260] sm:$0xff] %v453
                %v455 = vld [vmem:[%s299 + $0x728] sm:$0xff]
                %456 = vst [vmem:[%s300 + $0x268] sm:$0xff] %v455
                %v457 = vld [vmem:[%s299 + $0x730] sm:$0xff]
                %458 = vst [vmem:[%s300 + $0x270] sm:$0xff] %v457
                %v459 = vld [vmem:[%s299 + $0x738] sm:$0xff]
                %460 = vst [vmem:[%s300 + $0x278] sm:$0xff] %v459
                %v461 = vld [vmem:[%s299 + $0x780] sm:$0xff]
                %462 = vst [vmem:[%s300 + $0x280] sm:$0xff] %v461
                %v463 = vld [vmem:[%s299 + $0x788] sm:$0xff]
                %464 = vst [vmem:[%s300 + $0x288] sm:$0xff] %v463
                %v465 = vld [vmem:[%s299 + $0x790] sm:$0xff]
                %466 = vst [vmem:[%s300 + $0x290] sm:$0xff] %v465
                %v467 = vld [vmem:[%s299 + $0x798] sm:$0xff]
                %468 = vst [vmem:[%s300 + $0x298] sm:$0xff] %v467
                %v469 = vld [vmem:[%s299 + $0x7e0] sm:$0xff]
                %470 = vst [vmem:[%s300 + $0x2a0] sm:$0xff] %v469
                %v471 = vld [vmem:[%s299 + $0x7e8] sm:$0xff]
                %472 = vst [vmem:[%s300 + $0x2a8] sm:$0xff] %v471
                %v473 = vld [vmem:[%s299 + $0x7f0] sm:$0xff]
                %474 = vst [vmem:[%s300 + $0x2b0] sm:$0xff] %v473
                %v475 = vld [vmem:[%s299 + $0x7f8] sm:$0xff]
                %476 = vst [vmem:[%s300 + $0x2b8] sm:$0xff] %v475
                %v477 = vld [vmem:[%s299 + $0x840] sm:$0xff]
                %478 = vst [vmem:[%s300 + $0x2c0] sm:$0xff] %v477
                %v479 = vld [vmem:[%s299 + $0x848] sm:$0xff]
                %480 = vst [vmem:[%s300 + $0x2c8] sm:$0xff] %v479
                %v481 = vld [vmem:[%s299 + $0x850] sm:$0xff]
                %482 = vst [vmem:[%s300 + $0x2d0] sm:$0xff] %v481
                %v483 = vld [vmem:[%s299 + $0x858] sm:$0xff]
                %484 = vst [vmem:[%s300 + $0x2d8] sm:$0xff] %v483
                %v485 = vld [vmem:[%s299 + $0x8a0] sm:$0xff]
                %486 = vst [vmem:[%s300 + $0x2e0] sm:$0xff] %v485
                %v487 = vld [vmem:[%s299 + $0x8a8] sm:$0xff]
                %488 = vst [vmem:[%s300 + $0x2e8] sm:$0xff] %v487
                %v489 = vld [vmem:[%s299 + $0x8b0] sm:$0xff]
                %490 = vst [vmem:[%s300 + $0x2f0] sm:$0xff] %v489
                %v491 = vld [vmem:[%s299 + $0x8b8] sm:$0xff]
                %492 = vst [vmem:[%s300 + $0x2f8] sm:$0xff] %v491
              $region65: #{_lambda_.1} parent=59 // loop_footer
                %s298 = sadd.s32 1, %s294
              $region66: #{_lambda_.1} parent=59 // loop_footer_branch
                %293 = sbr.rel target = $region62
              $region67: #{_lambda_.1} parent=59 // loop_exit
                _
            $region60: #{_lambda_.1} parent=55 // pred_fallthru
              _
            // Predicated region
            $region68: #{_lambda_.1} parent=55 // pred_check
              _
            $region69: #{_lambda_.1} parent=55 // pred_check_branch
              %494 = sbr.rel target = $region71
            $region70: #{_lambda_.1} parent=55 // pred_region
              _
            $region71: #{_lambda_.1} parent=55 // pred_fallthru
              _
          $region56: #{_lambda_.1} parent=51 // pred_fallthru
            _
          %495 = vnop
        $region52: #{_lambda_.1} parent=47 // pred_fallthru
          _
      $region48: #{_lambda_.1} parent=5 // pred_fallthru
        _
      %p496 = scmp.le.s32.totalorder 1, %s15
      %p497 = scmp.lt.s32.totalorder %s15, 4
      %p498 = pnand %p496, %p497
      %p499 = pneg %p498
      // Predicated region
      $region72: #{_lambda_.1} parent=5 // pred_check
        _
      $region73: #{_lambda_.1} parent=5 // pred_check_branch
        %501 = sbr.rel (%p498) target = $region75
      $region74: #{_lambda_.1} parent=5 // pred_region
        %s502 = ssub.s32 %s15, 1
        %s503 = sand.u32 %s28, 1
        %s504 = sand.u32 %s28, 1
        %s505 = smul.addr %s504, 768
        %s506 = scalar_lea.vmem [#allocation2], %s505
        // Predicated region
        $region76: #{_lambda_.1} parent=74 // pred_check
          %p507 = pneg %p41
        $region77: #{_lambda_.1} parent=74 // pred_check_branch
          %509 = sbr.rel (%p507) target = $region79
        $region78: #{_lambda_.1} parent=74 // pred_region
          _
        $region79: #{_lambda_.1} parent=74 // pred_fallthru
          _
        %s510 = sand.u32 %s28, 1
        %s511 = sand.u32 %s28, 1
        %s512 = smul.addr %s511, 768
        %s513 = scalar_lea.vmem [#allocation2], %s512
        %p514 = pneg %p41
        %p515 = pneg %p38
        %p516 = pneg %p62
        %p517 = pneg %p59
        %p518 = pneg %p83
        %p519 = pneg %p80
        %p520 = pneg %p104
        %p521 = pneg %p101
        %p522 = pneg %p125
        %p523 = pneg %p122
        %p524 = pneg %p146
        %p525 = pneg %p143
        %p526 = pneg %p167
        %p527 = pneg %p164
        %p528 = pneg %p188
        %p529 = pneg %p185
        %p530 = pneg %p209
        %p531 = pneg %p206
        %p532 = pneg %p235
        %p533 = pneg %p232
        %s534 = smul.u32 2, %s20
        %p535 = scmp.lt.s32.totalorder %s534, 5
        %s536 = scalar_select %p535, %s534, 5
        %s537 = smul.addr %s536, 8
        %s538 = scalar_lea.vmem %s9, %s537
        %s539 = smul.u32 2, %s20
        %s540 = smul.u32 2, %s20
        %p541 = scmp.lt.s32.totalorder %s540, 5
        %s542 = scalar_select %p541, %s540, 5
        %s543 = smul.addr %s542, 8
        %s544 = scalar_lea.vmem %s9, %s543
        %s545 = smul.u32 2, %s20
        %v546 = vld [vmem:[%s506] sm:$0xff]
        %v547 = vld [vmem:[%s506 + $0x8] sm:$0xff]
        %v548 = vld [vmem:[%s506 + $0x10] sm:$0xff]
        %v549 = vld [vmem:[%s506 + $0x18] sm:$0xff]
        %v550 = vld [vmem:[%s506 + $0x20] sm:$0xff]
        %v551 = vld [vmem:[%s506 + $0x28] sm:$0xff]
        %v552 = vld [vmem:[%s506 + $0x30] sm:$0xff]
        %v553 = vld [vmem:[%s506 + $0x38] sm:$0xff]
        %v554 = vld [vmem:[%s506 + $0x40] sm:$0xff]
        %v555 = vld [vmem:[%s506 + $0x48] sm:$0xff]
        %v556 = vld [vmem:[%s506 + $0x50] sm:$0xff]
        %v557 = vld [vmem:[%s506 + $0x58] sm:$0xff]
        %v558 = vld [vmem:[%s506 + $0x60] sm:$0xff]
        %v559 = vld [vmem:[%s506 + $0x68] sm:$0xff]
        %v560 = vld [vmem:[%s506 + $0x70] sm:$0xff]
        %v561 = vld [vmem:[%s506 + $0x78] sm:$0xff]
        %v562 = vld [vmem:[%s506 + $0x80] sm:$0xff]
        %v563 = vld [vmem:[%s506 + $0x88] sm:$0xff]
        %v564 = vld [vmem:[%s506 + $0x90] sm:$0xff]
        %v565 = vld [vmem:[%s506 + $0x98] sm:$0xff]
        %v566 = vld [vmem:[%s506 + $0xa0] sm:$0xff]
        %v567 = vld [vmem:[%s506 + $0xa8] sm:$0xff]
        %v568 = vld [vmem:[%s506 + $0xb0] sm:$0xff]
        %v569 = vld [vmem:[%s506 + $0xb8] sm:$0xff]
        %v570 = vld [vmem:[%s506 + $0xc0] sm:$0xff]
        %v571 = vld [vmem:[%s506 + $0xc8] sm:$0xff]
        %v572 = vld [vmem:[%s506 + $0xd0] sm:$0xff]
        %v573 = vld [vmem:[%s506 + $0xd8] sm:$0xff]
        %v574 = vld [vmem:[%s506 + $0xe0] sm:$0xff]
        %v575 = vld [vmem:[%s506 + $0xe8] sm:$0xff]
        %v576 = vld [vmem:[%s506 + $0xf0] sm:$0xff]
        %v577 = vld [vmem:[%s506 + $0xf8] sm:$0xff]
        %v578 = vld [vmem:[%s506 + $0x100] sm:$0xff]
        %v579 = vld [vmem:[%s506 + $0x108] sm:$0xff]
        %v580 = vld [vmem:[%s506 + $0x110] sm:$0xff]
        %v581 = vld [vmem:[%s506 + $0x118] sm:$0xff]
        %v582 = vld [vmem:[%s506 + $0x120] sm:$0xff]
        %v583 = vld [vmem:[%s506 + $0x128] sm:$0xff]
        %v584 = vld [vmem:[%s506 + $0x130] sm:$0xff]
        %v585 = vld [vmem:[%s506 + $0x138] sm:$0xff]
        %v586 = vld [vmem:[%s506 + $0x140] sm:$0xff]
        %v587 = vld [vmem:[%s506 + $0x148] sm:$0xff]
        %v588 = vld [vmem:[%s506 + $0x150] sm:$0xff]
        %v589 = vld [vmem:[%s506 + $0x158] sm:$0xff]
        %v590 = vld [vmem:[%s506 + $0x160] sm:$0xff]
        %v591 = vld [vmem:[%s506 + $0x168] sm:$0xff]
        %v592 = vld [vmem:[%s506 + $0x170] sm:$0xff]
        %v593 = vld [vmem:[%s506 + $0x178] sm:$0xff]
        %v594 = vld [vmem:[%s506 + $0x180] sm:$0xff]
        %v595 = vld [vmem:[%s506 + $0x188] sm:$0xff]
        %v596 = vld [vmem:[%s506 + $0x190] sm:$0xff]
        %v597 = vld [vmem:[%s506 + $0x198] sm:$0xff]
        %v598 = vld [vmem:[%s506 + $0x1a0] sm:$0xff]
        %v599 = vld [vmem:[%s506 + $0x1a8] sm:$0xff]
        %v600 = vld [vmem:[%s506 + $0x1b0] sm:$0xff]
        %v601 = vld [vmem:[%s506 + $0x1b8] sm:$0xff]
        %v602 = vld [vmem:[%s506 + $0x1c0] sm:$0xff]
        %v603 = vld [vmem:[%s506 + $0x1c8] sm:$0xff]
        %v604 = vld [vmem:[%s506 + $0x1d0] sm:$0xff]
        %v605 = vld [vmem:[%s506 + $0x1d8] sm:$0xff]
        %v606 = vld [vmem:[%s506 + $0x1e0] sm:$0xff]
        %v607 = vld [vmem:[%s506 + $0x1e8] sm:$0xff]
        %v608 = vld [vmem:[%s506 + $0x1f0] sm:$0xff]
        %v609 = vld [vmem:[%s506 + $0x1f8] sm:$0xff]
        %v610 = vld [vmem:[%s506 + $0x200] sm:$0xff]
        %v611 = vld [vmem:[%s506 + $0x208] sm:$0xff]
        %v612 = vld [vmem:[%s506 + $0x210] sm:$0xff]
        %v613 = vld [vmem:[%s506 + $0x218] sm:$0xff]
        %v614 = vld [vmem:[%s506 + $0x220] sm:$0xff]
        %v615 = vld [vmem:[%s506 + $0x228] sm:$0xff]
        %v616 = vld [vmem:[%s506 + $0x230] sm:$0xff]
        %v617 = vld [vmem:[%s506 + $0x238] sm:$0xff]
        %v618 = vld [vmem:[%s506 + $0x240] sm:$0xff]
        %v619 = vld [vmem:[%s506 + $0x248] sm:$0xff]
        %v620 = vld [vmem:[%s506 + $0x250] sm:$0xff]
        %v621 = vld [vmem:[%s506 + $0x258] sm:$0xff]
        %v622 = vld [vmem:[%s506 + $0x260] sm:$0xff]
        %v623 = vld [vmem:[%s506 + $0x268] sm:$0xff]
        %v624 = vld [vmem:[%s506 + $0x270] sm:$0xff]
        %v625 = vld [vmem:[%s506 + $0x278] sm:$0xff]
        %v626 = vld [vmem:[%s506 + $0x280] sm:$0xff]
        %v627 = vld [vmem:[%s506 + $0x288] sm:$0xff]
        %v628 = vld [vmem:[%s506 + $0x290] sm:$0xff]
        %v629 = vld [vmem:[%s506 + $0x298] sm:$0xff]
        %v630 = vld [vmem:[%s506 + $0x2a0] sm:$0xff]
        %v631 = vld [vmem:[%s506 + $0x2a8] sm:$0xff]
        %v632 = vld [vmem:[%s506 + $0x2b0] sm:$0xff]
        %v633 = vld [vmem:[%s506 + $0x2b8] sm:$0xff]
        %v634 = vld [vmem:[%s506 + $0x2c0] sm:$0xff]
        %v635 = vld [vmem:[%s506 + $0x2c8] sm:$0xff]
        %v636 = vld [vmem:[%s506 + $0x2d0] sm:$0xff]
        %v637 = vld [vmem:[%s506 + $0x2d8] sm:$0xff]
        %v638 = vld [vmem:[%s506 + $0x2e0] sm:$0xff]
        %v639 = vld [vmem:[%s506 + $0x2e8] sm:$0xff]
        %v640 = vld [vmem:[%s506 + $0x2f0] sm:$0xff]
        %v641 = vld [vmem:[%s506 + $0x2f8] sm:$0xff]
        %v642 = vld [vmem:[%s1] sm:$0xff]
        %v643 = vld [vmem:[%s1 + $0x8] sm:$0xff]
        %v644 = vld [vmem:[%s1 + $0x10] sm:$0xff]
        %v645 = vld [vmem:[%s1 + $0x18] sm:$0xff]
        %v646 = vld [vmem:[%s1 + $0x20] sm:$0xff]
        %v647 = vld [vmem:[%s1 + $0x28] sm:$0xff]
        %v648 = vld [vmem:[%s1 + $0x30] sm:$0xff]
        %v649 = vld [vmem:[%s1 + $0x38] sm:$0xff]
        %v650 = vld [vmem:[%s1 + $0x40] sm:$0xff]
        %v651 = vld [vmem:[%s1 + $0x48] sm:$0xff]
        %v652 = vld [vmem:[%s1 + $0x50] sm:$0xff]
        %v653 = vld [vmem:[%s1 + $0x58] sm:$0xff]
        %v654 = vld [vmem:[%s1 + $0x60] sm:$0xff]
        %v655 = vld [vmem:[%s1 + $0x68] sm:$0xff]
        %v656 = vld [vmem:[%s1 + $0x70] sm:$0xff]
        %v657 = vld [vmem:[%s1 + $0x78] sm:$0xff]
        %v658 = vld [vmem:[%s1 + $0x80] sm:$0xff]
        %v659 = vld [vmem:[%s1 + $0x88] sm:$0xff]
        %v660 = vld [vmem:[%s1 + $0x90] sm:$0xff]
        %v661 = vld [vmem:[%s1 + $0x98] sm:$0xff]
        %v662 = vld [vmem:[%s1 + $0xa0] sm:$0xff]
        %v663 = vld [vmem:[%s1 + $0xa8] sm:$0xff]
        %v664 = vld [vmem:[%s1 + $0xb0] sm:$0xff]
        %v665 = vld [vmem:[%s1 + $0xb8] sm:$0xff]
        %v666 = vld [vmem:[%s1 + $0xc0] sm:$0xff]
        %v667 = vld [vmem:[%s1 + $0xc8] sm:$0xff]
        %v668 = vld [vmem:[%s1 + $0xd0] sm:$0xff]
        %v669 = vld [vmem:[%s1 + $0xd8] sm:$0xff]
        %v670 = vld [vmem:[%s1 + $0xe0] sm:$0xff]
        %v671 = vld [vmem:[%s1 + $0xe8] sm:$0xff]
        %v672 = vld [vmem:[%s1 + $0xf0] sm:$0xff]
        %v673 = vld [vmem:[%s1 + $0xf8] sm:$0xff]
        %v674 = vld [vmem:[%s1 + $0x100] sm:$0xff]
        %v675 = vld [vmem:[%s1 + $0x108] sm:$0xff]
        %v676 = vld [vmem:[%s1 + $0x110] sm:$0xff]
        %v677 = vld [vmem:[%s1 + $0x118] sm:$0xff]
        %v678 = vld [vmem:[%s1 + $0x120] sm:$0xff]
        %v679 = vld [vmem:[%s1 + $0x128] sm:$0xff]
        %v680 = vld [vmem:[%s1 + $0x130] sm:$0xff]
        %v681 = vld [vmem:[%s1 + $0x138] sm:$0xff]
        %v682 = vld [vmem:[%s1 + $0x140] sm:$0xff]
        %v683 = vld [vmem:[%s1 + $0x148] sm:$0xff]
        %v684 = vld [vmem:[%s1 + $0x150] sm:$0xff]
        %v685 = vld [vmem:[%s1 + $0x158] sm:$0xff]
        %v686 = vld [vmem:[%s1 + $0x160] sm:$0xff]
        %v687 = vld [vmem:[%s1 + $0x168] sm:$0xff]
        %v688 = vld [vmem:[%s1 + $0x170] sm:$0xff]
        %v689 = vld [vmem:[%s1 + $0x178] sm:$0xff]
        %v690 = vld [vmem:[%s1 + $0x180] sm:$0xff]
        %v691 = vld [vmem:[%s1 + $0x188] sm:$0xff]
        %v692 = vld [vmem:[%s1 + $0x190] sm:$0xff]
        %v693 = vld [vmem:[%s1 + $0x198] sm:$0xff]
        %v694 = vld [vmem:[%s1 + $0x1a0] sm:$0xff]
        %v695 = vld [vmem:[%s1 + $0x1a8] sm:$0xff]
        %v696 = vld [vmem:[%s1 + $0x1b0] sm:$0xff]
        %v697 = vld [vmem:[%s1 + $0x1b8] sm:$0xff]
        %v698 = vld [vmem:[%s1 + $0x1c0] sm:$0xff]
        %v699 = vld [vmem:[%s1 + $0x1c8] sm:$0xff]
        %v700 = vld [vmem:[%s1 + $0x1d0] sm:$0xff]
        %v701 = vld [vmem:[%s1 + $0x1d8] sm:$0xff]
        %v702 = vld [vmem:[%s1 + $0x1e0] sm:$0xff]
        %v703 = vld [vmem:[%s1 + $0x1e8] sm:$0xff]
        %v704 = vld [vmem:[%s1 + $0x1f0] sm:$0xff]
        %v705 = vld [vmem:[%s1 + $0x1f8] sm:$0xff]
        %v706 = vld [vmem:[%s1 + $0x200] sm:$0xff]
        %v707 = vld [vmem:[%s1 + $0x208] sm:$0xff]
        %v708 = vld [vmem:[%s1 + $0x210] sm:$0xff]
        %v709 = vld [vmem:[%s1 + $0x218] sm:$0xff]
        %v710 = vld [vmem:[%s1 + $0x220] sm:$0xf]
        %v711 = vld [vmem:[%s1 + $0x228] sm:$0xf]
        %v712 = vld [vmem:[%s1 + $0x230] sm:$0xf]
        %v713 = vld [vmem:[%s1 + $0x238] sm:$0xf]
        %v714 = vld [vmem:[%s2] sm:$0xf]
        %v716 = vlaneseq
        %v717 = vshrl.u32 %v716, 7
        %v718 = vsub.s32 0, %v717
        %v719 = vrot.slane %v714, %v718
        %v720 = vlaneseq
        %v721 = vshrl.u32 %v720, 7
        %v722 = vsub.s32 1, %v721
        %v723 = vrot.slane %v714, %v722
        %v724 = vlaneseq
        %v725 = vshrl.u32 %v724, 7
        %v726 = vsub.s32 2, %v725
        %v727 = vrot.slane %v714, %v726
        %v728 = vlaneseq
        %v729 = vshrl.u32 %v728, 7
        %v730 = vsub.s32 3, %v729
        %v731 = vrot.slane %v714, %v730
        %vm736 = vcmask 97280
        %v738 = vsel %vm736, %v547, 0
        %v741 = vsel %vm736, %v549, 0
        %v744 = vsel %vm736, %v551, 0
        %v747 = vsel %vm736, %v553, 0
        %v750 = vsel %vm736, %v555, 0
        %v753 = vsel %vm736, %v557, 0
        %v756 = vsel %vm736, %v559, 0
        %v759 = vsel %vm736, %v561, 0
        %v762 = vsel %vm736, %v563, 0
        %v765 = vsel %vm736, %v565, 0
        %v768 = vsel %vm736, %v567, 0
        %v771 = vsel %vm736, %v569, 0
        %v774 = vsel %vm736, %v571, 0
        %v777 = vsel %vm736, %v573, 0
        %v780 = vsel %vm736, %v575, 0
        %v783 = vsel %vm736, %v577, 0
        %v786 = vsel %vm736, %v579, 0
        %v789 = vsel %vm736, %v581, 0
        %v792 = vsel %vm736, %v583, 0
        %v795 = vsel %vm736, %v585, 0
        %v798 = vsel %vm736, %v587, 0
        %v801 = vsel %vm736, %v589, 0
        %v804 = vsel %vm736, %v591, 0
        %v807 = vsel %vm736, %v593, 0
        %v810 = vsel %vm736, %v595, 0
        %v813 = vsel %vm736, %v597, 0
        %v816 = vsel %vm736, %v599, 0
        %v819 = vsel %vm736, %v601, 0
        %v822 = vsel %vm736, %v603, 0
        %v825 = vsel %vm736, %v605, 0
        %v828 = vsel %vm736, %v607, 0
        %v831 = vsel %vm736, %v609, 0
        %v834 = vsel %vm736, %v611, 0
        %v837 = vsel %vm736, %v613, 0
        %v840 = vsel %vm736, %v615, 0
        %v843 = vsel %vm736, %v617, 0
        %v846 = vsel %vm736, %v619, 0
        %v849 = vsel %vm736, %v621, 0
        %v852 = vsel %vm736, %v623, 0
        %v855 = vsel %vm736, %v625, 0
        %v858 = vsel %vm736, %v627, 0
        %v861 = vsel %vm736, %v629, 0
        %v864 = vsel %vm736, %v631, 0
        %v867 = vsel %vm736, %v633, 0
        %v870 = vsel %vm736, %v635, 0
        %v873 = vsel %vm736, %v637, 0
        %v876 = vsel %vm736, %v639, 0
        %v879 = vsel %vm736, %v641, 0
        %vm881 = vcmask 1043456
        %v883 = vsel %vm881, %v710, 0
        %v886 = vsel %vm881, %v711, 0
        %v889 = vsel %vm881, %v712, 0
        %v892 = vsel %vm881, %v713, 0
        %894 = vmatprep.subr.mxu0 %v643
        %895 = vmatpush1.msra.mxu0 %v642
        %896 = vmatprep.subr.mxu0 %v647
        %897 = vmatpush1.msra.mxu0 %v646
        %898 = vmatprep.subr.mxu0 %v651
        %899 = vmatpush1.msra.mxu0 %v650
        %900 = vmatprep.subr.mxu0 %v655
        %901 = vmatpush1.msra.mxu0 %v654
        %902 = vmatprep.subr.mxu0 %v659
        %903 = vmatpush1.msra.mxu0 %v658
        %904 = vmatprep.subr.mxu0 %v663
        %905 = vmatpush1.msra.mxu0 %v662
        %906 = vmatprep.subr.mxu0 %v667
        %907 = vmatpush1.msra.mxu0 %v666
        %908 = vmatprep.subr.mxu0 %v671
        %909 = vmatpush1.msra.mxu0 %v670
        %910 = vmatprep.subr.mxu0 %v675
        %911 = vmatpush1.msra.mxu0 %v674
        %912 = vmatprep.subr.mxu0 %v679
        %913 = vmatpush1.msra.mxu0 %v678
        %914 = vmatprep.subr.mxu0 %v683
        %915 = vmatpush1.msra.mxu0 %v682
        %916 = vmatprep.subr.mxu0 %v687
        %917 = vmatpush1.msra.mxu0 %v686
        %918 = vmatprep.subr.mxu0 %v691
        %919 = vmatpush1.msra.mxu0 %v690
        %920 = vmatprep.subr.mxu0 %v695
        %921 = vmatpush1.msra.mxu0 %v694
        %922 = vmatprep.subr.mxu0 %v699
        %923 = vmatpush1.msra.mxu0 %v698
        %924 = vmatprep.subr.mxu0 %v703
        %925 = vmatpush1.msra.mxu0 %v702
        %926 = vmatprep.subr.mxu0 %v707
        %927 = vmatpush1.msra.mxu0 %v706
        %928 = vmatprep.subr.mxu0 %v886
        %929 = vmatpush1.msra.mxu0 %v883
        %930 = vmatprep.subr.mxu0 0.0
        %931 = vmatpush1.msra.mxu0 0.0
        %932 = vmatprep.subr.mxu0 0.0
        %933 = vmatpush1.msra.mxu0 0.0
        %934 = vmatprep.subr.mxu0 0.0
        %935 = vmatpush1.msra.mxu0 0.0
        %936 = vmatprep.subr.mxu0 0.0
        %937 = vmatpush1.msra.mxu0 0.0
        %938 = vmatprep.subr.mxu0 0.0
        %939 = vmatpush1.msra.mxu0 0.0
        %940 = vmatprep.subr.mxu0 0.0
        %941 = vmatpush1.msra.mxu0 0.0
        %942 = vmatprep.subr.mxu0 0.0
        %943 = vmatpush1.msra.mxu0 0.0
        %944 = vmatprep.subr.mxu0 0.0
        %945 = vmatpush1.msra.mxu0 0.0
        %946 = vmatprep.subr.mxu0 0.0
        %947 = vmatpush1.msra.mxu0 0.0
        %948 = vmatprep.subr.mxu0 0.0
        %949 = vmatpush1.msra.mxu0 0.0
        %950 = vmatprep.subr.mxu0 0.0
        %951 = vmatpush1.msra.mxu0 0.0
        %952 = vmatprep.subr.mxu0 0.0
        %953 = vmatpush1.msra.mxu0 0.0
        %954 = vmatprep.subr.mxu0 0.0
        %955 = vmatpush1.msra.mxu0 0.0
        %956 = vmatprep.subr.mxu0 0.0
        %957 = vmatpush1.msra.mxu0 0.0
        %958 = vmatprep.mubr.f32.mxu0 %v738
        %959 = vmatmul.mubr.f32.gmra.mrb[0].mxu0 %v546
        %v960 = vpop.f32.mrb[0].mxu0
        %v961 = vadd.f32 %v719, %v960
        %v962 = vpop.f32.mrb[0].mxu0
        %v963 = vadd.f32 %v723, %v962
        %964 = vmatprep.mubr.f32.mxu0 %v741
        %965 = vmatmul.mubr.f32.gmra.mrb[0].mxu0 %v548
        %v966 = vpop.f32.mrb[0].mxu0
        %v967 = vadd.f32 %v719, %v966
        %v968 = vpop.f32.mrb[0].mxu0
        %v969 = vadd.f32 %v723, %v968
        %970 = vmatprep.mubr.f32.mxu0 %v744
        %971 = vmatmul.mubr.f32.gmra.mrb[0].mxu0 %v550
        %v972 = vpop.f32.mrb[0].mxu0
        %v973 = vadd.f32 %v719, %v972
        %v974 = vpop.f32.mrb[0].mxu0
        %v975 = vadd.f32 %v723, %v974
        %976 = vmatprep.mubr.f32.mxu0 %v747
        %977 = vmatmul.mubr.f32.gmra.mrb[0].mxu0 %v552
        %v978 = vpop.f32.mrb[0].mxu0
        %v979 = vadd.f32 %v719, %v978
        %v980 = vpop.f32.mrb[0].mxu0
        %v981 = vadd.f32 %v723, %v980
        %982 = vmatprep.mubr.f32.mxu0 %v750
        %983 = vmatmul.mubr.f32.gmra.mrb[0].mxu0 %v554
        %v984 = vpop.f32.mrb[0].mxu0
        %v985 = vadd.f32 %v719, %v984
        %v986 = vpop.f32.mrb[0].mxu0
        %v987 = vadd.f32 %v723, %v986
        %988 = vmatprep.mubr.f32.mxu0 %v753
        %989 = vmatmul.mubr.f32.gmra.mrb[0].mxu0 %v556
        %v990 = vpop.f32.mrb[0].mxu0
        %v991 = vadd.f32 %v719, %v990
        %v992 = vpop.f32.mrb[0].mxu0
        %v993 = vadd.f32 %v723, %v992
        %994 = vmatprep.mubr.f32.mxu0 %v756
        %995 = vmatmul.mubr.f32.gmra.mrb[0].mxu0 %v558
        %v996 = vpop.f32.mrb[0].mxu0
        %v997 = vadd.f32 %v719, %v996
        %v998 = vpop.f32.mrb[0].mxu0
        %v999 = vadd.f32 %v723, %v998
        %1000 = vmatprep.mubr.f32.mxu0 %v759
        %1001 = vmatmul.mubr.f32.gmra.mrb[0].mxu0 %v560
        %v1002 = vpop.f32.mrb[0].mxu0
        %v1003 = vadd.f32 %v719, %v1002
        %v1004 = vpop.f32.mrb[0].mxu0
        %v1005 = vadd.f32 %v723, %v1004
        %1006 = vmatprep.mubr.f32.mxu0 %v762
        %1007 = vmatmul.mubr.f32.gmra.mrb[0].mxu0 %v562
        %v1008 = vpop.f32.mrb[0].mxu0
        %v1009 = vadd.f32 %v719, %v1008
        %v1010 = vpop.f32.mrb[0].mxu0
        %v1011 = vadd.f32 %v723, %v1010
        %1012 = vmatprep.mubr.f32.mxu0 %v765
        %1013 = vmatmul.mubr.f32.gmra.mrb[0].mxu0 %v564
        %v1014 = vpop.f32.mrb[0].mxu0
        %v1015 = vadd.f32 %v719, %v1014
        %v1016 = vpop.f32.mrb[0].mxu0
        %v1017 = vadd.f32 %v723, %v1016
        %1018 = vmatprep.mubr.f32.mxu0 %v768
        %1019 = vmatmul.mubr.f32.gmra.mrb[0].mxu0 %v566
        %v1020 = vpop.f32.mrb[0].mxu0
        %v1021 = vadd.f32 %v719, %v1020
        %v1022 = vpop.f32.mrb[0].mxu0
        %v1023 = vadd.f32 %v723, %v1022
        %1024 = vmatprep.mubr.f32.mxu0 %v771
        %1025 = vmatmul.mubr.f32.gmra.mrb[0].mxu0 %v568
        %v1026 = vpop.f32.mrb[0].mxu0
        %v1027 = vadd.f32 %v719, %v1026
        %v1028 = vpop.f32.mrb[0].mxu0
        %v1029 = vadd.f32 %v723, %v1028
        %1030 = vmatprep.mubr.f32.mxu0 %v774
        %1031 = vmatmul.mubr.f32.gmra.mrb[0].mxu0 %v570
        %v1032 = vpop.f32.mrb[0].mxu0
        %v1033 = vadd.f32 %v719, %v1032
        %v1034 = vpop.f32.mrb[0].mxu0
        %v1035 = vadd.f32 %v723, %v1034
        %1036 = vmatprep.mubr.f32.mxu0 %v777
        %1037 = vmatmul.mubr.f32.gmra.mrb[0].mxu0 %v572
        %v1038 = vpop.f32.mrb[0].mxu0
        %v1039 = vadd.f32 %v719, %v1038
        %v1040 = vpop.f32.mrb[0].mxu0
        %v1041 = vadd.f32 %v723, %v1040
        %1042 = vmatprep.mubr.f32.mxu0 %v780
        %1043 = vmatmul.mubr.f32.gmra.mrb[0].mxu0 %v574
        %v1044 = vpop.f32.mrb[0].mxu0
        %v1045 = vadd.f32 %v719, %v1044
        %v1046 = vpop.f32.mrb[0].mxu0
        %v1047 = vadd.f32 %v723, %v1046
        %1048 = vmatprep.mubr.f32.mxu0 %v783
        %1049 = vmatmul.mubr.f32.gmra.mrb[0].mxu0 %v576
        %v1050 = vpop.f32.mrb[0].mxu0
        %v1051 = vadd.f32 %v719, %v1050
        %v1052 = vpop.f32.mrb[0].mxu0
        %v1053 = vadd.f32 %v723, %v1052
        %1054 = vmatprep.mubr.f32.mxu0 %v786
        %1055 = vmatmul.mubr.f32.gmra.mrb[0].mxu0 %v578
        %v1056 = vpop.f32.mrb[0].mxu0
        %v1057 = vadd.f32 %v719, %v1056
        %v1058 = vpop.f32.mrb[0].mxu0
        %v1059 = vadd.f32 %v723, %v1058
        %1060 = vmatprep.mubr.f32.mxu0 %v789
        %1061 = vmatmul.mubr.f32.gmra.mrb[0].mxu0 %v580
        %v1062 = vpop.f32.mrb[0].mxu0
        %v1063 = vadd.f32 %v719, %v1062
        %v1064 = vpop.f32.mrb[0].mxu0
        %v1065 = vadd.f32 %v723, %v1064
        %1066 = vmatprep.mubr.f32.mxu0 %v792
        %1067 = vmatmul.mubr.f32.gmra.mrb[0].mxu0 %v582
        %v1068 = vpop.f32.mrb[0].mxu0
        %v1069 = vadd.f32 %v719, %v1068
        %v1070 = vpop.f32.mrb[0].mxu0
        %v1071 = vadd.f32 %v723, %v1070
        %1072 = vmatprep.mubr.f32.mxu0 %v795
        %1073 = vmatmul.mubr.f32.gmra.mrb[0].mxu0 %v584
        %v1074 = vpop.f32.mrb[0].mxu0
        %v1075 = vadd.f32 %v719, %v1074
        %v1076 = vpop.f32.mrb[0].mxu0
        %v1077 = vadd.f32 %v723, %v1076
        %1078 = vmatprep.mubr.f32.mxu0 %v798
        %1079 = vmatmul.mubr.f32.gmra.mrb[0].mxu0 %v586
        %v1080 = vpop.f32.mrb[0].mxu0
        %v1081 = vadd.f32 %v719, %v1080
        %v1082 = vpop.f32.mrb[0].mxu0
        %v1083 = vadd.f32 %v723, %v1082
        %1084 = vmatprep.mubr.f32.mxu0 %v801
        %1085 = vmatmul.mubr.f32.gmra.mrb[0].mxu0 %v588
        %v1086 = vpop.f32.mrb[0].mxu0
        %v1087 = vadd.f32 %v719, %v1086
        %v1088 = vpop.f32.mrb[0].mxu0
        %v1089 = vadd.f32 %v723, %v1088
        %1090 = vmatprep.mubr.f32.mxu0 %v804
        %1091 = vmatmul.mubr.f32.gmra.mrb[0].mxu0 %v590
        %v1092 = vpop.f32.mrb[0].mxu0
        %v1093 = vadd.f32 %v719, %v1092
        %v1094 = vpop.f32.mrb[0].mxu0
        %v1095 = vadd.f32 %v723, %v1094
        %1096 = vmatprep.mubr.f32.mxu0 %v807
        %1097 = vmatmul.mubr.f32.gmra.mrb[0].mxu0 %v592
        %v1098 = vpop.f32.mrb[0].mxu0
        %v1099 = vadd.f32 %v719, %v1098
        %v1100 = vpop.f32.mrb[0].mxu0
        %v1101 = vadd.f32 %v723, %v1100
        %1102 = vmatprep.mubr.f32.mxu0 %v810
        %1103 = vmatmul.mubr.f32.gmra.mrb[0].mxu0 %v594
        %v1104 = vpop.f32.mrb[0].mxu0
        %v1105 = vadd.f32 %v719, %v1104
        %v1106 = vpop.f32.mrb[0].mxu0
        %v1107 = vadd.f32 %v723, %v1106
        %1108 = vmatprep.mubr.f32.mxu0 %v813
        %1109 = vmatmul.mubr.f32.gmra.mrb[0].mxu0 %v596
        %v1110 = vpop.f32.mrb[0].mxu0
        %v1111 = vadd.f32 %v719, %v1110
        %v1112 = vpop.f32.mrb[0].mxu0
        %v1113 = vadd.f32 %v723, %v1112
        %1114 = vmatprep.mubr.f32.mxu0 %v816
        %1115 = vmatmul.mubr.f32.gmra.mrb[0].mxu0 %v598
        %v1116 = vpop.f32.mrb[0].mxu0
        %v1117 = vadd.f32 %v719, %v1116
        %v1118 = vpop.f32.mrb[0].mxu0
        %v1119 = vadd.f32 %v723, %v1118
        %1120 = vmatprep.mubr.f32.mxu0 %v819
        %1121 = vmatmul.mubr.f32.gmra.mrb[0].mxu0 %v600
        %v1122 = vpop.f32.mrb[0].mxu0
        %v1123 = vadd.f32 %v719, %v1122
        %v1124 = vpop.f32.mrb[0].mxu0
        %v1125 = vadd.f32 %v723, %v1124
        %1126 = vmatprep.mubr.f32.mxu0 %v822
        %1127 = vmatmul.mubr.f32.gmra.mrb[0].mxu0 %v602
        %v1128 = vpop.f32.mrb[0].mxu0
        %v1129 = vadd.f32 %v719, %v1128
        %v1130 = vpop.f32.mrb[0].mxu0
        %v1131 = vadd.f32 %v723, %v1130
        %1132 = vmatprep.mubr.f32.mxu0 %v825
        %1133 = vmatmul.mubr.f32.gmra.mrb[0].mxu0 %v604
        %v1134 = vpop.f32.mrb[0].mxu0
        %v1135 = vadd.f32 %v719, %v1134
        %v1136 = vpop.f32.mrb[0].mxu0
        %v1137 = vadd.f32 %v723, %v1136
        %1138 = vmatprep.mubr.f32.mxu0 %v828
        %1139 = vmatmul.mubr.f32.gmra.mrb[0].mxu0 %v606
        %v1140 = vpop.f32.mrb[0].mxu0
        %v1141 = vadd.f32 %v719, %v1140
        %v1142 = vpop.f32.mrb[0].mxu0
        %v1143 = vadd.f32 %v723, %v1142
        %1144 = vmatprep.mubr.f32.mxu0 %v831
        %1145 = vmatmul.mubr.f32.gmra.mrb[0].mxu0 %v608
        %v1146 = vpop.f32.mrb[0].mxu0
        %v1147 = vadd.f32 %v719, %v1146
        %v1148 = vpop.f32.mrb[0].mxu0
        %v1149 = vadd.f32 %v723, %v1148
        %1150 = vmatprep.mubr.f32.mxu0 %v834
        %1151 = vmatmul.mubr.f32.gmra.mrb[0].mxu0 %v610
        %v1152 = vpop.f32.mrb[0].mxu0
        %v1153 = vadd.f32 %v719, %v1152
        %v1154 = vpop.f32.mrb[0].mxu0
        %v1155 = vadd.f32 %v723, %v1154
        %1156 = vmatprep.mubr.f32.mxu0 %v837
        %1157 = vmatmul.mubr.f32.gmra.mrb[0].mxu0 %v612
        %v1158 = vpop.f32.mrb[0].mxu0
        %v1159 = vadd.f32 %v719, %v1158
        %v1160 = vpop.f32.mrb[0].mxu0
        %v1161 = vadd.f32 %v723, %v1160
        %1162 = vmatprep.mubr.f32.mxu0 %v840
        %1163 = vmatmul.mubr.f32.gmra.mrb[0].mxu0 %v614
        %v1164 = vpop.f32.mrb[0].mxu0
        %v1165 = vadd.f32 %v719, %v1164
        %v1166 = vpop.f32.mrb[0].mxu0
        %v1167 = vadd.f32 %v723, %v1166
        %1168 = vmatprep.mubr.f32.mxu0 %v843
        %1169 = vmatmul.mubr.f32.gmra.mrb[0].mxu0 %v616
        %v1170 = vpop.f32.mrb[0].mxu0
        %v1171 = vadd.f32 %v719, %v1170
        %v1172 = vpop.f32.mrb[0].mxu0
        %v1173 = vadd.f32 %v723, %v1172
        %1174 = vmatprep.mubr.f32.mxu0 %v846
        %1175 = vmatmul.mubr.f32.gmra.mrb[0].mxu0 %v618
        %v1176 = vpop.f32.mrb[0].mxu0
        %v1177 = vadd.f32 %v719, %v1176
        %v1178 = vpop.f32.mrb[0].mxu0
        %v1179 = vadd.f32 %v723, %v1178
        %1180 = vmatprep.mubr.f32.mxu0 %v849
        %1181 = vmatmul.mubr.f32.gmra.mrb[0].mxu0 %v620
        %v1182 = vpop.f32.mrb[0].mxu0
        %v1183 = vadd.f32 %v719, %v1182
        %v1184 = vpop.f32.mrb[0].mxu0
        %v1185 = vadd.f32 %v723, %v1184
        %1186 = vmatprep.mubr.f32.mxu0 %v852
        %1187 = vmatmul.mubr.f32.gmra.mrb[0].mxu0 %v622
        %v1188 = vpop.f32.mrb[0].mxu0
        %v1189 = vadd.f32 %v719, %v1188
        %v1190 = vpop.f32.mrb[0].mxu0
        %v1191 = vadd.f32 %v723, %v1190
        %1192 = vmatprep.mubr.f32.mxu0 %v855
        %1193 = vmatmul.mubr.f32.gmra.mrb[0].mxu0 %v624
        %v1194 = vpop.f32.mrb[0].mxu0
        %v1195 = vadd.f32 %v719, %v1194
        %v1196 = vpop.f32.mrb[0].mxu0
        %v1197 = vadd.f32 %v723, %v1196
        %1198 = vmatprep.mubr.f32.mxu0 %v858
        %1199 = vmatmul.mubr.f32.gmra.mrb[0].mxu0 %v626
        %v1200 = vpop.f32.mrb[0].mxu0
        %v1201 = vadd.f32 %v719, %v1200
        %v1202 = vpop.f32.mrb[0].mxu0
        %v1203 = vadd.f32 %v723, %v1202
        %1204 = vmatprep.mubr.f32.mxu0 %v861
        %1205 = vmatmul.mubr.f32.gmra.mrb[0].mxu0 %v628
        %v1206 = vpop.f32.mrb[0].mxu0
        %v1207 = vadd.f32 %v719, %v1206
        %v1208 = vpop.f32.mrb[0].mxu0
        %v1209 = vadd.f32 %v723, %v1208
        %1210 = vmatprep.mubr.f32.mxu0 %v864
        %1211 = vmatmul.mubr.f32.gmra.mrb[0].mxu0 %v630
        %v1212 = vpop.f32.mrb[0].mxu0
        %v1213 = vadd.f32 %v719, %v1212
        %v1214 = vpop.f32.mrb[0].mxu0
        %v1215 = vadd.f32 %v723, %v1214
        %1216 = vmatprep.mubr.f32.mxu0 %v867
        %1217 = vmatmul.mubr.f32.gmra.mrb[0].mxu0 %v632
        %v1218 = vpop.f32.mrb[0].mxu0
        %v1219 = vadd.f32 %v719, %v1218
        %v1220 = vpop.f32.mrb[0].mxu0
        %v1221 = vadd.f32 %v723, %v1220
        %1222 = vmatprep.mubr.f32.mxu0 %v870
        %1223 = vmatmul.mubr.f32.gmra.mrb[0].mxu0 %v634
        %v1224 = vpop.f32.mrb[0].mxu0
        %v1225 = vadd.f32 %v719, %v1224
        %v1226 = vpop.f32.mrb[0].mxu0
        %v1227 = vadd.f32 %v723, %v1226
        %1228 = vmatprep.mubr.f32.mxu0 %v873
        %1229 = vmatmul.mubr.f32.gmra.mrb[0].mxu0 %v636
        %v1230 = vpop.f32.mrb[0].mxu0
        %v1231 = vadd.f32 %v719, %v1230
        %v1232 = vpop.f32.mrb[0].mxu0
        %v1233 = vadd.f32 %v723, %v1232
        %1234 = vmatprep.mubr.f32.mxu0 %v876
        %1235 = vmatmul.mubr.f32.gmra.mrb[0].mxu0 %v638
        %v1236 = vpop.f32.mrb[0].mxu0
        %v1237 = vadd.f32 %v719, %v1236
        %v1238 = vpop.f32.mrb[0].mxu0
        %v1239 = vadd.f32 %v723, %v1238
        %1240 = vmatprep.mubr.f32.mxu0 %v879
        %1241 = vmatmul.mubr.f32.gmra.mrb[0].mxu0 %v640
        %v1242 = vpop.f32.mrb[0].mxu0
        %v1243 = vadd.f32 %v719, %v1242
        %v1244 = vpop.f32.mrb[0].mxu0
        %v1245 = vadd.f32 %v723, %v1244
        %1246 = vdwg.mxu0
        %1247 = vmatprep.subr.mxu0 %v645
        %1248 = vmatpush1.msra.mxu0 %v644
        %1249 = vmatprep.subr.mxu0 %v649
        %1250 = vmatpush1.msra.mxu0 %v648
        %1251 = vmatprep.subr.mxu0 %v653
        %1252 = vmatpush1.msra.mxu0 %v652
        %1253 = vmatprep.subr.mxu0 %v657
        %1254 = vmatpush1.msra.mxu0 %v656
        %1255 = vmatprep.subr.mxu0 %v661
        %1256 = vmatpush1.msra.mxu0 %v660
        %1257 = vmatprep.subr.mxu0 %v665
        %1258 = vmatpush1.msra.mxu0 %v664
        %1259 = vmatprep.subr.mxu0 %v669
        %1260 = vmatpush1.msra.mxu0 %v668
        %1261 = vmatprep.subr.mxu0 %v673
        %1262 = vmatpush1.msra.mxu0 %v672
        %1263 = vmatprep.subr.mxu0 %v677
        %1264 = vmatpush1.msra.mxu0 %v676
        %1265 = vmatprep.subr.mxu0 %v681
        %1266 = vmatpush1.msra.mxu0 %v680
        %1267 = vmatprep.subr.mxu0 %v685
        %1268 = vmatpush1.msra.mxu0 %v684
        %1269 = vmatprep.subr.mxu0 %v689
        %1270 = vmatpush1.msra.mxu0 %v688
        %1271 = vmatprep.subr.mxu0 %v693
        %1272 = vmatpush1.msra.mxu0 %v692
        %1273 = vmatprep.subr.mxu0 %v697
        %1274 = vmatpush1.msra.mxu0 %v696
        %1275 = vmatprep.subr.mxu0 %v701
        %1276 = vmatpush1.msra.mxu0 %v700
        %1277 = vmatprep.subr.mxu0 %v705
        %1278 = vmatpush1.msra.mxu0 %v704
        %1279 = vmatprep.subr.mxu0 %v709
        %1280 = vmatpush1.msra.mxu0 %v708
        %1281 = vmatprep.subr.mxu0 %v892
        %1282 = vmatpush1.msra.mxu0 %v889
        %1283 = vmatprep.subr.mxu0 0.0
        %1284 = vmatpush1.msra.mxu0 0.0
        %1285 = vmatprep.subr.mxu0 0.0
        %1286 = vmatpush1.msra.mxu0 0.0
        %1287 = vmatprep.subr.mxu0 0.0
        %1288 = vmatpush1.msra.mxu0 0.0
        %1289 = vmatprep.subr.mxu0 0.0
        %1290 = vmatpush1.msra.mxu0 0.0
        %1291 = vmatprep.subr.mxu0 0.0
        %1292 = vmatpush1.msra.mxu0 0.0
        %1293 = vmatprep.subr.mxu0 0.0
        %1294 = vmatpush1.msra.mxu0 0.0
        %1295 = vmatprep.subr.mxu0 0.0
        %1296 = vmatpush1.msra.mxu0 0.0
        %1297 = vmatprep.subr.mxu0 0.0
        %1298 = vmatpush1.msra.mxu0 0.0
        %1299 = vmatprep.subr.mxu0 0.0
        %1300 = vmatpush1.msra.mxu0 0.0
        %1301 = vmatprep.subr.mxu0 0.0
        %1302 = vmatpush1.msra.mxu0 0.0
        %1303 = vmatprep.subr.mxu0 0.0
        %1304 = vmatpush1.msra.mxu0 0.0
        %1305 = vmatprep.subr.mxu0 0.0
        %1306 = vmatpush1.msra.mxu0 0.0
        %1307 = vmatprep.subr.mxu0 0.0
        %1308 = vmatpush1.msra.mxu0 0.0
        %1309 = vmatprep.subr.mxu0 0.0
        %1310 = vmatpush1.msra.mxu0 0.0
        %1311 = vmatprep.mubr.f32.mxu0 %v738
        %1312 = vmatmul.mubr.f32.gmra.mrb[0].mxu0 %v546
        %v1313 = vpop.f32.mrb[0].mxu0
        %v1314 = vadd.f32 %v727, %v1313
        %v1315 = vpop.f32.mrb[0].mxu0
        %v1316 = vadd.f32 %v731, %v1315
        %1317 = vmatprep.mubr.f32.mxu0 %v741
        %1318 = vmatmul.mubr.f32.gmra.mrb[0].mxu0 %v548
        %v1319 = vpop.f32.mrb[0].mxu0
        %v1320 = vadd.f32 %v727, %v1319
        %v1321 = vpop.f32.mrb[0].mxu0
        %v1322 = vadd.f32 %v731, %v1321
        %1323 = vmatprep.mubr.f32.mxu0 %v744
        %1324 = vmatmul.mubr.f32.gmra.mrb[0].mxu0 %v550
        %v1325 = vpop.f32.mrb[0].mxu0
        %v1326 = vadd.f32 %v727, %v1325
        %v1327 = vpop.f32.mrb[0].mxu0
        %v1328 = vadd.f32 %v731, %v1327
        %1329 = vmatprep.mubr.f32.mxu0 %v747
        %1330 = vmatmul.mubr.f32.gmra.mrb[0].mxu0 %v552
        %v1331 = vpop.f32.mrb[0].mxu0
        %v1332 = vadd.f32 %v727, %v1331
        %v1333 = vpop.f32.mrb[0].mxu0
        %v1334 = vadd.f32 %v731, %v1333
        %1335 = vmatprep.mubr.f32.mxu0 %v750
        %1336 = vmatmul.mubr.f32.gmra.mrb[0].mxu0 %v554
        %v1337 = vpop.f32.mrb[0].mxu0
        %v1338 = vadd.f32 %v727, %v1337
        %v1339 = vpop.f32.mrb[0].mxu0
        %v1340 = vadd.f32 %v731, %v1339
        %1341 = vmatprep.mubr.f32.mxu0 %v753
        %1342 = vmatmul.mubr.f32.gmra.mrb[0].mxu0 %v556
        %v1343 = vpop.f32.mrb[0].mxu0
        %v1344 = vadd.f32 %v727, %v1343
        %v1345 = vpop.f32.mrb[0].mxu0
        %v1346 = vadd.f32 %v731, %v1345
        %1347 = vmatprep.mubr.f32.mxu0 %v756
        %1348 = vmatmul.mubr.f32.gmra.mrb[0].mxu0 %v558
        %v1349 = vpop.f32.mrb[0].mxu0
        %v1350 = vadd.f32 %v727, %v1349
        %v1351 = vpop.f32.mrb[0].mxu0
        %v1352 = vadd.f32 %v731, %v1351
        %1353 = vmatprep.mubr.f32.mxu0 %v759
        %1354 = vmatmul.mubr.f32.gmra.mrb[0].mxu0 %v560
        %v1355 = vpop.f32.mrb[0].mxu0
        %v1356 = vadd.f32 %v727, %v1355
        %v1357 = vpop.f32.mrb[0].mxu0
        %v1358 = vadd.f32 %v731, %v1357
        %1359 = vmatprep.mubr.f32.mxu0 %v762
        %1360 = vmatmul.mubr.f32.gmra.mrb[0].mxu0 %v562
        %v1361 = vpop.f32.mrb[0].mxu0
        %v1362 = vadd.f32 %v727, %v1361
        %v1363 = vpop.f32.mrb[0].mxu0
        %v1364 = vadd.f32 %v731, %v1363
        %1365 = vmatprep.mubr.f32.mxu0 %v765
        %1366 = vmatmul.mubr.f32.gmra.mrb[0].mxu0 %v564
        %v1367 = vpop.f32.mrb[0].mxu0
        %v1368 = vadd.f32 %v727, %v1367
        %v1369 = vpop.f32.mrb[0].mxu0
        %v1370 = vadd.f32 %v731, %v1369
        %1371 = vmatprep.mubr.f32.mxu0 %v768
        %1372 = vmatmul.mubr.f32.gmra.mrb[0].mxu0 %v566
        %v1373 = vpop.f32.mrb[0].mxu0
        %v1374 = vadd.f32 %v727, %v1373
        %v1375 = vpop.f32.mrb[0].mxu0
        %v1376 = vadd.f32 %v731, %v1375
        %1377 = vmatprep.mubr.f32.mxu0 %v771
        %1378 = vmatmul.mubr.f32.gmra.mrb[0].mxu0 %v568
        %v1379 = vpop.f32.mrb[0].mxu0
        %v1380 = vadd.f32 %v727, %v1379
        %v1381 = vpop.f32.mrb[0].mxu0
        %v1382 = vadd.f32 %v731, %v1381
        %1383 = vmatprep.mubr.f32.mxu0 %v774
        %1384 = vmatmul.mubr.f32.gmra.mrb[0].mxu0 %v570
        %v1385 = vpop.f32.mrb[0].mxu0
        %v1386 = vadd.f32 %v727, %v1385
        %v1387 = vpop.f32.mrb[0].mxu0
        %v1388 = vadd.f32 %v731, %v1387
        %1389 = vmatprep.mubr.f32.mxu0 %v777
        %1390 = vmatmul.mubr.f32.gmra.mrb[0].mxu0 %v572
        %v1391 = vpop.f32.mrb[0].mxu0
        %v1392 = vadd.f32 %v727, %v1391
        %v1393 = vpop.f32.mrb[0].mxu0
        %v1394 = vadd.f32 %v731, %v1393
        %1395 = vmatprep.mubr.f32.mxu0 %v780
        %1396 = vmatmul.mubr.f32.gmra.mrb[0].mxu0 %v574
        %v1397 = vpop.f32.mrb[0].mxu0
        %v1398 = vadd.f32 %v727, %v1397
        %v1399 = vpop.f32.mrb[0].mxu0
        %v1400 = vadd.f32 %v731, %v1399
        %1401 = vmatprep.mubr.f32.mxu0 %v783
        %1402 = vmatmul.mubr.f32.gmra.mrb[0].mxu0 %v576
        %v1403 = vpop.f32.mrb[0].mxu0
        %v1404 = vadd.f32 %v727, %v1403
        %v1405 = vpop.f32.mrb[0].mxu0
        %v1406 = vadd.f32 %v731, %v1405
        %1407 = vmatprep.mubr.f32.mxu0 %v786
        %1408 = vmatmul.mubr.f32.gmra.mrb[0].mxu0 %v578
        %v1409 = vpop.f32.mrb[0].mxu0
        %v1410 = vadd.f32 %v727, %v1409
        %v1411 = vpop.f32.mrb[0].mxu0
        %v1412 = vadd.f32 %v731, %v1411
        %1413 = vmatprep.mubr.f32.mxu0 %v789
        %1414 = vmatmul.mubr.f32.gmra.mrb[0].mxu0 %v580
        %v1415 = vpop.f32.mrb[0].mxu0
        %v1416 = vadd.f32 %v727, %v1415
        %v1417 = vpop.f32.mrb[0].mxu0
        %v1418 = vadd.f32 %v731, %v1417
        %1419 = vmatprep.mubr.f32.mxu0 %v792
        %1420 = vmatmul.mubr.f32.gmra.mrb[0].mxu0 %v582
        %v1421 = vpop.f32.mrb[0].mxu0
        %v1422 = vadd.f32 %v727, %v1421
        %v1423 = vpop.f32.mrb[0].mxu0
        %v1424 = vadd.f32 %v731, %v1423
        %1425 = vmatprep.mubr.f32.mxu0 %v795
        %1426 = vmatmul.mubr.f32.gmra.mrb[0].mxu0 %v584
        %v1427 = vpop.f32.mrb[0].mxu0
        %v1428 = vadd.f32 %v727, %v1427
        %v1429 = vpop.f32.mrb[0].mxu0
        %v1430 = vadd.f32 %v731, %v1429
        %1431 = vmatprep.mubr.f32.mxu0 %v798
        %1432 = vmatmul.mubr.f32.gmra.mrb[0].mxu0 %v586
        %v1433 = vpop.f32.mrb[0].mxu0
        %v1434 = vadd.f32 %v727, %v1433
        %v1435 = vpop.f32.mrb[0].mxu0
        %v1436 = vadd.f32 %v731, %v1435
        %1437 = vmatprep.mubr.f32.mxu0 %v801
        %1438 = vmatmul.mubr.f32.gmra.mrb[0].mxu0 %v588
        %v1439 = vpop.f32.mrb[0].mxu0
        %v1440 = vadd.f32 %v727, %v1439
        %v1441 = vpop.f32.mrb[0].mxu0
        %v1442 = vadd.f32 %v731, %v1441
        %1443 = vmatprep.mubr.f32.mxu0 %v804
        %1444 = vmatmul.mubr.f32.gmra.mrb[0].mxu0 %v590
        %v1445 = vpop.f32.mrb[0].mxu0
        %v1446 = vadd.f32 %v727, %v1445
        %v1447 = vpop.f32.mrb[0].mxu0
        %v1448 = vadd.f32 %v731, %v1447
        %1449 = vmatprep.mubr.f32.mxu0 %v807
        %1450 = vmatmul.mubr.f32.gmra.mrb[0].mxu0 %v592
        %v1451 = vpop.f32.mrb[0].mxu0
        %v1452 = vadd.f32 %v727, %v1451
        %v1453 = vpop.f32.mrb[0].mxu0
        %v1454 = vadd.f32 %v731, %v1453
        %1455 = vmatprep.mubr.f32.mxu0 %v810
        %1456 = vmatmul.mubr.f32.gmra.mrb[0].mxu0 %v594
        %v1457 = vpop.f32.mrb[0].mxu0
        %v1458 = vadd.f32 %v727, %v1457
        %v1459 = vpop.f32.mrb[0].mxu0
        %v1460 = vadd.f32 %v731, %v1459
        %1461 = vmatprep.mubr.f32.mxu0 %v813
        %1462 = vmatmul.mubr.f32.gmra.mrb[0].mxu0 %v596
        %v1463 = vpop.f32.mrb[0].mxu0
        %v1464 = vadd.f32 %v727, %v1463
        %v1465 = vpop.f32.mrb[0].mxu0
        %v1466 = vadd.f32 %v731, %v1465
        %1467 = vmatprep.mubr.f32.mxu0 %v816
        %1468 = vmatmul.mubr.f32.gmra.mrb[0].mxu0 %v598
        %v1469 = vpop.f32.mrb[0].mxu0
        %v1470 = vadd.f32 %v727, %v1469
        %v1471 = vpop.f32.mrb[0].mxu0
        %v1472 = vadd.f32 %v731, %v1471
        %1473 = vmatprep.mubr.f32.mxu0 %v819
        %1474 = vmatmul.mubr.f32.gmra.mrb[0].mxu0 %v600
        %v1475 = vpop.f32.mrb[0].mxu0
        %v1476 = vadd.f32 %v727, %v1475
        %v1477 = vpop.f32.mrb[0].mxu0
        %v1478 = vadd.f32 %v731, %v1477
        %1479 = vmatprep.mubr.f32.mxu0 %v822
        %1480 = vmatmul.mubr.f32.gmra.mrb[0].mxu0 %v602
        %v1481 = vpop.f32.mrb[0].mxu0
        %v1482 = vadd.f32 %v727, %v1481
        %v1483 = vpop.f32.mrb[0].mxu0
        %v1484 = vadd.f32 %v731, %v1483
        %1485 = vmatprep.mubr.f32.mxu0 %v825
        %1486 = vmatmul.mubr.f32.gmra.mrb[0].mxu0 %v604
        %v1487 = vpop.f32.mrb[0].mxu0
        %v1488 = vadd.f32 %v727, %v1487
        %v1489 = vpop.f32.mrb[0].mxu0
        %v1490 = vadd.f32 %v731, %v1489
        %1491 = vmatprep.mubr.f32.mxu0 %v828
        %1492 = vmatmul.mubr.f32.gmra.mrb[0].mxu0 %v606
        %v1493 = vpop.f32.mrb[0].mxu0
        %v1494 = vadd.f32 %v727, %v1493
        %v1495 = vpop.f32.mrb[0].mxu0
        %v1496 = vadd.f32 %v731, %v1495
        %1497 = vmatprep.mubr.f32.mxu0 %v831
        %1498 = vmatmul.mubr.f32.gmra.mrb[0].mxu0 %v608
        %v1499 = vpop.f32.mrb[0].mxu0
        %v1500 = vadd.f32 %v727, %v1499
        %v1501 = vpop.f32.mrb[0].mxu0
        %v1502 = vadd.f32 %v731, %v1501
        %1503 = vmatprep.mubr.f32.mxu0 %v834
        %1504 = vmatmul.mubr.f32.gmra.mrb[0].mxu0 %v610
        %v1505 = vpop.f32.mrb[0].mxu0
        %v1506 = vadd.f32 %v727, %v1505
        %v1507 = vpop.f32.mrb[0].mxu0
        %v1508 = vadd.f32 %v731, %v1507
        %1509 = vmatprep.mubr.f32.mxu0 %v837
        %1510 = vmatmul.mubr.f32.gmra.mrb[0].mxu0 %v612
        %v1511 = vpop.f32.mrb[0].mxu0
        %v1512 = vadd.f32 %v727, %v1511
        %v1513 = vpop.f32.mrb[0].mxu0
        %v1514 = vadd.f32 %v731, %v1513
        %1515 = vmatprep.mubr.f32.mxu0 %v840
        %1516 = vmatmul.mubr.f32.gmra.mrb[0].mxu0 %v614
        %v1517 = vpop.f32.mrb[0].mxu0
        %v1518 = vadd.f32 %v727, %v1517
        %v1519 = vpop.f32.mrb[0].mxu0
        %v1520 = vadd.f32 %v731, %v1519
        %1521 = vmatprep.mubr.f32.mxu0 %v843
        %1522 = vmatmul.mubr.f32.gmra.mrb[0].mxu0 %v616
        %v1523 = vpop.f32.mrb[0].mxu0
        %v1524 = vadd.f32 %v727, %v1523
        %v1525 = vpop.f32.mrb[0].mxu0
        %v1526 = vadd.f32 %v731, %v1525
        %1527 = vmatprep.mubr.f32.mxu0 %v846
        %1528 = vmatmul.mubr.f32.gmra.mrb[0].mxu0 %v618
        %v1529 = vpop.f32.mrb[0].mxu0
        %v1530 = vadd.f32 %v727, %v1529
        %v1531 = vpop.f32.mrb[0].mxu0
        %v1532 = vadd.f32 %v731, %v1531
        %1533 = vmatprep.mubr.f32.mxu0 %v849
        %1534 = vmatmul.mubr.f32.gmra.mrb[0].mxu0 %v620
        %v1535 = vpop.f32.mrb[0].mxu0
        %v1536 = vadd.f32 %v727, %v1535
        %v1537 = vpop.f32.mrb[0].mxu0
        %v1538 = vadd.f32 %v731, %v1537
        %1539 = vmatprep.mubr.f32.mxu0 %v852
        %1540 = vmatmul.mubr.f32.gmra.mrb[0].mxu0 %v622
        %v1541 = vpop.f32.mrb[0].mxu0
        %v1542 = vadd.f32 %v727, %v1541
        %v1543 = vpop.f32.mrb[0].mxu0
        %v1544 = vadd.f32 %v731, %v1543
        %1545 = vmatprep.mubr.f32.mxu0 %v855
        %1546 = vmatmul.mubr.f32.gmra.mrb[0].mxu0 %v624
        %v1547 = vpop.f32.mrb[0].mxu0
        %v1548 = vadd.f32 %v727, %v1547
        %v1549 = vpop.f32.mrb[0].mxu0
        %v1550 = vadd.f32 %v731, %v1549
        %1551 = vmatprep.mubr.f32.mxu0 %v858
        %1552 = vmatmul.mubr.f32.gmra.mrb[0].mxu0 %v626
        %v1553 = vpop.f32.mrb[0].mxu0
        %v1554 = vadd.f32 %v727, %v1553
        %v1555 = vpop.f32.mrb[0].mxu0
        %v1556 = vadd.f32 %v731, %v1555
        %1557 = vmatprep.mubr.f32.mxu0 %v861
        %1558 = vmatmul.mubr.f32.gmra.mrb[0].mxu0 %v628
        %v1559 = vpop.f32.mrb[0].mxu0
        %v1560 = vadd.f32 %v727, %v1559
        %v1561 = vpop.f32.mrb[0].mxu0
        %v1562 = vadd.f32 %v731, %v1561
        %1563 = vmatprep.mubr.f32.mxu0 %v864
        %1564 = vmatmul.mubr.f32.gmra.mrb[0].mxu0 %v630
        %v1565 = vpop.f32.mrb[0].mxu0
        %v1566 = vadd.f32 %v727, %v1565
        %v1567 = vpop.f32.mrb[0].mxu0
        %v1568 = vadd.f32 %v731, %v1567
        %1569 = vmatprep.mubr.f32.mxu0 %v867
        %1570 = vmatmul.mubr.f32.gmra.mrb[0].mxu0 %v632
        %v1571 = vpop.f32.mrb[0].mxu0
        %v1572 = vadd.f32 %v727, %v1571
        %v1573 = vpop.f32.mrb[0].mxu0
        %v1574 = vadd.f32 %v731, %v1573
        %1575 = vmatprep.mubr.f32.mxu0 %v870
        %1576 = vmatmul.mubr.f32.gmra.mrb[0].mxu0 %v634
        %v1577 = vpop.f32.mrb[0].mxu0
        %v1578 = vadd.f32 %v727, %v1577
        %v1579 = vpop.f32.mrb[0].mxu0
        %v1580 = vadd.f32 %v731, %v1579
        %1581 = vmatprep.mubr.f32.mxu0 %v873
        %1582 = vmatmul.mubr.f32.gmra.mrb[0].mxu0 %v636
        %v1583 = vpop.f32.mrb[0].mxu0
        %v1584 = vadd.f32 %v727, %v1583
        %v1585 = vpop.f32.mrb[0].mxu0
        %v1586 = vadd.f32 %v731, %v1585
        %1587 = vmatprep.mubr.f32.mxu0 %v876
        %1588 = vmatmul.mubr.f32.gmra.mrb[0].mxu0 %v638
        %v1589 = vpop.f32.mrb[0].mxu0
        %v1590 = vadd.f32 %v727, %v1589
        %v1591 = vpop.f32.mrb[0].mxu0
        %v1592 = vadd.f32 %v731, %v1591
        %1593 = vmatprep.mubr.f32.mxu0 %v879
        %1594 = vmatmul.mubr.f32.gmra.mrb[0].mxu0 %v640
        %v1595 = vpop.f32.mrb[0].mxu0
        %v1596 = vadd.f32 %v727, %v1595
        %v1597 = vpop.f32.mrb[0].mxu0
        %v1598 = vadd.f32 %v731, %v1597
        %1599 = vdwg.mxu0
        %v1600 = vmax.f32 %v961, 0.0
        %v1601 = vmax.f32 %v963, 0.0
        %v1602 = vmax.f32 %v1314, 0.0
        %v1603 = vmax.f32 %v1316, 0.0
        %v1604 = vmax.f32 %v967, 0.0
        %v1605 = vmax.f32 %v969, 0.0
        %v1606 = vmax.f32 %v1320, 0.0
        %v1607 = vmax.f32 %v1322, 0.0
        %v1608 = vmax.f32 %v973, 0.0
        %v1609 = vmax.f32 %v975, 0.0
        %v1610 = vmax.f32 %v1326, 0.0
        %v1611 = vmax.f32 %v1328, 0.0
        %v1612 = vmax.f32 %v979, 0.0
        %v1613 = vmax.f32 %v981, 0.0
        %v1614 = vmax.f32 %v1332, 0.0
        %v1615 = vmax.f32 %v1334, 0.0
        %v1616 = vmax.f32 %v985, 0.0
        %v1617 = vmax.f32 %v987, 0.0
        %v1618 = vmax.f32 %v1338, 0.0
        %v1619 = vmax.f32 %v1340, 0.0
        %v1620 = vmax.f32 %v991, 0.0
        %v1621 = vmax.f32 %v993, 0.0
        %v1622 = vmax.f32 %v1344, 0.0
        %v1623 = vmax.f32 %v1346, 0.0
        %v1624 = vmax.f32 %v997, 0.0
        %v1625 = vmax.f32 %v999, 0.0
        %v1626 = vmax.f32 %v1350, 0.0
        %v1627 = vmax.f32 %v1352, 0.0
        %v1628 = vmax.f32 %v1003, 0.0
        %v1629 = vmax.f32 %v1005, 0.0
        %v1630 = vmax.f32 %v1356, 0.0
        %v1631 = vmax.f32 %v1358, 0.0
        %v1632 = vmax.f32 %v1009, 0.0
        %v1633 = vmax.f32 %v1011, 0.0
        %v1634 = vmax.f32 %v1362, 0.0
        %v1635 = vmax.f32 %v1364, 0.0
        %v1636 = vmax.f32 %v1015, 0.0
        %v1637 = vmax.f32 %v1017, 0.0
        %v1638 = vmax.f32 %v1368, 0.0
        %v1639 = vmax.f32 %v1370, 0.0
        %v1640 = vmax.f32 %v1021, 0.0
        %v1641 = vmax.f32 %v1023, 0.0
        %v1642 = vmax.f32 %v1374, 0.0
        %v1643 = vmax.f32 %v1376, 0.0
        %v1644 = vmax.f32 %v1027, 0.0
        %v1645 = vmax.f32 %v1029, 0.0
        %v1646 = vmax.f32 %v1380, 0.0
        %v1647 = vmax.f32 %v1382, 0.0
        %v1648 = vmax.f32 %v1033, 0.0
        %v1649 = vmax.f32 %v1035, 0.0
        %v1650 = vmax.f32 %v1386, 0.0
        %v1651 = vmax.f32 %v1388, 0.0
        %v1652 = vmax.f32 %v1039, 0.0
        %v1653 = vmax.f32 %v1041, 0.0
        %v1654 = vmax.f32 %v1392, 0.0
        %v1655 = vmax.f32 %v1394, 0.0
        %v1656 = vmax.f32 %v1045, 0.0
        %v1657 = vmax.f32 %v1047, 0.0
        %v1658 = vmax.f32 %v1398, 0.0
        %v1659 = vmax.f32 %v1400, 0.0
        %v1660 = vmax.f32 %v1051, 0.0
        %v1661 = vmax.f32 %v1053, 0.0
        %v1662 = vmax.f32 %v1404, 0.0
        %v1663 = vmax.f32 %v1406, 0.0
        %v1664 = vmax.f32 %v1057, 0.0
        %v1665 = vmax.f32 %v1059, 0.0
        %v1666 = vmax.f32 %v1410, 0.0
        %v1667 = vmax.f32 %v1412, 0.0
        %v1668 = vmax.f32 %v1063, 0.0
        %v1669 = vmax.f32 %v1065, 0.0
        %v1670 = vmax.f32 %v1416, 0.0
        %v1671 = vmax.f32 %v1418, 0.0
        %v1672 = vmax.f32 %v1069, 0.0
        %v1673 = vmax.f32 %v1071, 0.0
        %v1674 = vmax.f32 %v1422, 0.0
        %v1675 = vmax.f32 %v1424, 0.0
        %v1676 = vmax.f32 %v1075, 0.0
        %v1677 = vmax.f32 %v1077, 0.0
        %v1678 = vmax.f32 %v1428, 0.0
        %v1679 = vmax.f32 %v1430, 0.0
        %v1680 = vmax.f32 %v1081, 0.0
        %v1681 = vmax.f32 %v1083, 0.0
        %v1682 = vmax.f32 %v1434, 0.0
        %v1683 = vmax.f32 %v1436, 0.0
        %v1684 = vmax.f32 %v1087, 0.0
        %v1685 = vmax.f32 %v1089, 0.0
        %v1686 = vmax.f32 %v1440, 0.0
        %v1687 = vmax.f32 %v1442, 0.0
        %v1688 = vmax.f32 %v1093, 0.0
        %v1689 = vmax.f32 %v1095, 0.0
        %v1690 = vmax.f32 %v1446, 0.0
        %v1691 = vmax.f32 %v1448, 0.0
        %v1692 = vmax.f32 %v1099, 0.0
        %v1693 = vmax.f32 %v1101, 0.0
        %v1694 = vmax.f32 %v1452, 0.0
        %v1695 = vmax.f32 %v1454, 0.0
        %v1696 = vmax.f32 %v1105, 0.0
        %v1697 = vmax.f32 %v1107, 0.0
        %v1698 = vmax.f32 %v1458, 0.0
        %v1699 = vmax.f32 %v1460, 0.0
        %v1700 = vmax.f32 %v1111, 0.0
        %v1701 = vmax.f32 %v1113, 0.0
        %v1702 = vmax.f32 %v1464, 0.0
        %v1703 = vmax.f32 %v1466, 0.0
        %v1704 = vmax.f32 %v1117, 0.0
        %v1705 = vmax.f32 %v1119, 0.0
        %v1706 = vmax.f32 %v1470, 0.0
        %v1707 = vmax.f32 %v1472, 0.0
        %v1708 = vmax.f32 %v1123, 0.0
        %v1709 = vmax.f32 %v1125, 0.0
        %v1710 = vmax.f32 %v1476, 0.0
        %v1711 = vmax.f32 %v1478, 0.0
        %v1712 = vmax.f32 %v1129, 0.0
        %v1713 = vmax.f32 %v1131, 0.0
        %v1714 = vmax.f32 %v1482, 0.0
        %v1715 = vmax.f32 %v1484, 0.0
        %v1716 = vmax.f32 %v1135, 0.0
        %v1717 = vmax.f32 %v1137, 0.0
        %v1718 = vmax.f32 %v1488, 0.0
        %v1719 = vmax.f32 %v1490, 0.0
        %v1720 = vmax.f32 %v1141, 0.0
        %v1721 = vmax.f32 %v1143, 0.0
        %v1722 = vmax.f32 %v1494, 0.0
        %v1723 = vmax.f32 %v1496, 0.0
        %v1724 = vmax.f32 %v1147, 0.0
        %v1725 = vmax.f32 %v1149, 0.0
        %v1726 = vmax.f32 %v1500, 0.0
        %v1727 = vmax.f32 %v1502, 0.0
        %v1728 = vmax.f32 %v1153, 0.0
        %v1729 = vmax.f32 %v1155, 0.0
        %v1730 = vmax.f32 %v1506, 0.0
        %v1731 = vmax.f32 %v1508, 0.0
        %v1732 = vmax.f32 %v1159, 0.0
        %v1733 = vmax.f32 %v1161, 0.0
        %v1734 = vmax.f32 %v1512, 0.0
        %v1735 = vmax.f32 %v1514, 0.0
        %v1736 = vmax.f32 %v1165, 0.0
        %v1737 = vmax.f32 %v1167, 0.0
        %v1738 = vmax.f32 %v1518, 0.0
        %v1739 = vmax.f32 %v1520, 0.0
        %v1740 = vmax.f32 %v1171, 0.0
        %v1741 = vmax.f32 %v1173, 0.0
        %v1742 = vmax.f32 %v1524, 0.0
        %v1743 = vmax.f32 %v1526, 0.0
        %v1744 = vmax.f32 %v1177, 0.0
        %v1745 = vmax.f32 %v1179, 0.0
        %v1746 = vmax.f32 %v1530, 0.0
        %v1747 = vmax.f32 %v1532, 0.0
        %v1748 = vmax.f32 %v1183, 0.0
        %v1749 = vmax.f32 %v1185, 0.0
        %v1750 = vmax.f32 %v1536, 0.0
        %v1751 = vmax.f32 %v1538, 0.0
        %v1752 = vmax.f32 %v1189, 0.0
        %v1753 = vmax.f32 %v1191, 0.0
        %v1754 = vmax.f32 %v1542, 0.0
        %v1755 = vmax.f32 %v1544, 0.0
        %v1756 = vmax.f32 %v1195, 0.0
        %v1757 = vmax.f32 %v1197, 0.0
        %v1758 = vmax.f32 %v1548, 0.0
        %v1759 = vmax.f32 %v1550, 0.0
        %v1760 = vmax.f32 %v1201, 0.0
        %v1761 = vmax.f32 %v1203, 0.0
        %v1762 = vmax.f32 %v1554, 0.0
        %v1763 = vmax.f32 %v1556, 0.0
        %v1764 = vmax.f32 %v1207, 0.0
        %v1765 = vmax.f32 %v1209, 0.0
        %v1766 = vmax.f32 %v1560, 0.0
        %v1767 = vmax.f32 %v1562, 0.0
        %v1768 = vmax.f32 %v1213, 0.0
        %v1769 = vmax.f32 %v1215, 0.0
        %v1770 = vmax.f32 %v1566, 0.0
        %v1771 = vmax.f32 %v1568, 0.0
        %v1772 = vmax.f32 %v1219, 0.0
        %v1773 = vmax.f32 %v1221, 0.0
        %v1774 = vmax.f32 %v1572, 0.0
        %v1775 = vmax.f32 %v1574, 0.0
        %v1776 = vmax.f32 %v1225, 0.0
        %v1777 = vmax.f32 %v1227, 0.0
        %v1778 = vmax.f32 %v1578, 0.0
        %v1779 = vmax.f32 %v1580, 0.0
        %v1780 = vmax.f32 %v1231, 0.0
        %v1781 = vmax.f32 %v1233, 0.0
        %v1782 = vmax.f32 %v1584, 0.0
        %v1783 = vmax.f32 %v1586, 0.0
        %v1784 = vmax.f32 %v1237, 0.0
        %v1785 = vmax.f32 %v1239, 0.0
        %v1786 = vmax.f32 %v1590, 0.0
        %v1787 = vmax.f32 %v1592, 0.0
        %v1788 = vmax.f32 %v1243, 0.0
        %v1789 = vmax.f32 %v1245, 0.0
        %v1790 = vmax.f32 %v1596, 0.0
        %v1791 = vmax.f32 %v1598, 0.0
        %1936 = vrot.lane.b32.xlu0 %v1601, 16
        %v1937 = vpop.permute.xlu0 %1936
        %1938 = vrot.lane.b32.xlu0 %v1602, 16
        %v1939 = vpop.permute.xlu0 %1938
        %1940 = vrot.lane.b32.xlu0 %v1603, 16
        %v1941 = vpop.permute.xlu0 %1940
        %1942 = vrot.lane.b32.xlu0 %v1605, 16
        %v1943 = vpop.permute.xlu0 %1942
        %1944 = vrot.lane.b32.xlu0 %v1606, 16
        %v1945 = vpop.permute.xlu0 %1944
        %1946 = vrot.lane.b32.xlu0 %v1607, 16
        %v1947 = vpop.permute.xlu0 %1946
        %1948 = vrot.lane.b32.xlu0 %v1609, 16
        %v1949 = vpop.permute.xlu0 %1948
        %1950 = vrot.lane.b32.xlu0 %v1610, 16
        %v1951 = vpop.permute.xlu0 %1950
        %1952 = vrot.lane.b32.xlu0 %v1611, 16
        %v1953 = vpop.permute.xlu0 %1952
        %1954 = vrot.lane.b32.xlu0 %v1613, 16
        %v1955 = vpop.permute.xlu0 %1954
        %1956 = vrot.lane.b32.xlu0 %v1614, 16
        %v1957 = vpop.permute.xlu0 %1956
        %1958 = vrot.lane.b32.xlu0 %v1615, 16
        %v1959 = vpop.permute.xlu0 %1958
        %1960 = vrot.lane.b32.xlu0 %v1617, 16
        %v1961 = vpop.permute.xlu0 %1960
        %1962 = vrot.lane.b32.xlu0 %v1618, 16
        %v1963 = vpop.permute.xlu0 %1962
        %1964 = vrot.lane.b32.xlu0 %v1619, 16
        %v1965 = vpop.permute.xlu0 %1964
        %1966 = vrot.lane.b32.xlu0 %v1621, 16
        %v1967 = vpop.permute.xlu0 %1966
        %1968 = vrot.lane.b32.xlu0 %v1622, 16
        %v1969 = vpop.permute.xlu0 %1968
        %1970 = vrot.lane.b32.xlu0 %v1623, 16
        %v1971 = vpop.permute.xlu0 %1970
        %1972 = vrot.lane.b32.xlu0 %v1625, 16
        %v1973 = vpop.permute.xlu0 %1972
        %1974 = vrot.lane.b32.xlu0 %v1626, 16
        %v1975 = vpop.permute.xlu0 %1974
        %1976 = vrot.lane.b32.xlu0 %v1627, 16
        %v1977 = vpop.permute.xlu0 %1976
        %1978 = vrot.lane.b32.xlu0 %v1629, 16
        %v1979 = vpop.permute.xlu0 %1978
        %1980 = vrot.lane.b32.xlu0 %v1630, 16
        %v1981 = vpop.permute.xlu0 %1980
        %1982 = vrot.lane.b32.xlu0 %v1631, 16
        %v1983 = vpop.permute.xlu0 %1982
        %1984 = vrot.lane.b32.xlu0 %v1633, 16
        %v1985 = vpop.permute.xlu0 %1984
        %1986 = vrot.lane.b32.xlu0 %v1634, 16
        %v1987 = vpop.permute.xlu0 %1986
        %1988 = vrot.lane.b32.xlu0 %v1635, 16
        %v1989 = vpop.permute.xlu0 %1988
        %1990 = vrot.lane.b32.xlu0 %v1637, 16
        %v1991 = vpop.permute.xlu0 %1990
        %1992 = vrot.lane.b32.xlu0 %v1638, 16
        %v1993 = vpop.permute.xlu0 %1992
        %1994 = vrot.lane.b32.xlu0 %v1639, 16
        %v1995 = vpop.permute.xlu0 %1994
        %1996 = vrot.lane.b32.xlu0 %v1641, 16
        %v1997 = vpop.permute.xlu0 %1996
        %1998 = vrot.lane.b32.xlu0 %v1642, 16
        %v1999 = vpop.permute.xlu0 %1998
        %2000 = vrot.lane.b32.xlu0 %v1643, 16
        %v2001 = vpop.permute.xlu0 %2000
        %2002 = vrot.lane.b32.xlu0 %v1645, 16
        %v2003 = vpop.permute.xlu0 %2002
        %2004 = vrot.lane.b32.xlu0 %v1646, 16
        %v2005 = vpop.permute.xlu0 %2004
        %2006 = vrot.lane.b32.xlu0 %v1647, 16
        %v2007 = vpop.permute.xlu0 %2006
        %2008 = vrot.lane.b32.xlu0 %v1649, 16
        %v2009 = vpop.permute.xlu0 %2008
        %2010 = vrot.lane.b32.xlu0 %v1650, 16
        %v2011 = vpop.permute.xlu0 %2010
        %2012 = vrot.lane.b32.xlu0 %v1651, 16
        %v2013 = vpop.permute.xlu0 %2012
        %2014 = vrot.lane.b32.xlu0 %v1653, 16
        %v2015 = vpop.permute.xlu0 %2014
        %2016 = vrot.lane.b32.xlu0 %v1654, 16
        %v2017 = vpop.permute.xlu0 %2016
        %2018 = vrot.lane.b32.xlu0 %v1655, 16
        %v2019 = vpop.permute.xlu0 %2018
        %2020 = vrot.lane.b32.xlu0 %v1657, 16
        %v2021 = vpop.permute.xlu0 %2020
        %2022 = vrot.lane.b32.xlu0 %v1658, 16
        %v2023 = vpop.permute.xlu0 %2022
        %2024 = vrot.lane.b32.xlu0 %v1659, 16
        %v2025 = vpop.permute.xlu0 %2024
        %2026 = vrot.lane.b32.xlu0 %v1661, 16
        %v2027 = vpop.permute.xlu0 %2026
        %2028 = vrot.lane.b32.xlu0 %v1662, 16
        %v2029 = vpop.permute.xlu0 %2028
        %2030 = vrot.lane.b32.xlu0 %v1663, 16
        %v2031 = vpop.permute.xlu0 %2030
        %2032 = vrot.lane.b32.xlu0 %v1665, 16
        %v2033 = vpop.permute.xlu0 %2032
        %2034 = vrot.lane.b32.xlu0 %v1666, 16
        %v2035 = vpop.permute.xlu0 %2034
        %2036 = vrot.lane.b32.xlu0 %v1667, 16
        %v2037 = vpop.permute.xlu0 %2036
        %2038 = vrot.lane.b32.xlu0 %v1669, 16
        %v2039 = vpop.permute.xlu0 %2038
        %2040 = vrot.lane.b32.xlu0 %v1670, 16
        %v2041 = vpop.permute.xlu0 %2040
        %2042 = vrot.lane.b32.xlu0 %v1671, 16
        %v2043 = vpop.permute.xlu0 %2042
        %2044 = vrot.lane.b32.xlu0 %v1673, 16
        %v2045 = vpop.permute.xlu0 %2044
        %2046 = vrot.lane.b32.xlu0 %v1674, 16
        %v2047 = vpop.permute.xlu0 %2046
        %2048 = vrot.lane.b32.xlu0 %v1675, 16
        %v2049 = vpop.permute.xlu0 %2048
        %2050 = vrot.lane.b32.xlu0 %v1677, 16
        %v2051 = vpop.permute.xlu0 %2050
        %2052 = vrot.lane.b32.xlu0 %v1678, 16
        %v2053 = vpop.permute.xlu0 %2052
        %2054 = vrot.lane.b32.xlu0 %v1679, 16
        %v2055 = vpop.permute.xlu0 %2054
        %2056 = vrot.lane.b32.xlu0 %v1681, 16
        %v2057 = vpop.permute.xlu0 %2056
        %2058 = vrot.lane.b32.xlu0 %v1682, 16
        %v2059 = vpop.permute.xlu0 %2058
        %2060 = vrot.lane.b32.xlu0 %v1683, 16
        %v2061 = vpop.permute.xlu0 %2060
        %2062 = vrot.lane.b32.xlu0 %v1685, 16
        %v2063 = vpop.permute.xlu0 %2062
        %2064 = vrot.lane.b32.xlu0 %v1686, 16
        %v2065 = vpop.permute.xlu0 %2064
        %2066 = vrot.lane.b32.xlu0 %v1687, 16
        %v2067 = vpop.permute.xlu0 %2066
        %2068 = vrot.lane.b32.xlu0 %v1689, 16
        %v2069 = vpop.permute.xlu0 %2068
        %2070 = vrot.lane.b32.xlu0 %v1690, 16
        %v2071 = vpop.permute.xlu0 %2070
        %2072 = vrot.lane.b32.xlu0 %v1691, 16
        %v2073 = vpop.permute.xlu0 %2072
        %2074 = vrot.lane.b32.xlu0 %v1693, 16
        %v2075 = vpop.permute.xlu0 %2074
        %2076 = vrot.lane.b32.xlu0 %v1694, 16
        %v2077 = vpop.permute.xlu0 %2076
        %2078 = vrot.lane.b32.xlu0 %v1695, 16
        %v2079 = vpop.permute.xlu0 %2078
        %2080 = vrot.lane.b32.xlu0 %v1697, 16
        %v2081 = vpop.permute.xlu0 %2080
        %2082 = vrot.lane.b32.xlu0 %v1698, 16
        %v2083 = vpop.permute.xlu0 %2082
        %2084 = vrot.lane.b32.xlu0 %v1699, 16
        %v2085 = vpop.permute.xlu0 %2084
        %2086 = vrot.lane.b32.xlu0 %v1701, 16
        %v2087 = vpop.permute.xlu0 %2086
        %2088 = vrot.lane.b32.xlu0 %v1702, 16
        %v2089 = vpop.permute.xlu0 %2088
        %2090 = vrot.lane.b32.xlu0 %v1703, 16
        %v2091 = vpop.permute.xlu0 %2090
        %2092 = vrot.lane.b32.xlu0 %v1705, 16
        %v2093 = vpop.permute.xlu0 %2092
        %2094 = vrot.lane.b32.xlu0 %v1706, 16
        %v2095 = vpop.permute.xlu0 %2094
        %2096 = vrot.lane.b32.xlu0 %v1707, 16
        %v2097 = vpop.permute.xlu0 %2096
        %2098 = vrot.lane.b32.xlu0 %v1709, 16
        %v2099 = vpop.permute.xlu0 %2098
        %2100 = vrot.lane.b32.xlu0 %v1710, 16
        %v2101 = vpop.permute.xlu0 %2100
        %2102 = vrot.lane.b32.xlu0 %v1711, 16
        %v2103 = vpop.permute.xlu0 %2102
        %2104 = vrot.lane.b32.xlu0 %v1713, 16
        %v2105 = vpop.permute.xlu0 %2104
        %2106 = vrot.lane.b32.xlu0 %v1714, 16
        %v2107 = vpop.permute.xlu0 %2106
        %2108 = vrot.lane.b32.xlu0 %v1715, 16
        %v2109 = vpop.permute.xlu0 %2108
        %2110 = vrot.lane.b32.xlu0 %v1717, 16
        %v2111 = vpop.permute.xlu0 %2110
        %2112 = vrot.lane.b32.xlu0 %v1718, 16
        %v2113 = vpop.permute.xlu0 %2112
        %2114 = vrot.lane.b32.xlu0 %v1719, 16
        %v2115 = vpop.permute.xlu0 %2114
        %2116 = vrot.lane.b32.xlu0 %v1721, 16
        %v2117 = vpop.permute.xlu0 %2116
        %2118 = vrot.lane.b32.xlu0 %v1722, 16
        %v2119 = vpop.permute.xlu0 %2118
        %2120 = vrot.lane.b32.xlu0 %v1723, 16
        %v2121 = vpop.permute.xlu0 %2120
        %2122 = vrot.lane.b32.xlu0 %v1725, 16
        %v2123 = vpop.permute.xlu0 %2122
        %2124 = vrot.lane.b32.xlu0 %v1726, 16
        %v2125 = vpop.permute.xlu0 %2124
        %2126 = vrot.lane.b32.xlu0 %v1727, 16
        %v2127 = vpop.permute.xlu0 %2126
        %2128 = vrot.lane.b32.xlu0 %v1729, 16
        %v2129 = vpop.permute.xlu0 %2128
        %2130 = vrot.lane.b32.xlu0 %v1730, 16
        %v2131 = vpop.permute.xlu0 %2130
        %2132 = vrot.lane.b32.xlu0 %v1731, 16
        %v2133 = vpop.permute.xlu0 %2132
        %2134 = vrot.lane.b32.xlu0 %v1733, 16
        %v2135 = vpop.permute.xlu0 %2134
        %2136 = vrot.lane.b32.xlu0 %v1734, 16
        %v2137 = vpop.permute.xlu0 %2136
        %2138 = vrot.lane.b32.xlu0 %v1735, 16
        %v2139 = vpop.permute.xlu0 %2138
        %2140 = vrot.lane.b32.xlu0 %v1737, 16
        %v2141 = vpop.permute.xlu0 %2140
        %2142 = vrot.lane.b32.xlu0 %v1738, 16
        %v2143 = vpop.permute.xlu0 %2142
        %2144 = vrot.lane.b32.xlu0 %v1739, 16
        %v2145 = vpop.permute.xlu0 %2144
        %2146 = vrot.lane.b32.xlu0 %v1741, 16
        %v2147 = vpop.permute.xlu0 %2146
        %2148 = vrot.lane.b32.xlu0 %v1742, 16
        %v2149 = vpop.permute.xlu0 %2148
        %2150 = vrot.lane.b32.xlu0 %v1743, 16
        %v2151 = vpop.permute.xlu0 %2150
        %2152 = vrot.lane.b32.xlu0 %v1745, 16
        %v2153 = vpop.permute.xlu0 %2152
        %2154 = vrot.lane.b32.xlu0 %v1746, 16
        %v2155 = vpop.permute.xlu0 %2154
        %2156 = vrot.lane.b32.xlu0 %v1747, 16
        %v2157 = vpop.permute.xlu0 %2156
        %2158 = vrot.lane.b32.xlu0 %v1749, 16
        %v2159 = vpop.permute.xlu0 %2158
        %2160 = vrot.lane.b32.xlu0 %v1750, 16
        %v2161 = vpop.permute.xlu0 %2160
        %2162 = vrot.lane.b32.xlu0 %v1751, 16
        %v2163 = vpop.permute.xlu0 %2162
        %2164 = vrot.lane.b32.xlu0 %v1753, 16
        %v2165 = vpop.permute.xlu0 %2164
        %2166 = vrot.lane.b32.xlu0 %v1754, 16
        %v2167 = vpop.permute.xlu0 %2166
        %2168 = vrot.lane.b32.xlu0 %v1755, 16
        %v2169 = vpop.permute.xlu0 %2168
        %2170 = vrot.lane.b32.xlu0 %v1757, 16
        %v2171 = vpop.permute.xlu0 %2170
        %2172 = vrot.lane.b32.xlu0 %v1758, 16
        %v2173 = vpop.permute.xlu0 %2172
        %2174 = vrot.lane.b32.xlu0 %v1759, 16
        %v2175 = vpop.permute.xlu0 %2174
        %2176 = vrot.lane.b32.xlu0 %v1761, 16
        %v2177 = vpop.permute.xlu0 %2176
        %2178 = vrot.lane.b32.xlu0 %v1762, 16
        %v2179 = vpop.permute.xlu0 %2178
        %2180 = vrot.lane.b32.xlu0 %v1763, 16
        %v2181 = vpop.permute.xlu0 %2180
        %2182 = vrot.lane.b32.xlu0 %v1765, 16
        %v2183 = vpop.permute.xlu0 %2182
        %2184 = vrot.lane.b32.xlu0 %v1766, 16
        %v2185 = vpop.permute.xlu0 %2184
        %2186 = vrot.lane.b32.xlu0 %v1767, 16
        %v2187 = vpop.permute.xlu0 %2186
        %2188 = vrot.lane.b32.xlu0 %v1769, 16
        %v2189 = vpop.permute.xlu0 %2188
        %2190 = vrot.lane.b32.xlu0 %v1770, 16
        %v2191 = vpop.permute.xlu0 %2190
        %2192 = vrot.lane.b32.xlu0 %v1771, 16
        %v2193 = vpop.permute.xlu0 %2192
        %2194 = vrot.lane.b32.xlu0 %v1773, 16
        %v2195 = vpop.permute.xlu0 %2194
        %2196 = vrot.lane.b32.xlu0 %v1774, 16
        %v2197 = vpop.permute.xlu0 %2196
        %2198 = vrot.lane.b32.xlu0 %v1775, 16
        %v2199 = vpop.permute.xlu0 %2198
        %2200 = vrot.lane.b32.xlu0 %v1777, 16
        %v2201 = vpop.permute.xlu0 %2200
        %2202 = vrot.lane.b32.xlu0 %v1778, 16
        %v2203 = vpop.permute.xlu0 %2202
        %2204 = vrot.lane.b32.xlu0 %v1779, 16
        %v2205 = vpop.permute.xlu0 %2204
        %2206 = vrot.lane.b32.xlu0 %v1781, 16
        %v2207 = vpop.permute.xlu0 %2206
        %2208 = vrot.lane.b32.xlu0 %v1782, 16
        %v2209 = vpop.permute.xlu0 %2208
        %2210 = vrot.lane.b32.xlu0 %v1783, 16
        %v2211 = vpop.permute.xlu0 %2210
        %2212 = vrot.lane.b32.xlu0 %v1785, 16
        %v2213 = vpop.permute.xlu0 %2212
        %2214 = vrot.lane.b32.xlu0 %v1786, 16
        %v2215 = vpop.permute.xlu0 %2214
        %2216 = vrot.lane.b32.xlu0 %v1787, 16
        %v2217 = vpop.permute.xlu0 %2216
        %2218 = vrot.lane.b32.xlu0 %v1789, 16
        %v2219 = vpop.permute.xlu0 %2218
        %2220 = vrot.lane.b32.xlu0 %v1790, 16
        %v2221 = vpop.permute.xlu0 %2220
        %2222 = vrot.lane.b32.xlu0 %v1791, 16
        %v2223 = vpop.permute.xlu0 %2222
        %vm2224 = vcmask 130048
        %v2225 = vsel %vm2224, %v1937, %v1939
        %v2226 = vsel %vm2224, %v1939, %v1941
        %v2227 = vsel %vm2224, %v1943, %v1945
        %v2228 = vsel %vm2224, %v1945, %v1947
        %v2229 = vsel %vm2224, %v1949, %v1951
        %v2230 = vsel %vm2224, %v1951, %v1953
        %v2231 = vsel %vm2224, %v1955, %v1957
        %v2232 = vsel %vm2224, %v1957, %v1959
        %v2233 = vsel %vm2224, %v1961, %v1963
        %v2234 = vsel %vm2224, %v1963, %v1965
        %v2235 = vsel %vm2224, %v1967, %v1969
        %v2236 = vsel %vm2224, %v1969, %v1971
        %v2237 = vsel %vm2224, %v1973, %v1975
        %v2238 = vsel %vm2224, %v1975, %v1977
        %v2239 = vsel %vm2224, %v1979, %v1981
        %v2240 = vsel %vm2224, %v1981, %v1983
        %v2241 = vsel %vm2224, %v1985, %v1987
        %v2242 = vsel %vm2224, %v1987, %v1989
        %v2243 = vsel %vm2224, %v1991, %v1993
        %v2244 = vsel %vm2224, %v1993, %v1995
        %v2245 = vsel %vm2224, %v1997, %v1999
        %v2246 = vsel %vm2224, %v1999, %v2001
        %v2247 = vsel %vm2224, %v2003, %v2005
        %v2248 = vsel %vm2224, %v2005, %v2007
        %v2249 = vsel %vm2224, %v2009, %v2011
        %v2250 = vsel %vm2224, %v2011, %v2013
        %v2251 = vsel %vm2224, %v2015, %v2017
        %v2252 = vsel %vm2224, %v2017, %v2019
        %v2253 = vsel %vm2224, %v2021, %v2023
        %v2254 = vsel %vm2224, %v2023, %v2025
        %v2255 = vsel %vm2224, %v2027, %v2029
        %v2256 = vsel %vm2224, %v2029, %v2031
        %v2257 = vsel %vm2224, %v2033, %v2035
        %v2258 = vsel %vm2224, %v2035, %v2037
        %v2259 = vsel %vm2224, %v2039, %v2041
        %v2260 = vsel %vm2224, %v2041, %v2043
        %v2261 = vsel %vm2224, %v2045, %v2047
        %v2262 = vsel %vm2224, %v2047, %v2049
        %v2263 = vsel %vm2224, %v2051, %v2053
        %v2264 = vsel %vm2224, %v2053, %v2055
        %v2265 = vsel %vm2224, %v2057, %v2059
        %v2266 = vsel %vm2224, %v2059, %v2061
        %v2267 = vsel %vm2224, %v2063, %v2065
        %v2268 = vsel %vm2224, %v2065, %v2067
        %v2269 = vsel %vm2224, %v2069, %v2071
        %v2270 = vsel %vm2224, %v2071, %v2073
        %v2271 = vsel %vm2224, %v2075, %v2077
        %v2272 = vsel %vm2224, %v2077, %v2079
        %v2273 = vsel %vm2224, %v2081, %v2083
        %v2274 = vsel %vm2224, %v2083, %v2085
        %v2275 = vsel %vm2224, %v2087, %v2089
        %v2276 = vsel %vm2224, %v2089, %v2091
        %v2277 = vsel %vm2224, %v2093, %v2095
        %v2278 = vsel %vm2224, %v2095, %v2097
        %v2279 = vsel %vm2224, %v2099, %v2101
        %v2280 = vsel %vm2224, %v2101, %v2103
        %v2281 = vsel %vm2224, %v2105, %v2107
        %v2282 = vsel %vm2224, %v2107, %v2109
        %v2283 = vsel %vm2224, %v2111, %v2113
        %v2284 = vsel %vm2224, %v2113, %v2115
        %v2285 = vsel %vm2224, %v2117, %v2119
        %v2286 = vsel %vm2224, %v2119, %v2121
        %v2287 = vsel %vm2224, %v2123, %v2125
        %v2288 = vsel %vm2224, %v2125, %v2127
        %v2289 = vsel %vm2224, %v2129, %v2131
        %v2290 = vsel %vm2224, %v2131, %v2133
        %v2291 = vsel %vm2224, %v2135, %v2137
        %v2292 = vsel %vm2224, %v2137, %v2139
        %v2293 = vsel %vm2224, %v2141, %v2143
        %v2294 = vsel %vm2224, %v2143, %v2145
        %v2295 = vsel %vm2224, %v2147, %v2149
        %v2296 = vsel %vm2224, %v2149, %v2151
        %v2297 = vsel %vm2224, %v2153, %v2155
        %v2298 = vsel %vm2224, %v2155, %v2157
        %v2299 = vsel %vm2224, %v2159, %v2161
        %v2300 = vsel %vm2224, %v2161, %v2163
        %v2301 = vsel %vm2224, %v2165, %v2167
        %v2302 = vsel %vm2224, %v2167, %v2169
        %v2303 = vsel %vm2224, %v2171, %v2173
        %v2304 = vsel %vm2224, %v2173, %v2175
        %v2305 = vsel %vm2224, %v2177, %v2179
        %v2306 = vsel %vm2224, %v2179, %v2181
        %v2307 = vsel %vm2224, %v2183, %v2185
        %v2308 = vsel %vm2224, %v2185, %v2187
        %v2309 = vsel %vm2224, %v2189, %v2191
        %v2310 = vsel %vm2224, %v2191, %v2193
        %v2311 = vsel %vm2224, %v2195, %v2197
        %v2312 = vsel %vm2224, %v2197, %v2199
        %v2313 = vsel %vm2224, %v2201, %v2203
        %v2314 = vsel %vm2224, %v2203, %v2205
        %v2315 = vsel %vm2224, %v2207, %v2209
        %v2316 = vsel %vm2224, %v2209, %v2211
        %v2317 = vsel %vm2224, %v2213, %v2215
        %v2318 = vsel %vm2224, %v2215, %v2217
        %v2319 = vsel %vm2224, %v2219, %v2221
        %v2320 = vsel %vm2224, %v2221, %v2223
        %v2417 = vmax.f32 %v1600, %v2225
        %v2418 = vmax.f32 %v1601, %v2226
        %v2419 = vmax.f32 %v1604, %v2227
        %v2420 = vmax.f32 %v1605, %v2228
        %v2421 = vmax.f32 %v1608, %v2229
        %v2422 = vmax.f32 %v1609, %v2230
        %v2423 = vmax.f32 %v1612, %v2231
        %v2424 = vmax.f32 %v1613, %v2232
        %v2425 = vmax.f32 %v1616, %v2233
        %v2426 = vmax.f32 %v1617, %v2234
        %v2427 = vmax.f32 %v1620, %v2235
        %v2428 = vmax.f32 %v1621, %v2236
        %v2429 = vmax.f32 %v1624, %v2237
        %v2430 = vmax.f32 %v1625, %v2238
        %v2431 = vmax.f32 %v1628, %v2239
        %v2432 = vmax.f32 %v1629, %v2240
        %v2433 = vmax.f32 %v1632, %v2241
        %v2434 = vmax.f32 %v1633, %v2242
        %v2435 = vmax.f32 %v1636, %v2243
        %v2436 = vmax.f32 %v1637, %v2244
        %v2437 = vmax.f32 %v1640, %v2245
        %v2438 = vmax.f32 %v1641, %v2246
        %v2439 = vmax.f32 %v1644, %v2247
        %v2440 = vmax.f32 %v1645, %v2248
        %v2441 = vmax.f32 %v1648, %v2249
        %v2442 = vmax.f32 %v1649, %v2250
        %v2443 = vmax.f32 %v1652, %v2251
        %v2444 = vmax.f32 %v1653, %v2252
        %v2445 = vmax.f32 %v1656, %v2253
        %v2446 = vmax.f32 %v1657, %v2254
        %v2447 = vmax.f32 %v1660, %v2255
        %v2448 = vmax.f32 %v1661, %v2256
        %v2449 = vmax.f32 %v1664, %v2257
        %v2450 = vmax.f32 %v1665, %v2258
        %v2451 = vmax.f32 %v1668, %v2259
        %v2452 = vmax.f32 %v1669, %v2260
        %v2453 = vmax.f32 %v1672, %v2261
        %v2454 = vmax.f32 %v1673, %v2262
        %v2455 = vmax.f32 %v1676, %v2263
        %v2456 = vmax.f32 %v1677, %v2264
        %v2457 = vmax.f32 %v1680, %v2265
        %v2458 = vmax.f32 %v1681, %v2266
        %v2459 = vmax.f32 %v1684, %v2267
        %v2460 = vmax.f32 %v1685, %v2268
        %v2461 = vmax.f32 %v1688, %v2269
        %v2462 = vmax.f32 %v1689, %v2270
        %v2463 = vmax.f32 %v1692, %v2271
        %v2464 = vmax.f32 %v1693, %v2272
        %v2465 = vmax.f32 %v1696, %v2273
        %v2466 = vmax.f32 %v1697, %v2274
        %v2467 = vmax.f32 %v1700, %v2275
        %v2468 = vmax.f32 %v1701, %v2276
        %v2469 = vmax.f32 %v1704, %v2277
        %v2470 = vmax.f32 %v1705, %v2278
        %v2471 = vmax.f32 %v1708, %v2279
        %v2472 = vmax.f32 %v1709, %v2280
        %v2473 = vmax.f32 %v1712, %v2281
        %v2474 = vmax.f32 %v1713, %v2282
        %v2475 = vmax.f32 %v1716, %v2283
        %v2476 = vmax.f32 %v1717, %v2284
        %v2477 = vmax.f32 %v1720, %v2285
        %v2478 = vmax.f32 %v1721, %v2286
        %v2479 = vmax.f32 %v1724, %v2287
        %v2480 = vmax.f32 %v1725, %v2288
        %v2481 = vmax.f32 %v1728, %v2289
        %v2482 = vmax.f32 %v1729, %v2290
        %v2483 = vmax.f32 %v1732, %v2291
        %v2484 = vmax.f32 %v1733, %v2292
        %v2485 = vmax.f32 %v1736, %v2293
        %v2486 = vmax.f32 %v1737, %v2294
        %v2487 = vmax.f32 %v1740, %v2295
        %v2488 = vmax.f32 %v1741, %v2296
        %v2489 = vmax.f32 %v1744, %v2297
        %v2490 = vmax.f32 %v1745, %v2298
        %v2491 = vmax.f32 %v1748, %v2299
        %v2492 = vmax.f32 %v1749, %v2300
        %v2493 = vmax.f32 %v1752, %v2301
        %v2494 = vmax.f32 %v1753, %v2302
        %v2495 = vmax.f32 %v1756, %v2303
        %v2496 = vmax.f32 %v1757, %v2304
        %v2497 = vmax.f32 %v1760, %v2305
        %v2498 = vmax.f32 %v1761, %v2306
        %v2499 = vmax.f32 %v1764, %v2307
        %v2500 = vmax.f32 %v1765, %v2308
        %v2501 = vmax.f32 %v1768, %v2309
        %v2502 = vmax.f32 %v1769, %v2310
        %v2503 = vmax.f32 %v1772, %v2311
        %v2504 = vmax.f32 %v1773, %v2312
        %v2505 = vmax.f32 %v1776, %v2313
        %v2506 = vmax.f32 %v1777, %v2314
        %v2507 = vmax.f32 %v1780, %v2315
        %v2508 = vmax.f32 %v1781, %v2316
        %v2509 = vmax.f32 %v1784, %v2317
        %v2510 = vmax.f32 %v1785, %v2318
        %v2511 = vmax.f32 %v1788, %v2319
        %v2512 = vmax.f32 %v1789, %v2320
        %v2513 = vmax.f32 %v2417, %v2421
        %v2514 = vmax.f32 %v2418, %v2422
        %v2515 = vmax.f32 %v2419, %v2423
        %v2516 = vmax.f32 %v2420, %v2424
        %v2517 = vmax.f32 %v2425, %v2429
        %v2518 = vmax.f32 %v2426, %v2430
        %v2519 = vmax.f32 %v2427, %v2431
        %v2520 = vmax.f32 %v2428, %v2432
        %v2521 = vmax.f32 %v2433, %v2437
        %v2522 = vmax.f32 %v2434, %v2438
        %v2523 = vmax.f32 %v2435, %v2439
        %v2524 = vmax.f32 %v2436, %v2440
        %v2525 = vmax.f32 %v2441, %v2445
        %v2526 = vmax.f32 %v2442, %v2446
        %v2527 = vmax.f32 %v2443, %v2447
        %v2528 = vmax.f32 %v2444, %v2448
        %v2529 = vmax.f32 %v2449, %v2453
        %v2530 = vmax.f32 %v2450, %v2454
        %v2531 = vmax.f32 %v2451, %v2455
        %v2532 = vmax.f32 %v2452, %v2456
        %v2533 = vmax.f32 %v2457, %v2461
        %v2534 = vmax.f32 %v2458, %v2462
        %v2535 = vmax.f32 %v2459, %v2463
        %v2536 = vmax.f32 %v2460, %v2464
        %v2537 = vmax.f32 %v2465, %v2469
        %v2538 = vmax.f32 %v2466, %v2470
        %v2539 = vmax.f32 %v2467, %v2471
        %v2540 = vmax.f32 %v2468, %v2472
        %v2541 = vmax.f32 %v2473, %v2477
        %v2542 = vmax.f32 %v2474, %v2478
        %v2543 = vmax.f32 %v2475, %v2479
        %v2544 = vmax.f32 %v2476, %v2480
        %v2545 = vmax.f32 %v2481, %v2485
        %v2546 = vmax.f32 %v2482, %v2486
        %v2547 = vmax.f32 %v2483, %v2487
        %v2548 = vmax.f32 %v2484, %v2488
        %v2549 = vmax.f32 %v2489, %v2493
        %v2550 = vmax.f32 %v2490, %v2494
        %v2551 = vmax.f32 %v2491, %v2495
        %v2552 = vmax.f32 %v2492, %v2496
        %v2553 = vmax.f32 %v2497, %v2501
        %v2554 = vmax.f32 %v2498, %v2502
        %v2555 = vmax.f32 %v2499, %v2503
        %v2556 = vmax.f32 %v2500, %v2504
        %v2557 = vmax.f32 %v2505, %v2509
        %v2558 = vmax.f32 %v2506, %v2510
        %v2559 = vmax.f32 %v2507, %v2511
        %v2560 = vmax.f32 %v2508, %v2512
        %v2561 = vld [vmem:[%s4] sm:$0xf]
        %v2562 = vld [vmem:[%s3] sm:$0xff]
        %v2563 = vld [vmem:[%s3 + $0x8] sm:$0xff]
        %v2564 = vld [vmem:[%s3 + $0x10] sm:$0xff]
        %v2565 = vld [vmem:[%s3 + $0x18] sm:$0xff]
        %v2566 = vld [vmem:[%s3 + $0x20] sm:$0xff]
        %v2567 = vld [vmem:[%s3 + $0x28] sm:$0xff]
        %v2568 = vld [vmem:[%s3 + $0x30] sm:$0xff]
        %v2569 = vld [vmem:[%s3 + $0x38] sm:$0xff]
        %v2570 = vld [vmem:[%s3 + $0x40] sm:$0xff]
        %v2571 = vld [vmem:[%s3 + $0x48] sm:$0xff]
        %v2572 = vld [vmem:[%s3 + $0x50] sm:$0xff]
        %v2573 = vld [vmem:[%s3 + $0x58] sm:$0xff]
        %v2574 = vld [vmem:[%s3 + $0x60] sm:$0xff]
        %v2575 = vld [vmem:[%s3 + $0x68] sm:$0xff]
        %v2576 = vld [vmem:[%s3 + $0x70] sm:$0xff]
        %v2577 = vld [vmem:[%s3 + $0x78] sm:$0xff]
        %v2578 = vld [vmem:[%s3 + $0x80] sm:$0xff]
        %v2579 = vld [vmem:[%s3 + $0x88] sm:$0xff]
        %v2580 = vld [vmem:[%s3 + $0x90] sm:$0xff]
        %v2581 = vld [vmem:[%s3 + $0x98] sm:$0xff]
        %v2582 = vld [vmem:[%s3 + $0xa0] sm:$0xff]
        %v2583 = vld [vmem:[%s3 + $0xa8] sm:$0xff]
        %v2584 = vld [vmem:[%s3 + $0xb0] sm:$0xff]
        %v2585 = vld [vmem:[%s3 + $0xb8] sm:$0xff]
        %v2586 = vld [vmem:[%s3 + $0xc0] sm:$0xff]
        %v2587 = vld [vmem:[%s3 + $0xc8] sm:$0xff]
        %v2588 = vld [vmem:[%s3 + $0xd0] sm:$0xff]
        %v2589 = vld [vmem:[%s3 + $0xd8] sm:$0xff]
        %v2590 = vld [vmem:[%s3 + $0xe0] sm:$0xff]
        %v2591 = vld [vmem:[%s3 + $0xe8] sm:$0xff]
        %v2592 = vld [vmem:[%s3 + $0xf0] sm:$0xff]
        %v2593 = vld [vmem:[%s3 + $0xf8] sm:$0xff]
        %v2594 = vld [vmem:[%s3 + $0x100] sm:$0xff]
        %v2595 = vld [vmem:[%s3 + $0x108] sm:$0xff]
        %v2596 = vld [vmem:[%s3 + $0x110] sm:$0xff]
        %v2597 = vld [vmem:[%s3 + $0x118] sm:$0xff]
        %v2598 = vld [vmem:[%s3 + $0x120] sm:$0xff]
        %v2599 = vld [vmem:[%s3 + $0x128] sm:$0xff]
        %v2600 = vld [vmem:[%s3 + $0x130] sm:$0xff]
        %v2601 = vld [vmem:[%s3 + $0x138] sm:$0xff]
        %v2602 = vld [vmem:[%s3 + $0x140] sm:$0xff]
        %v2603 = vld [vmem:[%s3 + $0x148] sm:$0xff]
        %v2604 = vld [vmem:[%s3 + $0x150] sm:$0xff]
        %v2605 = vld [vmem:[%s3 + $0x158] sm:$0xff]
        %v2606 = vld [vmem:[%s3 + $0x160] sm:$0xff]
        %v2607 = vld [vmem:[%s3 + $0x168] sm:$0xff]
        %v2608 = vld [vmem:[%s3 + $0x170] sm:$0xff]
        %v2609 = vld [vmem:[%s3 + $0x178] sm:$0xff]
        %v2610 = vld [vmem:[%s3 + $0x180] sm:$0xff]
        %v2611 = vld [vmem:[%s3 + $0x188] sm:$0xff]
        %v2612 = vld [vmem:[%s3 + $0x190] sm:$0xff]
        %v2613 = vld [vmem:[%s3 + $0x198] sm:$0xff]
        %v2614 = vld [vmem:[%s3 + $0x1a0] sm:$0xff]
        %v2615 = vld [vmem:[%s3 + $0x1a8] sm:$0xff]
        %v2616 = vld [vmem:[%s3 + $0x1b0] sm:$0xff]
        %v2617 = vld [vmem:[%s3 + $0x1b8] sm:$0xff]
        %v2618 = vld [vmem:[%s3 + $0x1c0] sm:$0xff]
        %v2619 = vld [vmem:[%s3 + $0x1c8] sm:$0xff]
        %v2620 = vld [vmem:[%s3 + $0x1d0] sm:$0xff]
        %v2621 = vld [vmem:[%s3 + $0x1d8] sm:$0xff]
        %v2622 = vld [vmem:[%s3 + $0x1e0] sm:$0xff]
        %v2623 = vld [vmem:[%s3 + $0x1e8] sm:$0xff]
        %v2624 = vld [vmem:[%s3 + $0x1f0] sm:$0xff]
        %v2625 = vld [vmem:[%s3 + $0x1f8] sm:$0xff]
        %v2626 = vld [vmem:[%s3 + $0x200] sm:$0xff]
        %v2627 = vld [vmem:[%s3 + $0x208] sm:$0xff]
        %v2628 = vld [vmem:[%s3 + $0x210] sm:$0xff]
        %v2629 = vld [vmem:[%s3 + $0x218] sm:$0xff]
        %v2630 = vld [vmem:[%s3 + $0x220] sm:$0xff]
        %v2631 = vld [vmem:[%s3 + $0x228] sm:$0xff]
        %v2632 = vld [vmem:[%s3 + $0x230] sm:$0xff]
        %v2633 = vld [vmem:[%s3 + $0x238] sm:$0xff]
        %v2634 = vld [vmem:[%s3 + $0x240] sm:$0xff]
        %v2635 = vld [vmem:[%s3 + $0x248] sm:$0xff]
        %v2636 = vld [vmem:[%s3 + $0x250] sm:$0xff]
        %v2637 = vld [vmem:[%s3 + $0x258] sm:$0xff]
        %v2638 = vld [vmem:[%s3 + $0x260] sm:$0xff]
        %v2639 = vld [vmem:[%s3 + $0x268] sm:$0xff]
        %v2640 = vld [vmem:[%s3 + $0x270] sm:$0xff]
        %v2641 = vld [vmem:[%s3 + $0x278] sm:$0xff]
        %v2642 = vld [vmem:[%s3 + $0x280] sm:$0xff]
        %v2643 = vld [vmem:[%s3 + $0x288] sm:$0xff]
        %v2644 = vld [vmem:[%s3 + $0x290] sm:$0xff]
        %v2645 = vld [vmem:[%s3 + $0x298] sm:$0xff]
        %v2646 = vld [vmem:[%s3 + $0x2a0] sm:$0xff]
        %v2647 = vld [vmem:[%s3 + $0x2a8] sm:$0xff]
        %v2648 = vld [vmem:[%s3 + $0x2b0] sm:$0xff]
        %v2649 = vld [vmem:[%s3 + $0x2b8] sm:$0xff]
        %v2650 = vld [vmem:[%s3 + $0x2c0] sm:$0xff]
        %v2651 = vld [vmem:[%s3 + $0x2c8] sm:$0xff]
        %v2652 = vld [vmem:[%s3 + $0x2d0] sm:$0xff]
        %v2653 = vld [vmem:[%s3 + $0x2d8] sm:$0xff]
        %v2654 = vld [vmem:[%s3 + $0x2e0] sm:$0xff]
        %v2655 = vld [vmem:[%s3 + $0x2e8] sm:$0xff]
        %v2656 = vld [vmem:[%s3 + $0x2f0] sm:$0xff]
        %v2657 = vld [vmem:[%s3 + $0x2f8] sm:$0xff]
        %v2658 = vld [vmem:[%s3 + $0x300] sm:$0xff]
        %v2659 = vld [vmem:[%s3 + $0x308] sm:$0xff]
        %v2660 = vld [vmem:[%s3 + $0x310] sm:$0xff]
        %v2661 = vld [vmem:[%s3 + $0x318] sm:$0xff]
        %v2662 = vld [vmem:[%s3 + $0x320] sm:$0xff]
        %v2663 = vld [vmem:[%s3 + $0x328] sm:$0xff]
        %v2664 = vld [vmem:[%s3 + $0x330] sm:$0xff]
        %v2665 = vld [vmem:[%s3 + $0x338] sm:$0xff]
        %v2666 = vld [vmem:[%s3 + $0x340] sm:$0xff]
        %v2667 = vld [vmem:[%s3 + $0x348] sm:$0xff]
        %v2668 = vld [vmem:[%s3 + $0x350] sm:$0xff]
        %v2669 = vld [vmem:[%s3 + $0x358] sm:$0xff]
        %v2670 = vld [vmem:[%s3 + $0x360] sm:$0xff]
        %v2671 = vld [vmem:[%s3 + $0x368] sm:$0xff]
        %v2672 = vld [vmem:[%s3 + $0x370] sm:$0xff]
        %v2673 = vld [vmem:[%s3 + $0x378] sm:$0xff]
        %v2674 = vld [vmem:[%s3 + $0x380] sm:$0xff]
        %v2675 = vld [vmem:[%s3 + $0x388] sm:$0xff]
        %v2676 = vld [vmem:[%s3 + $0x390] sm:$0xff]
        %v2677 = vld [vmem:[%s3 + $0x398] sm:$0xff]
        %v2678 = vld [vmem:[%s3 + $0x3a0] sm:$0xff]
        %v2679 = vld [vmem:[%s3 + $0x3a8] sm:$0xff]
        %v2680 = vld [vmem:[%s3 + $0x3b0] sm:$0xff]
        %v2681 = vld [vmem:[%s3 + $0x3b8] sm:$0xff]
        %vm2682 = vcmask 916480
        %v2684 = vsel %vm2682, %v2514, 0
        %v2687 = vsel %vm2682, %v2516, 0
        %v2690 = vsel %vm2682, %v2518, 0
        %v2693 = vsel %vm2682, %v2520, 0
        %v2696 = vsel %vm2682, %v2522, 0
        %v2699 = vsel %vm2682, %v2524, 0
        %v2702 = vsel %vm2682, %v2526, 0
        %v2705 = vsel %vm2682, %v2528, 0
        %v2708 = vsel %vm2682, %v2530, 0
        %v2711 = vsel %vm2682, %v2532, 0
        %v2714 = vsel %vm2682, %v2534, 0
        %v2717 = vsel %vm2682, %v2536, 0
        %v2720 = vsel %vm2682, %v2538, 0
        %v2723 = vsel %vm2682, %v2540, 0
        %v2726 = vsel %vm2682, %v2542, 0
        %v2729 = vsel %vm2682, %v2544, 0
        %2731 = vmatprep.subr.mxu0 %v2563
        %2732 = vmatpush1.msra.mxu0 %v2562
        %2733 = vmatprep.subr.mxu0 %v2567
        %2734 = vmatpush1.msra.mxu0 %v2566
        %2735 = vmatprep.subr.mxu0 %v2571
        %2736 = vmatpush1.msra.mxu0 %v2570
        %2737 = vmatprep.subr.mxu0 %v2575
        %2738 = vmatpush1.msra.mxu0 %v2574
        %2739 = vmatprep.subr.mxu0 %v2579
        %2740 = vmatpush1.msra.mxu0 %v2578
        %2741 = vmatprep.subr.mxu0 %v2583
        %2742 = vmatpush1.msra.mxu0 %v2582
        %2743 = vmatprep.subr.mxu0 %v2587
        %2744 = vmatpush1.msra.mxu0 %v2586
        %2745 = vmatprep.subr.mxu0 %v2591
        %2746 = vmatpush1.msra.mxu0 %v2590
        %2747 = vmatprep.subr.mxu0 %v2595
        %2748 = vmatpush1.msra.mxu0 %v2594
        %2749 = vmatprep.subr.mxu0 %v2599
        %2750 = vmatpush1.msra.mxu0 %v2598
        %2751 = vmatprep.subr.mxu0 %v2603
        %2752 = vmatpush1.msra.mxu0 %v2602
        %2753 = vmatprep.subr.mxu0 %v2607
        %2754 = vmatpush1.msra.mxu0 %v2606
        %2755 = vmatprep.subr.mxu0 %v2611
        %2756 = vmatpush1.msra.mxu0 %v2610
        %2757 = vmatprep.subr.mxu0 %v2615
        %2758 = vmatpush1.msra.mxu0 %v2614
        %2759 = vmatprep.subr.mxu0 %v2619
        %2760 = vmatpush1.msra.mxu0 %v2618
        %2761 = vmatprep.subr.mxu0 %v2623
        %2762 = vmatpush1.msra.mxu0 %v2622
        %2763 = vmatprep.subr.mxu0 %v2627
        %2764 = vmatpush1.msra.mxu0 %v2626
        %2765 = vmatprep.subr.mxu0 %v2631
        %2766 = vmatpush1.msra.mxu0 %v2630
        %2767 = vmatprep.subr.mxu0 %v2635
        %2768 = vmatpush1.msra.mxu0 %v2634
        %2769 = vmatprep.subr.mxu0 %v2639
        %2770 = vmatpush1.msra.mxu0 %v2638
        %2771 = vmatprep.subr.mxu0 %v2643
        %2772 = vmatpush1.msra.mxu0 %v2642
        %2773 = vmatprep.subr.mxu0 %v2647
        %2774 = vmatpush1.msra.mxu0 %v2646
        %2775 = vmatprep.subr.mxu0 %v2651
        %2776 = vmatpush1.msra.mxu0 %v2650
        %2777 = vmatprep.subr.mxu0 %v2655
        %2778 = vmatpush1.msra.mxu0 %v2654
        %2779 = vmatprep.subr.mxu0 %v2659
        %2780 = vmatpush1.msra.mxu0 %v2658
        %2781 = vmatprep.subr.mxu0 %v2663
        %2782 = vmatpush1.msra.mxu0 %v2662
        %2783 = vmatprep.subr.mxu0 %v2667
        %2784 = vmatpush1.msra.mxu0 %v2666
        %2785 = vmatprep.subr.mxu0 %v2671
        %2786 = vmatpush1.msra.mxu0 %v2670
        %2787 = vmatprep.subr.mxu0 %v2675
        %2788 = vmatpush1.msra.mxu0 %v2674
        %2789 = vmatprep.subr.mxu0 %v2679
        %2790 = vmatpush1.msra.mxu0 %v2678
        %2791 = vmatprep.subr.mxu0 0.0
        %2792 = vmatpush1.msra.mxu0 0.0
        %2793 = vmatprep.subr.mxu0 0.0
        %2794 = vmatpush1.msra.mxu0 0.0
        %2795 = vmatprep.mubr.f32.mxu0 %v2684
        %2796 = vmatmul.mubr.f32.gmra.mrb[0].mxu0 %v2513
        %v2797 = vpop.f32.mrb[0].mxu0
        %v2798 = vadd.f32 0.0, %v2797
        %v2799 = vpop.f32.mrb[0].mxu0
        %v2800 = vadd.f32 0.0, %v2799
        %2801 = vmatprep.mubr.f32.mxu0 %v2687
        %2802 = vmatmul.mubr.f32.gmra.mrb[0].mxu0 %v2515
        %v2803 = vpop.f32.mrb[0].mxu0
        %v2804 = vadd.f32 0.0, %v2803
        %v2805 = vpop.f32.mrb[0].mxu0
        %v2806 = vadd.f32 0.0, %v2805
        %2807 = vmatprep.mubr.f32.mxu0 %v2690
        %2808 = vmatmul.mubr.f32.gmra.mrb[0].mxu0 %v2517
        %v2809 = vpop.f32.mrb[0].mxu0
        %v2810 = vadd.f32 0.0, %v2809
        %v2811 = vpop.f32.mrb[0].mxu0
        %v2812 = vadd.f32 0.0, %v2811
        %2813 = vmatprep.mubr.f32.mxu0 %v2693
        %2814 = vmatmul.mubr.f32.gmra.mrb[0].mxu0 %v2519
        %v2815 = vpop.f32.mrb[0].mxu0
        %v2816 = vadd.f32 0.0, %v2815
        %v2817 = vpop.f32.mrb[0].mxu0
        %v2818 = vadd.f32 0.0, %v2817
        %2819 = vmatprep.mubr.f32.mxu0 %v2696
        %2820 = vmatmul.mubr.f32.gmra.mrb[0].mxu0 %v2521
        %v2821 = vpop.f32.mrb[0].mxu0
        %v2822 = vadd.f32 0.0, %v2821
        %v2823 = vpop.f32.mrb[0].mxu0
        %v2824 = vadd.f32 0.0, %v2823
        %2825 = vmatprep.mubr.f32.mxu0 %v2699
        %2826 = vmatmul.mubr.f32.gmra.mrb[0].mxu0 %v2523
        %v2827 = vpop.f32.mrb[0].mxu0
        %v2828 = vadd.f32 0.0, %v2827
        %v2829 = vpop.f32.mrb[0].mxu0
        %v2830 = vadd.f32 0.0, %v2829
        %2831 = vmatprep.mubr.f32.mxu0 %v2702
        %2832 = vmatmul.mubr.f32.gmra.mrb[0].mxu0 %v2525
        %v2833 = vpop.f32.mrb[0].mxu0
        %v2834 = vadd.f32 0.0, %v2833
        %v2835 = vpop.f32.mrb[0].mxu0
        %v2836 = vadd.f32 0.0, %v2835
        %2837 = vmatprep.mubr.f32.mxu0 %v2705
        %2838 = vmatmul.mubr.f32.gmra.mrb[0].mxu0 %v2527
        %v2839 = vpop.f32.mrb[0].mxu0
        %v2840 = vadd.f32 0.0, %v2839
        %v2841 = vpop.f32.mrb[0].mxu0
        %v2842 = vadd.f32 0.0, %v2841
        %2843 = vmatprep.mubr.f32.mxu0 %v2708
        %2844 = vmatmul.mubr.f32.gmra.mrb[0].mxu0 %v2529
        %v2845 = vpop.f32.mrb[0].mxu0
        %v2846 = vadd.f32 0.0, %v2845
        %v2847 = vpop.f32.mrb[0].mxu0
        %v2848 = vadd.f32 0.0, %v2847
        %2849 = vmatprep.mubr.f32.mxu0 %v2711
        %2850 = vmatmul.mubr.f32.gmra.mrb[0].mxu0 %v2531
        %v2851 = vpop.f32.mrb[0].mxu0
        %v2852 = vadd.f32 0.0, %v2851
        %v2853 = vpop.f32.mrb[0].mxu0
        %v2854 = vadd.f32 0.0, %v2853
        %2855 = vmatprep.mubr.f32.mxu0 %v2714
        %2856 = vmatmul.mubr.f32.gmra.mrb[0].mxu0 %v2533
        %v2857 = vpop.f32.mrb[0].mxu0
        %v2858 = vadd.f32 0.0, %v2857
        %v2859 = vpop.f32.mrb[0].mxu0
        %v2860 = vadd.f32 0.0, %v2859
        %2861 = vmatprep.mubr.f32.mxu0 %v2717
        %2862 = vmatmul.mubr.f32.gmra.mrb[0].mxu0 %v2535
        %v2863 = vpop.f32.mrb[0].mxu0
        %v2864 = vadd.f32 0.0, %v2863
        %v2865 = vpop.f32.mrb[0].mxu0
        %v2866 = vadd.f32 0.0, %v2865
        %2867 = vmatprep.mubr.f32.mxu0 %v2720
        %2868 = vmatmul.mubr.f32.gmra.mrb[0].mxu0 %v2537
        %v2869 = vpop.f32.mrb[0].mxu0
        %v2870 = vadd.f32 0.0, %v2869
        %v2871 = vpop.f32.mrb[0].mxu0
        %v2872 = vadd.f32 0.0, %v2871
        %2873 = vmatprep.mubr.f32.mxu0 %v2723
        %2874 = vmatmul.mubr.f32.gmra.mrb[0].mxu0 %v2539
        %v2875 = vpop.f32.mrb[0].mxu0
        %v2876 = vadd.f32 0.0, %v2875
        %v2877 = vpop.f32.mrb[0].mxu0
        %v2878 = vadd.f32 0.0, %v2877
        %2879 = vmatprep.mubr.f32.mxu0 %v2726
        %2880 = vmatmul.mubr.f32.gmra.mrb[0].mxu0 %v2541
        %v2881 = vpop.f32.mrb[0].mxu0
        %v2882 = vadd.f32 0.0, %v2881
        %v2883 = vpop.f32.mrb[0].mxu0
        %v2884 = vadd.f32 0.0, %v2883
        %2885 = vmatprep.mubr.f32.mxu0 %v2729
        %2886 = vmatmul.mubr.f32.gmra.mrb[0].mxu0 %v2543
        %v2887 = vpop.f32.mrb[0].mxu0
        %v2888 = vadd.f32 0.0, %v2887
        %v2889 = vpop.f32.mrb[0].mxu0
        %v2890 = vadd.f32 0.0, %v2889
        %2891 = vdwg.mxu0
        %2892 = vmatprep.subr.mxu0 %v2565
        %2893 = vmatpush1.msra.mxu0 %v2564
        %2894 = vmatprep.subr.mxu0 %v2569
        %2895 = vmatpush1.msra.mxu0 %v2568
        %2896 = vmatprep.subr.mxu0 %v2573
        %2897 = vmatpush1.msra.mxu0 %v2572
        %2898 = vmatprep.subr.mxu0 %v2577
        %2899 = vmatpush1.msra.mxu0 %v2576
        %2900 = vmatprep.subr.mxu0 %v2581
        %2901 = vmatpush1.msra.mxu0 %v2580
        %2902 = vmatprep.subr.mxu0 %v2585
        %2903 = vmatpush1.msra.mxu0 %v2584
        %2904 = vmatprep.subr.mxu0 %v2589
        %2905 = vmatpush1.msra.mxu0 %v2588
        %2906 = vmatprep.subr.mxu0 %v2593
        %2907 = vmatpush1.msra.mxu0 %v2592
        %2908 = vmatprep.subr.mxu0 %v2597
        %2909 = vmatpush1.msra.mxu0 %v2596
        %2910 = vmatprep.subr.mxu0 %v2601
        %2911 = vmatpush1.msra.mxu0 %v2600
        %2912 = vmatprep.subr.mxu0 %v2605
        %2913 = vmatpush1.msra.mxu0 %v2604
        %2914 = vmatprep.subr.mxu0 %v2609
        %2915 = vmatpush1.msra.mxu0 %v2608
        %2916 = vmatprep.subr.mxu0 %v2613
        %2917 = vmatpush1.msra.mxu0 %v2612
        %2918 = vmatprep.subr.mxu0 %v2617
        %2919 = vmatpush1.msra.mxu0 %v2616
        %2920 = vmatprep.subr.mxu0 %v2621
        %2921 = vmatpush1.msra.mxu0 %v2620
        %2922 = vmatprep.subr.mxu0 %v2625
        %2923 = vmatpush1.msra.mxu0 %v2624
        %2924 = vmatprep.subr.mxu0 %v2629
        %2925 = vmatpush1.msra.mxu0 %v2628
        %2926 = vmatprep.subr.mxu0 %v2633
        %2927 = vmatpush1.msra.mxu0 %v2632
        %2928 = vmatprep.subr.mxu0 %v2637
        %2929 = vmatpush1.msra.mxu0 %v2636
        %2930 = vmatprep.subr.mxu0 %v2641
        %2931 = vmatpush1.msra.mxu0 %v2640
        %2932 = vmatprep.subr.mxu0 %v2645
        %2933 = vmatpush1.msra.mxu0 %v2644
        %2934 = vmatprep.subr.mxu0 %v2649
        %2935 = vmatpush1.msra.mxu0 %v2648
        %2936 = vmatprep.subr.mxu0 %v2653
        %2937 = vmatpush1.msra.mxu0 %v2652
        %2938 = vmatprep.subr.mxu0 %v2657
        %2939 = vmatpush1.msra.mxu0 %v2656
        %2940 = vmatprep.subr.mxu0 %v2661
        %2941 = vmatpush1.msra.mxu0 %v2660
        %2942 = vmatprep.subr.mxu0 %v2665
        %2943 = vmatpush1.msra.mxu0 %v2664
        %2944 = vmatprep.subr.mxu0 %v2669
        %2945 = vmatpush1.msra.mxu0 %v2668
        %2946 = vmatprep.subr.mxu0 %v2673
        %2947 = vmatpush1.msra.mxu0 %v2672
        %2948 = vmatprep.subr.mxu0 %v2677
        %2949 = vmatpush1.msra.mxu0 %v2676
        %2950 = vmatprep.subr.mxu0 %v2681
        %2951 = vmatpush1.msra.mxu0 %v2680
        %2952 = vmatprep.subr.mxu0 0.0
        %2953 = vmatpush1.msra.mxu0 0.0
        %2954 = vmatprep.subr.mxu0 0.0
        %2955 = vmatpush1.msra.mxu0 0.0
        %2956 = vmatprep.mubr.f32.mxu0 %v2684
        %2957 = vmatmul.mubr.f32.gmra.mrb[0].mxu0 %v2513
        %v2958 = vpop.f32.mrb[0].mxu0
        %v2959 = vadd.f32 0.0, %v2958
        %v2960 = vpop.f32.mrb[0].mxu0
        %v2961 = vadd.f32 0.0, %v2960
        %2962 = vmatprep.mubr.f32.mxu0 %v2687
        %2963 = vmatmul.mubr.f32.gmra.mrb[0].mxu0 %v2515
        %v2964 = vpop.f32.mrb[0].mxu0
        %v2965 = vadd.f32 0.0, %v2964
        %v2966 = vpop.f32.mrb[0].mxu0
        %v2967 = vadd.f32 0.0, %v2966
        %2968 = vmatprep.mubr.f32.mxu0 %v2690
        %2969 = vmatmul.mubr.f32.gmra.mrb[0].mxu0 %v2517
        %v2970 = vpop.f32.mrb[0].mxu0
        %v2971 = vadd.f32 0.0, %v2970
        %v2972 = vpop.f32.mrb[0].mxu0
        %v2973 = vadd.f32 0.0, %v2972
        %2974 = vmatprep.mubr.f32.mxu0 %v2693
        %2975 = vmatmul.mubr.f32.gmra.mrb[0].mxu0 %v2519
        %v2976 = vpop.f32.mrb[0].mxu0
        %v2977 = vadd.f32 0.0, %v2976
        %v2978 = vpop.f32.mrb[0].mxu0
        %v2979 = vadd.f32 0.0, %v2978
        %2980 = vmatprep.mubr.f32.mxu0 %v2696
        %2981 = vmatmul.mubr.f32.gmra.mrb[0].mxu0 %v2521
        %v2982 = vpop.f32.mrb[0].mxu0
        %v2983 = vadd.f32 0.0, %v2982
        %v2984 = vpop.f32.mrb[0].mxu0
        %v2985 = vadd.f32 0.0, %v2984
        %2986 = vmatprep.mubr.f32.mxu0 %v2699
        %2987 = vmatmul.mubr.f32.gmra.mrb[0].mxu0 %v2523
        %v2988 = vpop.f32.mrb[0].mxu0
        %v2989 = vadd.f32 0.0, %v2988
        %v2990 = vpop.f32.mrb[0].mxu0
        %v2991 = vadd.f32 0.0, %v2990
        %2992 = vmatprep.mubr.f32.mxu0 %v2702
        %2993 = vmatmul.mubr.f32.gmra.mrb[0].mxu0 %v2525
        %v2994 = vpop.f32.mrb[0].mxu0
        %v2995 = vadd.f32 0.0, %v2994
        %v2996 = vpop.f32.mrb[0].mxu0
        %v2997 = vadd.f32 0.0, %v2996
        %2998 = vmatprep.mubr.f32.mxu0 %v2705
        %2999 = vmatmul.mubr.f32.gmra.mrb[0].mxu0 %v2527
        %v3000 = vpop.f32.mrb[0].mxu0
        %v3001 = vadd.f32 0.0, %v3000
        %v3002 = vpop.f32.mrb[0].mxu0
        %v3003 = vadd.f32 0.0, %v3002
        %3004 = vmatprep.mubr.f32.mxu0 %v2708
        %3005 = vmatmul.mubr.f32.gmra.mrb[0].mxu0 %v2529
        %v3006 = vpop.f32.mrb[0].mxu0
        %v3007 = vadd.f32 0.0, %v3006
        %v3008 = vpop.f32.mrb[0].mxu0
        %v3009 = vadd.f32 0.0, %v3008
        %3010 = vmatprep.mubr.f32.mxu0 %v2711
        %3011 = vmatmul.mubr.f32.gmra.mrb[0].mxu0 %v2531
        %v3012 = vpop.f32.mrb[0].mxu0
        %v3013 = vadd.f32 0.0, %v3012
        %v3014 = vpop.f32.mrb[0].mxu0
        %v3015 = vadd.f32 0.0, %v3014
        %3016 = vmatprep.mubr.f32.mxu0 %v2714
        %3017 = vmatmul.mubr.f32.gmra.mrb[0].mxu0 %v2533
        %v3018 = vpop.f32.mrb[0].mxu0
        %v3019 = vadd.f32 0.0, %v3018
        %v3020 = vpop.f32.mrb[0].mxu0
        %v3021 = vadd.f32 0.0, %v3020
        %3022 = vmatprep.mubr.f32.mxu0 %v2717
        %3023 = vmatmul.mubr.f32.gmra.mrb[0].mxu0 %v2535
        %v3024 = vpop.f32.mrb[0].mxu0
        %v3025 = vadd.f32 0.0, %v3024
        %v3026 = vpop.f32.mrb[0].mxu0
        %v3027 = vadd.f32 0.0, %v3026
        %3028 = vmatprep.mubr.f32.mxu0 %v2720
        %3029 = vmatmul.mubr.f32.gmra.mrb[0].mxu0 %v2537
        %v3030 = vpop.f32.mrb[0].mxu0
        %v3031 = vadd.f32 0.0, %v3030
        %v3032 = vpop.f32.mrb[0].mxu0
        %v3033 = vadd.f32 0.0, %v3032
        %3034 = vmatprep.mubr.f32.mxu0 %v2723
        %3035 = vmatmul.mubr.f32.gmra.mrb[0].mxu0 %v2539
        %v3036 = vpop.f32.mrb[0].mxu0
        %v3037 = vadd.f32 0.0, %v3036
        %v3038 = vpop.f32.mrb[0].mxu0
        %v3039 = vadd.f32 0.0, %v3038
        %3040 = vmatprep.mubr.f32.mxu0 %v2726
        %3041 = vmatmul.mubr.f32.gmra.mrb[0].mxu0 %v2541
        %v3042 = vpop.f32.mrb[0].mxu0
        %v3043 = vadd.f32 0.0, %v3042
        %v3044 = vpop.f32.mrb[0].mxu0
        %v3045 = vadd.f32 0.0, %v3044
        %3046 = vmatprep.mubr.f32.mxu0 %v2729
        %3047 = vmatmul.mubr.f32.gmra.mrb[0].mxu0 %v2543
        %v3048 = vpop.f32.mrb[0].mxu0
        %v3049 = vadd.f32 0.0, %v3048
        %v3050 = vpop.f32.mrb[0].mxu0
        %v3051 = vadd.f32 0.0, %v3050
        %3052 = vdwg.mxu0
        %v3054 = vlaneseq
        %v3055 = vshrl.u32 %v3054, 7
        %v3056 = vsub.s32 0, %v3055
        %v3057 = vrot.slane %v2561, %v3056
        %v3058 = vlaneseq
        %v3059 = vshrl.u32 %v3058, 7
        %v3060 = vsub.s32 1, %v3059
        %v3061 = vrot.slane %v2561, %v3060
        %v3062 = vlaneseq
        %v3063 = vshrl.u32 %v3062, 7
        %v3064 = vsub.s32 2, %v3063
        %v3065 = vrot.slane %v2561, %v3064
        %v3066 = vlaneseq
        %v3067 = vshrl.u32 %v3066, 7
        %v3068 = vsub.s32 3, %v3067
        %v3069 = vrot.slane %v2561, %v3068
        %v3074 = vadd.f32 %v3057, %v2798
        %v3075 = vadd.f32 %v3061, %v2800
        %v3076 = vadd.f32 %v3065, %v2959
        %v3077 = vadd.f32 %v3069, %v2961
        %v3078 = vadd.f32 %v3057, %v2804
        %v3079 = vadd.f32 %v3061, %v2806
        %v3080 = vadd.f32 %v3065, %v2965
        %v3081 = vadd.f32 %v3069, %v2967
        %v3082 = vadd.f32 %v3057, %v2810
        %v3083 = vadd.f32 %v3061, %v2812
        %v3084 = vadd.f32 %v3065, %v2971
        %v3085 = vadd.f32 %v3069, %v2973
        %v3086 = vadd.f32 %v3057, %v2816
        %v3087 = vadd.f32 %v3061, %v2818
        %v3088 = vadd.f32 %v3065, %v2977
        %v3089 = vadd.f32 %v3069, %v2979
        %v3090 = vadd.f32 %v3057, %v2822
        %v3091 = vadd.f32 %v3061, %v2824
        %v3092 = vadd.f32 %v3065, %v2983
        %v3093 = vadd.f32 %v3069, %v2985
        %v3094 = vadd.f32 %v3057, %v2828
        %v3095 = vadd.f32 %v3061, %v2830
        %v3096 = vadd.f32 %v3065, %v2989
        %v3097 = vadd.f32 %v3069, %v2991
        %v3098 = vadd.f32 %v3057, %v2834
        %v3099 = vadd.f32 %v3061, %v2836
        %v3100 = vadd.f32 %v3065, %v2995
        %v3101 = vadd.f32 %v3069, %v2997
        %v3102 = vadd.f32 %v3057, %v2840
        %v3103 = vadd.f32 %v3061, %v2842
        %v3104 = vadd.f32 %v3065, %v3001
        %v3105 = vadd.f32 %v3069, %v3003
        %v3106 = vadd.f32 %v3057, %v2846
        %v3107 = vadd.f32 %v3061, %v2848
        %v3108 = vadd.f32 %v3065, %v3007
        %v3109 = vadd.f32 %v3069, %v3009
        %v3110 = vadd.f32 %v3057, %v2852
        %v3111 = vadd.f32 %v3061, %v2854
        %v3112 = vadd.f32 %v3065, %v3013
        %v3113 = vadd.f32 %v3069, %v3015
        %v3114 = vadd.f32 %v3057, %v2858
        %v3115 = vadd.f32 %v3061, %v2860
        %v3116 = vadd.f32 %v3065, %v3019
        %v3117 = vadd.f32 %v3069, %v3021
        %v3118 = vadd.f32 %v3057, %v2864
        %v3119 = vadd.f32 %v3061, %v2866
        %v3120 = vadd.f32 %v3065, %v3025
        %v3121 = vadd.f32 %v3069, %v3027
        %v3122 = vadd.f32 %v3057, %v2870
        %v3123 = vadd.f32 %v3061, %v2872
        %v3124 = vadd.f32 %v3065, %v3031
        %v3125 = vadd.f32 %v3069, %v3033
        %v3126 = vadd.f32 %v3057, %v2876
        %v3127 = vadd.f32 %v3061, %v2878
        %v3128 = vadd.f32 %v3065, %v3037
        %v3129 = vadd.f32 %v3069, %v3039
        %v3130 = vadd.f32 %v3057, %v2882
        %v3131 = vadd.f32 %v3061, %v2884
        %v3132 = vadd.f32 %v3065, %v3043
        %v3133 = vadd.f32 %v3069, %v3045
        %v3134 = vadd.f32 %v3057, %v2888
        %v3135 = vadd.f32 %v3061, %v2890
        %v3136 = vadd.f32 %v3065, %v3049
        %v3137 = vadd.f32 %v3069, %v3051
        %s3138 = scalar_lea.vmem %s3, 960
        %v3139 = vld [vmem:[%s3138] sm:$0xff]
        %v3140 = vld [vmem:[%s3138 + $0x8] sm:$0xff]
        %v3141 = vld [vmem:[%s3138 + $0x10] sm:$0xff]
        %v3142 = vld [vmem:[%s3138 + $0x18] sm:$0xff]
        %v3143 = vld [vmem:[%s3138 + $0x20] sm:$0xff]
        %v3144 = vld [vmem:[%s3138 + $0x28] sm:$0xff]
        %v3145 = vld [vmem:[%s3138 + $0x30] sm:$0xff]
        %v3146 = vld [vmem:[%s3138 + $0x38] sm:$0xff]
        %v3147 = vld [vmem:[%s3138 + $0x40] sm:$0xff]
        %v3148 = vld [vmem:[%s3138 + $0x48] sm:$0xff]
        %v3149 = vld [vmem:[%s3138 + $0x50] sm:$0xff]
        %v3150 = vld [vmem:[%s3138 + $0x58] sm:$0xff]
        %v3151 = vld [vmem:[%s3138 + $0x60] sm:$0xff]
        %v3152 = vld [vmem:[%s3138 + $0x68] sm:$0xff]
        %v3153 = vld [vmem:[%s3138 + $0x70] sm:$0xff]
        %v3154 = vld [vmem:[%s3138 + $0x78] sm:$0xff]
        %v3155 = vld [vmem:[%s3138 + $0x80] sm:$0xff]
        %v3156 = vld [vmem:[%s3138 + $0x88] sm:$0xff]
        %v3157 = vld [vmem:[%s3138 + $0x90] sm:$0xff]
        %v3158 = vld [vmem:[%s3138 + $0x98] sm:$0xff]
        %v3159 = vld [vmem:[%s3138 + $0xa0] sm:$0xff]
        %v3160 = vld [vmem:[%s3138 + $0xa8] sm:$0xff]
        %v3161 = vld [vmem:[%s3138 + $0xb0] sm:$0xff]
        %v3162 = vld [vmem:[%s3138 + $0xb8] sm:$0xff]
        %v3163 = vld [vmem:[%s3138 + $0xc0] sm:$0xff]
        %v3164 = vld [vmem:[%s3138 + $0xc8] sm:$0xff]
        %v3165 = vld [vmem:[%s3138 + $0xd0] sm:$0xff]
        %v3166 = vld [vmem:[%s3138 + $0xd8] sm:$0xff]
        %v3167 = vld [vmem:[%s3138 + $0xe0] sm:$0xff]
        %v3168 = vld [vmem:[%s3138 + $0xe8] sm:$0xff]
        %v3169 = vld [vmem:[%s3138 + $0xf0] sm:$0xff]
        %v3170 = vld [vmem:[%s3138 + $0xf8] sm:$0xff]
        %v3171 = vld [vmem:[%s3138 + $0x100] sm:$0xff]
        %v3172 = vld [vmem:[%s3138 + $0x108] sm:$0xff]
        %v3173 = vld [vmem:[%s3138 + $0x110] sm:$0xff]
        %v3174 = vld [vmem:[%s3138 + $0x118] sm:$0xff]
        %v3175 = vld [vmem:[%s3138 + $0x120] sm:$0xff]
        %v3176 = vld [vmem:[%s3138 + $0x128] sm:$0xff]
        %v3177 = vld [vmem:[%s3138 + $0x130] sm:$0xff]
        %v3178 = vld [vmem:[%s3138 + $0x138] sm:$0xff]
        %v3179 = vld [vmem:[%s3138 + $0x140] sm:$0xff]
        %v3180 = vld [vmem:[%s3138 + $0x148] sm:$0xff]
        %v3181 = vld [vmem:[%s3138 + $0x150] sm:$0xff]
        %v3182 = vld [vmem:[%s3138 + $0x158] sm:$0xff]
        %v3183 = vld [vmem:[%s3138 + $0x160] sm:$0xff]
        %v3184 = vld [vmem:[%s3138 + $0x168] sm:$0xff]
        %v3185 = vld [vmem:[%s3138 + $0x170] sm:$0xff]
        %v3186 = vld [vmem:[%s3138 + $0x178] sm:$0xff]
        %v3187 = vld [vmem:[%s3138 + $0x180] sm:$0xff]
        %v3188 = vld [vmem:[%s3138 + $0x188] sm:$0xff]
        %v3189 = vld [vmem:[%s3138 + $0x190] sm:$0xff]
        %v3190 = vld [vmem:[%s3138 + $0x198] sm:$0xff]
        %v3191 = vld [vmem:[%s3138 + $0x1a0] sm:$0xff]
        %v3192 = vld [vmem:[%s3138 + $0x1a8] sm:$0xff]
        %v3193 = vld [vmem:[%s3138 + $0x1b0] sm:$0xff]
        %v3194 = vld [vmem:[%s3138 + $0x1b8] sm:$0xff]
        %v3195 = vld [vmem:[%s3138 + $0x1c0] sm:$0xff]
        %v3196 = vld [vmem:[%s3138 + $0x1c8] sm:$0xff]
        %v3197 = vld [vmem:[%s3138 + $0x1d0] sm:$0xff]
        %v3198 = vld [vmem:[%s3138 + $0x1d8] sm:$0xff]
        %v3199 = vld [vmem:[%s3138 + $0x1e0] sm:$0xff]
        %v3200 = vld [vmem:[%s3138 + $0x1e8] sm:$0xff]
        %v3201 = vld [vmem:[%s3138 + $0x1f0] sm:$0xff]
        %v3202 = vld [vmem:[%s3138 + $0x1f8] sm:$0xff]
        %v3203 = vld [vmem:[%s3138 + $0x200] sm:$0xff]
        %v3204 = vld [vmem:[%s3138 + $0x208] sm:$0xff]
        %v3205 = vld [vmem:[%s3138 + $0x210] sm:$0xff]
        %v3206 = vld [vmem:[%s3138 + $0x218] sm:$0xff]
        %v3207 = vld [vmem:[%s3138 + $0x220] sm:$0xff]
        %v3208 = vld [vmem:[%s3138 + $0x228] sm:$0xff]
        %v3209 = vld [vmem:[%s3138 + $0x230] sm:$0xff]
        %v3210 = vld [vmem:[%s3138 + $0x238] sm:$0xff]
        %v3211 = vld [vmem:[%s3138 + $0x240] sm:$0xff]
        %v3212 = vld [vmem:[%s3138 + $0x248] sm:$0xff]
        %v3213 = vld [vmem:[%s3138 + $0x250] sm:$0xff]
        %v3214 = vld [vmem:[%s3138 + $0x258] sm:$0xff]
        %v3215 = vld [vmem:[%s3138 + $0x260] sm:$0xff]
        %v3216 = vld [vmem:[%s3138 + $0x268] sm:$0xff]
        %v3217 = vld [vmem:[%s3138 + $0x270] sm:$0xff]
        %v3218 = vld [vmem:[%s3138 + $0x278] sm:$0xff]
        %v3219 = vld [vmem:[%s3138 + $0x280] sm:$0xff]
        %v3220 = vld [vmem:[%s3138 + $0x288] sm:$0xff]
        %v3221 = vld [vmem:[%s3138 + $0x290] sm:$0xff]
        %v3222 = vld [vmem:[%s3138 + $0x298] sm:$0xff]
        %v3223 = vld [vmem:[%s3138 + $0x2a0] sm:$0xff]
        %v3224 = vld [vmem:[%s3138 + $0x2a8] sm:$0xff]
        %v3225 = vld [vmem:[%s3138 + $0x2b0] sm:$0xff]
        %v3226 = vld [vmem:[%s3138 + $0x2b8] sm:$0xff]
        %v3227 = vld [vmem:[%s3138 + $0x2c0] sm:$0xff]
        %v3228 = vld [vmem:[%s3138 + $0x2c8] sm:$0xff]
        %v3229 = vld [vmem:[%s3138 + $0x2d0] sm:$0xff]
        %v3230 = vld [vmem:[%s3138 + $0x2d8] sm:$0xff]
        %v3231 = vld [vmem:[%s3138 + $0x2e0] sm:$0xff]
        %v3232 = vld [vmem:[%s3138 + $0x2e8] sm:$0xff]
        %v3233 = vld [vmem:[%s3138 + $0x2f0] sm:$0xff]
        %v3234 = vld [vmem:[%s3138 + $0x2f8] sm:$0xff]
        %v3235 = vld [vmem:[%s3138 + $0x300] sm:$0xff]
        %v3236 = vld [vmem:[%s3138 + $0x308] sm:$0xff]
        %v3237 = vld [vmem:[%s3138 + $0x310] sm:$0xff]
        %v3238 = vld [vmem:[%s3138 + $0x318] sm:$0xff]
        %v3239 = vld [vmem:[%s3138 + $0x320] sm:$0xff]
        %v3240 = vld [vmem:[%s3138 + $0x328] sm:$0xff]
        %v3241 = vld [vmem:[%s3138 + $0x330] sm:$0xff]
        %v3242 = vld [vmem:[%s3138 + $0x338] sm:$0xff]
        %v3243 = vld [vmem:[%s3138 + $0x340] sm:$0xff]
        %v3244 = vld [vmem:[%s3138 + $0x348] sm:$0xff]
        %v3245 = vld [vmem:[%s3138 + $0x350] sm:$0xff]
        %v3246 = vld [vmem:[%s3138 + $0x358] sm:$0xff]
        %v3247 = vld [vmem:[%s3138 + $0x360] sm:$0xff]
        %v3248 = vld [vmem:[%s3138 + $0x368] sm:$0xff]
        %v3249 = vld [vmem:[%s3138 + $0x370] sm:$0xff]
        %v3250 = vld [vmem:[%s3138 + $0x378] sm:$0xff]
        %v3251 = vld [vmem:[%s3138 + $0x380] sm:$0xff]
        %v3252 = vld [vmem:[%s3138 + $0x388] sm:$0xff]
        %v3253 = vld [vmem:[%s3138 + $0x390] sm:$0xff]
        %v3254 = vld [vmem:[%s3138 + $0x398] sm:$0xff]
        %v3255 = vld [vmem:[%s3138 + $0x3a0] sm:$0xff]
        %v3256 = vld [vmem:[%s3138 + $0x3a8] sm:$0xff]
        %v3257 = vld [vmem:[%s3138 + $0x3b0] sm:$0xff]
        %v3258 = vld [vmem:[%s3138 + $0x3b8] sm:$0xff]
        %v3260 = vsel %vm2682, %v2546, 0
        %v3263 = vsel %vm2682, %v2548, 0
        %3265 = vmatprep.subr.mxu0 %v3140
        %3266 = vmatpush1.msra.mxu0 %v3139
        %3267 = vmatprep.subr.mxu0 %v3144
        %3268 = vmatpush1.msra.mxu0 %v3143
        %3269 = vmatprep.subr.mxu0 %v3148
        %3270 = vmatpush1.msra.mxu0 %v3147
        %3271 = vmatprep.subr.mxu0 %v3152
        %3272 = vmatpush1.msra.mxu0 %v3151
        %3273 = vmatprep.subr.mxu0 %v3156
        %3274 = vmatpush1.msra.mxu0 %v3155
        %3275 = vmatprep.subr.mxu0 %v3160
        %3276 = vmatpush1.msra.mxu0 %v3159
        %3277 = vmatprep.subr.mxu0 %v3164
        %3278 = vmatpush1.msra.mxu0 %v3163
        %3279 = vmatprep.subr.mxu0 %v3168
        %3280 = vmatpush1.msra.mxu0 %v3167
        %3281 = vmatprep.subr.mxu0 %v3172
        %3282 = vmatpush1.msra.mxu0 %v3171
        %3283 = vmatprep.subr.mxu0 %v3176
        %3284 = vmatpush1.msra.mxu0 %v3175
        %3285 = vmatprep.subr.mxu0 %v3180
        %3286 = vmatpush1.msra.mxu0 %v3179
        %3287 = vmatprep.subr.mxu0 %v3184
        %3288 = vmatpush1.msra.mxu0 %v3183
        %3289 = vmatprep.subr.mxu0 %v3188
        %3290 = vmatpush1.msra.mxu0 %v3187
        %3291 = vmatprep.subr.mxu0 %v3192
        %3292 = vmatpush1.msra.mxu0 %v3191
        %3293 = vmatprep.subr.mxu0 %v3196
        %3294 = vmatpush1.msra.mxu0 %v3195
        %3295 = vmatprep.subr.mxu0 %v3200
        %3296 = vmatpush1.msra.mxu0 %v3199
        %3297 = vmatprep.subr.mxu0 %v3204
        %3298 = vmatpush1.msra.mxu0 %v3203
        %3299 = vmatprep.subr.mxu0 %v3208
        %3300 = vmatpush1.msra.mxu0 %v3207
        %3301 = vmatprep.subr.mxu0 %v3212
        %3302 = vmatpush1.msra.mxu0 %v3211
        %3303 = vmatprep.subr.mxu0 %v3216
        %3304 = vmatpush1.msra.mxu0 %v3215
        %3305 = vmatprep.subr.mxu0 %v3220
        %3306 = vmatpush1.msra.mxu0 %v3219
        %3307 = vmatprep.subr.mxu0 %v3224
        %3308 = vmatpush1.msra.mxu0 %v3223
        %3309 = vmatprep.subr.mxu0 %v3228
        %3310 = vmatpush1.msra.mxu0 %v3227
        %3311 = vmatprep.subr.mxu0 %v3232
        %3312 = vmatpush1.msra.mxu0 %v3231
        %3313 = vmatprep.subr.mxu0 %v3236
        %3314 = vmatpush1.msra.mxu0 %v3235
        %3315 = vmatprep.subr.mxu0 %v3240
        %3316 = vmatpush1.msra.mxu0 %v3239
        %3317 = vmatprep.subr.mxu0 %v3244
        %3318 = vmatpush1.msra.mxu0 %v3243
        %3319 = vmatprep.subr.mxu0 %v3248
        %3320 = vmatpush1.msra.mxu0 %v3247
        %3321 = vmatprep.subr.mxu0 %v3252
        %3322 = vmatpush1.msra.mxu0 %v3251
        %3323 = vmatprep.subr.mxu0 %v3256
        %3324 = vmatpush1.msra.mxu0 %v3255
        %3325 = vmatprep.subr.mxu0 0.0
        %3326 = vmatpush1.msra.mxu0 0.0
        %3327 = vmatprep.subr.mxu0 0.0
        %3328 = vmatpush1.msra.mxu0 0.0
        %3329 = vmatprep.mubr.f32.mxu0 %v2690
        %3330 = vmatmul.mubr.f32.gmra.mrb[0].mxu0 %v2517
        %v3331 = vpop.f32.mrb[0].mxu0
        %v3332 = vadd.f32 0.0, %v3331
        %v3333 = vpop.f32.mrb[0].mxu0
        %v3334 = vadd.f32 0.0, %v3333
        %3335 = vmatprep.mubr.f32.mxu0 %v2693
        %3336 = vmatmul.mubr.f32.gmra.mrb[0].mxu0 %v2519
        %v3337 = vpop.f32.mrb[0].mxu0
        %v3338 = vadd.f32 0.0, %v3337
        %v3339 = vpop.f32.mrb[0].mxu0
        %v3340 = vadd.f32 0.0, %v3339
        %3341 = vmatprep.mubr.f32.mxu0 %v2696
        %3342 = vmatmul.mubr.f32.gmra.mrb[0].mxu0 %v2521
        %v3343 = vpop.f32.mrb[0].mxu0
        %v3344 = vadd.f32 0.0, %v3343
        %v3345 = vpop.f32.mrb[0].mxu0
        %v3346 = vadd.f32 0.0, %v3345
        %3347 = vmatprep.mubr.f32.mxu0 %v2699
        %3348 = vmatmul.mubr.f32.gmra.mrb[0].mxu0 %v2523
        %v3349 = vpop.f32.mrb[0].mxu0
        %v3350 = vadd.f32 0.0, %v3349
        %v3351 = vpop.f32.mrb[0].mxu0
        %v3352 = vadd.f32 0.0, %v3351
        %3353 = vmatprep.mubr.f32.mxu0 %v2702
        %3354 = vmatmul.mubr.f32.gmra.mrb[0].mxu0 %v2525
        %v3355 = vpop.f32.mrb[0].mxu0
        %v3356 = vadd.f32 0.0, %v3355
        %v3357 = vpop.f32.mrb[0].mxu0
        %v3358 = vadd.f32 0.0, %v3357
        %3359 = vmatprep.mubr.f32.mxu0 %v2705
        %3360 = vmatmul.mubr.f32.gmra.mrb[0].mxu0 %v2527
        %v3361 = vpop.f32.mrb[0].mxu0
        %v3362 = vadd.f32 0.0, %v3361
        %v3363 = vpop.f32.mrb[0].mxu0
        %v3364 = vadd.f32 0.0, %v3363
        %3365 = vmatprep.mubr.f32.mxu0 %v2708
        %3366 = vmatmul.mubr.f32.gmra.mrb[0].mxu0 %v2529
        %v3367 = vpop.f32.mrb[0].mxu0
        %v3368 = vadd.f32 0.0, %v3367
        %v3369 = vpop.f32.mrb[0].mxu0
        %v3370 = vadd.f32 0.0, %v3369
        %3371 = vmatprep.mubr.f32.mxu0 %v2711
        %3372 = vmatmul.mubr.f32.gmra.mrb[0].mxu0 %v2531
        %v3373 = vpop.f32.mrb[0].mxu0
        %v3374 = vadd.f32 0.0, %v3373
        %v3375 = vpop.f32.mrb[0].mxu0
        %v3376 = vadd.f32 0.0, %v3375
        %3377 = vmatprep.mubr.f32.mxu0 %v2714
        %3378 = vmatmul.mubr.f32.gmra.mrb[0].mxu0 %v2533
        %v3379 = vpop.f32.mrb[0].mxu0
        %v3380 = vadd.f32 0.0, %v3379
        %v3381 = vpop.f32.mrb[0].mxu0
        %v3382 = vadd.f32 0.0, %v3381
        %3383 = vmatprep.mubr.f32.mxu0 %v2717
        %3384 = vmatmul.mubr.f32.gmra.mrb[0].mxu0 %v2535
        %v3385 = vpop.f32.mrb[0].mxu0
        %v3386 = vadd.f32 0.0, %v3385
        %v3387 = vpop.f32.mrb[0].mxu0
        %v3388 = vadd.f32 0.0, %v3387
        %3389 = vmatprep.mubr.f32.mxu0 %v2720
        %3390 = vmatmul.mubr.f32.gmra.mrb[0].mxu0 %v2537
        %v3391 = vpop.f32.mrb[0].mxu0
        %v3392 = vadd.f32 0.0, %v3391
        %v3393 = vpop.f32.mrb[0].mxu0
        %v3394 = vadd.f32 0.0, %v3393
        %3395 = vmatprep.mubr.f32.mxu0 %v2723
        %3396 = vmatmul.mubr.f32.gmra.mrb[0].mxu0 %v2539
        %v3397 = vpop.f32.mrb[0].mxu0
        %v3398 = vadd.f32 0.0, %v3397
        %v3399 = vpop.f32.mrb[0].mxu0
        %v3400 = vadd.f32 0.0, %v3399
        %3401 = vmatprep.mubr.f32.mxu0 %v2726
        %3402 = vmatmul.mubr.f32.gmra.mrb[0].mxu0 %v2541
        %v3403 = vpop.f32.mrb[0].mxu0
        %v3404 = vadd.f32 0.0, %v3403
        %v3405 = vpop.f32.mrb[0].mxu0
        %v3406 = vadd.f32 0.0, %v3405
        %3407 = vmatprep.mubr.f32.mxu0 %v2729
        %3408 = vmatmul.mubr.f32.gmra.mrb[0].mxu0 %v2543
        %v3409 = vpop.f32.mrb[0].mxu0
        %v3410 = vadd.f32 0.0, %v3409
        %v3411 = vpop.f32.mrb[0].mxu0
        %v3412 = vadd.f32 0.0, %v3411
        %3413 = vmatprep.mubr.f32.mxu0 %v3260
        %3414 = vmatmul.mubr.f32.gmra.mrb[0].mxu0 %v2545
        %v3415 = vpop.f32.mrb[0].mxu0
        %v3416 = vadd.f32 0.0, %v3415
        %v3417 = vpop.f32.mrb[0].mxu0
        %v3418 = vadd.f32 0.0, %v3417
        %3419 = vmatprep.mubr.f32.mxu0 %v3263
        %3420 = vmatmul.mubr.f32.gmra.mrb[0].mxu0 %v2547
        %v3421 = vpop.f32.mrb[0].mxu0
        %v3422 = vadd.f32 0.0, %v3421
        %v3423 = vpop.f32.mrb[0].mxu0
        %v3424 = vadd.f32 0.0, %v3423
        %3425 = vdwg.mxu0
        %3426 = vmatprep.subr.mxu0 %v3142
        %3427 = vmatpush1.msra.mxu0 %v3141
        %3428 = vmatprep.subr.mxu0 %v3146
        %3429 = vmatpush1.msra.mxu0 %v3145
        %3430 = vmatprep.subr.mxu0 %v3150
        %3431 = vmatpush1.msra.mxu0 %v3149
        %3432 = vmatprep.subr.mxu0 %v3154
        %3433 = vmatpush1.msra.mxu0 %v3153
        %3434 = vmatprep.subr.mxu0 %v3158
        %3435 = vmatpush1.msra.mxu0 %v3157
        %3436 = vmatprep.subr.mxu0 %v3162
        %3437 = vmatpush1.msra.mxu0 %v3161
        %3438 = vmatprep.subr.mxu0 %v3166
        %3439 = vmatpush1.msra.mxu0 %v3165
        %3440 = vmatprep.subr.mxu0 %v3170
        %3441 = vmatpush1.msra.mxu0 %v3169
        %3442 = vmatprep.subr.mxu0 %v3174
        %3443 = vmatpush1.msra.mxu0 %v3173
        %3444 = vmatprep.subr.mxu0 %v3178
        %3445 = vmatpush1.msra.mxu0 %v3177
        %3446 = vmatprep.subr.mxu0 %v3182
        %3447 = vmatpush1.msra.mxu0 %v3181
        %3448 = vmatprep.subr.mxu0 %v3186
        %3449 = vmatpush1.msra.mxu0 %v3185
        %3450 = vmatprep.subr.mxu0 %v3190
        %3451 = vmatpush1.msra.mxu0 %v3189
        %3452 = vmatprep.subr.mxu0 %v3194
        %3453 = vmatpush1.msra.mxu0 %v3193
        %3454 = vmatprep.subr.mxu0 %v3198
        %3455 = vmatpush1.msra.mxu0 %v3197
        %3456 = vmatprep.subr.mxu0 %v3202
        %3457 = vmatpush1.msra.mxu0 %v3201
        %3458 = vmatprep.subr.mxu0 %v3206
        %3459 = vmatpush1.msra.mxu0 %v3205
        %3460 = vmatprep.subr.mxu0 %v3210
        %3461 = vmatpush1.msra.mxu0 %v3209
        %3462 = vmatprep.subr.mxu0 %v3214
        %3463 = vmatpush1.msra.mxu0 %v3213
        %3464 = vmatprep.subr.mxu0 %v3218
        %3465 = vmatpush1.msra.mxu0 %v3217
        %3466 = vmatprep.subr.mxu0 %v3222
        %3467 = vmatpush1.msra.mxu0 %v3221
        %3468 = vmatprep.subr.mxu0 %v3226
        %3469 = vmatpush1.msra.mxu0 %v3225
        %3470 = vmatprep.subr.mxu0 %v3230
        %3471 = vmatpush1.msra.mxu0 %v3229
        %3472 = vmatprep.subr.mxu0 %v3234
        %3473 = vmatpush1.msra.mxu0 %v3233
        %3474 = vmatprep.subr.mxu0 %v3238
        %3475 = vmatpush1.msra.mxu0 %v3237
        %3476 = vmatprep.subr.mxu0 %v3242
        %3477 = vmatpush1.msra.mxu0 %v3241
        %3478 = vmatprep.subr.mxu0 %v3246
        %3479 = vmatpush1.msra.mxu0 %v3245
        %3480 = vmatprep.subr.mxu0 %v3250
        %3481 = vmatpush1.msra.mxu0 %v3249
        %3482 = vmatprep.subr.mxu0 %v3254
        %3483 = vmatpush1.msra.mxu0 %v3253
        %3484 = vmatprep.subr.mxu0 %v3258
        %3485 = vmatpush1.msra.mxu0 %v3257
        %3486 = vmatprep.subr.mxu0 0.0
        %3487 = vmatpush1.msra.mxu0 0.0
        %3488 = vmatprep.subr.mxu0 0.0
        %3489 = vmatpush1.msra.mxu0 0.0
        %3490 = vmatprep.mubr.f32.mxu0 %v2690
        %3491 = vmatmul.mubr.f32.gmra.mrb[0].mxu0 %v2517
        %v3492 = vpop.f32.mrb[0].mxu0
        %v3493 = vadd.f32 0.0, %v3492
        %v3494 = vpop.f32.mrb[0].mxu0
        %v3495 = vadd.f32 0.0, %v3494
        %3496 = vmatprep.mubr.f32.mxu0 %v2693
        %3497 = vmatmul.mubr.f32.gmra.mrb[0].mxu0 %v2519
        %v3498 = vpop.f32.mrb[0].mxu0
        %v3499 = vadd.f32 0.0, %v3498
        %v3500 = vpop.f32.mrb[0].mxu0
        %v3501 = vadd.f32 0.0, %v3500
        %3502 = vmatprep.mubr.f32.mxu0 %v2696
        %3503 = vmatmul.mubr.f32.gmra.mrb[0].mxu0 %v2521
        %v3504 = vpop.f32.mrb[0].mxu0
        %v3505 = vadd.f32 0.0, %v3504
        %v3506 = vpop.f32.mrb[0].mxu0
        %v3507 = vadd.f32 0.0, %v3506
        %3508 = vmatprep.mubr.f32.mxu0 %v2699
        %3509 = vmatmul.mubr.f32.gmra.mrb[0].mxu0 %v2523
        %v3510 = vpop.f32.mrb[0].mxu0
        %v3511 = vadd.f32 0.0, %v3510
        %v3512 = vpop.f32.mrb[0].mxu0
        %v3513 = vadd.f32 0.0, %v3512
        %3514 = vmatprep.mubr.f32.mxu0 %v2702
        %3515 = vmatmul.mubr.f32.gmra.mrb[0].mxu0 %v2525
        %v3516 = vpop.f32.mrb[0].mxu0
        %v3517 = vadd.f32 0.0, %v3516
        %v3518 = vpop.f32.mrb[0].mxu0
        %v3519 = vadd.f32 0.0, %v3518
        %3520 = vmatprep.mubr.f32.mxu0 %v2705
        %3521 = vmatmul.mubr.f32.gmra.mrb[0].mxu0 %v2527
        %v3522 = vpop.f32.mrb[0].mxu0
        %v3523 = vadd.f32 0.0, %v3522
        %v3524 = vpop.f32.mrb[0].mxu0
        %v3525 = vadd.f32 0.0, %v3524
        %3526 = vmatprep.mubr.f32.mxu0 %v2708
        %3527 = vmatmul.mubr.f32.gmra.mrb[0].mxu0 %v2529
        %v3528 = vpop.f32.mrb[0].mxu0
        %v3529 = vadd.f32 0.0, %v3528
        %v3530 = vpop.f32.mrb[0].mxu0
        %v3531 = vadd.f32 0.0, %v3530
        %3532 = vmatprep.mubr.f32.mxu0 %v2711
        %3533 = vmatmul.mubr.f32.gmra.mrb[0].mxu0 %v2531
        %v3534 = vpop.f32.mrb[0].mxu0
        %v3535 = vadd.f32 0.0, %v3534
        %v3536 = vpop.f32.mrb[0].mxu0
        %v3537 = vadd.f32 0.0, %v3536
        %3538 = vmatprep.mubr.f32.mxu0 %v2714
        %3539 = vmatmul.mubr.f32.gmra.mrb[0].mxu0 %v2533
        %v3540 = vpop.f32.mrb[0].mxu0
        %v3541 = vadd.f32 0.0, %v3540
        %v3542 = vpop.f32.mrb[0].mxu0
        %v3543 = vadd.f32 0.0, %v3542
        %3544 = vmatprep.mubr.f32.mxu0 %v2717
        %3545 = vmatmul.mubr.f32.gmra.mrb[0].mxu0 %v2535
        %v3546 = vpop.f32.mrb[0].mxu0
        %v3547 = vadd.f32 0.0, %v3546
        %v3548 = vpop.f32.mrb[0].mxu0
        %v3549 = vadd.f32 0.0, %v3548
        %3550 = vmatprep.mubr.f32.mxu0 %v2720
        %3551 = vmatmul.mubr.f32.gmra.mrb[0].mxu0 %v2537
        %v3552 = vpop.f32.mrb[0].mxu0
        %v3553 = vadd.f32 0.0, %v3552
        %v3554 = vpop.f32.mrb[0].mxu0
        %v3555 = vadd.f32 0.0, %v3554
        %3556 = vmatprep.mubr.f32.mxu0 %v2723
        %3557 = vmatmul.mubr.f32.gmra.mrb[0].mxu0 %v2539
        %v3558 = vpop.f32.mrb[0].mxu0
        %v3559 = vadd.f32 0.0, %v3558
        %v3560 = vpop.f32.mrb[0].mxu0
        %v3561 = vadd.f32 0.0, %v3560
        %3562 = vmatprep.mubr.f32.mxu0 %v2726
        %3563 = vmatmul.mubr.f32.gmra.mrb[0].mxu0 %v2541
        %v3564 = vpop.f32.mrb[0].mxu0
        %v3565 = vadd.f32 0.0, %v3564
        %v3566 = vpop.f32.mrb[0].mxu0
        %v3567 = vadd.f32 0.0, %v3566
        %3568 = vmatprep.mubr.f32.mxu0 %v2729
        %3569 = vmatmul.mubr.f32.gmra.mrb[0].mxu0 %v2543
        %v3570 = vpop.f32.mrb[0].mxu0
        %v3571 = vadd.f32 0.0, %v3570
        %v3572 = vpop.f32.mrb[0].mxu0
        %v3573 = vadd.f32 0.0, %v3572
        %3574 = vmatprep.mubr.f32.mxu0 %v3260
        %3575 = vmatmul.mubr.f32.gmra.mrb[0].mxu0 %v2545
        %v3576 = vpop.f32.mrb[0].mxu0
        %v3577 = vadd.f32 0.0, %v3576
        %v3578 = vpop.f32.mrb[0].mxu0
        %v3579 = vadd.f32 0.0, %v3578
        %3580 = vmatprep.mubr.f32.mxu0 %v3263
        %3581 = vmatmul.mubr.f32.gmra.mrb[0].mxu0 %v2547
        %v3582 = vpop.f32.mrb[0].mxu0
        %v3583 = vadd.f32 0.0, %v3582
        %v3584 = vpop.f32.mrb[0].mxu0
        %v3585 = vadd.f32 0.0, %v3584
        %3586 = vdwg.mxu0
        %v3587 = vadd.f32 %v3074, %v3332
        %v3588 = vadd.f32 %v3075, %v3334
        %v3589 = vadd.f32 %v3076, %v3493
        %v3590 = vadd.f32 %v3077, %v3495
        %v3591 = vadd.f32 %v3078, %v3338
        %v3592 = vadd.f32 %v3079, %v3340
        %v3593 = vadd.f32 %v3080, %v3499
        %v3594 = vadd.f32 %v3081, %v3501
        %v3595 = vadd.f32 %v3082, %v3344
        %v3596 = vadd.f32 %v3083, %v3346
        %v3597 = vadd.f32 %v3084, %v3505
        %v3598 = vadd.f32 %v3085, %v3507
        %v3599 = vadd.f32 %v3086, %v3350
        %v3600 = vadd.f32 %v3087, %v3352
        %v3601 = vadd.f32 %v3088, %v3511
        %v3602 = vadd.f32 %v3089, %v3513
        %v3603 = vadd.f32 %v3090, %v3356
        %v3604 = vadd.f32 %v3091, %v3358
        %v3605 = vadd.f32 %v3092, %v3517
        %v3606 = vadd.f32 %v3093, %v3519
        %v3607 = vadd.f32 %v3094, %v3362
        %v3608 = vadd.f32 %v3095, %v3364
        %v3609 = vadd.f32 %v3096, %v3523
        %v3610 = vadd.f32 %v3097, %v3525
        %v3611 = vadd.f32 %v3098, %v3368
        %v3612 = vadd.f32 %v3099, %v3370
        %v3613 = vadd.f32 %v3100, %v3529
        %v3614 = vadd.f32 %v3101, %v3531
        %v3615 = vadd.f32 %v3102, %v3374
        %v3616 = vadd.f32 %v3103, %v3376
        %v3617 = vadd.f32 %v3104, %v3535
        %v3618 = vadd.f32 %v3105, %v3537
        %v3619 = vadd.f32 %v3106, %v3380
        %v3620 = vadd.f32 %v3107, %v3382
        %v3621 = vadd.f32 %v3108, %v3541
        %v3622 = vadd.f32 %v3109, %v3543
        %v3623 = vadd.f32 %v3110, %v3386
        %v3624 = vadd.f32 %v3111, %v3388
        %v3625 = vadd.f32 %v3112, %v3547
        %v3626 = vadd.f32 %v3113, %v3549
        %v3627 = vadd.f32 %v3114, %v3392
        %v3628 = vadd.f32 %v3115, %v3394
        %v3629 = vadd.f32 %v3116, %v3553
        %v3630 = vadd.f32 %v3117, %v3555
        %v3631 = vadd.f32 %v3118, %v3398
        %v3632 = vadd.f32 %v3119, %v3400
        %v3633 = vadd.f32 %v3120, %v3559
        %v3634 = vadd.f32 %v3121, %v3561
        %v3635 = vadd.f32 %v3122, %v3404
        %v3636 = vadd.f32 %v3123, %v3406
        %v3637 = vadd.f32 %v3124, %v3565
        %v3638 = vadd.f32 %v3125, %v3567
        %v3639 = vadd.f32 %v3126, %v3410
        %v3640 = vadd.f32 %v3127, %v3412
        %v3641 = vadd.f32 %v3128, %v3571
        %v3642 = vadd.f32 %v3129, %v3573
        %v3643 = vadd.f32 %v3130, %v3416
        %v3644 = vadd.f32 %v3131, %v3418
        %v3645 = vadd.f32 %v3132, %v3577
        %v3646 = vadd.f32 %v3133, %v3579
        %v3647 = vadd.f32 %v3134, %v3422
        %v3648 = vadd.f32 %v3135, %v3424
        %v3649 = vadd.f32 %v3136, %v3583
        %v3650 = vadd.f32 %v3137, %v3585
        %s3651 = scalar_lea.vmem %s3, 1920
        %v3652 = vld [vmem:[%s3651] sm:$0xff]
        %v3653 = vld [vmem:[%s3651 + $0x8] sm:$0xff]
        %v3654 = vld [vmem:[%s3651 + $0x10] sm:$0xff]
        %v3655 = vld [vmem:[%s3651 + $0x18] sm:$0xff]
        %v3656 = vld [vmem:[%s3651 + $0x20] sm:$0xff]
        %v3657 = vld [vmem:[%s3651 + $0x28] sm:$0xff]
        %v3658 = vld [vmem:[%s3651 + $0x30] sm:$0xff]
        %v3659 = vld [vmem:[%s3651 + $0x38] sm:$0xff]
        %v3660 = vld [vmem:[%s3651 + $0x40] sm:$0xff]
        %v3661 = vld [vmem:[%s3651 + $0x48] sm:$0xff]
        %v3662 = vld [vmem:[%s3651 + $0x50] sm:$0xff]
        %v3663 = vld [vmem:[%s3651 + $0x58] sm:$0xff]
        %v3664 = vld [vmem:[%s3651 + $0x60] sm:$0xff]
        %v3665 = vld [vmem:[%s3651 + $0x68] sm:$0xff]
        %v3666 = vld [vmem:[%s3651 + $0x70] sm:$0xff]
        %v3667 = vld [vmem:[%s3651 + $0x78] sm:$0xff]
        %v3668 = vld [vmem:[%s3651 + $0x80] sm:$0xff]
        %v3669 = vld [vmem:[%s3651 + $0x88] sm:$0xff]
        %v3670 = vld [vmem:[%s3651 + $0x90] sm:$0xff]
        %v3671 = vld [vmem:[%s3651 + $0x98] sm:$0xff]
        %v3672 = vld [vmem:[%s3651 + $0xa0] sm:$0xff]
        %v3673 = vld [vmem:[%s3651 + $0xa8] sm:$0xff]
        %v3674 = vld [vmem:[%s3651 + $0xb0] sm:$0xff]
        %v3675 = vld [vmem:[%s3651 + $0xb8] sm:$0xff]
        %v3676 = vld [vmem:[%s3651 + $0xc0] sm:$0xff]
        %v3677 = vld [vmem:[%s3651 + $0xc8] sm:$0xff]
        %v3678 = vld [vmem:[%s3651 + $0xd0] sm:$0xff]
        %v3679 = vld [vmem:[%s3651 + $0xd8] sm:$0xff]
        %v3680 = vld [vmem:[%s3651 + $0xe0] sm:$0xff]
        %v3681 = vld [vmem:[%s3651 + $0xe8] sm:$0xff]
        %v3682 = vld [vmem:[%s3651 + $0xf0] sm:$0xff]
        %v3683 = vld [vmem:[%s3651 + $0xf8] sm:$0xff]
        %v3684 = vld [vmem:[%s3651 + $0x100] sm:$0xff]
        %v3685 = vld [vmem:[%s3651 + $0x108] sm:$0xff]
        %v3686 = vld [vmem:[%s3651 + $0x110] sm:$0xff]
        %v3687 = vld [vmem:[%s3651 + $0x118] sm:$0xff]
        %v3688 = vld [vmem:[%s3651 + $0x120] sm:$0xff]
        %v3689 = vld [vmem:[%s3651 + $0x128] sm:$0xff]
        %v3690 = vld [vmem:[%s3651 + $0x130] sm:$0xff]
        %v3691 = vld [vmem:[%s3651 + $0x138] sm:$0xff]
        %v3692 = vld [vmem:[%s3651 + $0x140] sm:$0xff]
        %v3693 = vld [vmem:[%s3651 + $0x148] sm:$0xff]
        %v3694 = vld [vmem:[%s3651 + $0x150] sm:$0xff]
        %v3695 = vld [vmem:[%s3651 + $0x158] sm:$0xff]
        %v3696 = vld [vmem:[%s3651 + $0x160] sm:$0xff]
        %v3697 = vld [vmem:[%s3651 + $0x168] sm:$0xff]
        %v3698 = vld [vmem:[%s3651 + $0x170] sm:$0xff]
        %v3699 = vld [vmem:[%s3651 + $0x178] sm:$0xff]
        %v3700 = vld [vmem:[%s3651 + $0x180] sm:$0xff]
        %v3701 = vld [vmem:[%s3651 + $0x188] sm:$0xff]
        %v3702 = vld [vmem:[%s3651 + $0x190] sm:$0xff]
        %v3703 = vld [vmem:[%s3651 + $0x198] sm:$0xff]
        %v3704 = vld [vmem:[%s3651 + $0x1a0] sm:$0xff]
        %v3705 = vld [vmem:[%s3651 + $0x1a8] sm:$0xff]
        %v3706 = vld [vmem:[%s3651 + $0x1b0] sm:$0xff]
        %v3707 = vld [vmem:[%s3651 + $0x1b8] sm:$0xff]
        %v3708 = vld [vmem:[%s3651 + $0x1c0] sm:$0xff]
        %v3709 = vld [vmem:[%s3651 + $0x1c8] sm:$0xff]
        %v3710 = vld [vmem:[%s3651 + $0x1d0] sm:$0xff]
        %v3711 = vld [vmem:[%s3651 + $0x1d8] sm:$0xff]
        %v3712 = vld [vmem:[%s3651 + $0x1e0] sm:$0xff]
        %v3713 = vld [vmem:[%s3651 + $0x1e8] sm:$0xff]
        %v3714 = vld [vmem:[%s3651 + $0x1f0] sm:$0xff]
        %v3715 = vld [vmem:[%s3651 + $0x1f8] sm:$0xff]
        %v3716 = vld [vmem:[%s3651 + $0x200] sm:$0xff]
        %v3717 = vld [vmem:[%s3651 + $0x208] sm:$0xff]
        %v3718 = vld [vmem:[%s3651 + $0x210] sm:$0xff]
        %v3719 = vld [vmem:[%s3651 + $0x218] sm:$0xff]
        %v3720 = vld [vmem:[%s3651 + $0x220] sm:$0xff]
        %v3721 = vld [vmem:[%s3651 + $0x228] sm:$0xff]
        %v3722 = vld [vmem:[%s3651 + $0x230] sm:$0xff]
        %v3723 = vld [vmem:[%s3651 + $0x238] sm:$0xff]
        %v3724 = vld [vmem:[%s3651 + $0x240] sm:$0xff]
        %v3725 = vld [vmem:[%s3651 + $0x248] sm:$0xff]
        %v3726 = vld [vmem:[%s3651 + $0x250] sm:$0xff]
        %v3727 = vld [vmem:[%s3651 + $0x258] sm:$0xff]
        %v3728 = vld [vmem:[%s3651 + $0x260] sm:$0xff]
        %v3729 = vld [vmem:[%s3651 + $0x268] sm:$0xff]
        %v3730 = vld [vmem:[%s3651 + $0x270] sm:$0xff]
        %v3731 = vld [vmem:[%s3651 + $0x278] sm:$0xff]
        %v3732 = vld [vmem:[%s3651 + $0x280] sm:$0xff]
        %v3733 = vld [vmem:[%s3651 + $0x288] sm:$0xff]
        %v3734 = vld [vmem:[%s3651 + $0x290] sm:$0xff]
        %v3735 = vld [vmem:[%s3651 + $0x298] sm:$0xff]
        %v3736 = vld [vmem:[%s3651 + $0x2a0] sm:$0xff]
        %v3737 = vld [vmem:[%s3651 + $0x2a8] sm:$0xff]
        %v3738 = vld [vmem:[%s3651 + $0x2b0] sm:$0xff]
        %v3739 = vld [vmem:[%s3651 + $0x2b8] sm:$0xff]
        %v3740 = vld [vmem:[%s3651 + $0x2c0] sm:$0xff]
        %v3741 = vld [vmem:[%s3651 + $0x2c8] sm:$0xff]
        %v3742 = vld [vmem:[%s3651 + $0x2d0] sm:$0xff]
        %v3743 = vld [vmem:[%s3651 + $0x2d8] sm:$0xff]
        %v3744 = vld [vmem:[%s3651 + $0x2e0] sm:$0xff]
        %v3745 = vld [vmem:[%s3651 + $0x2e8] sm:$0xff]
        %v3746 = vld [vmem:[%s3651 + $0x2f0] sm:$0xff]
        %v3747 = vld [vmem:[%s3651 + $0x2f8] sm:$0xff]
        %v3748 = vld [vmem:[%s3651 + $0x300] sm:$0xff]
        %v3749 = vld [vmem:[%s3651 + $0x308] sm:$0xff]
        %v3750 = vld [vmem:[%s3651 + $0x310] sm:$0xff]
        %v3751 = vld [vmem:[%s3651 + $0x318] sm:$0xff]
        %v3752 = vld [vmem:[%s3651 + $0x320] sm:$0xff]
        %v3753 = vld [vmem:[%s3651 + $0x328] sm:$0xff]
        %v3754 = vld [vmem:[%s3651 + $0x330] sm:$0xff]
        %v3755 = vld [vmem:[%s3651 + $0x338] sm:$0xff]
        %v3756 = vld [vmem:[%s3651 + $0x340] sm:$0xff]
        %v3757 = vld [vmem:[%s3651 + $0x348] sm:$0xff]
        %v3758 = vld [vmem:[%s3651 + $0x350] sm:$0xff]
        %v3759 = vld [vmem:[%s3651 + $0x358] sm:$0xff]
        %v3760 = vld [vmem:[%s3651 + $0x360] sm:$0xff]
        %v3761 = vld [vmem:[%s3651 + $0x368] sm:$0xff]
        %v3762 = vld [vmem:[%s3651 + $0x370] sm:$0xff]
        %v3763 = vld [vmem:[%s3651 + $0x378] sm:$0xff]
        %v3764 = vld [vmem:[%s3651 + $0x380] sm:$0xff]
        %v3765 = vld [vmem:[%s3651 + $0x388] sm:$0xff]
        %v3766 = vld [vmem:[%s3651 + $0x390] sm:$0xff]
        %v3767 = vld [vmem:[%s3651 + $0x398] sm:$0xff]
        %v3768 = vld [vmem:[%s3651 + $0x3a0] sm:$0xff]
        %v3769 = vld [vmem:[%s3651 + $0x3a8] sm:$0xff]
        %v3770 = vld [vmem:[%s3651 + $0x3b0] sm:$0xff]
        %v3771 = vld [vmem:[%s3651 + $0x3b8] sm:$0xff]
        %v3773 = vsel %vm2682, %v2550, 0
        %v3776 = vsel %vm2682, %v2552, 0
        %3778 = vmatprep.subr.mxu0 %v3653
        %3779 = vmatpush1.msra.mxu0 %v3652
        %3780 = vmatprep.subr.mxu0 %v3657
        %3781 = vmatpush1.msra.mxu0 %v3656
        %3782 = vmatprep.subr.mxu0 %v3661
        %3783 = vmatpush1.msra.mxu0 %v3660
        %3784 = vmatprep.subr.mxu0 %v3665
        %3785 = vmatpush1.msra.mxu0 %v3664
        %3786 = vmatprep.subr.mxu0 %v3669
        %3787 = vmatpush1.msra.mxu0 %v3668
        %3788 = vmatprep.subr.mxu0 %v3673
        %3789 = vmatpush1.msra.mxu0 %v3672
        %3790 = vmatprep.subr.mxu0 %v3677
        %3791 = vmatpush1.msra.mxu0 %v3676
        %3792 = vmatprep.subr.mxu0 %v3681
        %3793 = vmatpush1.msra.mxu0 %v3680
        %3794 = vmatprep.subr.mxu0 %v3685
        %3795 = vmatpush1.msra.mxu0 %v3684
        %3796 = vmatprep.subr.mxu0 %v3689
        %3797 = vmatpush1.msra.mxu0 %v3688
        %3798 = vmatprep.subr.mxu0 %v3693
        %3799 = vmatpush1.msra.mxu0 %v3692
        %3800 = vmatprep.subr.mxu0 %v3697
        %3801 = vmatpush1.msra.mxu0 %v3696
        %3802 = vmatprep.subr.mxu0 %v3701
        %3803 = vmatpush1.msra.mxu0 %v3700
        %3804 = vmatprep.subr.mxu0 %v3705
        %3805 = vmatpush1.msra.mxu0 %v3704
        %3806 = vmatprep.subr.mxu0 %v3709
        %3807 = vmatpush1.msra.mxu0 %v3708
        %3808 = vmatprep.subr.mxu0 %v3713
        %3809 = vmatpush1.msra.mxu0 %v3712
        %3810 = vmatprep.subr.mxu0 %v3717
        %3811 = vmatpush1.msra.mxu0 %v3716
        %3812 = vmatprep.subr.mxu0 %v3721
        %3813 = vmatpush1.msra.mxu0 %v3720
        %3814 = vmatprep.subr.mxu0 %v3725
        %3815 = vmatpush1.msra.mxu0 %v3724
        %3816 = vmatprep.subr.mxu0 %v3729
        %3817 = vmatpush1.msra.mxu0 %v3728
        %3818 = vmatprep.subr.mxu0 %v3733
        %3819 = vmatpush1.msra.mxu0 %v3732
        %3820 = vmatprep.subr.mxu0 %v3737
        %3821 = vmatpush1.msra.mxu0 %v3736
        %3822 = vmatprep.subr.mxu0 %v3741
        %3823 = vmatpush1.msra.mxu0 %v3740
        %3824 = vmatprep.subr.mxu0 %v3745
        %3825 = vmatpush1.msra.mxu0 %v3744
        %3826 = vmatprep.subr.mxu0 %v3749
        %3827 = vmatpush1.msra.mxu0 %v3748
        %3828 = vmatprep.subr.mxu0 %v3753
        %3829 = vmatpush1.msra.mxu0 %v3752
        %3830 = vmatprep.subr.mxu0 %v3757
        %3831 = vmatpush1.msra.mxu0 %v3756
        %3832 = vmatprep.subr.mxu0 %v3761
        %3833 = vmatpush1.msra.mxu0 %v3760
        %3834 = vmatprep.subr.mxu0 %v3765
        %3835 = vmatpush1.msra.mxu0 %v3764
        %3836 = vmatprep.subr.mxu0 %v3769
        %3837 = vmatpush1.msra.mxu0 %v3768
        %3838 = vmatprep.subr.mxu0 0.0
        %3839 = vmatpush1.msra.mxu0 0.0
        %3840 = vmatprep.subr.mxu0 0.0
        %3841 = vmatpush1.msra.mxu0 0.0
        %3842 = vmatprep.mubr.f32.mxu0 %v2696
        %3843 = vmatmul.mubr.f32.gmra.mrb[0].mxu0 %v2521
        %v3844 = vpop.f32.mrb[0].mxu0
        %v3845 = vadd.f32 0.0, %v3844
        %v3846 = vpop.f32.mrb[0].mxu0
        %v3847 = vadd.f32 0.0, %v3846
        %3848 = vmatprep.mubr.f32.mxu0 %v2699
        %3849 = vmatmul.mubr.f32.gmra.mrb[0].mxu0 %v2523
        %v3850 = vpop.f32.mrb[0].mxu0
        %v3851 = vadd.f32 0.0, %v3850
        %v3852 = vpop.f32.mrb[0].mxu0
        %v3853 = vadd.f32 0.0, %v3852
        %3854 = vmatprep.mubr.f32.mxu0 %v2702
        %3855 = vmatmul.mubr.f32.gmra.mrb[0].mxu0 %v2525
        %v3856 = vpop.f32.mrb[0].mxu0
        %v3857 = vadd.f32 0.0, %v3856
        %v3858 = vpop.f32.mrb[0].mxu0
        %v3859 = vadd.f32 0.0, %v3858
        %3860 = vmatprep.mubr.f32.mxu0 %v2705
        %3861 = vmatmul.mubr.f32.gmra.mrb[0].mxu0 %v2527
        %v3862 = vpop.f32.mrb[0].mxu0
        %v3863 = vadd.f32 0.0, %v3862
        %v3864 = vpop.f32.mrb[0].mxu0
        %v3865 = vadd.f32 0.0, %v3864
        %3866 = vmatprep.mubr.f32.mxu0 %v2708
        %3867 = vmatmul.mubr.f32.gmra.mrb[0].mxu0 %v2529
        %v3868 = vpop.f32.mrb[0].mxu0
        %v3869 = vadd.f32 0.0, %v3868
        %v3870 = vpop.f32.mrb[0].mxu0
        %v3871 = vadd.f32 0.0, %v3870
        %3872 = vmatprep.mubr.f32.mxu0 %v2711
        %3873 = vmatmul.mubr.f32.gmra.mrb[0].mxu0 %v2531
        %v3874 = vpop.f32.mrb[0].mxu0
        %v3875 = vadd.f32 0.0, %v3874
        %v3876 = vpop.f32.mrb[0].mxu0
        %v3877 = vadd.f32 0.0, %v3876
        %3878 = vmatprep.mubr.f32.mxu0 %v2714
        %3879 = vmatmul.mubr.f32.gmra.mrb[0].mxu0 %v2533
        %v3880 = vpop.f32.mrb[0].mxu0
        %v3881 = vadd.f32 0.0, %v3880
        %v3882 = vpop.f32.mrb[0].mxu0
        %v3883 = vadd.f32 0.0, %v3882
        %3884 = vmatprep.mubr.f32.mxu0 %v2717
        %3885 = vmatmul.mubr.f32.gmra.mrb[0].mxu0 %v2535
        %v3886 = vpop.f32.mrb[0].mxu0
        %v3887 = vadd.f32 0.0, %v3886
        %v3888 = vpop.f32.mrb[0].mxu0
        %v3889 = vadd.f32 0.0, %v3888
        %3890 = vmatprep.mubr.f32.mxu0 %v2720
        %3891 = vmatmul.mubr.f32.gmra.mrb[0].mxu0 %v2537
        %v3892 = vpop.f32.mrb[0].mxu0
        %v3893 = vadd.f32 0.0, %v3892
        %v3894 = vpop.f32.mrb[0].mxu0
        %v3895 = vadd.f32 0.0, %v3894
        %3896 = vmatprep.mubr.f32.mxu0 %v2723
        %3897 = vmatmul.mubr.f32.gmra.mrb[0].mxu0 %v2539
        %v3898 = vpop.f32.mrb[0].mxu0
        %v3899 = vadd.f32 0.0, %v3898
        %v3900 = vpop.f32.mrb[0].mxu0
        %v3901 = vadd.f32 0.0, %v3900
        %3902 = vmatprep.mubr.f32.mxu0 %v2726
        %3903 = vmatmul.mubr.f32.gmra.mrb[0].mxu0 %v2541
        %v3904 = vpop.f32.mrb[0].mxu0
        %v3905 = vadd.f32 0.0, %v3904
        %v3906 = vpop.f32.mrb[0].mxu0
        %v3907 = vadd.f32 0.0, %v3906
        %3908 = vmatprep.mubr.f32.mxu0 %v2729
        %3909 = vmatmul.mubr.f32.gmra.mrb[0].mxu0 %v2543
        %v3910 = vpop.f32.mrb[0].mxu0
        %v3911 = vadd.f32 0.0, %v3910
        %v3912 = vpop.f32.mrb[0].mxu0
        %v3913 = vadd.f32 0.0, %v3912
        %3914 = vmatprep.mubr.f32.mxu0 %v3260
        %3915 = vmatmul.mubr.f32.gmra.mrb[0].mxu0 %v2545
        %v3916 = vpop.f32.mrb[0].mxu0
        %v3917 = vadd.f32 0.0, %v3916
        %v3918 = vpop.f32.mrb[0].mxu0
        %v3919 = vadd.f32 0.0, %v3918
        %3920 = vmatprep.mubr.f32.mxu0 %v3263
        %3921 = vmatmul.mubr.f32.gmra.mrb[0].mxu0 %v2547
        %v3922 = vpop.f32.mrb[0].mxu0
        %v3923 = vadd.f32 0.0, %v3922
        %v3924 = vpop.f32.mrb[0].mxu0
        %v3925 = vadd.f32 0.0, %v3924
        %3926 = vmatprep.mubr.f32.mxu0 %v3773
        %3927 = vmatmul.mubr.f32.gmra.mrb[0].mxu0 %v2549
        %v3928 = vpop.f32.mrb[0].mxu0
        %v3929 = vadd.f32 0.0, %v3928
        %v3930 = vpop.f32.mrb[0].mxu0
        %v3931 = vadd.f32 0.0, %v3930
        %3932 = vmatprep.mubr.f32.mxu0 %v3776
        %3933 = vmatmul.mubr.f32.gmra.mrb[0].mxu0 %v2551
        %v3934 = vpop.f32.mrb[0].mxu0
        %v3935 = vadd.f32 0.0, %v3934
        %v3936 = vpop.f32.mrb[0].mxu0
        %v3937 = vadd.f32 0.0, %v3936
        %3938 = vdwg.mxu0
        %3939 = vmatprep.subr.mxu0 %v3655
        %3940 = vmatpush1.msra.mxu0 %v3654
        %3941 = vmatprep.subr.mxu0 %v3659
        %3942 = vmatpush1.msra.mxu0 %v3658
        %3943 = vmatprep.subr.mxu0 %v3663
        %3944 = vmatpush1.msra.mxu0 %v3662
        %3945 = vmatprep.subr.mxu0 %v3667
        %3946 = vmatpush1.msra.mxu0 %v3666
        %3947 = vmatprep.subr.mxu0 %v3671
        %3948 = vmatpush1.msra.mxu0 %v3670
        %3949 = vmatprep.subr.mxu0 %v3675
        %3950 = vmatpush1.msra.mxu0 %v3674
        %3951 = vmatprep.subr.mxu0 %v3679
        %3952 = vmatpush1.msra.mxu0 %v3678
        %3953 = vmatprep.subr.mxu0 %v3683
        %3954 = vmatpush1.msra.mxu0 %v3682
        %3955 = vmatprep.subr.mxu0 %v3687
        %3956 = vmatpush1.msra.mxu0 %v3686
        %3957 = vmatprep.subr.mxu0 %v3691
        %3958 = vmatpush1.msra.mxu0 %v3690
        %3959 = vmatprep.subr.mxu0 %v3695
        %3960 = vmatpush1.msra.mxu0 %v3694
        %3961 = vmatprep.subr.mxu0 %v3699
        %3962 = vmatpush1.msra.mxu0 %v3698
        %3963 = vmatprep.subr.mxu0 %v3703
        %3964 = vmatpush1.msra.mxu0 %v3702
        %3965 = vmatprep.subr.mxu0 %v3707
        %3966 = vmatpush1.msra.mxu0 %v3706
        %3967 = vmatprep.subr.mxu0 %v3711
        %3968 = vmatpush1.msra.mxu0 %v3710
        %3969 = vmatprep.subr.mxu0 %v3715
        %3970 = vmatpush1.msra.mxu0 %v3714
        %3971 = vmatprep.subr.mxu0 %v3719
        %3972 = vmatpush1.msra.mxu0 %v3718
        %3973 = vmatprep.subr.mxu0 %v3723
        %3974 = vmatpush1.msra.mxu0 %v3722
        %3975 = vmatprep.subr.mxu0 %v3727
        %3976 = vmatpush1.msra.mxu0 %v3726
        %3977 = vmatprep.subr.mxu0 %v3731
        %3978 = vmatpush1.msra.mxu0 %v3730
        %3979 = vmatprep.subr.mxu0 %v3735
        %3980 = vmatpush1.msra.mxu0 %v3734
        %3981 = vmatprep.subr.mxu0 %v3739
        %3982 = vmatpush1.msra.mxu0 %v3738
        %3983 = vmatprep.subr.mxu0 %v3743
        %3984 = vmatpush1.msra.mxu0 %v3742
        %3985 = vmatprep.subr.mxu0 %v3747
        %3986 = vmatpush1.msra.mxu0 %v3746
        %3987 = vmatprep.subr.mxu0 %v3751
        %3988 = vmatpush1.msra.mxu0 %v3750
        %3989 = vmatprep.subr.mxu0 %v3755
        %3990 = vmatpush1.msra.mxu0 %v3754
        %3991 = vmatprep.subr.mxu0 %v3759
        %3992 = vmatpush1.msra.mxu0 %v3758
        %3993 = vmatprep.subr.mxu0 %v3763
        %3994 = vmatpush1.msra.mxu0 %v3762
        %3995 = vmatprep.subr.mxu0 %v3767
        %3996 = vmatpush1.msra.mxu0 %v3766
        %3997 = vmatprep.subr.mxu0 %v3771
        %3998 = vmatpush1.msra.mxu0 %v3770
        %3999 = vmatprep.subr.mxu0 0.0
        %4000 = vmatpush1.msra.mxu0 0.0
        %4001 = vmatprep.subr.mxu0 0.0
        %4002 = vmatpush1.msra.mxu0 0.0
        %4003 = vmatprep.mubr.f32.mxu0 %v2696
        %4004 = vmatmul.mubr.f32.gmra.mrb[0].mxu0 %v2521
        %v4005 = vpop.f32.mrb[0].mxu0
        %v4006 = vadd.f32 0.0, %v4005
        %v4007 = vpop.f32.mrb[0].mxu0
        %v4008 = vadd.f32 0.0, %v4007
        %4009 = vmatprep.mubr.f32.mxu0 %v2699
        %4010 = vmatmul.mubr.f32.gmra.mrb[0].mxu0 %v2523
        %v4011 = vpop.f32.mrb[0].mxu0
        %v4012 = vadd.f32 0.0, %v4011
        %v4013 = vpop.f32.mrb[0].mxu0
        %v4014 = vadd.f32 0.0, %v4013
        %4015 = vmatprep.mubr.f32.mxu0 %v2702
        %4016 = vmatmul.mubr.f32.gmra.mrb[0].mxu0 %v2525
        %v4017 = vpop.f32.mrb[0].mxu0
        %v4018 = vadd.f32 0.0, %v4017
        %v4019 = vpop.f32.mrb[0].mxu0
        %v4020 = vadd.f32 0.0, %v4019
        %4021 = vmatprep.mubr.f32.mxu0 %v2705
        %4022 = vmatmul.mubr.f32.gmra.mrb[0].mxu0 %v2527
        %v4023 = vpop.f32.mrb[0].mxu0
        %v4024 = vadd.f32 0.0, %v4023
        %v4025 = vpop.f32.mrb[0].mxu0
        %v4026 = vadd.f32 0.0, %v4025
        %4027 = vmatprep.mubr.f32.mxu0 %v2708
        %4028 = vmatmul.mubr.f32.gmra.mrb[0].mxu0 %v2529
        %v4029 = vpop.f32.mrb[0].mxu0
        %v4030 = vadd.f32 0.0, %v4029
        %v4031 = vpop.f32.mrb[0].mxu0
        %v4032 = vadd.f32 0.0, %v4031
        %4033 = vmatprep.mubr.f32.mxu0 %v2711
        %4034 = vmatmul.mubr.f32.gmra.mrb[0].mxu0 %v2531
        %v4035 = vpop.f32.mrb[0].mxu0
        %v4036 = vadd.f32 0.0, %v4035
        %v4037 = vpop.f32.mrb[0].mxu0
        %v4038 = vadd.f32 0.0, %v4037
        %4039 = vmatprep.mubr.f32.mxu0 %v2714
        %4040 = vmatmul.mubr.f32.gmra.mrb[0].mxu0 %v2533
        %v4041 = vpop.f32.mrb[0].mxu0
        %v4042 = vadd.f32 0.0, %v4041
        %v4043 = vpop.f32.mrb[0].mxu0
        %v4044 = vadd.f32 0.0, %v4043
        %4045 = vmatprep.mubr.f32.mxu0 %v2717
        %4046 = vmatmul.mubr.f32.gmra.mrb[0].mxu0 %v2535
        %v4047 = vpop.f32.mrb[0].mxu0
        %v4048 = vadd.f32 0.0, %v4047
        %v4049 = vpop.f32.mrb[0].mxu0
        %v4050 = vadd.f32 0.0, %v4049
        %4051 = vmatprep.mubr.f32.mxu0 %v2720
        %4052 = vmatmul.mubr.f32.gmra.mrb[0].mxu0 %v2537
        %v4053 = vpop.f32.mrb[0].mxu0
        %v4054 = vadd.f32 0.0, %v4053
        %v4055 = vpop.f32.mrb[0].mxu0
        %v4056 = vadd.f32 0.0, %v4055
        %4057 = vmatprep.mubr.f32.mxu0 %v2723
        %4058 = vmatmul.mubr.f32.gmra.mrb[0].mxu0 %v2539
        %v4059 = vpop.f32.mrb[0].mxu0
        %v4060 = vadd.f32 0.0, %v4059
        %v4061 = vpop.f32.mrb[0].mxu0
        %v4062 = vadd.f32 0.0, %v4061
        %4063 = vmatprep.mubr.f32.mxu0 %v2726
        %4064 = vmatmul.mubr.f32.gmra.mrb[0].mxu0 %v2541
        %v4065 = vpop.f32.mrb[0].mxu0
        %v4066 = vadd.f32 0.0, %v4065
        %v4067 = vpop.f32.mrb[0].mxu0
        %v4068 = vadd.f32 0.0, %v4067
        %4069 = vmatprep.mubr.f32.mxu0 %v2729
        %4070 = vmatmul.mubr.f32.gmra.mrb[0].mxu0 %v2543
        %v4071 = vpop.f32.mrb[0].mxu0
        %v4072 = vadd.f32 0.0, %v4071
        %v4073 = vpop.f32.mrb[0].mxu0
        %v4074 = vadd.f32 0.0, %v4073
        %4075 = vmatprep.mubr.f32.mxu0 %v3260
        %4076 = vmatmul.mubr.f32.gmra.mrb[0].mxu0 %v2545
        %v4077 = vpop.f32.mrb[0].mxu0
        %v4078 = vadd.f32 0.0, %v4077
        %v4079 = vpop.f32.mrb[0].mxu0
        %v4080 = vadd.f32 0.0, %v4079
        %4081 = vmatprep.mubr.f32.mxu0 %v3263
        %4082 = vmatmul.mubr.f32.gmra.mrb[0].mxu0 %v2547
        %v4083 = vpop.f32.mrb[0].mxu0
        %v4084 = vadd.f32 0.0, %v4083
        %v4085 = vpop.f32.mrb[0].mxu0
        %v4086 = vadd.f32 0.0, %v4085
        %4087 = vmatprep.mubr.f32.mxu0 %v3773
        %4088 = vmatmul.mubr.f32.gmra.mrb[0].mxu0 %v2549
        %v4089 = vpop.f32.mrb[0].mxu0
        %v4090 = vadd.f32 0.0, %v4089
        %v4091 = vpop.f32.mrb[0].mxu0
        %v4092 = vadd.f32 0.0, %v4091
        %4093 = vmatprep.mubr.f32.mxu0 %v3776
        %4094 = vmatmul.mubr.f32.gmra.mrb[0].mxu0 %v2551
        %v4095 = vpop.f32.mrb[0].mxu0
        %v4096 = vadd.f32 0.0, %v4095
        %v4097 = vpop.f32.mrb[0].mxu0
        %v4098 = vadd.f32 0.0, %v4097
        %4099 = vdwg.mxu0
        %v4100 = vadd.f32 %v3587, %v3845
        %v4101 = vadd.f32 %v3588, %v3847
        %v4102 = vadd.f32 %v3589, %v4006
        %v4103 = vadd.f32 %v3590, %v4008
        %v4104 = vadd.f32 %v3591, %v3851
        %v4105 = vadd.f32 %v3592, %v3853
        %v4106 = vadd.f32 %v3593, %v4012
        %v4107 = vadd.f32 %v3594, %v4014
        %v4108 = vadd.f32 %v3595, %v3857
        %v4109 = vadd.f32 %v3596, %v3859
        %v4110 = vadd.f32 %v3597, %v4018
        %v4111 = vadd.f32 %v3598, %v4020
        %v4112 = vadd.f32 %v3599, %v3863
        %v4113 = vadd.f32 %v3600, %v3865
        %v4114 = vadd.f32 %v3601, %v4024
        %v4115 = vadd.f32 %v3602, %v4026
        %v4116 = vadd.f32 %v3603, %v3869
        %v4117 = vadd.f32 %v3604, %v3871
        %v4118 = vadd.f32 %v3605, %v4030
        %v4119 = vadd.f32 %v3606, %v4032
        %v4120 = vadd.f32 %v3607, %v3875
        %v4121 = vadd.f32 %v3608, %v3877
        %v4122 = vadd.f32 %v3609, %v4036
        %v4123 = vadd.f32 %v3610, %v4038
        %v4124 = vadd.f32 %v3611, %v3881
        %v4125 = vadd.f32 %v3612, %v3883
        %v4126 = vadd.f32 %v3613, %v4042
        %v4127 = vadd.f32 %v3614, %v4044
        %v4128 = vadd.f32 %v3615, %v3887
        %v4129 = vadd.f32 %v3616, %v3889
        %v4130 = vadd.f32 %v3617, %v4048
        %v4131 = vadd.f32 %v3618, %v4050
        %v4132 = vadd.f32 %v3619, %v3893
        %v4133 = vadd.f32 %v3620, %v3895
        %v4134 = vadd.f32 %v3621, %v4054
        %v4135 = vadd.f32 %v3622, %v4056
        %v4136 = vadd.f32 %v3623, %v3899
        %v4137 = vadd.f32 %v3624, %v3901
        %v4138 = vadd.f32 %v3625, %v4060
        %v4139 = vadd.f32 %v3626, %v4062
        %v4140 = vadd.f32 %v3627, %v3905
        %v4141 = vadd.f32 %v3628, %v3907
        %v4142 = vadd.f32 %v3629, %v4066
        %v4143 = vadd.f32 %v3630, %v4068
        %v4144 = vadd.f32 %v3631, %v3911
        %v4145 = vadd.f32 %v3632, %v3913
        %v4146 = vadd.f32 %v3633, %v4072
        %v4147 = vadd.f32 %v3634, %v4074
        %v4148 = vadd.f32 %v3635, %v3917
        %v4149 = vadd.f32 %v3636, %v3919
        %v4150 = vadd.f32 %v3637, %v4078
        %v4151 = vadd.f32 %v3638, %v4080
        %v4152 = vadd.f32 %v3639, %v3923
        %v4153 = vadd.f32 %v3640, %v3925
        %v4154 = vadd.f32 %v3641, %v4084
        %v4155 = vadd.f32 %v3642, %v4086
        %v4156 = vadd.f32 %v3643, %v3929
        %v4157 = vadd.f32 %v3644, %v3931
        %v4158 = vadd.f32 %v3645, %v4090
        %v4159 = vadd.f32 %v3646, %v4092
        %v4160 = vadd.f32 %v3647, %v3935
        %v4161 = vadd.f32 %v3648, %v3937
        %v4162 = vadd.f32 %v3649, %v4096
        %v4163 = vadd.f32 %v3650, %v4098
        %s4164 = scalar_lea.vmem %s3, 2880
        %v4165 = vld [vmem:[%s4164] sm:$0xff]
        %v4166 = vld [vmem:[%s4164 + $0x8] sm:$0xff]
        %v4167 = vld [vmem:[%s4164 + $0x10] sm:$0xff]
        %v4168 = vld [vmem:[%s4164 + $0x18] sm:$0xff]
        %v4169 = vld [vmem:[%s4164 + $0x20] sm:$0xff]
        %v4170 = vld [vmem:[%s4164 + $0x28] sm:$0xff]
        %v4171 = vld [vmem:[%s4164 + $0x30] sm:$0xff]
        %v4172 = vld [vmem:[%s4164 + $0x38] sm:$0xff]
        %v4173 = vld [vmem:[%s4164 + $0x40] sm:$0xff]
        %v4174 = vld [vmem:[%s4164 + $0x48] sm:$0xff]
        %v4175 = vld [vmem:[%s4164 + $0x50] sm:$0xff]
        %v4176 = vld [vmem:[%s4164 + $0x58] sm:$0xff]
        %v4177 = vld [vmem:[%s4164 + $0x60] sm:$0xff]
        %v4178 = vld [vmem:[%s4164 + $0x68] sm:$0xff]
        %v4179 = vld [vmem:[%s4164 + $0x70] sm:$0xff]
        %v4180 = vld [vmem:[%s4164 + $0x78] sm:$0xff]
        %v4181 = vld [vmem:[%s4164 + $0x80] sm:$0xff]
        %v4182 = vld [vmem:[%s4164 + $0x88] sm:$0xff]
        %v4183 = vld [vmem:[%s4164 + $0x90] sm:$0xff]
        %v4184 = vld [vmem:[%s4164 + $0x98] sm:$0xff]
        %v4185 = vld [vmem:[%s4164 + $0xa0] sm:$0xff]
        %v4186 = vld [vmem:[%s4164 + $0xa8] sm:$0xff]
        %v4187 = vld [vmem:[%s4164 + $0xb0] sm:$0xff]
        %v4188 = vld [vmem:[%s4164 + $0xb8] sm:$0xff]
        %v4189 = vld [vmem:[%s4164 + $0xc0] sm:$0xff]
        %v4190 = vld [vmem:[%s4164 + $0xc8] sm:$0xff]
        %v4191 = vld [vmem:[%s4164 + $0xd0] sm:$0xff]
        %v4192 = vld [vmem:[%s4164 + $0xd8] sm:$0xff]
        %v4193 = vld [vmem:[%s4164 + $0xe0] sm:$0xff]
        %v4194 = vld [vmem:[%s4164 + $0xe8] sm:$0xff]
        %v4195 = vld [vmem:[%s4164 + $0xf0] sm:$0xff]
        %v4196 = vld [vmem:[%s4164 + $0xf8] sm:$0xff]
        %v4197 = vld [vmem:[%s4164 + $0x100] sm:$0xff]
        %v4198 = vld [vmem:[%s4164 + $0x108] sm:$0xff]
        %v4199 = vld [vmem:[%s4164 + $0x110] sm:$0xff]
        %v4200 = vld [vmem:[%s4164 + $0x118] sm:$0xff]
        %v4201 = vld [vmem:[%s4164 + $0x120] sm:$0xff]
        %v4202 = vld [vmem:[%s4164 + $0x128] sm:$0xff]
        %v4203 = vld [vmem:[%s4164 + $0x130] sm:$0xff]
        %v4204 = vld [vmem:[%s4164 + $0x138] sm:$0xff]
        %v4205 = vld [vmem:[%s4164 + $0x140] sm:$0xff]
        %v4206 = vld [vmem:[%s4164 + $0x148] sm:$0xff]
        %v4207 = vld [vmem:[%s4164 + $0x150] sm:$0xff]
        %v4208 = vld [vmem:[%s4164 + $0x158] sm:$0xff]
        %v4209 = vld [vmem:[%s4164 + $0x160] sm:$0xff]
        %v4210 = vld [vmem:[%s4164 + $0x168] sm:$0xff]
        %v4211 = vld [vmem:[%s4164 + $0x170] sm:$0xff]
        %v4212 = vld [vmem:[%s4164 + $0x178] sm:$0xff]
        %v4213 = vld [vmem:[%s4164 + $0x180] sm:$0xff]
        %v4214 = vld [vmem:[%s4164 + $0x188] sm:$0xff]
        %v4215 = vld [vmem:[%s4164 + $0x190] sm:$0xff]
        %v4216 = vld [vmem:[%s4164 + $0x198] sm:$0xff]
        %v4217 = vld [vmem:[%s4164 + $0x1a0] sm:$0xff]
        %v4218 = vld [vmem:[%s4164 + $0x1a8] sm:$0xff]
        %v4219 = vld [vmem:[%s4164 + $0x1b0] sm:$0xff]
        %v4220 = vld [vmem:[%s4164 + $0x1b8] sm:$0xff]
        %v4221 = vld [vmem:[%s4164 + $0x1c0] sm:$0xff]
        %v4222 = vld [vmem:[%s4164 + $0x1c8] sm:$0xff]
        %v4223 = vld [vmem:[%s4164 + $0x1d0] sm:$0xff]
        %v4224 = vld [vmem:[%s4164 + $0x1d8] sm:$0xff]
        %v4225 = vld [vmem:[%s4164 + $0x1e0] sm:$0xff]
        %v4226 = vld [vmem:[%s4164 + $0x1e8] sm:$0xff]
        %v4227 = vld [vmem:[%s4164 + $0x1f0] sm:$0xff]
        %v4228 = vld [vmem:[%s4164 + $0x1f8] sm:$0xff]
        %v4229 = vld [vmem:[%s4164 + $0x200] sm:$0xff]
        %v4230 = vld [vmem:[%s4164 + $0x208] sm:$0xff]
        %v4231 = vld [vmem:[%s4164 + $0x210] sm:$0xff]
        %v4232 = vld [vmem:[%s4164 + $0x218] sm:$0xff]
        %v4233 = vld [vmem:[%s4164 + $0x220] sm:$0xff]
        %v4234 = vld [vmem:[%s4164 + $0x228] sm:$0xff]
        %v4235 = vld [vmem:[%s4164 + $0x230] sm:$0xff]
        %v4236 = vld [vmem:[%s4164 + $0x238] sm:$0xff]
        %v4237 = vld [vmem:[%s4164 + $0x240] sm:$0xff]
        %v4238 = vld [vmem:[%s4164 + $0x248] sm:$0xff]
        %v4239 = vld [vmem:[%s4164 + $0x250] sm:$0xff]
        %v4240 = vld [vmem:[%s4164 + $0x258] sm:$0xff]
        %v4241 = vld [vmem:[%s4164 + $0x260] sm:$0xff]
        %v4242 = vld [vmem:[%s4164 + $0x268] sm:$0xff]
        %v4243 = vld [vmem:[%s4164 + $0x270] sm:$0xff]
        %v4244 = vld [vmem:[%s4164 + $0x278] sm:$0xff]
        %v4245 = vld [vmem:[%s4164 + $0x280] sm:$0xff]
        %v4246 = vld [vmem:[%s4164 + $0x288] sm:$0xff]
        %v4247 = vld [vmem:[%s4164 + $0x290] sm:$0xff]
        %v4248 = vld [vmem:[%s4164 + $0x298] sm:$0xff]
        %v4249 = vld [vmem:[%s4164 + $0x2a0] sm:$0xff]
        %v4250 = vld [vmem:[%s4164 + $0x2a8] sm:$0xff]
        %v4251 = vld [vmem:[%s4164 + $0x2b0] sm:$0xff]
        %v4252 = vld [vmem:[%s4164 + $0x2b8] sm:$0xff]
        %v4253 = vld [vmem:[%s4164 + $0x2c0] sm:$0xff]
        %v4254 = vld [vmem:[%s4164 + $0x2c8] sm:$0xff]
        %v4255 = vld [vmem:[%s4164 + $0x2d0] sm:$0xff]
        %v4256 = vld [vmem:[%s4164 + $0x2d8] sm:$0xff]
        %v4257 = vld [vmem:[%s4164 + $0x2e0] sm:$0xff]
        %v4258 = vld [vmem:[%s4164 + $0x2e8] sm:$0xff]
        %v4259 = vld [vmem:[%s4164 + $0x2f0] sm:$0xff]
        %v4260 = vld [vmem:[%s4164 + $0x2f8] sm:$0xff]
        %v4261 = vld [vmem:[%s4164 + $0x300] sm:$0xff]
        %v4262 = vld [vmem:[%s4164 + $0x308] sm:$0xff]
        %v4263 = vld [vmem:[%s4164 + $0x310] sm:$0xff]
        %v4264 = vld [vmem:[%s4164 + $0x318] sm:$0xff]
        %v4265 = vld [vmem:[%s4164 + $0x320] sm:$0xff]
        %v4266 = vld [vmem:[%s4164 + $0x328] sm:$0xff]
        %v4267 = vld [vmem:[%s4164 + $0x330] sm:$0xff]
        %v4268 = vld [vmem:[%s4164 + $0x338] sm:$0xff]
        %v4269 = vld [vmem:[%s4164 + $0x340] sm:$0xff]
        %v4270 = vld [vmem:[%s4164 + $0x348] sm:$0xff]
        %v4271 = vld [vmem:[%s4164 + $0x350] sm:$0xff]
        %v4272 = vld [vmem:[%s4164 + $0x358] sm:$0xff]
        %v4273 = vld [vmem:[%s4164 + $0x360] sm:$0xff]
        %v4274 = vld [vmem:[%s4164 + $0x368] sm:$0xff]
        %v4275 = vld [vmem:[%s4164 + $0x370] sm:$0xff]
        %v4276 = vld [vmem:[%s4164 + $0x378] sm:$0xff]
        %v4277 = vld [vmem:[%s4164 + $0x380] sm:$0xff]
        %v4278 = vld [vmem:[%s4164 + $0x388] sm:$0xff]
        %v4279 = vld [vmem:[%s4164 + $0x390] sm:$0xff]
        %v4280 = vld [vmem:[%s4164 + $0x398] sm:$0xff]
        %v4281 = vld [vmem:[%s4164 + $0x3a0] sm:$0xff]
        %v4282 = vld [vmem:[%s4164 + $0x3a8] sm:$0xff]
        %v4283 = vld [vmem:[%s4164 + $0x3b0] sm:$0xff]
        %v4284 = vld [vmem:[%s4164 + $0x3b8] sm:$0xff]
        %v4286 = vsel %vm2682, %v2554, 0
        %v4289 = vsel %vm2682, %v2556, 0
        %4291 = vmatprep.subr.mxu0 %v4166
        %4292 = vmatpush1.msra.mxu0 %v4165
        %4293 = vmatprep.subr.mxu0 %v4170
        %4294 = vmatpush1.msra.mxu0 %v4169
        %4295 = vmatprep.subr.mxu0 %v4174
        %4296 = vmatpush1.msra.mxu0 %v4173
        %4297 = vmatprep.subr.mxu0 %v4178
        %4298 = vmatpush1.msra.mxu0 %v4177
        %4299 = vmatprep.subr.mxu0 %v4182
        %4300 = vmatpush1.msra.mxu0 %v4181
        %4301 = vmatprep.subr.mxu0 %v4186
        %4302 = vmatpush1.msra.mxu0 %v4185
        %4303 = vmatprep.subr.mxu0 %v4190
        %4304 = vmatpush1.msra.mxu0 %v4189
        %4305 = vmatprep.subr.mxu0 %v4194
        %4306 = vmatpush1.msra.mxu0 %v4193
        %4307 = vmatprep.subr.mxu0 %v4198
        %4308 = vmatpush1.msra.mxu0 %v4197
        %4309 = vmatprep.subr.mxu0 %v4202
        %4310 = vmatpush1.msra.mxu0 %v4201
        %4311 = vmatprep.subr.mxu0 %v4206
        %4312 = vmatpush1.msra.mxu0 %v4205
        %4313 = vmatprep.subr.mxu0 %v4210
        %4314 = vmatpush1.msra.mxu0 %v4209
        %4315 = vmatprep.subr.mxu0 %v4214
        %4316 = vmatpush1.msra.mxu0 %v4213
        %4317 = vmatprep.subr.mxu0 %v4218
        %4318 = vmatpush1.msra.mxu0 %v4217
        %4319 = vmatprep.subr.mxu0 %v4222
        %4320 = vmatpush1.msra.mxu0 %v4221
        %4321 = vmatprep.subr.mxu0 %v4226
        %4322 = vmatpush1.msra.mxu0 %v4225
        %4323 = vmatprep.subr.mxu0 %v4230
        %4324 = vmatpush1.msra.mxu0 %v4229
        %4325 = vmatprep.subr.mxu0 %v4234
        %4326 = vmatpush1.msra.mxu0 %v4233
        %4327 = vmatprep.subr.mxu0 %v4238
        %4328 = vmatpush1.msra.mxu0 %v4237
        %4329 = vmatprep.subr.mxu0 %v4242
        %4330 = vmatpush1.msra.mxu0 %v4241
        %4331 = vmatprep.subr.mxu0 %v4246
        %4332 = vmatpush1.msra.mxu0 %v4245
        %4333 = vmatprep.subr.mxu0 %v4250
        %4334 = vmatpush1.msra.mxu0 %v4249
        %4335 = vmatprep.subr.mxu0 %v4254
        %4336 = vmatpush1.msra.mxu0 %v4253
        %4337 = vmatprep.subr.mxu0 %v4258
        %4338 = vmatpush1.msra.mxu0 %v4257
        %4339 = vmatprep.subr.mxu0 %v4262
        %4340 = vmatpush1.msra.mxu0 %v4261
        %4341 = vmatprep.subr.mxu0 %v4266
        %4342 = vmatpush1.msra.mxu0 %v4265
        %4343 = vmatprep.subr.mxu0 %v4270
        %4344 = vmatpush1.msra.mxu0 %v4269
        %4345 = vmatprep.subr.mxu0 %v4274
        %4346 = vmatpush1.msra.mxu0 %v4273
        %4347 = vmatprep.subr.mxu0 %v4278
        %4348 = vmatpush1.msra.mxu0 %v4277
        %4349 = vmatprep.subr.mxu0 %v4282
        %4350 = vmatpush1.msra.mxu0 %v4281
        %4351 = vmatprep.subr.mxu0 0.0
        %4352 = vmatpush1.msra.mxu0 0.0
        %4353 = vmatprep.subr.mxu0 0.0
        %4354 = vmatpush1.msra.mxu0 0.0
        %4355 = vmatprep.mubr.f32.mxu0 %v2702
        %4356 = vmatmul.mubr.f32.gmra.mrb[0].mxu0 %v2525
        %v4357 = vpop.f32.mrb[0].mxu0
        %v4358 = vadd.f32 0.0, %v4357
        %v4359 = vpop.f32.mrb[0].mxu0
        %v4360 = vadd.f32 0.0, %v4359
        %4361 = vmatprep.mubr.f32.mxu0 %v2705
        %4362 = vmatmul.mubr.f32.gmra.mrb[0].mxu0 %v2527
        %v4363 = vpop.f32.mrb[0].mxu0
        %v4364 = vadd.f32 0.0, %v4363
        %v4365 = vpop.f32.mrb[0].mxu0
        %v4366 = vadd.f32 0.0, %v4365
        %4367 = vmatprep.mubr.f32.mxu0 %v2708
        %4368 = vmatmul.mubr.f32.gmra.mrb[0].mxu0 %v2529
        %v4369 = vpop.f32.mrb[0].mxu0
        %v4370 = vadd.f32 0.0, %v4369
        %v4371 = vpop.f32.mrb[0].mxu0
        %v4372 = vadd.f32 0.0, %v4371
        %4373 = vmatprep.mubr.f32.mxu0 %v2711
        %4374 = vmatmul.mubr.f32.gmra.mrb[0].mxu0 %v2531
        %v4375 = vpop.f32.mrb[0].mxu0
        %v4376 = vadd.f32 0.0, %v4375
        %v4377 = vpop.f32.mrb[0].mxu0
        %v4378 = vadd.f32 0.0, %v4377
        %4379 = vmatprep.mubr.f32.mxu0 %v2714
        %4380 = vmatmul.mubr.f32.gmra.mrb[0].mxu0 %v2533
        %v4381 = vpop.f32.mrb[0].mxu0
        %v4382 = vadd.f32 0.0, %v4381
        %v4383 = vpop.f32.mrb[0].mxu0
        %v4384 = vadd.f32 0.0, %v4383
        %4385 = vmatprep.mubr.f32.mxu0 %v2717
        %4386 = vmatmul.mubr.f32.gmra.mrb[0].mxu0 %v2535
        %v4387 = vpop.f32.mrb[0].mxu0
        %v4388 = vadd.f32 0.0, %v4387
        %v4389 = vpop.f32.mrb[0].mxu0
        %v4390 = vadd.f32 0.0, %v4389
        %4391 = vmatprep.mubr.f32.mxu0 %v2720
        %4392 = vmatmul.mubr.f32.gmra.mrb[0].mxu0 %v2537
        %v4393 = vpop.f32.mrb[0].mxu0
        %v4394 = vadd.f32 0.0, %v4393
        %v4395 = vpop.f32.mrb[0].mxu0
        %v4396 = vadd.f32 0.0, %v4395
        %4397 = vmatprep.mubr.f32.mxu0 %v2723
        %4398 = vmatmul.mubr.f32.gmra.mrb[0].mxu0 %v2539
        %v4399 = vpop.f32.mrb[0].mxu0
        %v4400 = vadd.f32 0.0, %v4399
        %v4401 = vpop.f32.mrb[0].mxu0
        %v4402 = vadd.f32 0.0, %v4401
        %4403 = vmatprep.mubr.f32.mxu0 %v2726
        %4404 = vmatmul.mubr.f32.gmra.mrb[0].mxu0 %v2541
        %v4405 = vpop.f32.mrb[0].mxu0
        %v4406 = vadd.f32 0.0, %v4405
        %v4407 = vpop.f32.mrb[0].mxu0
        %v4408 = vadd.f32 0.0, %v4407
        %4409 = vmatprep.mubr.f32.mxu0 %v2729
        %4410 = vmatmul.mubr.f32.gmra.mrb[0].mxu0 %v2543
        %v4411 = vpop.f32.mrb[0].mxu0
        %v4412 = vadd.f32 0.0, %v4411
        %v4413 = vpop.f32.mrb[0].mxu0
        %v4414 = vadd.f32 0.0, %v4413
        %4415 = vmatprep.mubr.f32.mxu0 %v3260
        %4416 = vmatmul.mubr.f32.gmra.mrb[0].mxu0 %v2545
        %v4417 = vpop.f32.mrb[0].mxu0
        %v4418 = vadd.f32 0.0, %v4417
        %v4419 = vpop.f32.mrb[0].mxu0
        %v4420 = vadd.f32 0.0, %v4419
        %4421 = vmatprep.mubr.f32.mxu0 %v3263
        %4422 = vmatmul.mubr.f32.gmra.mrb[0].mxu0 %v2547
        %v4423 = vpop.f32.mrb[0].mxu0
        %v4424 = vadd.f32 0.0, %v4423
        %v4425 = vpop.f32.mrb[0].mxu0
        %v4426 = vadd.f32 0.0, %v4425
        %4427 = vmatprep.mubr.f32.mxu0 %v3773
        %4428 = vmatmul.mubr.f32.gmra.mrb[0].mxu0 %v2549
        %v4429 = vpop.f32.mrb[0].mxu0
        %v4430 = vadd.f32 0.0, %v4429
        %v4431 = vpop.f32.mrb[0].mxu0
        %v4432 = vadd.f32 0.0, %v4431
        %4433 = vmatprep.mubr.f32.mxu0 %v3776
        %4434 = vmatmul.mubr.f32.gmra.mrb[0].mxu0 %v2551
        %v4435 = vpop.f32.mrb[0].mxu0
        %v4436 = vadd.f32 0.0, %v4435
        %v4437 = vpop.f32.mrb[0].mxu0
        %v4438 = vadd.f32 0.0, %v4437
        %4439 = vmatprep.mubr.f32.mxu0 %v4286
        %4440 = vmatmul.mubr.f32.gmra.mrb[0].mxu0 %v2553
        %v4441 = vpop.f32.mrb[0].mxu0
        %v4442 = vadd.f32 0.0, %v4441
        %v4443 = vpop.f32.mrb[0].mxu0
        %v4444 = vadd.f32 0.0, %v4443
        %4445 = vmatprep.mubr.f32.mxu0 %v4289
        %4446 = vmatmul.mubr.f32.gmra.mrb[0].mxu0 %v2555
        %v4447 = vpop.f32.mrb[0].mxu0
        %v4448 = vadd.f32 0.0, %v4447
        %v4449 = vpop.f32.mrb[0].mxu0
        %v4450 = vadd.f32 0.0, %v4449
        %4451 = vdwg.mxu0
        %4452 = vmatprep.subr.mxu0 %v4168
        %4453 = vmatpush1.msra.mxu0 %v4167
        %4454 = vmatprep.subr.mxu0 %v4172
        %4455 = vmatpush1.msra.mxu0 %v4171
        %4456 = vmatprep.subr.mxu0 %v4176
        %4457 = vmatpush1.msra.mxu0 %v4175
        %4458 = vmatprep.subr.mxu0 %v4180
        %4459 = vmatpush1.msra.mxu0 %v4179
        %4460 = vmatprep.subr.mxu0 %v4184
        %4461 = vmatpush1.msra.mxu0 %v4183
        %4462 = vmatprep.subr.mxu0 %v4188
        %4463 = vmatpush1.msra.mxu0 %v4187
        %4464 = vmatprep.subr.mxu0 %v4192
        %4465 = vmatpush1.msra.mxu0 %v4191
        %4466 = vmatprep.subr.mxu0 %v4196
        %4467 = vmatpush1.msra.mxu0 %v4195
        %4468 = vmatprep.subr.mxu0 %v4200
        %4469 = vmatpush1.msra.mxu0 %v4199
        %4470 = vmatprep.subr.mxu0 %v4204
        %4471 = vmatpush1.msra.mxu0 %v4203
        %4472 = vmatprep.subr.mxu0 %v4208
        %4473 = vmatpush1.msra.mxu0 %v4207
        %4474 = vmatprep.subr.mxu0 %v4212
        %4475 = vmatpush1.msra.mxu0 %v4211
        %4476 = vmatprep.subr.mxu0 %v4216
        %4477 = vmatpush1.msra.mxu0 %v4215
        %4478 = vmatprep.subr.mxu0 %v4220
        %4479 = vmatpush1.msra.mxu0 %v4219
        %4480 = vmatprep.subr.mxu0 %v4224
        %4481 = vmatpush1.msra.mxu0 %v4223
        %4482 = vmatprep.subr.mxu0 %v4228
        %4483 = vmatpush1.msra.mxu0 %v4227
        %4484 = vmatprep.subr.mxu0 %v4232
        %4485 = vmatpush1.msra.mxu0 %v4231
        %4486 = vmatprep.subr.mxu0 %v4236
        %4487 = vmatpush1.msra.mxu0 %v4235
        %4488 = vmatprep.subr.mxu0 %v4240
        %4489 = vmatpush1.msra.mxu0 %v4239
        %4490 = vmatprep.subr.mxu0 %v4244
        %4491 = vmatpush1.msra.mxu0 %v4243
        %4492 = vmatprep.subr.mxu0 %v4248
        %4493 = vmatpush1.msra.mxu0 %v4247
        %4494 = vmatprep.subr.mxu0 %v4252
        %4495 = vmatpush1.msra.mxu0 %v4251
        %4496 = vmatprep.subr.mxu0 %v4256
        %4497 = vmatpush1.msra.mxu0 %v4255
        %4498 = vmatprep.subr.mxu0 %v4260
        %4499 = vmatpush1.msra.mxu0 %v4259
        %4500 = vmatprep.subr.mxu0 %v4264
        %4501 = vmatpush1.msra.mxu0 %v4263
        %4502 = vmatprep.subr.mxu0 %v4268
        %4503 = vmatpush1.msra.mxu0 %v4267
        %4504 = vmatprep.subr.mxu0 %v4272
        %4505 = vmatpush1.msra.mxu0 %v4271
        %4506 = vmatprep.subr.mxu0 %v4276
        %4507 = vmatpush1.msra.mxu0 %v4275
        %4508 = vmatprep.subr.mxu0 %v4280
        %4509 = vmatpush1.msra.mxu0 %v4279
        %4510 = vmatprep.subr.mxu0 %v4284
        %4511 = vmatpush1.msra.mxu0 %v4283
        %4512 = vmatprep.subr.mxu0 0.0
        %4513 = vmatpush1.msra.mxu0 0.0
        %4514 = vmatprep.subr.mxu0 0.0
        %4515 = vmatpush1.msra.mxu0 0.0
        %4516 = vmatprep.mubr.f32.mxu0 %v2702
        %4517 = vmatmul.mubr.f32.gmra.mrb[0].mxu0 %v2525
        %v4518 = vpop.f32.mrb[0].mxu0
        %v4519 = vadd.f32 0.0, %v4518
        %v4520 = vpop.f32.mrb[0].mxu0
        %v4521 = vadd.f32 0.0, %v4520
        %4522 = vmatprep.mubr.f32.mxu0 %v2705
        %4523 = vmatmul.mubr.f32.gmra.mrb[0].mxu0 %v2527
        %v4524 = vpop.f32.mrb[0].mxu0
        %v4525 = vadd.f32 0.0, %v4524
        %v4526 = vpop.f32.mrb[0].mxu0
        %v4527 = vadd.f32 0.0, %v4526
        %4528 = vmatprep.mubr.f32.mxu0 %v2708
        %4529 = vmatmul.mubr.f32.gmra.mrb[0].mxu0 %v2529
        %v4530 = vpop.f32.mrb[0].mxu0
        %v4531 = vadd.f32 0.0, %v4530
        %v4532 = vpop.f32.mrb[0].mxu0
        %v4533 = vadd.f32 0.0, %v4532
        %4534 = vmatprep.mubr.f32.mxu0 %v2711
        %4535 = vmatmul.mubr.f32.gmra.mrb[0].mxu0 %v2531
        %v4536 = vpop.f32.mrb[0].mxu0
        %v4537 = vadd.f32 0.0, %v4536
        %v4538 = vpop.f32.mrb[0].mxu0
        %v4539 = vadd.f32 0.0, %v4538
        %4540 = vmatprep.mubr.f32.mxu0 %v2714
        %4541 = vmatmul.mubr.f32.gmra.mrb[0].mxu0 %v2533
        %v4542 = vpop.f32.mrb[0].mxu0
        %v4543 = vadd.f32 0.0, %v4542
        %v4544 = vpop.f32.mrb[0].mxu0
        %v4545 = vadd.f32 0.0, %v4544
        %4546 = vmatprep.mubr.f32.mxu0 %v2717
        %4547 = vmatmul.mubr.f32.gmra.mrb[0].mxu0 %v2535
        %v4548 = vpop.f32.mrb[0].mxu0
        %v4549 = vadd.f32 0.0, %v4548
        %v4550 = vpop.f32.mrb[0].mxu0
        %v4551 = vadd.f32 0.0, %v4550
        %4552 = vmatprep.mubr.f32.mxu0 %v2720
        %4553 = vmatmul.mubr.f32.gmra.mrb[0].mxu0 %v2537
        %v4554 = vpop.f32.mrb[0].mxu0
        %v4555 = vadd.f32 0.0, %v4554
        %v4556 = vpop.f32.mrb[0].mxu0
        %v4557 = vadd.f32 0.0, %v4556
        %4558 = vmatprep.mubr.f32.mxu0 %v2723
        %4559 = vmatmul.mubr.f32.gmra.mrb[0].mxu0 %v2539
        %v4560 = vpop.f32.mrb[0].mxu0
        %v4561 = vadd.f32 0.0, %v4560
        %v4562 = vpop.f32.mrb[0].mxu0
        %v4563 = vadd.f32 0.0, %v4562
        %4564 = vmatprep.mubr.f32.mxu0 %v2726
        %4565 = vmatmul.mubr.f32.gmra.mrb[0].mxu0 %v2541
        %v4566 = vpop.f32.mrb[0].mxu0
        %v4567 = vadd.f32 0.0, %v4566
        %v4568 = vpop.f32.mrb[0].mxu0
        %v4569 = vadd.f32 0.0, %v4568
        %4570 = vmatprep.mubr.f32.mxu0 %v2729
        %4571 = vmatmul.mubr.f32.gmra.mrb[0].mxu0 %v2543
        %v4572 = vpop.f32.mrb[0].mxu0
        %v4573 = vadd.f32 0.0, %v4572
        %v4574 = vpop.f32.mrb[0].mxu0
        %v4575 = vadd.f32 0.0, %v4574
        %4576 = vmatprep.mubr.f32.mxu0 %v3260
        %4577 = vmatmul.mubr.f32.gmra.mrb[0].mxu0 %v2545
        %v4578 = vpop.f32.mrb[0].mxu0
        %v4579 = vadd.f32 0.0, %v4578
        %v4580 = vpop.f32.mrb[0].mxu0
        %v4581 = vadd.f32 0.0, %v4580
        %4582 = vmatprep.mubr.f32.mxu0 %v3263
        %4583 = vmatmul.mubr.f32.gmra.mrb[0].mxu0 %v2547
        %v4584 = vpop.f32.mrb[0].mxu0
        %v4585 = vadd.f32 0.0, %v4584
        %v4586 = vpop.f32.mrb[0].mxu0
        %v4587 = vadd.f32 0.0, %v4586
        %4588 = vmatprep.mubr.f32.mxu0 %v3773
        %4589 = vmatmul.mubr.f32.gmra.mrb[0].mxu0 %v2549
        %v4590 = vpop.f32.mrb[0].mxu0
        %v4591 = vadd.f32 0.0, %v4590
        %v4592 = vpop.f32.mrb[0].mxu0
        %v4593 = vadd.f32 0.0, %v4592
        %4594 = vmatprep.mubr.f32.mxu0 %v3776
        %4595 = vmatmul.mubr.f32.gmra.mrb[0].mxu0 %v2551
        %v4596 = vpop.f32.mrb[0].mxu0
        %v4597 = vadd.f32 0.0, %v4596
        %v4598 = vpop.f32.mrb[0].mxu0
        %v4599 = vadd.f32 0.0, %v4598
        %4600 = vmatprep.mubr.f32.mxu0 %v4286
        %4601 = vmatmul.mubr.f32.gmra.mrb[0].mxu0 %v2553
        %v4602 = vpop.f32.mrb[0].mxu0
        %v4603 = vadd.f32 0.0, %v4602
        %v4604 = vpop.f32.mrb[0].mxu0
        %v4605 = vadd.f32 0.0, %v4604
        %4606 = vmatprep.mubr.f32.mxu0 %v4289
        %4607 = vmatmul.mubr.f32.gmra.mrb[0].mxu0 %v2555
        %v4608 = vpop.f32.mrb[0].mxu0
        %v4609 = vadd.f32 0.0, %v4608
        %v4610 = vpop.f32.mrb[0].mxu0
        %v4611 = vadd.f32 0.0, %v4610
        %4612 = vdwg.mxu0
        %v4613 = vadd.f32 %v4100, %v4358
        %v4614 = vadd.f32 %v4101, %v4360
        %v4615 = vadd.f32 %v4102, %v4519
        %v4616 = vadd.f32 %v4103, %v4521
        %v4617 = vadd.f32 %v4104, %v4364
        %v4618 = vadd.f32 %v4105, %v4366
        %v4619 = vadd.f32 %v4106, %v4525
        %v4620 = vadd.f32 %v4107, %v4527
        %v4621 = vadd.f32 %v4108, %v4370
        %v4622 = vadd.f32 %v4109, %v4372
        %v4623 = vadd.f32 %v4110, %v4531
        %v4624 = vadd.f32 %v4111, %v4533
        %v4625 = vadd.f32 %v4112, %v4376
        %v4626 = vadd.f32 %v4113, %v4378
        %v4627 = vadd.f32 %v4114, %v4537
        %v4628 = vadd.f32 %v4115, %v4539
        %v4629 = vadd.f32 %v4116, %v4382
        %v4630 = vadd.f32 %v4117, %v4384
        %v4631 = vadd.f32 %v4118, %v4543
        %v4632 = vadd.f32 %v4119, %v4545
        %v4633 = vadd.f32 %v4120, %v4388
        %v4634 = vadd.f32 %v4121, %v4390
        %v4635 = vadd.f32 %v4122, %v4549
        %v4636 = vadd.f32 %v4123, %v4551
        %v4637 = vadd.f32 %v4124, %v4394
        %v4638 = vadd.f32 %v4125, %v4396
        %v4639 = vadd.f32 %v4126, %v4555
        %v4640 = vadd.f32 %v4127, %v4557
        %v4641 = vadd.f32 %v4128, %v4400
        %v4642 = vadd.f32 %v4129, %v4402
        %v4643 = vadd.f32 %v4130, %v4561
        %v4644 = vadd.f32 %v4131, %v4563
        %v4645 = vadd.f32 %v4132, %v4406
        %v4646 = vadd.f32 %v4133, %v4408
        %v4647 = vadd.f32 %v4134, %v4567
        %v4648 = vadd.f32 %v4135, %v4569
        %v4649 = vadd.f32 %v4136, %v4412
        %v4650 = vadd.f32 %v4137, %v4414
        %v4651 = vadd.f32 %v4138, %v4573
        %v4652 = vadd.f32 %v4139, %v4575
        %v4653 = vadd.f32 %v4140, %v4418
        %v4654 = vadd.f32 %v4141, %v4420
        %v4655 = vadd.f32 %v4142, %v4579
        %v4656 = vadd.f32 %v4143, %v4581
        %v4657 = vadd.f32 %v4144, %v4424
        %v4658 = vadd.f32 %v4145, %v4426
        %v4659 = vadd.f32 %v4146, %v4585
        %v4660 = vadd.f32 %v4147, %v4587
        %v4661 = vadd.f32 %v4148, %v4430
        %v4662 = vadd.f32 %v4149, %v4432
        %v4663 = vadd.f32 %v4150, %v4591
        %v4664 = vadd.f32 %v4151, %v4593
        %v4665 = vadd.f32 %v4152, %v4436
        %v4666 = vadd.f32 %v4153, %v4438
        %v4667 = vadd.f32 %v4154, %v4597
        %v4668 = vadd.f32 %v4155, %v4599
        %v4669 = vadd.f32 %v4156, %v4442
        %v4670 = vadd.f32 %v4157, %v4444
        %v4671 = vadd.f32 %v4158, %v4603
        %v4672 = vadd.f32 %v4159, %v4605
        %v4673 = vadd.f32 %v4160, %v4448
        %v4674 = vadd.f32 %v4161, %v4450
        %v4675 = vadd.f32 %v4162, %v4609
        %v4676 = vadd.f32 %v4163, %v4611
        %s4677 = scalar_lea.vmem %s3, 3840
        %v4678 = vld [vmem:[%s4677] sm:$0xff]
        %v4679 = vld [vmem:[%s4677 + $0x8] sm:$0xff]
        %v4680 = vld [vmem:[%s4677 + $0x10] sm:$0xff]
        %v4681 = vld [vmem:[%s4677 + $0x18] sm:$0xff]
        %v4682 = vld [vmem:[%s4677 + $0x20] sm:$0xff]
        %v4683 = vld [vmem:[%s4677 + $0x28] sm:$0xff]
        %v4684 = vld [vmem:[%s4677 + $0x30] sm:$0xff]
        %v4685 = vld [vmem:[%s4677 + $0x38] sm:$0xff]
        %v4686 = vld [vmem:[%s4677 + $0x40] sm:$0xff]
        %v4687 = vld [vmem:[%s4677 + $0x48] sm:$0xff]
        %v4688 = vld [vmem:[%s4677 + $0x50] sm:$0xff]
        %v4689 = vld [vmem:[%s4677 + $0x58] sm:$0xff]
        %v4690 = vld [vmem:[%s4677 + $0x60] sm:$0xff]
        %v4691 = vld [vmem:[%s4677 + $0x68] sm:$0xff]
        %v4692 = vld [vmem:[%s4677 + $0x70] sm:$0xff]
        %v4693 = vld [vmem:[%s4677 + $0x78] sm:$0xff]
        %v4694 = vld [vmem:[%s4677 + $0x80] sm:$0xff]
        %v4695 = vld [vmem:[%s4677 + $0x88] sm:$0xff]
        %v4696 = vld [vmem:[%s4677 + $0x90] sm:$0xff]
        %v4697 = vld [vmem:[%s4677 + $0x98] sm:$0xff]
        %v4698 = vld [vmem:[%s4677 + $0xa0] sm:$0xff]
        %v4699 = vld [vmem:[%s4677 + $0xa8] sm:$0xff]
        %v4700 = vld [vmem:[%s4677 + $0xb0] sm:$0xff]
        %v4701 = vld [vmem:[%s4677 + $0xb8] sm:$0xff]
        %v4702 = vld [vmem:[%s4677 + $0xc0] sm:$0xff]
        %v4703 = vld [vmem:[%s4677 + $0xc8] sm:$0xff]
        %v4704 = vld [vmem:[%s4677 + $0xd0] sm:$0xff]
        %v4705 = vld [vmem:[%s4677 + $0xd8] sm:$0xff]
        %v4706 = vld [vmem:[%s4677 + $0xe0] sm:$0xff]
        %v4707 = vld [vmem:[%s4677 + $0xe8] sm:$0xff]
        %v4708 = vld [vmem:[%s4677 + $0xf0] sm:$0xff]
        %v4709 = vld [vmem:[%s4677 + $0xf8] sm:$0xff]
        %v4710 = vld [vmem:[%s4677 + $0x100] sm:$0xff]
        %v4711 = vld [vmem:[%s4677 + $0x108] sm:$0xff]
        %v4712 = vld [vmem:[%s4677 + $0x110] sm:$0xff]
        %v4713 = vld [vmem:[%s4677 + $0x118] sm:$0xff]
        %v4714 = vld [vmem:[%s4677 + $0x120] sm:$0xff]
        %v4715 = vld [vmem:[%s4677 + $0x128] sm:$0xff]
        %v4716 = vld [vmem:[%s4677 + $0x130] sm:$0xff]
        %v4717 = vld [vmem:[%s4677 + $0x138] sm:$0xff]
        %v4718 = vld [vmem:[%s4677 + $0x140] sm:$0xff]
        %v4719 = vld [vmem:[%s4677 + $0x148] sm:$0xff]
        %v4720 = vld [vmem:[%s4677 + $0x150] sm:$0xff]
        %v4721 = vld [vmem:[%s4677 + $0x158] sm:$0xff]
        %v4722 = vld [vmem:[%s4677 + $0x160] sm:$0xff]
        %v4723 = vld [vmem:[%s4677 + $0x168] sm:$0xff]
        %v4724 = vld [vmem:[%s4677 + $0x170] sm:$0xff]
        %v4725 = vld [vmem:[%s4677 + $0x178] sm:$0xff]
        %v4726 = vld [vmem:[%s4677 + $0x180] sm:$0xff]
        %v4727 = vld [vmem:[%s4677 + $0x188] sm:$0xff]
        %v4728 = vld [vmem:[%s4677 + $0x190] sm:$0xff]
        %v4729 = vld [vmem:[%s4677 + $0x198] sm:$0xff]
        %v4730 = vld [vmem:[%s4677 + $0x1a0] sm:$0xff]
        %v4731 = vld [vmem:[%s4677 + $0x1a8] sm:$0xff]
        %v4732 = vld [vmem:[%s4677 + $0x1b0] sm:$0xff]
        %v4733 = vld [vmem:[%s4677 + $0x1b8] sm:$0xff]
        %v4734 = vld [vmem:[%s4677 + $0x1c0] sm:$0xff]
        %v4735 = vld [vmem:[%s4677 + $0x1c8] sm:$0xff]
        %v4736 = vld [vmem:[%s4677 + $0x1d0] sm:$0xff]
        %v4737 = vld [vmem:[%s4677 + $0x1d8] sm:$0xff]
        %v4738 = vld [vmem:[%s4677 + $0x1e0] sm:$0xff]
        %v4739 = vld [vmem:[%s4677 + $0x1e8] sm:$0xff]
        %v4740 = vld [vmem:[%s4677 + $0x1f0] sm:$0xff]
        %v4741 = vld [vmem:[%s4677 + $0x1f8] sm:$0xff]
        %v4742 = vld [vmem:[%s4677 + $0x200] sm:$0xff]
        %v4743 = vld [vmem:[%s4677 + $0x208] sm:$0xff]
        %v4744 = vld [vmem:[%s4677 + $0x210] sm:$0xff]
        %v4745 = vld [vmem:[%s4677 + $0x218] sm:$0xff]
        %v4746 = vld [vmem:[%s4677 + $0x220] sm:$0xff]
        %v4747 = vld [vmem:[%s4677 + $0x228] sm:$0xff]
        %v4748 = vld [vmem:[%s4677 + $0x230] sm:$0xff]
        %v4749 = vld [vmem:[%s4677 + $0x238] sm:$0xff]
        %v4750 = vld [vmem:[%s4677 + $0x240] sm:$0xff]
        %v4751 = vld [vmem:[%s4677 + $0x248] sm:$0xff]
        %v4752 = vld [vmem:[%s4677 + $0x250] sm:$0xff]
        %v4753 = vld [vmem:[%s4677 + $0x258] sm:$0xff]
        %v4754 = vld [vmem:[%s4677 + $0x260] sm:$0xff]
        %v4755 = vld [vmem:[%s4677 + $0x268] sm:$0xff]
        %v4756 = vld [vmem:[%s4677 + $0x270] sm:$0xff]
        %v4757 = vld [vmem:[%s4677 + $0x278] sm:$0xff]
        %v4758 = vld [vmem:[%s4677 + $0x280] sm:$0xff]
        %v4759 = vld [vmem:[%s4677 + $0x288] sm:$0xff]
        %v4760 = vld [vmem:[%s4677 + $0x290] sm:$0xff]
        %v4761 = vld [vmem:[%s4677 + $0x298] sm:$0xff]
        %v4762 = vld [vmem:[%s4677 + $0x2a0] sm:$0xff]
        %v4763 = vld [vmem:[%s4677 + $0x2a8] sm:$0xff]
        %v4764 = vld [vmem:[%s4677 + $0x2b0] sm:$0xff]
        %v4765 = vld [vmem:[%s4677 + $0x2b8] sm:$0xff]
        %v4766 = vld [vmem:[%s4677 + $0x2c0] sm:$0xff]
        %v4767 = vld [vmem:[%s4677 + $0x2c8] sm:$0xff]
        %v4768 = vld [vmem:[%s4677 + $0x2d0] sm:$0xff]
        %v4769 = vld [vmem:[%s4677 + $0x2d8] sm:$0xff]
        %v4770 = vld [vmem:[%s4677 + $0x2e0] sm:$0xff]
        %v4771 = vld [vmem:[%s4677 + $0x2e8] sm:$0xff]
        %v4772 = vld [vmem:[%s4677 + $0x2f0] sm:$0xff]
        %v4773 = vld [vmem:[%s4677 + $0x2f8] sm:$0xff]
        %v4774 = vld [vmem:[%s4677 + $0x300] sm:$0xff]
        %v4775 = vld [vmem:[%s4677 + $0x308] sm:$0xff]
        %v4776 = vld [vmem:[%s4677 + $0x310] sm:$0xff]
        %v4777 = vld [vmem:[%s4677 + $0x318] sm:$0xff]
        %v4778 = vld [vmem:[%s4677 + $0x320] sm:$0xff]
        %v4779 = vld [vmem:[%s4677 + $0x328] sm:$0xff]
        %v4780 = vld [vmem:[%s4677 + $0x330] sm:$0xff]
        %v4781 = vld [vmem:[%s4677 + $0x338] sm:$0xff]
        %v4782 = vld [vmem:[%s4677 + $0x340] sm:$0xff]
        %v4783 = vld [vmem:[%s4677 + $0x348] sm:$0xff]
        %v4784 = vld [vmem:[%s4677 + $0x350] sm:$0xff]
        %v4785 = vld [vmem:[%s4677 + $0x358] sm:$0xff]
        %v4786 = vld [vmem:[%s4677 + $0x360] sm:$0xff]
        %v4787 = vld [vmem:[%s4677 + $0x368] sm:$0xff]
        %v4788 = vld [vmem:[%s4677 + $0x370] sm:$0xff]
        %v4789 = vld [vmem:[%s4677 + $0x378] sm:$0xff]
        %v4790 = vld [vmem:[%s4677 + $0x380] sm:$0xff]
        %v4791 = vld [vmem:[%s4677 + $0x388] sm:$0xff]
        %v4792 = vld [vmem:[%s4677 + $0x390] sm:$0xff]
        %v4793 = vld [vmem:[%s4677 + $0x398] sm:$0xff]
        %v4794 = vld [vmem:[%s4677 + $0x3a0] sm:$0xff]
        %v4795 = vld [vmem:[%s4677 + $0x3a8] sm:$0xff]
        %v4796 = vld [vmem:[%s4677 + $0x3b0] sm:$0xff]
        %v4797 = vld [vmem:[%s4677 + $0x3b8] sm:$0xff]
        %v4799 = vsel %vm2682, %v2558, 0
        %v4802 = vsel %vm2682, %v2560, 0
        %4804 = vmatprep.subr.mxu0 %v4679
        %4805 = vmatpush1.msra.mxu0 %v4678
        %4806 = vmatprep.subr.mxu0 %v4683
        %4807 = vmatpush1.msra.mxu0 %v4682
        %4808 = vmatprep.subr.mxu0 %v4687
        %4809 = vmatpush1.msra.mxu0 %v4686
        %4810 = vmatprep.subr.mxu0 %v4691
        %4811 = vmatpush1.msra.mxu0 %v4690
        %4812 = vmatprep.subr.mxu0 %v4695
        %4813 = vmatpush1.msra.mxu0 %v4694
        %4814 = vmatprep.subr.mxu0 %v4699
        %4815 = vmatpush1.msra.mxu0 %v4698
        %4816 = vmatprep.subr.mxu0 %v4703
        %4817 = vmatpush1.msra.mxu0 %v4702
        %4818 = vmatprep.subr.mxu0 %v4707
        %4819 = vmatpush1.msra.mxu0 %v4706
        %4820 = vmatprep.subr.mxu0 %v4711
        %4821 = vmatpush1.msra.mxu0 %v4710
        %4822 = vmatprep.subr.mxu0 %v4715
        %4823 = vmatpush1.msra.mxu0 %v4714
        %4824 = vmatprep.subr.mxu0 %v4719
        %4825 = vmatpush1.msra.mxu0 %v4718
        %4826 = vmatprep.subr.mxu0 %v4723
        %4827 = vmatpush1.msra.mxu0 %v4722
        %4828 = vmatprep.subr.mxu0 %v4727
        %4829 = vmatpush1.msra.mxu0 %v4726
        %4830 = vmatprep.subr.mxu0 %v4731
        %4831 = vmatpush1.msra.mxu0 %v4730
        %4832 = vmatprep.subr.mxu0 %v4735
        %4833 = vmatpush1.msra.mxu0 %v4734
        %4834 = vmatprep.subr.mxu0 %v4739
        %4835 = vmatpush1.msra.mxu0 %v4738
        %4836 = vmatprep.subr.mxu0 %v4743
        %4837 = vmatpush1.msra.mxu0 %v4742
        %4838 = vmatprep.subr.mxu0 %v4747
        %4839 = vmatpush1.msra.mxu0 %v4746
        %4840 = vmatprep.subr.mxu0 %v4751
        %4841 = vmatpush1.msra.mxu0 %v4750
        %4842 = vmatprep.subr.mxu0 %v4755
        %4843 = vmatpush1.msra.mxu0 %v4754
        %4844 = vmatprep.subr.mxu0 %v4759
        %4845 = vmatpush1.msra.mxu0 %v4758
        %4846 = vmatprep.subr.mxu0 %v4763
        %4847 = vmatpush1.msra.mxu0 %v4762
        %4848 = vmatprep.subr.mxu0 %v4767
        %4849 = vmatpush1.msra.mxu0 %v4766
        %4850 = vmatprep.subr.mxu0 %v4771
        %4851 = vmatpush1.msra.mxu0 %v4770
        %4852 = vmatprep.subr.mxu0 %v4775
        %4853 = vmatpush1.msra.mxu0 %v4774
        %4854 = vmatprep.subr.mxu0 %v4779
        %4855 = vmatpush1.msra.mxu0 %v4778
        %4856 = vmatprep.subr.mxu0 %v4783
        %4857 = vmatpush1.msra.mxu0 %v4782
        %4858 = vmatprep.subr.mxu0 %v4787
        %4859 = vmatpush1.msra.mxu0 %v4786
        %4860 = vmatprep.subr.mxu0 %v4791
        %4861 = vmatpush1.msra.mxu0 %v4790
        %4862 = vmatprep.subr.mxu0 %v4795
        %4863 = vmatpush1.msra.mxu0 %v4794
        %4864 = vmatprep.subr.mxu0 0.0
        %4865 = vmatpush1.msra.mxu0 0.0
        %4866 = vmatprep.subr.mxu0 0.0
        %4867 = vmatpush1.msra.mxu0 0.0
        %4868 = vmatprep.mubr.f32.mxu0 %v2708
        %4869 = vmatmul.mubr.f32.gmra.mrb[0].mxu0 %v2529
        %v4870 = vpop.f32.mrb[0].mxu0
        %v4871 = vadd.f32 0.0, %v4870
        %v4872 = vpop.f32.mrb[0].mxu0
        %v4873 = vadd.f32 0.0, %v4872
        %4874 = vmatprep.mubr.f32.mxu0 %v2711
        %4875 = vmatmul.mubr.f32.gmra.mrb[0].mxu0 %v2531
        %v4876 = vpop.f32.mrb[0].mxu0
        %v4877 = vadd.f32 0.0, %v4876
        %v4878 = vpop.f32.mrb[0].mxu0
        %v4879 = vadd.f32 0.0, %v4878
        %4880 = vmatprep.mubr.f32.mxu0 %v2714
        %4881 = vmatmul.mubr.f32.gmra.mrb[0].mxu0 %v2533
        %v4882 = vpop.f32.mrb[0].mxu0
        %v4883 = vadd.f32 0.0, %v4882
        %v4884 = vpop.f32.mrb[0].mxu0
        %v4885 = vadd.f32 0.0, %v4884
        %4886 = vmatprep.mubr.f32.mxu0 %v2717
        %4887 = vmatmul.mubr.f32.gmra.mrb[0].mxu0 %v2535
        %v4888 = vpop.f32.mrb[0].mxu0
        %v4889 = vadd.f32 0.0, %v4888
        %v4890 = vpop.f32.mrb[0].mxu0
        %v4891 = vadd.f32 0.0, %v4890
        %4892 = vmatprep.mubr.f32.mxu0 %v2720
        %4893 = vmatmul.mubr.f32.gmra.mrb[0].mxu0 %v2537
        %v4894 = vpop.f32.mrb[0].mxu0
        %v4895 = vadd.f32 0.0, %v4894
        %v4896 = vpop.f32.mrb[0].mxu0
        %v4897 = vadd.f32 0.0, %v4896
        %4898 = vmatprep.mubr.f32.mxu0 %v2723
        %4899 = vmatmul.mubr.f32.gmra.mrb[0].mxu0 %v2539
        %v4900 = vpop.f32.mrb[0].mxu0
        %v4901 = vadd.f32 0.0, %v4900
        %v4902 = vpop.f32.mrb[0].mxu0
        %v4903 = vadd.f32 0.0, %v4902
        %4904 = vmatprep.mubr.f32.mxu0 %v2726
        %4905 = vmatmul.mubr.f32.gmra.mrb[0].mxu0 %v2541
        %v4906 = vpop.f32.mrb[0].mxu0
        %v4907 = vadd.f32 0.0, %v4906
        %v4908 = vpop.f32.mrb[0].mxu0
        %v4909 = vadd.f32 0.0, %v4908
        %4910 = vmatprep.mubr.f32.mxu0 %v2729
        %4911 = vmatmul.mubr.f32.gmra.mrb[0].mxu0 %v2543
        %v4912 = vpop.f32.mrb[0].mxu0
        %v4913 = vadd.f32 0.0, %v4912
        %v4914 = vpop.f32.mrb[0].mxu0
        %v4915 = vadd.f32 0.0, %v4914
        %4916 = vmatprep.mubr.f32.mxu0 %v3260
        %4917 = vmatmul.mubr.f32.gmra.mrb[0].mxu0 %v2545
        %v4918 = vpop.f32.mrb[0].mxu0
        %v4919 = vadd.f32 0.0, %v4918
        %v4920 = vpop.f32.mrb[0].mxu0
        %v4921 = vadd.f32 0.0, %v4920
        %4922 = vmatprep.mubr.f32.mxu0 %v3263
        %4923 = vmatmul.mubr.f32.gmra.mrb[0].mxu0 %v2547
        %v4924 = vpop.f32.mrb[0].mxu0
        %v4925 = vadd.f32 0.0, %v4924
        %v4926 = vpop.f32.mrb[0].mxu0
        %v4927 = vadd.f32 0.0, %v4926
        %4928 = vmatprep.mubr.f32.mxu0 %v3773
        %4929 = vmatmul.mubr.f32.gmra.mrb[0].mxu0 %v2549
        %v4930 = vpop.f32.mrb[0].mxu0
        %v4931 = vadd.f32 0.0, %v4930
        %v4932 = vpop.f32.mrb[0].mxu0
        %v4933 = vadd.f32 0.0, %v4932
        %4934 = vmatprep.mubr.f32.mxu0 %v3776
        %4935 = vmatmul.mubr.f32.gmra.mrb[0].mxu0 %v2551
        %v4936 = vpop.f32.mrb[0].mxu0
        %v4937 = vadd.f32 0.0, %v4936
        %v4938 = vpop.f32.mrb[0].mxu0
        %v4939 = vadd.f32 0.0, %v4938
        %4940 = vmatprep.mubr.f32.mxu0 %v4286
        %4941 = vmatmul.mubr.f32.gmra.mrb[0].mxu0 %v2553
        %v4942 = vpop.f32.mrb[0].mxu0
        %v4943 = vadd.f32 0.0, %v4942
        %v4944 = vpop.f32.mrb[0].mxu0
        %v4945 = vadd.f32 0.0, %v4944
        %4946 = vmatprep.mubr.f32.mxu0 %v4289
        %4947 = vmatmul.mubr.f32.gmra.mrb[0].mxu0 %v2555
        %v4948 = vpop.f32.mrb[0].mxu0
        %v4949 = vadd.f32 0.0, %v4948
        %v4950 = vpop.f32.mrb[0].mxu0
        %v4951 = vadd.f32 0.0, %v4950
        %4952 = vmatprep.mubr.f32.mxu0 %v4799
        %4953 = vmatmul.mubr.f32.gmra.mrb[0].mxu0 %v2557
        %v4954 = vpop.f32.mrb[0].mxu0
        %v4955 = vadd.f32 0.0, %v4954
        %v4956 = vpop.f32.mrb[0].mxu0
        %v4957 = vadd.f32 0.0, %v4956
        %4958 = vmatprep.mubr.f32.mxu0 %v4802
        %4959 = vmatmul.mubr.f32.gmra.mrb[0].mxu0 %v2559
        %v4960 = vpop.f32.mrb[0].mxu0
        %v4961 = vadd.f32 0.0, %v4960
        %v4962 = vpop.f32.mrb[0].mxu0
        %v4963 = vadd.f32 0.0, %v4962
        %4964 = vdwg.mxu0
        %4965 = vmatprep.subr.mxu0 %v4681
        %4966 = vmatpush1.msra.mxu0 %v4680
        %4967 = vmatprep.subr.mxu0 %v4685
        %4968 = vmatpush1.msra.mxu0 %v4684
        %4969 = vmatprep.subr.mxu0 %v4689
        %4970 = vmatpush1.msra.mxu0 %v4688
        %4971 = vmatprep.subr.mxu0 %v4693
        %4972 = vmatpush1.msra.mxu0 %v4692
        %4973 = vmatprep.subr.mxu0 %v4697
        %4974 = vmatpush1.msra.mxu0 %v4696
        %4975 = vmatprep.subr.mxu0 %v4701
        %4976 = vmatpush1.msra.mxu0 %v4700
        %4977 = vmatprep.subr.mxu0 %v4705
        %4978 = vmatpush1.msra.mxu0 %v4704
        %4979 = vmatprep.subr.mxu0 %v4709
        %4980 = vmatpush1.msra.mxu0 %v4708
        %4981 = vmatprep.subr.mxu0 %v4713
        %4982 = vmatpush1.msra.mxu0 %v4712
        %4983 = vmatprep.subr.mxu0 %v4717
        %4984 = vmatpush1.msra.mxu0 %v4716
        %4985 = vmatprep.subr.mxu0 %v4721
        %4986 = vmatpush1.msra.mxu0 %v4720
        %4987 = vmatprep.subr.mxu0 %v4725
        %4988 = vmatpush1.msra.mxu0 %v4724
        %4989 = vmatprep.subr.mxu0 %v4729
        %4990 = vmatpush1.msra.mxu0 %v4728
        %4991 = vmatprep.subr.mxu0 %v4733
        %4992 = vmatpush1.msra.mxu0 %v4732
        %4993 = vmatprep.subr.mxu0 %v4737
        %4994 = vmatpush1.msra.mxu0 %v4736
        %4995 = vmatprep.subr.mxu0 %v4741
        %4996 = vmatpush1.msra.mxu0 %v4740
        %4997 = vmatprep.subr.mxu0 %v4745
        %4998 = vmatpush1.msra.mxu0 %v4744
        %4999 = vmatprep.subr.mxu0 %v4749
        %5000 = vmatpush1.msra.mxu0 %v4748
        %5001 = vmatprep.subr.mxu0 %v4753
        %5002 = vmatpush1.msra.mxu0 %v4752
        %5003 = vmatprep.subr.mxu0 %v4757
        %5004 = vmatpush1.msra.mxu0 %v4756
        %5005 = vmatprep.subr.mxu0 %v4761
        %5006 = vmatpush1.msra.mxu0 %v4760
        %5007 = vmatprep.subr.mxu0 %v4765
        %5008 = vmatpush1.msra.mxu0 %v4764
        %5009 = vmatprep.subr.mxu0 %v4769
        %5010 = vmatpush1.msra.mxu0 %v4768
        %5011 = vmatprep.subr.mxu0 %v4773
        %5012 = vmatpush1.msra.mxu0 %v4772
        %5013 = vmatprep.subr.mxu0 %v4777
        %5014 = vmatpush1.msra.mxu0 %v4776
        %5015 = vmatprep.subr.mxu0 %v4781
        %5016 = vmatpush1.msra.mxu0 %v4780
        %5017 = vmatprep.subr.mxu0 %v4785
        %5018 = vmatpush1.msra.mxu0 %v4784
        %5019 = vmatprep.subr.mxu0 %v4789
        %5020 = vmatpush1.msra.mxu0 %v4788
        %5021 = vmatprep.subr.mxu0 %v4793
        %5022 = vmatpush1.msra.mxu0 %v4792
        %5023 = vmatprep.subr.mxu0 %v4797
        %5024 = vmatpush1.msra.mxu0 %v4796
        %5025 = vmatprep.subr.mxu0 0.0
        %5026 = vmatpush1.msra.mxu0 0.0
        %5027 = vmatprep.subr.mxu0 0.0
        %5028 = vmatpush1.msra.mxu0 0.0
        %5029 = vmatprep.mubr.f32.mxu0 %v2708
        %5030 = vmatmul.mubr.f32.gmra.mrb[0].mxu0 %v2529
        %v5031 = vpop.f32.mrb[0].mxu0
        %v5032 = vadd.f32 0.0, %v5031
        %v5033 = vpop.f32.mrb[0].mxu0
        %v5034 = vadd.f32 0.0, %v5033
        %5035 = vmatprep.mubr.f32.mxu0 %v2711
        %5036 = vmatmul.mubr.f32.gmra.mrb[0].mxu0 %v2531
        %v5037 = vpop.f32.mrb[0].mxu0
        %v5038 = vadd.f32 0.0, %v5037
        %v5039 = vpop.f32.mrb[0].mxu0
        %v5040 = vadd.f32 0.0, %v5039
        %5041 = vmatprep.mubr.f32.mxu0 %v2714
        %5042 = vmatmul.mubr.f32.gmra.mrb[0].mxu0 %v2533
        %v5043 = vpop.f32.mrb[0].mxu0
        %v5044 = vadd.f32 0.0, %v5043
        %v5045 = vpop.f32.mrb[0].mxu0
        %v5046 = vadd.f32 0.0, %v5045
        %5047 = vmatprep.mubr.f32.mxu0 %v2717
        %5048 = vmatmul.mubr.f32.gmra.mrb[0].mxu0 %v2535
        %v5049 = vpop.f32.mrb[0].mxu0
        %v5050 = vadd.f32 0.0, %v5049
        %v5051 = vpop.f32.mrb[0].mxu0
        %v5052 = vadd.f32 0.0, %v5051
        %5053 = vmatprep.mubr.f32.mxu0 %v2720
        %5054 = vmatmul.mubr.f32.gmra.mrb[0].mxu0 %v2537
        %v5055 = vpop.f32.mrb[0].mxu0
        %v5056 = vadd.f32 0.0, %v5055
        %v5057 = vpop.f32.mrb[0].mxu0
        %v5058 = vadd.f32 0.0, %v5057
        %5059 = vmatprep.mubr.f32.mxu0 %v2723
        %5060 = vmatmul.mubr.f32.gmra.mrb[0].mxu0 %v2539
        %v5061 = vpop.f32.mrb[0].mxu0
        %v5062 = vadd.f32 0.0, %v5061
        %v5063 = vpop.f32.mrb[0].mxu0
        %v5064 = vadd.f32 0.0, %v5063
        %5065 = vmatprep.mubr.f32.mxu0 %v2726
        %5066 = vmatmul.mubr.f32.gmra.mrb[0].mxu0 %v2541
        %v5067 = vpop.f32.mrb[0].mxu0
        %v5068 = vadd.f32 0.0, %v5067
        %v5069 = vpop.f32.mrb[0].mxu0
        %v5070 = vadd.f32 0.0, %v5069
        %5071 = vmatprep.mubr.f32.mxu0 %v2729
        %5072 = vmatmul.mubr.f32.gmra.mrb[0].mxu0 %v2543
        %v5073 = vpop.f32.mrb[0].mxu0
        %v5074 = vadd.f32 0.0, %v5073
        %v5075 = vpop.f32.mrb[0].mxu0
        %v5076 = vadd.f32 0.0, %v5075
        %5077 = vmatprep.mubr.f32.mxu0 %v3260
        %5078 = vmatmul.mubr.f32.gmra.mrb[0].mxu0 %v2545
        %v5079 = vpop.f32.mrb[0].mxu0
        %v5080 = vadd.f32 0.0, %v5079
        %v5081 = vpop.f32.mrb[0].mxu0
        %v5082 = vadd.f32 0.0, %v5081
        %5083 = vmatprep.mubr.f32.mxu0 %v3263
        %5084 = vmatmul.mubr.f32.gmra.mrb[0].mxu0 %v2547
        %v5085 = vpop.f32.mrb[0].mxu0
        %v5086 = vadd.f32 0.0, %v5085
        %v5087 = vpop.f32.mrb[0].mxu0
        %v5088 = vadd.f32 0.0, %v5087
        %5089 = vmatprep.mubr.f32.mxu0 %v3773
        %5090 = vmatmul.mubr.f32.gmra.mrb[0].mxu0 %v2549
        %v5091 = vpop.f32.mrb[0].mxu0
        %v5092 = vadd.f32 0.0, %v5091
        %v5093 = vpop.f32.mrb[0].mxu0
        %v5094 = vadd.f32 0.0, %v5093
        %5095 = vmatprep.mubr.f32.mxu0 %v3776
        %5096 = vmatmul.mubr.f32.gmra.mrb[0].mxu0 %v2551
        %v5097 = vpop.f32.mrb[0].mxu0
        %v5098 = vadd.f32 0.0, %v5097
        %v5099 = vpop.f32.mrb[0].mxu0
        %v5100 = vadd.f32 0.0, %v5099
        %5101 = vmatprep.mubr.f32.mxu0 %v4286
        %5102 = vmatmul.mubr.f32.gmra.mrb[0].mxu0 %v2553
        %v5103 = vpop.f32.mrb[0].mxu0
        %v5104 = vadd.f32 0.0, %v5103
        %v5105 = vpop.f32.mrb[0].mxu0
        %v5106 = vadd.f32 0.0, %v5105
        %5107 = vmatprep.mubr.f32.mxu0 %v4289
        %5108 = vmatmul.mubr.f32.gmra.mrb[0].mxu0 %v2555
        %v5109 = vpop.f32.mrb[0].mxu0
        %v5110 = vadd.f32 0.0, %v5109
        %v5111 = vpop.f32.mrb[0].mxu0
        %v5112 = vadd.f32 0.0, %v5111
        %5113 = vmatprep.mubr.f32.mxu0 %v4799
        %5114 = vmatmul.mubr.f32.gmra.mrb[0].mxu0 %v2557
        %v5115 = vpop.f32.mrb[0].mxu0
        %v5116 = vadd.f32 0.0, %v5115
        %v5117 = vpop.f32.mrb[0].mxu0
        %v5118 = vadd.f32 0.0, %v5117
        %5119 = vmatprep.mubr.f32.mxu0 %v4802
        %5120 = vmatmul.mubr.f32.gmra.mrb[0].mxu0 %v2559
        %v5121 = vpop.f32.mrb[0].mxu0
        %v5122 = vadd.f32 0.0, %v5121
        %v5123 = vpop.f32.mrb[0].mxu0
        %v5124 = vadd.f32 0.0, %v5123
        %5125 = vdwg.mxu0
        %v5126 = vadd.f32 %v4613, %v4871
        %v5127 = vadd.f32 %v4614, %v4873
        %v5128 = vadd.f32 %v4615, %v5032
        %v5129 = vadd.f32 %v4616, %v5034
        %v5130 = vadd.f32 %v4617, %v4877
        %v5131 = vadd.f32 %v4618, %v4879
        %v5132 = vadd.f32 %v4619, %v5038
        %v5133 = vadd.f32 %v4620, %v5040
        %v5134 = vadd.f32 %v4621, %v4883
        %v5135 = vadd.f32 %v4622, %v4885
        %v5136 = vadd.f32 %v4623, %v5044
        %v5137 = vadd.f32 %v4624, %v5046
        %v5138 = vadd.f32 %v4625, %v4889
        %v5139 = vadd.f32 %v4626, %v4891
        %v5140 = vadd.f32 %v4627, %v5050
        %v5141 = vadd.f32 %v4628, %v5052
        %v5142 = vadd.f32 %v4629, %v4895
        %v5143 = vadd.f32 %v4630, %v4897
        %v5144 = vadd.f32 %v4631, %v5056
        %v5145 = vadd.f32 %v4632, %v5058
        %v5146 = vadd.f32 %v4633, %v4901
        %v5147 = vadd.f32 %v4634, %v4903
        %v5148 = vadd.f32 %v4635, %v5062
        %v5149 = vadd.f32 %v4636, %v5064
        %v5150 = vadd.f32 %v4637, %v4907
        %v5151 = vadd.f32 %v4638, %v4909
        %v5152 = vadd.f32 %v4639, %v5068
        %v5153 = vadd.f32 %v4640, %v5070
        %v5154 = vadd.f32 %v4641, %v4913
        %v5155 = vadd.f32 %v4642, %v4915
        %v5156 = vadd.f32 %v4643, %v5074
        %v5157 = vadd.f32 %v4644, %v5076
        %v5158 = vadd.f32 %v4645, %v4919
        %v5159 = vadd.f32 %v4646, %v4921
        %v5160 = vadd.f32 %v4647, %v5080
        %v5161 = vadd.f32 %v4648, %v5082
        %v5162 = vadd.f32 %v4649, %v4925
        %v5163 = vadd.f32 %v4650, %v4927
        %v5164 = vadd.f32 %v4651, %v5086
        %v5165 = vadd.f32 %v4652, %v5088
        %v5166 = vadd.f32 %v4653, %v4931
        %v5167 = vadd.f32 %v4654, %v4933
        %v5168 = vadd.f32 %v4655, %v5092
        %v5169 = vadd.f32 %v4656, %v5094
        %v5170 = vadd.f32 %v4657, %v4937
        %v5171 = vadd.f32 %v4658, %v4939
        %v5172 = vadd.f32 %v4659, %v5098
        %v5173 = vadd.f32 %v4660, %v5100
        %v5174 = vadd.f32 %v4661, %v4943
        %v5175 = vadd.f32 %v4662, %v4945
        %v5176 = vadd.f32 %v4663, %v5104
        %v5177 = vadd.f32 %v4664, %v5106
        %v5178 = vadd.f32 %v4665, %v4949
        %v5179 = vadd.f32 %v4666, %v4951
        %v5180 = vadd.f32 %v4667, %v5110
        %v5181 = vadd.f32 %v4668, %v5112
        %v5182 = vadd.f32 %v4669, %v4955
        %v5183 = vadd.f32 %v4670, %v4957
        %v5184 = vadd.f32 %v4671, %v5116
        %v5185 = vadd.f32 %v4672, %v5118
        %v5186 = vadd.f32 %v4673, %v4961
        %v5187 = vadd.f32 %v4674, %v4963
        %v5188 = vadd.f32 %v4675, %v5122
        %v5189 = vadd.f32 %v4676, %v5124
        %v5190 = vmax.f32 %v5126, 0.0
        %v5191 = vmax.f32 %v5127, 0.0
        %v5192 = vmax.f32 %v5128, 0.0
        %v5193 = vmax.f32 %v5129, 0.0
        %v5194 = vmax.f32 %v5130, 0.0
        %v5195 = vmax.f32 %v5131, 0.0
        %v5196 = vmax.f32 %v5132, 0.0
        %v5197 = vmax.f32 %v5133, 0.0
        %v5198 = vmax.f32 %v5134, 0.0
        %v5199 = vmax.f32 %v5135, 0.0
        %v5200 = vmax.f32 %v5136, 0.0
        %v5201 = vmax.f32 %v5137, 0.0
        %v5202 = vmax.f32 %v5138, 0.0
        %v5203 = vmax.f32 %v5139, 0.0
        %v5204 = vmax.f32 %v5140, 0.0
        %v5205 = vmax.f32 %v5141, 0.0
        %v5206 = vmax.f32 %v5142, 0.0
        %v5207 = vmax.f32 %v5143, 0.0
        %v5208 = vmax.f32 %v5144, 0.0
        %v5209 = vmax.f32 %v5145, 0.0
        %v5210 = vmax.f32 %v5146, 0.0
        %v5211 = vmax.f32 %v5147, 0.0
        %v5212 = vmax.f32 %v5148, 0.0
        %v5213 = vmax.f32 %v5149, 0.0
        %v5214 = vmax.f32 %v5150, 0.0
        %v5215 = vmax.f32 %v5151, 0.0
        %v5216 = vmax.f32 %v5152, 0.0
        %v5217 = vmax.f32 %v5153, 0.0
        %v5218 = vmax.f32 %v5154, 0.0
        %v5219 = vmax.f32 %v5155, 0.0
        %v5220 = vmax.f32 %v5156, 0.0
        %v5221 = vmax.f32 %v5157, 0.0
        %v5222 = vmax.f32 %v5158, 0.0
        %v5223 = vmax.f32 %v5159, 0.0
        %v5224 = vmax.f32 %v5160, 0.0
        %v5225 = vmax.f32 %v5161, 0.0
        %v5226 = vmax.f32 %v5162, 0.0
        %v5227 = vmax.f32 %v5163, 0.0
        %v5228 = vmax.f32 %v5164, 0.0
        %v5229 = vmax.f32 %v5165, 0.0
        %v5230 = vmax.f32 %v5166, 0.0
        %v5231 = vmax.f32 %v5167, 0.0
        %v5232 = vmax.f32 %v5168, 0.0
        %v5233 = vmax.f32 %v5169, 0.0
        %v5234 = vmax.f32 %v5170, 0.0
        %v5235 = vmax.f32 %v5171, 0.0
        %v5236 = vmax.f32 %v5172, 0.0
        %v5237 = vmax.f32 %v5173, 0.0
        %v5238 = vmax.f32 %v5174, 0.0
        %v5239 = vmax.f32 %v5175, 0.0
        %v5240 = vmax.f32 %v5176, 0.0
        %v5241 = vmax.f32 %v5177, 0.0
        %v5242 = vmax.f32 %v5178, 0.0
        %v5243 = vmax.f32 %v5179, 0.0
        %v5244 = vmax.f32 %v5180, 0.0
        %v5245 = vmax.f32 %v5181, 0.0
        %v5246 = vmax.f32 %v5182, 0.0
        %v5247 = vmax.f32 %v5183, 0.0
        %v5248 = vmax.f32 %v5184, 0.0
        %v5249 = vmax.f32 %v5185, 0.0
        %v5250 = vmax.f32 %v5186, 0.0
        %v5251 = vmax.f32 %v5187, 0.0
        %v5252 = vmax.f32 %v5188, 0.0
        %v5253 = vmax.f32 %v5189, 0.0
        %5302 = vrot.lane.b32.xlu0 %v5191, 56
        %v5303 = vpop.permute.xlu0 %5302
        %5304 = vrot.lane.b32.xlu0 %v5192, 56
        %v5305 = vpop.permute.xlu0 %5304
        %5306 = vrot.lane.b32.xlu0 %v5193, 56
        %v5307 = vpop.permute.xlu0 %5306
        %5308 = vrot.lane.b32.xlu0 %v5195, 56
        %v5309 = vpop.permute.xlu0 %5308
        %5310 = vrot.lane.b32.xlu0 %v5196, 56
        %v5311 = vpop.permute.xlu0 %5310
        %5312 = vrot.lane.b32.xlu0 %v5197, 56
        %v5313 = vpop.permute.xlu0 %5312
        %5314 = vrot.lane.b32.xlu0 %v5199, 56
        %v5315 = vpop.permute.xlu0 %5314
        %5316 = vrot.lane.b32.xlu0 %v5200, 56
        %v5317 = vpop.permute.xlu0 %5316
        %5318 = vrot.lane.b32.xlu0 %v5201, 56
        %v5319 = vpop.permute.xlu0 %5318
        %5320 = vrot.lane.b32.xlu0 %v5203, 56
        %v5321 = vpop.permute.xlu0 %5320
        %5322 = vrot.lane.b32.xlu0 %v5204, 56
        %v5323 = vpop.permute.xlu0 %5322
        %5324 = vrot.lane.b32.xlu0 %v5205, 56
        %v5325 = vpop.permute.xlu0 %5324
        %5326 = vrot.lane.b32.xlu0 %v5207, 56
        %v5327 = vpop.permute.xlu0 %5326
        %5328 = vrot.lane.b32.xlu0 %v5208, 56
        %v5329 = vpop.permute.xlu0 %5328
        %5330 = vrot.lane.b32.xlu0 %v5209, 56
        %v5331 = vpop.permute.xlu0 %5330
        %5332 = vrot.lane.b32.xlu0 %v5211, 56
        %v5333 = vpop.permute.xlu0 %5332
        %5334 = vrot.lane.b32.xlu0 %v5212, 56
        %v5335 = vpop.permute.xlu0 %5334
        %5336 = vrot.lane.b32.xlu0 %v5213, 56
        %v5337 = vpop.permute.xlu0 %5336
        %5338 = vrot.lane.b32.xlu0 %v5215, 56
        %v5339 = vpop.permute.xlu0 %5338
        %5340 = vrot.lane.b32.xlu0 %v5216, 56
        %v5341 = vpop.permute.xlu0 %5340
        %5342 = vrot.lane.b32.xlu0 %v5217, 56
        %v5343 = vpop.permute.xlu0 %5342
        %5344 = vrot.lane.b32.xlu0 %v5219, 56
        %v5345 = vpop.permute.xlu0 %5344
        %5346 = vrot.lane.b32.xlu0 %v5220, 56
        %v5347 = vpop.permute.xlu0 %5346
        %5348 = vrot.lane.b32.xlu0 %v5221, 56
        %v5349 = vpop.permute.xlu0 %5348
        %5350 = vrot.lane.b32.xlu0 %v5223, 56
        %v5351 = vpop.permute.xlu0 %5350
        %5352 = vrot.lane.b32.xlu0 %v5224, 56
        %v5353 = vpop.permute.xlu0 %5352
        %5354 = vrot.lane.b32.xlu0 %v5225, 56
        %v5355 = vpop.permute.xlu0 %5354
        %5356 = vrot.lane.b32.xlu0 %v5227, 56
        %v5357 = vpop.permute.xlu0 %5356
        %5358 = vrot.lane.b32.xlu0 %v5228, 56
        %v5359 = vpop.permute.xlu0 %5358
        %5360 = vrot.lane.b32.xlu0 %v5229, 56
        %v5361 = vpop.permute.xlu0 %5360
        %5362 = vrot.lane.b32.xlu0 %v5231, 56
        %v5363 = vpop.permute.xlu0 %5362
        %5364 = vrot.lane.b32.xlu0 %v5232, 56
        %v5365 = vpop.permute.xlu0 %5364
        %5366 = vrot.lane.b32.xlu0 %v5233, 56
        %v5367 = vpop.permute.xlu0 %5366
        %5368 = vrot.lane.b32.xlu0 %v5235, 56
        %v5369 = vpop.permute.xlu0 %5368
        %5370 = vrot.lane.b32.xlu0 %v5236, 56
        %v5371 = vpop.permute.xlu0 %5370
        %5372 = vrot.lane.b32.xlu0 %v5237, 56
        %v5373 = vpop.permute.xlu0 %5372
        %5374 = vrot.lane.b32.xlu0 %v5239, 56
        %v5375 = vpop.permute.xlu0 %5374
        %5376 = vrot.lane.b32.xlu0 %v5240, 56
        %v5377 = vpop.permute.xlu0 %5376
        %5378 = vrot.lane.b32.xlu0 %v5241, 56
        %v5379 = vpop.permute.xlu0 %5378
        %5380 = vrot.lane.b32.xlu0 %v5243, 56
        %v5381 = vpop.permute.xlu0 %5380
        %5382 = vrot.lane.b32.xlu0 %v5244, 56
        %v5383 = vpop.permute.xlu0 %5382
        %5384 = vrot.lane.b32.xlu0 %v5245, 56
        %v5385 = vpop.permute.xlu0 %5384
        %5386 = vrot.lane.b32.xlu0 %v5247, 56
        %v5387 = vpop.permute.xlu0 %5386
        %5388 = vrot.lane.b32.xlu0 %v5248, 56
        %v5389 = vpop.permute.xlu0 %5388
        %5390 = vrot.lane.b32.xlu0 %v5249, 56
        %v5391 = vpop.permute.xlu0 %5390
        %5392 = vrot.lane.b32.xlu0 %v5251, 56
        %v5393 = vpop.permute.xlu0 %5392
        %5394 = vrot.lane.b32.xlu0 %v5252, 56
        %v5395 = vpop.permute.xlu0 %5394
        %5396 = vrot.lane.b32.xlu0 %v5253, 56
        %v5397 = vpop.permute.xlu0 %5396
        %vm5398 = vcmask 457728
        %v5399 = vsel %vm5398, %v5303, %v5305
        %v5400 = vsel %vm5398, %v5305, %v5307
        %v5401 = vsel %vm5398, %v5309, %v5311
        %v5402 = vsel %vm5398, %v5311, %v5313
        %v5403 = vsel %vm5398, %v5315, %v5317
        %v5404 = vsel %vm5398, %v5317, %v5319
        %v5405 = vsel %vm5398, %v5321, %v5323
        %v5406 = vsel %vm5398, %v5323, %v5325
        %v5407 = vsel %vm5398, %v5327, %v5329
        %v5408 = vsel %vm5398, %v5329, %v5331
        %v5409 = vsel %vm5398, %v5333, %v5335
        %v5410 = vsel %vm5398, %v5335, %v5337
        %v5411 = vsel %vm5398, %v5339, %v5341
        %v5412 = vsel %vm5398, %v5341, %v5343
        %v5413 = vsel %vm5398, %v5345, %v5347
        %v5414 = vsel %vm5398, %v5347, %v5349
        %v5415 = vsel %vm5398, %v5351, %v5353
        %v5416 = vsel %vm5398, %v5353, %v5355
        %v5417 = vsel %vm5398, %v5357, %v5359
        %v5418 = vsel %vm5398, %v5359, %v5361
        %v5419 = vsel %vm5398, %v5363, %v5365
        %v5420 = vsel %vm5398, %v5365, %v5367
        %v5421 = vsel %vm5398, %v5369, %v5371
        %v5422 = vsel %vm5398, %v5371, %v5373
        %v5423 = vsel %vm5398, %v5375, %v5377
        %v5424 = vsel %vm5398, %v5377, %v5379
        %v5425 = vsel %vm5398, %v5381, %v5383
        %v5426 = vsel %vm5398, %v5383, %v5385
        %v5427 = vsel %vm5398, %v5387, %v5389
        %v5428 = vsel %vm5398, %v5389, %v5391
        %v5429 = vsel %vm5398, %v5393, %v5395
        %v5430 = vsel %vm5398, %v5395, %v5397
        %v5463 = vmax.f32 %v5190, %v5399
        %v5464 = vmax.f32 %v5191, %v5400
        %v5465 = vmax.f32 %v5194, %v5401
        %v5466 = vmax.f32 %v5195, %v5402
        %v5467 = vmax.f32 %v5198, %v5403
        %v5468 = vmax.f32 %v5199, %v5404
        %v5469 = vmax.f32 %v5202, %v5405
        %v5470 = vmax.f32 %v5203, %v5406
        %v5471 = vmax.f32 %v5206, %v5407
        %v5472 = vmax.f32 %v5207, %v5408
        %v5473 = vmax.f32 %v5210, %v5409
        %v5474 = vmax.f32 %v5211, %v5410
        %v5475 = vmax.f32 %v5214, %v5411
        %v5476 = vmax.f32 %v5215, %v5412
        %v5477 = vmax.f32 %v5218, %v5413
        %v5478 = vmax.f32 %v5219, %v5414
        %v5479 = vmax.f32 %v5222, %v5415
        %v5480 = vmax.f32 %v5223, %v5416
        %v5481 = vmax.f32 %v5226, %v5417
        %v5482 = vmax.f32 %v5227, %v5418
        %v5483 = vmax.f32 %v5230, %v5419
        %v5484 = vmax.f32 %v5231, %v5420
        %v5485 = vmax.f32 %v5234, %v5421
        %v5486 = vmax.f32 %v5235, %v5422
        %v5487 = vmax.f32 %v5238, %v5423
        %v5488 = vmax.f32 %v5239, %v5424
        %v5489 = vmax.f32 %v5242, %v5425
        %v5490 = vmax.f32 %v5243, %v5426
        %v5491 = vmax.f32 %v5246, %v5427
        %v5492 = vmax.f32 %v5247, %v5428
        %v5493 = vmax.f32 %v5250, %v5429
        %v5494 = vmax.f32 %v5251, %v5430
        %v5495 = vmax.f32 %v5463, %v5467
        %v5496 = vmax.f32 %v5464, %v5468
        %v5497 = vmax.f32 %v5465, %v5469
        %v5498 = vmax.f32 %v5466, %v5470
        %v5499 = vmax.f32 %v5471, %v5475
        %v5500 = vmax.f32 %v5472, %v5476
        %v5501 = vmax.f32 %v5473, %v5477
        %v5502 = vmax.f32 %v5474, %v5478
        %v5503 = vmax.f32 %v5479, %v5483
        %v5504 = vmax.f32 %v5480, %v5484
        %v5505 = vmax.f32 %v5481, %v5485
        %v5506 = vmax.f32 %v5482, %v5486
        %v5507 = vmax.f32 %v5487, %v5491
        %v5508 = vmax.f32 %v5488, %v5492
        %v5509 = vmax.f32 %v5489, %v5493
        %v5510 = vmax.f32 %v5490, %v5494
        %v5511 = vld [vmem:[%s6] sm:$0xf]
        %v5512 = vld [vmem:[%s5] sm:$0xff]
        %v5513 = vld [vmem:[%s5 + $0x8] sm:$0xff]
        %v5514 = vld [vmem:[%s5 + $0x10] sm:$0xff]
        %v5515 = vld [vmem:[%s5 + $0x18] sm:$0xff]
        %v5516 = vld [vmem:[%s5 + $0x20] sm:$0xff]
        %v5517 = vld [vmem:[%s5 + $0x28] sm:$0xff]
        %v5518 = vld [vmem:[%s5 + $0x30] sm:$0xff]
        %v5519 = vld [vmem:[%s5 + $0x38] sm:$0xff]
        %v5520 = vld [vmem:[%s5 + $0x40] sm:$0xff]
        %v5521 = vld [vmem:[%s5 + $0x48] sm:$0xff]
        %v5522 = vld [vmem:[%s5 + $0x50] sm:$0xff]
        %v5523 = vld [vmem:[%s5 + $0x58] sm:$0xff]
        %v5524 = vld [vmem:[%s5 + $0x60] sm:$0xff]
        %v5525 = vld [vmem:[%s5 + $0x68] sm:$0xff]
        %v5526 = vld [vmem:[%s5 + $0x70] sm:$0xff]
        %v5527 = vld [vmem:[%s5 + $0x78] sm:$0xff]
        %v5528 = vld [vmem:[%s5 + $0x80] sm:$0xff]
        %v5529 = vld [vmem:[%s5 + $0x88] sm:$0xff]
        %v5530 = vld [vmem:[%s5 + $0x90] sm:$0xff]
        %v5531 = vld [vmem:[%s5 + $0x98] sm:$0xff]
        %v5532 = vld [vmem:[%s5 + $0xa0] sm:$0xff]
        %v5533 = vld [vmem:[%s5 + $0xa8] sm:$0xff]
        %v5534 = vld [vmem:[%s5 + $0xb0] sm:$0xff]
        %v5535 = vld [vmem:[%s5 + $0xb8] sm:$0xff]
        %v5536 = vld [vmem:[%s5 + $0xc0] sm:$0xff]
        %v5537 = vld [vmem:[%s5 + $0xc8] sm:$0xff]
        %v5538 = vld [vmem:[%s5 + $0xd0] sm:$0xff]
        %v5539 = vld [vmem:[%s5 + $0xd8] sm:$0xff]
        %v5540 = vld [vmem:[%s5 + $0xe0] sm:$0xff]
        %v5541 = vld [vmem:[%s5 + $0xe8] sm:$0xff]
        %v5542 = vld [vmem:[%s5 + $0xf0] sm:$0xff]
        %v5543 = vld [vmem:[%s5 + $0xf8] sm:$0xff]
        %v5544 = vld [vmem:[%s5 + $0x100] sm:$0xff]
        %v5545 = vld [vmem:[%s5 + $0x108] sm:$0xff]
        %v5546 = vld [vmem:[%s5 + $0x110] sm:$0xff]
        %v5547 = vld [vmem:[%s5 + $0x118] sm:$0xff]
        %v5548 = vld [vmem:[%s5 + $0x120] sm:$0xff]
        %v5549 = vld [vmem:[%s5 + $0x128] sm:$0xff]
        %v5550 = vld [vmem:[%s5 + $0x130] sm:$0xff]
        %v5551 = vld [vmem:[%s5 + $0x138] sm:$0xff]
        %v5552 = vld [vmem:[%s5 + $0x140] sm:$0xff]
        %v5553 = vld [vmem:[%s5 + $0x148] sm:$0xff]
        %v5554 = vld [vmem:[%s5 + $0x150] sm:$0xff]
        %v5555 = vld [vmem:[%s5 + $0x158] sm:$0xff]
        %v5556 = vld [vmem:[%s5 + $0x160] sm:$0xff]
        %v5557 = vld [vmem:[%s5 + $0x168] sm:$0xff]
        %v5558 = vld [vmem:[%s5 + $0x170] sm:$0xff]
        %v5559 = vld [vmem:[%s5 + $0x178] sm:$0xff]
        %v5560 = vld [vmem:[%s5 + $0x180] sm:$0xff]
        %v5561 = vld [vmem:[%s5 + $0x188] sm:$0xff]
        %v5562 = vld [vmem:[%s5 + $0x190] sm:$0xff]
        %v5563 = vld [vmem:[%s5 + $0x198] sm:$0xff]
        %v5564 = vld [vmem:[%s5 + $0x1a0] sm:$0xff]
        %v5565 = vld [vmem:[%s5 + $0x1a8] sm:$0xff]
        %v5566 = vld [vmem:[%s5 + $0x1b0] sm:$0xff]
        %v5567 = vld [vmem:[%s5 + $0x1b8] sm:$0xff]
        %v5568 = vld [vmem:[%s5 + $0x1c0] sm:$0xff]
        %v5569 = vld [vmem:[%s5 + $0x1c8] sm:$0xff]
        %v5570 = vld [vmem:[%s5 + $0x1d0] sm:$0xff]
        %v5571 = vld [vmem:[%s5 + $0x1d8] sm:$0xff]
        %v5572 = vld [vmem:[%s5 + $0x1e0] sm:$0xff]
        %v5573 = vld [vmem:[%s5 + $0x1e8] sm:$0xff]
        %v5574 = vld [vmem:[%s5 + $0x1f0] sm:$0xff]
        %v5575 = vld [vmem:[%s5 + $0x1f8] sm:$0xff]
        %v5576 = vld [vmem:[%s5 + $0x200] sm:$0xff]
        %v5577 = vld [vmem:[%s5 + $0x208] sm:$0xff]
        %v5578 = vld [vmem:[%s5 + $0x210] sm:$0xff]
        %v5579 = vld [vmem:[%s5 + $0x218] sm:$0xff]
        %v5580 = vld [vmem:[%s5 + $0x220] sm:$0xff]
        %v5581 = vld [vmem:[%s5 + $0x228] sm:$0xff]
        %v5582 = vld [vmem:[%s5 + $0x230] sm:$0xff]
        %v5583 = vld [vmem:[%s5 + $0x238] sm:$0xff]
        %v5584 = vld [vmem:[%s5 + $0x240] sm:$0xff]
        %v5585 = vld [vmem:[%s5 + $0x248] sm:$0xff]
        %v5586 = vld [vmem:[%s5 + $0x250] sm:$0xff]
        %v5587 = vld [vmem:[%s5 + $0x258] sm:$0xff]
        %v5588 = vld [vmem:[%s5 + $0x260] sm:$0xff]
        %v5589 = vld [vmem:[%s5 + $0x268] sm:$0xff]
        %v5590 = vld [vmem:[%s5 + $0x270] sm:$0xff]
        %v5591 = vld [vmem:[%s5 + $0x278] sm:$0xff]
        %v5592 = vld [vmem:[%s5 + $0x280] sm:$0xff]
        %v5593 = vld [vmem:[%s5 + $0x288] sm:$0xff]
        %v5594 = vld [vmem:[%s5 + $0x290] sm:$0xff]
        %v5595 = vld [vmem:[%s5 + $0x298] sm:$0xff]
        %v5596 = vld [vmem:[%s5 + $0x2a0] sm:$0xff]
        %v5597 = vld [vmem:[%s5 + $0x2a8] sm:$0xff]
        %v5598 = vld [vmem:[%s5 + $0x2b0] sm:$0xff]
        %v5599 = vld [vmem:[%s5 + $0x2b8] sm:$0xff]
        %v5600 = vld [vmem:[%s5 + $0x2c0] sm:$0xff]
        %v5601 = vld [vmem:[%s5 + $0x2c8] sm:$0xff]
        %v5602 = vld [vmem:[%s5 + $0x2d0] sm:$0xff]
        %v5603 = vld [vmem:[%s5 + $0x2d8] sm:$0xff]
        %v5604 = vld [vmem:[%s5 + $0x2e0] sm:$0xff]
        %v5605 = vld [vmem:[%s5 + $0x2e8] sm:$0xff]
        %v5606 = vld [vmem:[%s5 + $0x2f0] sm:$0xff]
        %v5607 = vld [vmem:[%s5 + $0x2f8] sm:$0xff]
        %v5608 = vld [vmem:[%s5 + $0x300] sm:$0xff]
        %v5609 = vld [vmem:[%s5 + $0x308] sm:$0xff]
        %v5610 = vld [vmem:[%s5 + $0x310] sm:$0xff]
        %v5611 = vld [vmem:[%s5 + $0x318] sm:$0xff]
        %vm5612 = vcmask 588800
        %v5614 = vsel %vm5612, %v5496, 0
        %v5617 = vsel %vm5612, %v5498, 0
        %5619 = vmatprep.subr.mxu0 %v5513
        %5620 = vmatpush1.msra.mxu0 %v5512
        %5621 = vmatprep.subr.mxu0 %v5517
        %5622 = vmatpush1.msra.mxu0 %v5516
        %5623 = vmatprep.subr.mxu0 %v5521
        %5624 = vmatpush1.msra.mxu0 %v5520
        %5625 = vmatprep.subr.mxu0 %v5525
        %5626 = vmatpush1.msra.mxu0 %v5524
        %5627 = vmatprep.subr.mxu0 %v5529
        %5628 = vmatpush1.msra.mxu0 %v5528
        %5629 = vmatprep.subr.mxu0 %v5533
        %5630 = vmatpush1.msra.mxu0 %v5532
        %5631 = vmatprep.subr.mxu0 %v5537
        %5632 = vmatpush1.msra.mxu0 %v5536
        %5633 = vmatprep.subr.mxu0 %v5541
        %5634 = vmatpush1.msra.mxu0 %v5540
        %5635 = vmatprep.subr.mxu0 %v5545
        %5636 = vmatpush1.msra.mxu0 %v5544
        %5637 = vmatprep.subr.mxu0 %v5549
        %5638 = vmatpush1.msra.mxu0 %v5548
        %5639 = vmatprep.subr.mxu0 %v5553
        %5640 = vmatpush1.msra.mxu0 %v5552
        %5641 = vmatprep.subr.mxu0 %v5557
        %5642 = vmatpush1.msra.mxu0 %v5556
        %5643 = vmatprep.subr.mxu0 %v5561
        %5644 = vmatpush1.msra.mxu0 %v5560
        %5645 = vmatprep.subr.mxu0 %v5565
        %5646 = vmatpush1.msra.mxu0 %v5564
        %5647 = vmatprep.subr.mxu0 %v5569
        %5648 = vmatpush1.msra.mxu0 %v5568
        %5649 = vmatprep.subr.mxu0 %v5573
        %5650 = vmatpush1.msra.mxu0 %v5572
        %5651 = vmatprep.subr.mxu0 %v5577
        %5652 = vmatpush1.msra.mxu0 %v5576
        %5653 = vmatprep.subr.mxu0 %v5581
        %5654 = vmatpush1.msra.mxu0 %v5580
        %5655 = vmatprep.subr.mxu0 %v5585
        %5656 = vmatpush1.msra.mxu0 %v5584
        %5657 = vmatprep.subr.mxu0 %v5589
        %5658 = vmatpush1.msra.mxu0 %v5588
        %5659 = vmatprep.subr.mxu0 %v5593
        %5660 = vmatpush1.msra.mxu0 %v5592
        %5661 = vmatprep.subr.mxu0 %v5597
        %5662 = vmatpush1.msra.mxu0 %v5596
        %5663 = vmatprep.subr.mxu0 %v5601
        %5664 = vmatpush1.msra.mxu0 %v5600
        %5665 = vmatprep.subr.mxu0 %v5605
        %5666 = vmatpush1.msra.mxu0 %v5604
        %5667 = vmatprep.subr.mxu0 %v5609
        %5668 = vmatpush1.msra.mxu0 %v5608
        %5669 = vmatprep.subr.mxu0 0.0
        %5670 = vmatpush1.msra.mxu0 0.0
        %5671 = vmatprep.subr.mxu0 0.0
        %5672 = vmatpush1.msra.mxu0 0.0
        %5673 = vmatprep.subr.mxu0 0.0
        %5674 = vmatpush1.msra.mxu0 0.0
        %5675 = vmatprep.subr.mxu0 0.0
        %5676 = vmatpush1.msra.mxu0 0.0
        %5677 = vmatprep.subr.mxu0 0.0
        %5678 = vmatpush1.msra.mxu0 0.0
        %5679 = vmatprep.subr.mxu0 0.0
        %5680 = vmatpush1.msra.mxu0 0.0
        %5681 = vmatprep.subr.mxu0 0.0
        %5682 = vmatpush1.msra.mxu0 0.0
        %5683 = vmatprep.mubr.f32.mxu0 %v5614
        %5684 = vmatmul.mubr.f32.gmra.mrb[0].mxu0 %v5495
        %v5685 = vpop.f32.mrb[0].mxu0
        %v5686 = vadd.f32 0.0, %v5685
        %v5687 = vpop.f32.mrb[0].mxu0
        %v5688 = vadd.f32 0.0, %v5687
        %5689 = vmatprep.mubr.f32.mxu0 %v5617
        %5690 = vmatmul.mubr.f32.gmra.mrb[0].mxu0 %v5497
        %v5691 = vpop.f32.mrb[0].mxu0
        %v5692 = vadd.f32 0.0, %v5691
        %v5693 = vpop.f32.mrb[0].mxu0
        %v5694 = vadd.f32 0.0, %v5693
        %5695 = vdwg.mxu0
        %5696 = vmatprep.subr.mxu0 %v5515
        %5697 = vmatpush1.msra.mxu0 %v5514
        %5698 = vmatprep.subr.mxu0 %v5519
        %5699 = vmatpush1.msra.mxu0 %v5518
        %5700 = vmatprep.subr.mxu0 %v5523
        %5701 = vmatpush1.msra.mxu0 %v5522
        %5702 = vmatprep.subr.mxu0 %v5527
        %5703 = vmatpush1.msra.mxu0 %v5526
        %5704 = vmatprep.subr.mxu0 %v5531
        %5705 = vmatpush1.msra.mxu0 %v5530
        %5706 = vmatprep.subr.mxu0 %v5535
        %5707 = vmatpush1.msra.mxu0 %v5534
        %5708 = vmatprep.subr.mxu0 %v5539
        %5709 = vmatpush1.msra.mxu0 %v5538
        %5710 = vmatprep.subr.mxu0 %v5543
        %5711 = vmatpush1.msra.mxu0 %v5542
        %5712 = vmatprep.subr.mxu0 %v5547
        %5713 = vmatpush1.msra.mxu0 %v5546
        %5714 = vmatprep.subr.mxu0 %v5551
        %5715 = vmatpush1.msra.mxu0 %v5550
        %5716 = vmatprep.subr.mxu0 %v5555
        %5717 = vmatpush1.msra.mxu0 %v5554
        %5718 = vmatprep.subr.mxu0 %v5559
        %5719 = vmatpush1.msra.mxu0 %v5558
        %5720 = vmatprep.subr.mxu0 %v5563
        %5721 = vmatpush1.msra.mxu0 %v5562
        %5722 = vmatprep.subr.mxu0 %v5567
        %5723 = vmatpush1.msra.mxu0 %v5566
        %5724 = vmatprep.subr.mxu0 %v5571
        %5725 = vmatpush1.msra.mxu0 %v5570
        %5726 = vmatprep.subr.mxu0 %v5575
        %5727 = vmatpush1.msra.mxu0 %v5574
        %5728 = vmatprep.subr.mxu0 %v5579
        %5729 = vmatpush1.msra.mxu0 %v5578
        %5730 = vmatprep.subr.mxu0 %v5583
        %5731 = vmatpush1.msra.mxu0 %v5582
        %5732 = vmatprep.subr.mxu0 %v5587
        %5733 = vmatpush1.msra.mxu0 %v5586
        %5734 = vmatprep.subr.mxu0 %v5591
        %5735 = vmatpush1.msra.mxu0 %v5590
        %5736 = vmatprep.subr.mxu0 %v5595
        %5737 = vmatpush1.msra.mxu0 %v5594
        %5738 = vmatprep.subr.mxu0 %v5599
        %5739 = vmatpush1.msra.mxu0 %v5598
        %5740 = vmatprep.subr.mxu0 %v5603
        %5741 = vmatpush1.msra.mxu0 %v5602
        %5742 = vmatprep.subr.mxu0 %v5607
        %5743 = vmatpush1.msra.mxu0 %v5606
        %5744 = vmatprep.subr.mxu0 %v5611
        %5745 = vmatpush1.msra.mxu0 %v5610
        %5746 = vmatprep.subr.mxu0 0.0
        %5747 = vmatpush1.msra.mxu0 0.0
        %5748 = vmatprep.subr.mxu0 0.0
        %5749 = vmatpush1.msra.mxu0 0.0
        %5750 = vmatprep.subr.mxu0 0.0
        %5751 = vmatpush1.msra.mxu0 0.0
        %5752 = vmatprep.subr.mxu0 0.0
        %5753 = vmatpush1.msra.mxu0 0.0
        %5754 = vmatprep.subr.mxu0 0.0
        %5755 = vmatpush1.msra.mxu0 0.0
        %5756 = vmatprep.subr.mxu0 0.0
        %5757 = vmatpush1.msra.mxu0 0.0
        %5758 = vmatprep.subr.mxu0 0.0
        %5759 = vmatpush1.msra.mxu0 0.0
        %5760 = vmatprep.mubr.f32.mxu0 %v5614
        %5761 = vmatmul.mubr.f32.gmra.mrb[0].mxu0 %v5495
        %v5762 = vpop.f32.mrb[0].mxu0
        %v5763 = vadd.f32 0.0, %v5762
        %v5764 = vpop.f32.mrb[0].mxu0
        %v5765 = vadd.f32 0.0, %v5764
        %5766 = vmatprep.mubr.f32.mxu0 %v5617
        %5767 = vmatmul.mubr.f32.gmra.mrb[0].mxu0 %v5497
        %v5768 = vpop.f32.mrb[0].mxu0
        %v5769 = vadd.f32 0.0, %v5768
        %v5770 = vpop.f32.mrb[0].mxu0
        %v5771 = vadd.f32 0.0, %v5770
        %5772 = vdwg.mxu0
        %v5774 = vlaneseq
        %v5775 = vshrl.u32 %v5774, 7
        %v5776 = vsub.s32 0, %v5775
        %v5777 = vrot.slane %v5511, %v5776
        %v5778 = vlaneseq
        %v5779 = vshrl.u32 %v5778, 7
        %v5780 = vsub.s32 1, %v5779
        %v5781 = vrot.slane %v5511, %v5780
        %v5782 = vlaneseq
        %v5783 = vshrl.u32 %v5782, 7
        %v5784 = vsub.s32 2, %v5783
        %v5785 = vrot.slane %v5511, %v5784
        %v5786 = vlaneseq
        %v5787 = vshrl.u32 %v5786, 7
        %v5788 = vsub.s32 3, %v5787
        %v5789 = vrot.slane %v5511, %v5788
        %v5794 = vadd.f32 %v5777, %v5686
        %v5795 = vadd.f32 %v5781, %v5688
        %v5796 = vadd.f32 %v5785, %v5763
        %v5797 = vadd.f32 %v5789, %v5765
        %v5798 = vadd.f32 %v5777, %v5692
        %v5799 = vadd.f32 %v5781, %v5694
        %v5800 = vadd.f32 %v5785, %v5769
        %v5801 = vadd.f32 %v5789, %v5771
        %s5802 = scalar_lea.vmem %s5, 800
        %v5803 = vld [vmem:[%s5802] sm:$0xff]
        %v5804 = vld [vmem:[%s5802 + $0x8] sm:$0xff]
        %v5805 = vld [vmem:[%s5802 + $0x10] sm:$0xff]
        %v5806 = vld [vmem:[%s5802 + $0x18] sm:$0xff]
        %v5807 = vld [vmem:[%s5802 + $0x20] sm:$0xff]
        %v5808 = vld [vmem:[%s5802 + $0x28] sm:$0xff]
        %v5809 = vld [vmem:[%s5802 + $0x30] sm:$0xff]
        %v5810 = vld [vmem:[%s5802 + $0x38] sm:$0xff]
        %v5811 = vld [vmem:[%s5802 + $0x40] sm:$0xff]
        %v5812 = vld [vmem:[%s5802 + $0x48] sm:$0xff]
        %v5813 = vld [vmem:[%s5802 + $0x50] sm:$0xff]
        %v5814 = vld [vmem:[%s5802 + $0x58] sm:$0xff]
        %v5815 = vld [vmem:[%s5802 + $0x60] sm:$0xff]
        %v5816 = vld [vmem:[%s5802 + $0x68] sm:$0xff]
        %v5817 = vld [vmem:[%s5802 + $0x70] sm:$0xff]
        %v5818 = vld [vmem:[%s5802 + $0x78] sm:$0xff]
        %v5819 = vld [vmem:[%s5802 + $0x80] sm:$0xff]
        %v5820 = vld [vmem:[%s5802 + $0x88] sm:$0xff]
        %v5821 = vld [vmem:[%s5802 + $0x90] sm:$0xff]
        %v5822 = vld [vmem:[%s5802 + $0x98] sm:$0xff]
        %v5823 = vld [vmem:[%s5802 + $0xa0] sm:$0xff]
        %v5824 = vld [vmem:[%s5802 + $0xa8] sm:$0xff]
        %v5825 = vld [vmem:[%s5802 + $0xb0] sm:$0xff]
        %v5826 = vld [vmem:[%s5802 + $0xb8] sm:$0xff]
        %v5827 = vld [vmem:[%s5802 + $0xc0] sm:$0xff]
        %v5828 = vld [vmem:[%s5802 + $0xc8] sm:$0xff]
        %v5829 = vld [vmem:[%s5802 + $0xd0] sm:$0xff]
        %v5830 = vld [vmem:[%s5802 + $0xd8] sm:$0xff]
        %v5831 = vld [vmem:[%s5802 + $0xe0] sm:$0xff]
        %v5832 = vld [vmem:[%s5802 + $0xe8] sm:$0xff]
        %v5833 = vld [vmem:[%s5802 + $0xf0] sm:$0xff]
        %v5834 = vld [vmem:[%s5802 + $0xf8] sm:$0xff]
        %v5835 = vld [vmem:[%s5802 + $0x100] sm:$0xff]
        %v5836 = vld [vmem:[%s5802 + $0x108] sm:$0xff]
        %v5837 = vld [vmem:[%s5802 + $0x110] sm:$0xff]
        %v5838 = vld [vmem:[%s5802 + $0x118] sm:$0xff]
        %v5839 = vld [vmem:[%s5802 + $0x120] sm:$0xff]
        %v5840 = vld [vmem:[%s5802 + $0x128] sm:$0xff]
        %v5841 = vld [vmem:[%s5802 + $0x130] sm:$0xff]
        %v5842 = vld [vmem:[%s5802 + $0x138] sm:$0xff]
        %v5843 = vld [vmem:[%s5802 + $0x140] sm:$0xff]
        %v5844 = vld [vmem:[%s5802 + $0x148] sm:$0xff]
        %v5845 = vld [vmem:[%s5802 + $0x150] sm:$0xff]
        %v5846 = vld [vmem:[%s5802 + $0x158] sm:$0xff]
        %v5847 = vld [vmem:[%s5802 + $0x160] sm:$0xff]
        %v5848 = vld [vmem:[%s5802 + $0x168] sm:$0xff]
        %v5849 = vld [vmem:[%s5802 + $0x170] sm:$0xff]
        %v5850 = vld [vmem:[%s5802 + $0x178] sm:$0xff]
        %v5851 = vld [vmem:[%s5802 + $0x180] sm:$0xff]
        %v5852 = vld [vmem:[%s5802 + $0x188] sm:$0xff]
        %v5853 = vld [vmem:[%s5802 + $0x190] sm:$0xff]
        %v5854 = vld [vmem:[%s5802 + $0x198] sm:$0xff]
        %v5855 = vld [vmem:[%s5802 + $0x1a0] sm:$0xff]
        %v5856 = vld [vmem:[%s5802 + $0x1a8] sm:$0xff]
        %v5857 = vld [vmem:[%s5802 + $0x1b0] sm:$0xff]
        %v5858 = vld [vmem:[%s5802 + $0x1b8] sm:$0xff]
        %v5859 = vld [vmem:[%s5802 + $0x1c0] sm:$0xff]
        %v5860 = vld [vmem:[%s5802 + $0x1c8] sm:$0xff]
        %v5861 = vld [vmem:[%s5802 + $0x1d0] sm:$0xff]
        %v5862 = vld [vmem:[%s5802 + $0x1d8] sm:$0xff]
        %v5863 = vld [vmem:[%s5802 + $0x1e0] sm:$0xff]
        %v5864 = vld [vmem:[%s5802 + $0x1e8] sm:$0xff]
        %v5865 = vld [vmem:[%s5802 + $0x1f0] sm:$0xff]
        %v5866 = vld [vmem:[%s5802 + $0x1f8] sm:$0xff]
        %v5867 = vld [vmem:[%s5802 + $0x200] sm:$0xff]
        %v5868 = vld [vmem:[%s5802 + $0x208] sm:$0xff]
        %v5869 = vld [vmem:[%s5802 + $0x210] sm:$0xff]
        %v5870 = vld [vmem:[%s5802 + $0x218] sm:$0xff]
        %v5871 = vld [vmem:[%s5802 + $0x220] sm:$0xff]
        %v5872 = vld [vmem:[%s5802 + $0x228] sm:$0xff]
        %v5873 = vld [vmem:[%s5802 + $0x230] sm:$0xff]
        %v5874 = vld [vmem:[%s5802 + $0x238] sm:$0xff]
        %v5875 = vld [vmem:[%s5802 + $0x240] sm:$0xff]
        %v5876 = vld [vmem:[%s5802 + $0x248] sm:$0xff]
        %v5877 = vld [vmem:[%s5802 + $0x250] sm:$0xff]
        %v5878 = vld [vmem:[%s5802 + $0x258] sm:$0xff]
        %v5879 = vld [vmem:[%s5802 + $0x260] sm:$0xff]
        %v5880 = vld [vmem:[%s5802 + $0x268] sm:$0xff]
        %v5881 = vld [vmem:[%s5802 + $0x270] sm:$0xff]
        %v5882 = vld [vmem:[%s5802 + $0x278] sm:$0xff]
        %v5883 = vld [vmem:[%s5802 + $0x280] sm:$0xff]
        %v5884 = vld [vmem:[%s5802 + $0x288] sm:$0xff]
        %v5885 = vld [vmem:[%s5802 + $0x290] sm:$0xff]
        %v5886 = vld [vmem:[%s5802 + $0x298] sm:$0xff]
        %v5887 = vld [vmem:[%s5802 + $0x2a0] sm:$0xff]
        %v5888 = vld [vmem:[%s5802 + $0x2a8] sm:$0xff]
        %v5889 = vld [vmem:[%s5802 + $0x2b0] sm:$0xff]
        %v5890 = vld [vmem:[%s5802 + $0x2b8] sm:$0xff]
        %v5891 = vld [vmem:[%s5802 + $0x2c0] sm:$0xff]
        %v5892 = vld [vmem:[%s5802 + $0x2c8] sm:$0xff]
        %v5893 = vld [vmem:[%s5802 + $0x2d0] sm:$0xff]
        %v5894 = vld [vmem:[%s5802 + $0x2d8] sm:$0xff]
        %v5895 = vld [vmem:[%s5802 + $0x2e0] sm:$0xff]
        %v5896 = vld [vmem:[%s5802 + $0x2e8] sm:$0xff]
        %v5897 = vld [vmem:[%s5802 + $0x2f0] sm:$0xff]
        %v5898 = vld [vmem:[%s5802 + $0x2f8] sm:$0xff]
        %v5899 = vld [vmem:[%s5802 + $0x300] sm:$0xff]
        %v5900 = vld [vmem:[%s5802 + $0x308] sm:$0xff]
        %v5901 = vld [vmem:[%s5802 + $0x310] sm:$0xff]
        %v5902 = vld [vmem:[%s5802 + $0x318] sm:$0xff]
        %v5904 = vsel %vm5612, %v5500, 0
        %v5907 = vsel %vm5612, %v5502, 0
        %5909 = vmatprep.subr.mxu0 %v5804
        %5910 = vmatpush1.msra.mxu0 %v5803
        %5911 = vmatprep.subr.mxu0 %v5808
        %5912 = vmatpush1.msra.mxu0 %v5807
        %5913 = vmatprep.subr.mxu0 %v5812
        %5914 = vmatpush1.msra.mxu0 %v5811
        %5915 = vmatprep.subr.mxu0 %v5816
        %5916 = vmatpush1.msra.mxu0 %v5815
        %5917 = vmatprep.subr.mxu0 %v5820
        %5918 = vmatpush1.msra.mxu0 %v5819
        %5919 = vmatprep.subr.mxu0 %v5824
        %5920 = vmatpush1.msra.mxu0 %v5823
        %5921 = vmatprep.subr.mxu0 %v5828
        %5922 = vmatpush1.msra.mxu0 %v5827
        %5923 = vmatprep.subr.mxu0 %v5832
        %5924 = vmatpush1.msra.mxu0 %v5831
        %5925 = vmatprep.subr.mxu0 %v5836
        %5926 = vmatpush1.msra.mxu0 %v5835
        %5927 = vmatprep.subr.mxu0 %v5840
        %5928 = vmatpush1.msra.mxu0 %v5839
        %5929 = vmatprep.subr.mxu0 %v5844
        %5930 = vmatpush1.msra.mxu0 %v5843
        %5931 = vmatprep.subr.mxu0 %v5848
        %5932 = vmatpush1.msra.mxu0 %v5847
        %5933 = vmatprep.subr.mxu0 %v5852
        %5934 = vmatpush1.msra.mxu0 %v5851
        %5935 = vmatprep.subr.mxu0 %v5856
        %5936 = vmatpush1.msra.mxu0 %v5855
        %5937 = vmatprep.subr.mxu0 %v5860
        %5938 = vmatpush1.msra.mxu0 %v5859
        %5939 = vmatprep.subr.mxu0 %v5864
        %5940 = vmatpush1.msra.mxu0 %v5863
        %5941 = vmatprep.subr.mxu0 %v5868
        %5942 = vmatpush1.msra.mxu0 %v5867
        %5943 = vmatprep.subr.mxu0 %v5872
        %5944 = vmatpush1.msra.mxu0 %v5871
        %5945 = vmatprep.subr.mxu0 %v5876
        %5946 = vmatpush1.msra.mxu0 %v5875
        %5947 = vmatprep.subr.mxu0 %v5880
        %5948 = vmatpush1.msra.mxu0 %v5879
        %5949 = vmatprep.subr.mxu0 %v5884
        %5950 = vmatpush1.msra.mxu0 %v5883
        %5951 = vmatprep.subr.mxu0 %v5888
        %5952 = vmatpush1.msra.mxu0 %v5887
        %5953 = vmatprep.subr.mxu0 %v5892
        %5954 = vmatpush1.msra.mxu0 %v5891
        %5955 = vmatprep.subr.mxu0 %v5896
        %5956 = vmatpush1.msra.mxu0 %v5895
        %5957 = vmatprep.subr.mxu0 %v5900
        %5958 = vmatpush1.msra.mxu0 %v5899
        %5959 = vmatprep.subr.mxu0 0.0
        %5960 = vmatpush1.msra.mxu0 0.0
        %5961 = vmatprep.subr.mxu0 0.0
        %5962 = vmatpush1.msra.mxu0 0.0
        %5963 = vmatprep.subr.mxu0 0.0
        %5964 = vmatpush1.msra.mxu0 0.0
        %5965 = vmatprep.subr.mxu0 0.0
        %5966 = vmatpush1.msra.mxu0 0.0
        %5967 = vmatprep.subr.mxu0 0.0
        %5968 = vmatpush1.msra.mxu0 0.0
        %5969 = vmatprep.subr.mxu0 0.0
        %5970 = vmatpush1.msra.mxu0 0.0
        %5971 = vmatprep.subr.mxu0 0.0
        %5972 = vmatpush1.msra.mxu0 0.0
        %5973 = vmatprep.mubr.f32.mxu0 %v5904
        %5974 = vmatmul.mubr.f32.gmra.mrb[0].mxu0 %v5499
        %v5975 = vpop.f32.mrb[0].mxu0
        %v5976 = vadd.f32 0.0, %v5975
        %v5977 = vpop.f32.mrb[0].mxu0
        %v5978 = vadd.f32 0.0, %v5977
        %5979 = vmatprep.mubr.f32.mxu0 %v5907
        %5980 = vmatmul.mubr.f32.gmra.mrb[0].mxu0 %v5501
        %v5981 = vpop.f32.mrb[0].mxu0
        %v5982 = vadd.f32 0.0, %v5981
        %v5983 = vpop.f32.mrb[0].mxu0
        %v5984 = vadd.f32 0.0, %v5983
        %5985 = vdwg.mxu0
        %5986 = vmatprep.subr.mxu0 %v5806
        %5987 = vmatpush1.msra.mxu0 %v5805
        %5988 = vmatprep.subr.mxu0 %v5810
        %5989 = vmatpush1.msra.mxu0 %v5809
        %5990 = vmatprep.subr.mxu0 %v5814
        %5991 = vmatpush1.msra.mxu0 %v5813
        %5992 = vmatprep.subr.mxu0 %v5818
        %5993 = vmatpush1.msra.mxu0 %v5817
        %5994 = vmatprep.subr.mxu0 %v5822
        %5995 = vmatpush1.msra.mxu0 %v5821
        %5996 = vmatprep.subr.mxu0 %v5826
        %5997 = vmatpush1.msra.mxu0 %v5825
        %5998 = vmatprep.subr.mxu0 %v5830
        %5999 = vmatpush1.msra.mxu0 %v5829
        %6000 = vmatprep.subr.mxu0 %v5834
        %6001 = vmatpush1.msra.mxu0 %v5833
        %6002 = vmatprep.subr.mxu0 %v5838
        %6003 = vmatpush1.msra.mxu0 %v5837
        %6004 = vmatprep.subr.mxu0 %v5842
        %6005 = vmatpush1.msra.mxu0 %v5841
        %6006 = vmatprep.subr.mxu0 %v5846
        %6007 = vmatpush1.msra.mxu0 %v5845
        %6008 = vmatprep.subr.mxu0 %v5850
        %6009 = vmatpush1.msra.mxu0 %v5849
        %6010 = vmatprep.subr.mxu0 %v5854
        %6011 = vmatpush1.msra.mxu0 %v5853
        %6012 = vmatprep.subr.mxu0 %v5858
        %6013 = vmatpush1.msra.mxu0 %v5857
        %6014 = vmatprep.subr.mxu0 %v5862
        %6015 = vmatpush1.msra.mxu0 %v5861
        %6016 = vmatprep.subr.mxu0 %v5866
        %6017 = vmatpush1.msra.mxu0 %v5865
        %6018 = vmatprep.subr.mxu0 %v5870
        %6019 = vmatpush1.msra.mxu0 %v5869
        %6020 = vmatprep.subr.mxu0 %v5874
        %6021 = vmatpush1.msra.mxu0 %v5873
        %6022 = vmatprep.subr.mxu0 %v5878
        %6023 = vmatpush1.msra.mxu0 %v5877
        %6024 = vmatprep.subr.mxu0 %v5882
        %6025 = vmatpush1.msra.mxu0 %v5881
        %6026 = vmatprep.subr.mxu0 %v5886
        %6027 = vmatpush1.msra.mxu0 %v5885
        %6028 = vmatprep.subr.mxu0 %v5890
        %6029 = vmatpush1.msra.mxu0 %v5889
        %6030 = vmatprep.subr.mxu0 %v5894
        %6031 = vmatpush1.msra.mxu0 %v5893
        %6032 = vmatprep.subr.mxu0 %v5898
        %6033 = vmatpush1.msra.mxu0 %v5897
        %6034 = vmatprep.subr.mxu0 %v5902
        %6035 = vmatpush1.msra.mxu0 %v5901
        %6036 = vmatprep.subr.mxu0 0.0
        %6037 = vmatpush1.msra.mxu0 0.0
        %6038 = vmatprep.subr.mxu0 0.0
        %6039 = vmatpush1.msra.mxu0 0.0
        %6040 = vmatprep.subr.mxu0 0.0
        %6041 = vmatpush1.msra.mxu0 0.0
        %6042 = vmatprep.subr.mxu0 0.0
        %6043 = vmatpush1.msra.mxu0 0.0
        %6044 = vmatprep.subr.mxu0 0.0
        %6045 = vmatpush1.msra.mxu0 0.0
        %6046 = vmatprep.subr.mxu0 0.0
        %6047 = vmatpush1.msra.mxu0 0.0
        %6048 = vmatprep.subr.mxu0 0.0
        %6049 = vmatpush1.msra.mxu0 0.0
        %6050 = vmatprep.mubr.f32.mxu0 %v5904
        %6051 = vmatmul.mubr.f32.gmra.mrb[0].mxu0 %v5499
        %v6052 = vpop.f32.mrb[0].mxu0
        %v6053 = vadd.f32 0.0, %v6052
        %v6054 = vpop.f32.mrb[0].mxu0
        %v6055 = vadd.f32 0.0, %v6054
        %6056 = vmatprep.mubr.f32.mxu0 %v5907
        %6057 = vmatmul.mubr.f32.gmra.mrb[0].mxu0 %v5501
        %v6058 = vpop.f32.mrb[0].mxu0
        %v6059 = vadd.f32 0.0, %v6058
        %v6060 = vpop.f32.mrb[0].mxu0
        %v6061 = vadd.f32 0.0, %v6060
        %6062 = vdwg.mxu0
        %v6063 = vadd.f32 %v5794, %v5976
        %v6064 = vadd.f32 %v5795, %v5978
        %v6065 = vadd.f32 %v5796, %v6053
        %v6066 = vadd.f32 %v5797, %v6055
        %v6067 = vadd.f32 %v5798, %v5982
        %v6068 = vadd.f32 %v5799, %v5984
        %v6069 = vadd.f32 %v5800, %v6059
        %v6070 = vadd.f32 %v5801, %v6061
        %s6071 = scalar_lea.vmem %s5, 1600
        %v6072 = vld [vmem:[%s6071] sm:$0xff]
        %v6073 = vld [vmem:[%s6071 + $0x8] sm:$0xff]
        %v6074 = vld [vmem:[%s6071 + $0x10] sm:$0xff]
        %v6075 = vld [vmem:[%s6071 + $0x18] sm:$0xff]
        %v6076 = vld [vmem:[%s6071 + $0x20] sm:$0xff]
        %v6077 = vld [vmem:[%s6071 + $0x28] sm:$0xff]
        %v6078 = vld [vmem:[%s6071 + $0x30] sm:$0xff]
        %v6079 = vld [vmem:[%s6071 + $0x38] sm:$0xff]
        %v6080 = vld [vmem:[%s6071 + $0x40] sm:$0xff]
        %v6081 = vld [vmem:[%s6071 + $0x48] sm:$0xff]
        %v6082 = vld [vmem:[%s6071 + $0x50] sm:$0xff]
        %v6083 = vld [vmem:[%s6071 + $0x58] sm:$0xff]
        %v6084 = vld [vmem:[%s6071 + $0x60] sm:$0xff]
        %v6085 = vld [vmem:[%s6071 + $0x68] sm:$0xff]
        %v6086 = vld [vmem:[%s6071 + $0x70] sm:$0xff]
        %v6087 = vld [vmem:[%s6071 + $0x78] sm:$0xff]
        %v6088 = vld [vmem:[%s6071 + $0x80] sm:$0xff]
        %v6089 = vld [vmem:[%s6071 + $0x88] sm:$0xff]
        %v6090 = vld [vmem:[%s6071 + $0x90] sm:$0xff]
        %v6091 = vld [vmem:[%s6071 + $0x98] sm:$0xff]
        %v6092 = vld [vmem:[%s6071 + $0xa0] sm:$0xff]
        %v6093 = vld [vmem:[%s6071 + $0xa8] sm:$0xff]
        %v6094 = vld [vmem:[%s6071 + $0xb0] sm:$0xff]
        %v6095 = vld [vmem:[%s6071 + $0xb8] sm:$0xff]
        %v6096 = vld [vmem:[%s6071 + $0xc0] sm:$0xff]
        %v6097 = vld [vmem:[%s6071 + $0xc8] sm:$0xff]
        %v6098 = vld [vmem:[%s6071 + $0xd0] sm:$0xff]
        %v6099 = vld [vmem:[%s6071 + $0xd8] sm:$0xff]
        %v6100 = vld [vmem:[%s6071 + $0xe0] sm:$0xff]
        %v6101 = vld [vmem:[%s6071 + $0xe8] sm:$0xff]
        %v6102 = vld [vmem:[%s6071 + $0xf0] sm:$0xff]
        %v6103 = vld [vmem:[%s6071 + $0xf8] sm:$0xff]
        %v6104 = vld [vmem:[%s6071 + $0x100] sm:$0xff]
        %v6105 = vld [vmem:[%s6071 + $0x108] sm:$0xff]
        %v6106 = vld [vmem:[%s6071 + $0x110] sm:$0xff]
        %v6107 = vld [vmem:[%s6071 + $0x118] sm:$0xff]
        %v6108 = vld [vmem:[%s6071 + $0x120] sm:$0xff]
        %v6109 = vld [vmem:[%s6071 + $0x128] sm:$0xff]
        %v6110 = vld [vmem:[%s6071 + $0x130] sm:$0xff]
        %v6111 = vld [vmem:[%s6071 + $0x138] sm:$0xff]
        %v6112 = vld [vmem:[%s6071 + $0x140] sm:$0xff]
        %v6113 = vld [vmem:[%s6071 + $0x148] sm:$0xff]
        %v6114 = vld [vmem:[%s6071 + $0x150] sm:$0xff]
        %v6115 = vld [vmem:[%s6071 + $0x158] sm:$0xff]
        %v6116 = vld [vmem:[%s6071 + $0x160] sm:$0xff]
        %v6117 = vld [vmem:[%s6071 + $0x168] sm:$0xff]
        %v6118 = vld [vmem:[%s6071 + $0x170] sm:$0xff]
        %v6119 = vld [vmem:[%s6071 + $0x178] sm:$0xff]
        %v6120 = vld [vmem:[%s6071 + $0x180] sm:$0xff]
        %v6121 = vld [vmem:[%s6071 + $0x188] sm:$0xff]
        %v6122 = vld [vmem:[%s6071 + $0x190] sm:$0xff]
        %v6123 = vld [vmem:[%s6071 + $0x198] sm:$0xff]
        %v6124 = vld [vmem:[%s6071 + $0x1a0] sm:$0xff]
        %v6125 = vld [vmem:[%s6071 + $0x1a8] sm:$0xff]
        %v6126 = vld [vmem:[%s6071 + $0x1b0] sm:$0xff]
        %v6127 = vld [vmem:[%s6071 + $0x1b8] sm:$0xff]
        %v6128 = vld [vmem:[%s6071 + $0x1c0] sm:$0xff]
        %v6129 = vld [vmem:[%s6071 + $0x1c8] sm:$0xff]
        %v6130 = vld [vmem:[%s6071 + $0x1d0] sm:$0xff]
        %v6131 = vld [vmem:[%s6071 + $0x1d8] sm:$0xff]
        %v6132 = vld [vmem:[%s6071 + $0x1e0] sm:$0xff]
        %v6133 = vld [vmem:[%s6071 + $0x1e8] sm:$0xff]
        %v6134 = vld [vmem:[%s6071 + $0x1f0] sm:$0xff]
        %v6135 = vld [vmem:[%s6071 + $0x1f8] sm:$0xff]
        %v6136 = vld [vmem:[%s6071 + $0x200] sm:$0xff]
        %v6137 = vld [vmem:[%s6071 + $0x208] sm:$0xff]
        %v6138 = vld [vmem:[%s6071 + $0x210] sm:$0xff]
        %v6139 = vld [vmem:[%s6071 + $0x218] sm:$0xff]
        %v6140 = vld [vmem:[%s6071 + $0x220] sm:$0xff]
        %v6141 = vld [vmem:[%s6071 + $0x228] sm:$0xff]
        %v6142 = vld [vmem:[%s6071 + $0x230] sm:$0xff]
        %v6143 = vld [vmem:[%s6071 + $0x238] sm:$0xff]
        %v6144 = vld [vmem:[%s6071 + $0x240] sm:$0xff]
        %v6145 = vld [vmem:[%s6071 + $0x248] sm:$0xff]
        %v6146 = vld [vmem:[%s6071 + $0x250] sm:$0xff]
        %v6147 = vld [vmem:[%s6071 + $0x258] sm:$0xff]
        %v6148 = vld [vmem:[%s6071 + $0x260] sm:$0xff]
        %v6149 = vld [vmem:[%s6071 + $0x268] sm:$0xff]
        %v6150 = vld [vmem:[%s6071 + $0x270] sm:$0xff]
        %v6151 = vld [vmem:[%s6071 + $0x278] sm:$0xff]
        %v6152 = vld [vmem:[%s6071 + $0x280] sm:$0xff]
        %v6153 = vld [vmem:[%s6071 + $0x288] sm:$0xff]
        %v6154 = vld [vmem:[%s6071 + $0x290] sm:$0xff]
        %v6155 = vld [vmem:[%s6071 + $0x298] sm:$0xff]
        %v6156 = vld [vmem:[%s6071 + $0x2a0] sm:$0xff]
        %v6157 = vld [vmem:[%s6071 + $0x2a8] sm:$0xff]
        %v6158 = vld [vmem:[%s6071 + $0x2b0] sm:$0xff]
        %v6159 = vld [vmem:[%s6071 + $0x2b8] sm:$0xff]
        %v6160 = vld [vmem:[%s6071 + $0x2c0] sm:$0xff]
        %v6161 = vld [vmem:[%s6071 + $0x2c8] sm:$0xff]
        %v6162 = vld [vmem:[%s6071 + $0x2d0] sm:$0xff]
        %v6163 = vld [vmem:[%s6071 + $0x2d8] sm:$0xff]
        %v6164 = vld [vmem:[%s6071 + $0x2e0] sm:$0xff]
        %v6165 = vld [vmem:[%s6071 + $0x2e8] sm:$0xff]
        %v6166 = vld [vmem:[%s6071 + $0x2f0] sm:$0xff]
        %v6167 = vld [vmem:[%s6071 + $0x2f8] sm:$0xff]
        %v6168 = vld [vmem:[%s6071 + $0x300] sm:$0xff]
        %v6169 = vld [vmem:[%s6071 + $0x308] sm:$0xff]
        %v6170 = vld [vmem:[%s6071 + $0x310] sm:$0xff]
        %v6171 = vld [vmem:[%s6071 + $0x318] sm:$0xff]
        %v6173 = vsel %vm5612, %v5504, 0
        %v6176 = vsel %vm5612, %v5506, 0
        %6178 = vmatprep.subr.mxu0 %v6073
        %6179 = vmatpush1.msra.mxu0 %v6072
        %6180 = vmatprep.subr.mxu0 %v6077
        %6181 = vmatpush1.msra.mxu0 %v6076
        %6182 = vmatprep.subr.mxu0 %v6081
        %6183 = vmatpush1.msra.mxu0 %v6080
        %6184 = vmatprep.subr.mxu0 %v6085
        %6185 = vmatpush1.msra.mxu0 %v6084
        %6186 = vmatprep.subr.mxu0 %v6089
        %6187 = vmatpush1.msra.mxu0 %v6088
        %6188 = vmatprep.subr.mxu0 %v6093
        %6189 = vmatpush1.msra.mxu0 %v6092
        %6190 = vmatprep.subr.mxu0 %v6097
        %6191 = vmatpush1.msra.mxu0 %v6096
        %6192 = vmatprep.subr.mxu0 %v6101
        %6193 = vmatpush1.msra.mxu0 %v6100
        %6194 = vmatprep.subr.mxu0 %v6105
        %6195 = vmatpush1.msra.mxu0 %v6104
        %6196 = vmatprep.subr.mxu0 %v6109
        %6197 = vmatpush1.msra.mxu0 %v6108
        %6198 = vmatprep.subr.mxu0 %v6113
        %6199 = vmatpush1.msra.mxu0 %v6112
        %6200 = vmatprep.subr.mxu0 %v6117
        %6201 = vmatpush1.msra.mxu0 %v6116
        %6202 = vmatprep.subr.mxu0 %v6121
        %6203 = vmatpush1.msra.mxu0 %v6120
        %6204 = vmatprep.subr.mxu0 %v6125
        %6205 = vmatpush1.msra.mxu0 %v6124
        %6206 = vmatprep.subr.mxu0 %v6129
        %6207 = vmatpush1.msra.mxu0 %v6128
        %6208 = vmatprep.subr.mxu0 %v6133
        %6209 = vmatpush1.msra.mxu0 %v6132
        %6210 = vmatprep.subr.mxu0 %v6137
        %6211 = vmatpush1.msra.mxu0 %v6136
        %6212 = vmatprep.subr.mxu0 %v6141
        %6213 = vmatpush1.msra.mxu0 %v6140
        %6214 = vmatprep.subr.mxu0 %v6145
        %6215 = vmatpush1.msra.mxu0 %v6144
        %6216 = vmatprep.subr.mxu0 %v6149
        %6217 = vmatpush1.msra.mxu0 %v6148
        %6218 = vmatprep.subr.mxu0 %v6153
        %6219 = vmatpush1.msra.mxu0 %v6152
        %6220 = vmatprep.subr.mxu0 %v6157
        %6221 = vmatpush1.msra.mxu0 %v6156
        %6222 = vmatprep.subr.mxu0 %v6161
        %6223 = vmatpush1.msra.mxu0 %v6160
        %6224 = vmatprep.subr.mxu0 %v6165
        %6225 = vmatpush1.msra.mxu0 %v6164
        %6226 = vmatprep.subr.mxu0 %v6169
        %6227 = vmatpush1.msra.mxu0 %v6168
        %6228 = vmatprep.subr.mxu0 0.0
        %6229 = vmatpush1.msra.mxu0 0.0
        %6230 = vmatprep.subr.mxu0 0.0
        %6231 = vmatpush1.msra.mxu0 0.0
        %6232 = vmatprep.subr.mxu0 0.0
        %6233 = vmatpush1.msra.mxu0 0.0
        %6234 = vmatprep.subr.mxu0 0.0
        %6235 = vmatpush1.msra.mxu0 0.0
        %6236 = vmatprep.subr.mxu0 0.0
        %6237 = vmatpush1.msra.mxu0 0.0
        %6238 = vmatprep.subr.mxu0 0.0
        %6239 = vmatpush1.msra.mxu0 0.0
        %6240 = vmatprep.subr.mxu0 0.0
        %6241 = vmatpush1.msra.mxu0 0.0
        %6242 = vmatprep.mubr.f32.mxu0 %v6173
        %6243 = vmatmul.mubr.f32.gmra.mrb[0].mxu0 %v5503
        %v6244 = vpop.f32.mrb[0].mxu0
        %v6245 = vadd.f32 0.0, %v6244
        %v6246 = vpop.f32.mrb[0].mxu0
        %v6247 = vadd.f32 0.0, %v6246
        %6248 = vmatprep.mubr.f32.mxu0 %v6176
        %6249 = vmatmul.mubr.f32.gmra.mrb[0].mxu0 %v5505
        %v6250 = vpop.f32.mrb[0].mxu0
        %v6251 = vadd.f32 0.0, %v6250
        %v6252 = vpop.f32.mrb[0].mxu0
        %v6253 = vadd.f32 0.0, %v6252
        %6254 = vdwg.mxu0
        %6255 = vmatprep.subr.mxu0 %v6075
        %6256 = vmatpush1.msra.mxu0 %v6074
        %6257 = vmatprep.subr.mxu0 %v6079
        %6258 = vmatpush1.msra.mxu0 %v6078
        %6259 = vmatprep.subr.mxu0 %v6083
        %6260 = vmatpush1.msra.mxu0 %v6082
        %6261 = vmatprep.subr.mxu0 %v6087
        %6262 = vmatpush1.msra.mxu0 %v6086
        %6263 = vmatprep.subr.mxu0 %v6091
        %6264 = vmatpush1.msra.mxu0 %v6090
        %6265 = vmatprep.subr.mxu0 %v6095
        %6266 = vmatpush1.msra.mxu0 %v6094
        %6267 = vmatprep.subr.mxu0 %v6099
        %6268 = vmatpush1.msra.mxu0 %v6098
        %6269 = vmatprep.subr.mxu0 %v6103
        %6270 = vmatpush1.msra.mxu0 %v6102
        %6271 = vmatprep.subr.mxu0 %v6107
        %6272 = vmatpush1.msra.mxu0 %v6106
        %6273 = vmatprep.subr.mxu0 %v6111
        %6274 = vmatpush1.msra.mxu0 %v6110
        %6275 = vmatprep.subr.mxu0 %v6115
        %6276 = vmatpush1.msra.mxu0 %v6114
        %6277 = vmatprep.subr.mxu0 %v6119
        %6278 = vmatpush1.msra.mxu0 %v6118
        %6279 = vmatprep.subr.mxu0 %v6123
        %6280 = vmatpush1.msra.mxu0 %v6122
        %6281 = vmatprep.subr.mxu0 %v6127
        %6282 = vmatpush1.msra.mxu0 %v6126
        %6283 = vmatprep.subr.mxu0 %v6131
        %6284 = vmatpush1.msra.mxu0 %v6130
        %6285 = vmatprep.subr.mxu0 %v6135
        %6286 = vmatpush1.msra.mxu0 %v6134
        %6287 = vmatprep.subr.mxu0 %v6139
        %6288 = vmatpush1.msra.mxu0 %v6138
        %6289 = vmatprep.subr.mxu0 %v6143
        %6290 = vmatpush1.msra.mxu0 %v6142
        %6291 = vmatprep.subr.mxu0 %v6147
        %6292 = vmatpush1.msra.mxu0 %v6146
        %6293 = vmatprep.subr.mxu0 %v6151
        %6294 = vmatpush1.msra.mxu0 %v6150
        %6295 = vmatprep.subr.mxu0 %v6155
        %6296 = vmatpush1.msra.mxu0 %v6154
        %6297 = vmatprep.subr.mxu0 %v6159
        %6298 = vmatpush1.msra.mxu0 %v6158
        %6299 = vmatprep.subr.mxu0 %v6163
        %6300 = vmatpush1.msra.mxu0 %v6162
        %6301 = vmatprep.subr.mxu0 %v6167
        %6302 = vmatpush1.msra.mxu0 %v6166
        %6303 = vmatprep.subr.mxu0 %v6171
        %6304 = vmatpush1.msra.mxu0 %v6170
        %6305 = vmatprep.subr.mxu0 0.0
        %6306 = vmatpush1.msra.mxu0 0.0
        %6307 = vmatprep.subr.mxu0 0.0
        %6308 = vmatpush1.msra.mxu0 0.0
        %6309 = vmatprep.subr.mxu0 0.0
        %6310 = vmatpush1.msra.mxu0 0.0
        %6311 = vmatprep.subr.mxu0 0.0
        %6312 = vmatpush1.msra.mxu0 0.0
        %6313 = vmatprep.subr.mxu0 0.0
        %6314 = vmatpush1.msra.mxu0 0.0
        %6315 = vmatprep.subr.mxu0 0.0
        %6316 = vmatpush1.msra.mxu0 0.0
        %6317 = vmatprep.subr.mxu0 0.0
        %6318 = vmatpush1.msra.mxu0 0.0
        %6319 = vmatprep.mubr.f32.mxu0 %v6173
        %6320 = vmatmul.mubr.f32.gmra.mrb[0].mxu0 %v5503
        %v6321 = vpop.f32.mrb[0].mxu0
        %v6322 = vadd.f32 0.0, %v6321
        %v6323 = vpop.f32.mrb[0].mxu0
        %v6324 = vadd.f32 0.0, %v6323
        %6325 = vmatprep.mubr.f32.mxu0 %v6176
        %6326 = vmatmul.mubr.f32.gmra.mrb[0].mxu0 %v5505
        %v6327 = vpop.f32.mrb[0].mxu0
        %v6328 = vadd.f32 0.0, %v6327
        %v6329 = vpop.f32.mrb[0].mxu0
        %v6330 = vadd.f32 0.0, %v6329
        %6331 = vdwg.mxu0
        %v6332 = vadd.f32 %v6063, %v6245
        %v6333 = vadd.f32 %v6064, %v6247
        %v6334 = vadd.f32 %v6065, %v6322
        %v6335 = vadd.f32 %v6066, %v6324
        %v6336 = vadd.f32 %v6067, %v6251
        %v6337 = vadd.f32 %v6068, %v6253
        %v6338 = vadd.f32 %v6069, %v6328
        %v6339 = vadd.f32 %v6070, %v6330
        %s6340 = scalar_lea.vmem %s5, 2400
        %v6341 = vld [vmem:[%s6340] sm:$0xff]
        %v6342 = vld [vmem:[%s6340 + $0x8] sm:$0xff]
        %v6343 = vld [vmem:[%s6340 + $0x10] sm:$0xff]
        %v6344 = vld [vmem:[%s6340 + $0x18] sm:$0xff]
        %v6345 = vld [vmem:[%s6340 + $0x20] sm:$0xff]
        %v6346 = vld [vmem:[%s6340 + $0x28] sm:$0xff]
        %v6347 = vld [vmem:[%s6340 + $0x30] sm:$0xff]
        %v6348 = vld [vmem:[%s6340 + $0x38] sm:$0xff]
        %v6349 = vld [vmem:[%s6340 + $0x40] sm:$0xff]
        %v6350 = vld [vmem:[%s6340 + $0x48] sm:$0xff]
        %v6351 = vld [vmem:[%s6340 + $0x50] sm:$0xff]
        %v6352 = vld [vmem:[%s6340 + $0x58] sm:$0xff]
        %v6353 = vld [vmem:[%s6340 + $0x60] sm:$0xff]
        %v6354 = vld [vmem:[%s6340 + $0x68] sm:$0xff]
        %v6355 = vld [vmem:[%s6340 + $0x70] sm:$0xff]
        %v6356 = vld [vmem:[%s6340 + $0x78] sm:$0xff]
        %v6357 = vld [vmem:[%s6340 + $0x80] sm:$0xff]
        %v6358 = vld [vmem:[%s6340 + $0x88] sm:$0xff]
        %v6359 = vld [vmem:[%s6340 + $0x90] sm:$0xff]
        %v6360 = vld [vmem:[%s6340 + $0x98] sm:$0xff]
        %v6361 = vld [vmem:[%s6340 + $0xa0] sm:$0xff]
        %v6362 = vld [vmem:[%s6340 + $0xa8] sm:$0xff]
        %v6363 = vld [vmem:[%s6340 + $0xb0] sm:$0xff]
        %v6364 = vld [vmem:[%s6340 + $0xb8] sm:$0xff]
        %v6365 = vld [vmem:[%s6340 + $0xc0] sm:$0xff]
        %v6366 = vld [vmem:[%s6340 + $0xc8] sm:$0xff]
        %v6367 = vld [vmem:[%s6340 + $0xd0] sm:$0xff]
        %v6368 = vld [vmem:[%s6340 + $0xd8] sm:$0xff]
        %v6369 = vld [vmem:[%s6340 + $0xe0] sm:$0xff]
        %v6370 = vld [vmem:[%s6340 + $0xe8] sm:$0xff]
        %v6371 = vld [vmem:[%s6340 + $0xf0] sm:$0xff]
        %v6372 = vld [vmem:[%s6340 + $0xf8] sm:$0xff]
        %v6373 = vld [vmem:[%s6340 + $0x100] sm:$0xff]
        %v6374 = vld [vmem:[%s6340 + $0x108] sm:$0xff]
        %v6375 = vld [vmem:[%s6340 + $0x110] sm:$0xff]
        %v6376 = vld [vmem:[%s6340 + $0x118] sm:$0xff]
        %v6377 = vld [vmem:[%s6340 + $0x120] sm:$0xff]
        %v6378 = vld [vmem:[%s6340 + $0x128] sm:$0xff]
        %v6379 = vld [vmem:[%s6340 + $0x130] sm:$0xff]
        %v6380 = vld [vmem:[%s6340 + $0x138] sm:$0xff]
        %v6381 = vld [vmem:[%s6340 + $0x140] sm:$0xff]
        %v6382 = vld [vmem:[%s6340 + $0x148] sm:$0xff]
        %v6383 = vld [vmem:[%s6340 + $0x150] sm:$0xff]
        %v6384 = vld [vmem:[%s6340 + $0x158] sm:$0xff]
        %v6385 = vld [vmem:[%s6340 + $0x160] sm:$0xff]
        %v6386 = vld [vmem:[%s6340 + $0x168] sm:$0xff]
        %v6387 = vld [vmem:[%s6340 + $0x170] sm:$0xff]
        %v6388 = vld [vmem:[%s6340 + $0x178] sm:$0xff]
        %v6389 = vld [vmem:[%s6340 + $0x180] sm:$0xff]
        %v6390 = vld [vmem:[%s6340 + $0x188] sm:$0xff]
        %v6391 = vld [vmem:[%s6340 + $0x190] sm:$0xff]
        %v6392 = vld [vmem:[%s6340 + $0x198] sm:$0xff]
        %v6393 = vld [vmem:[%s6340 + $0x1a0] sm:$0xff]
        %v6394 = vld [vmem:[%s6340 + $0x1a8] sm:$0xff]
        %v6395 = vld [vmem:[%s6340 + $0x1b0] sm:$0xff]
        %v6396 = vld [vmem:[%s6340 + $0x1b8] sm:$0xff]
        %v6397 = vld [vmem:[%s6340 + $0x1c0] sm:$0xff]
        %v6398 = vld [vmem:[%s6340 + $0x1c8] sm:$0xff]
        %v6399 = vld [vmem:[%s6340 + $0x1d0] sm:$0xff]
        %v6400 = vld [vmem:[%s6340 + $0x1d8] sm:$0xff]
        %v6401 = vld [vmem:[%s6340 + $0x1e0] sm:$0xff]
        %v6402 = vld [vmem:[%s6340 + $0x1e8] sm:$0xff]
        %v6403 = vld [vmem:[%s6340 + $0x1f0] sm:$0xff]
        %v6404 = vld [vmem:[%s6340 + $0x1f8] sm:$0xff]
        %v6405 = vld [vmem:[%s6340 + $0x200] sm:$0xff]
        %v6406 = vld [vmem:[%s6340 + $0x208] sm:$0xff]
        %v6407 = vld [vmem:[%s6340 + $0x210] sm:$0xff]
        %v6408 = vld [vmem:[%s6340 + $0x218] sm:$0xff]
        %v6409 = vld [vmem:[%s6340 + $0x220] sm:$0xff]
        %v6410 = vld [vmem:[%s6340 + $0x228] sm:$0xff]
        %v6411 = vld [vmem:[%s6340 + $0x230] sm:$0xff]
        %v6412 = vld [vmem:[%s6340 + $0x238] sm:$0xff]
        %v6413 = vld [vmem:[%s6340 + $0x240] sm:$0xff]
        %v6414 = vld [vmem:[%s6340 + $0x248] sm:$0xff]
        %v6415 = vld [vmem:[%s6340 + $0x250] sm:$0xff]
        %v6416 = vld [vmem:[%s6340 + $0x258] sm:$0xff]
        %v6417 = vld [vmem:[%s6340 + $0x260] sm:$0xff]
        %v6418 = vld [vmem:[%s6340 + $0x268] sm:$0xff]
        %v6419 = vld [vmem:[%s6340 + $0x270] sm:$0xff]
        %v6420 = vld [vmem:[%s6340 + $0x278] sm:$0xff]
        %v6421 = vld [vmem:[%s6340 + $0x280] sm:$0xff]
        %v6422 = vld [vmem:[%s6340 + $0x288] sm:$0xff]
        %v6423 = vld [vmem:[%s6340 + $0x290] sm:$0xff]
        %v6424 = vld [vmem:[%s6340 + $0x298] sm:$0xff]
        %v6425 = vld [vmem:[%s6340 + $0x2a0] sm:$0xff]
        %v6426 = vld [vmem:[%s6340 + $0x2a8] sm:$0xff]
        %v6427 = vld [vmem:[%s6340 + $0x2b0] sm:$0xff]
        %v6428 = vld [vmem:[%s6340 + $0x2b8] sm:$0xff]
        %v6429 = vld [vmem:[%s6340 + $0x2c0] sm:$0xff]
        %v6430 = vld [vmem:[%s6340 + $0x2c8] sm:$0xff]
        %v6431 = vld [vmem:[%s6340 + $0x2d0] sm:$0xff]
        %v6432 = vld [vmem:[%s6340 + $0x2d8] sm:$0xff]
        %v6433 = vld [vmem:[%s6340 + $0x2e0] sm:$0xff]
        %v6434 = vld [vmem:[%s6340 + $0x2e8] sm:$0xff]
        %v6435 = vld [vmem:[%s6340 + $0x2f0] sm:$0xff]
        %v6436 = vld [vmem:[%s6340 + $0x2f8] sm:$0xff]
        %v6437 = vld [vmem:[%s6340 + $0x300] sm:$0xff]
        %v6438 = vld [vmem:[%s6340 + $0x308] sm:$0xff]
        %v6439 = vld [vmem:[%s6340 + $0x310] sm:$0xff]
        %v6440 = vld [vmem:[%s6340 + $0x318] sm:$0xff]
        %v6442 = vsel %vm5612, %v5508, 0
        %v6445 = vsel %vm5612, %v5510, 0
        %6447 = vmatprep.subr.mxu0 %v6342
        %6448 = vmatpush1.msra.mxu0 %v6341
        %6449 = vmatprep.subr.mxu0 %v6346
        %6450 = vmatpush1.msra.mxu0 %v6345
        %6451 = vmatprep.subr.mxu0 %v6350
        %6452 = vmatpush1.msra.mxu0 %v6349
        %6453 = vmatprep.subr.mxu0 %v6354
        %6454 = vmatpush1.msra.mxu0 %v6353
        %6455 = vmatprep.subr.mxu0 %v6358
        %6456 = vmatpush1.msra.mxu0 %v6357
        %6457 = vmatprep.subr.mxu0 %v6362
        %6458 = vmatpush1.msra.mxu0 %v6361
        %6459 = vmatprep.subr.mxu0 %v6366
        %6460 = vmatpush1.msra.mxu0 %v6365
        %6461 = vmatprep.subr.mxu0 %v6370
        %6462 = vmatpush1.msra.mxu0 %v6369
        %6463 = vmatprep.subr.mxu0 %v6374
        %6464 = vmatpush1.msra.mxu0 %v6373
        %6465 = vmatprep.subr.mxu0 %v6378
        %6466 = vmatpush1.msra.mxu0 %v6377
        %6467 = vmatprep.subr.mxu0 %v6382
        %6468 = vmatpush1.msra.mxu0 %v6381
        %6469 = vmatprep.subr.mxu0 %v6386
        %6470 = vmatpush1.msra.mxu0 %v6385
        %6471 = vmatprep.subr.mxu0 %v6390
        %6472 = vmatpush1.msra.mxu0 %v6389
        %6473 = vmatprep.subr.mxu0 %v6394
        %6474 = vmatpush1.msra.mxu0 %v6393
        %6475 = vmatprep.subr.mxu0 %v6398
        %6476 = vmatpush1.msra.mxu0 %v6397
        %6477 = vmatprep.subr.mxu0 %v6402
        %6478 = vmatpush1.msra.mxu0 %v6401
        %6479 = vmatprep.subr.mxu0 %v6406
        %6480 = vmatpush1.msra.mxu0 %v6405
        %6481 = vmatprep.subr.mxu0 %v6410
        %6482 = vmatpush1.msra.mxu0 %v6409
        %6483 = vmatprep.subr.mxu0 %v6414
        %6484 = vmatpush1.msra.mxu0 %v6413
        %6485 = vmatprep.subr.mxu0 %v6418
        %6486 = vmatpush1.msra.mxu0 %v6417
        %6487 = vmatprep.subr.mxu0 %v6422
        %6488 = vmatpush1.msra.mxu0 %v6421
        %6489 = vmatprep.subr.mxu0 %v6426
        %6490 = vmatpush1.msra.mxu0 %v6425
        %6491 = vmatprep.subr.mxu0 %v6430
        %6492 = vmatpush1.msra.mxu0 %v6429
        %6493 = vmatprep.subr.mxu0 %v6434
        %6494 = vmatpush1.msra.mxu0 %v6433
        %6495 = vmatprep.subr.mxu0 %v6438
        %6496 = vmatpush1.msra.mxu0 %v6437
        %6497 = vmatprep.subr.mxu0 0.0
        %6498 = vmatpush1.msra.mxu0 0.0
        %6499 = vmatprep.subr.mxu0 0.0
        %6500 = vmatpush1.msra.mxu0 0.0
        %6501 = vmatprep.subr.mxu0 0.0
        %6502 = vmatpush1.msra.mxu0 0.0
        %6503 = vmatprep.subr.mxu0 0.0
        %6504 = vmatpush1.msra.mxu0 0.0
        %6505 = vmatprep.subr.mxu0 0.0
        %6506 = vmatpush1.msra.mxu0 0.0
        %6507 = vmatprep.subr.mxu0 0.0
        %6508 = vmatpush1.msra.mxu0 0.0
        %6509 = vmatprep.subr.mxu0 0.0
        %6510 = vmatpush1.msra.mxu0 0.0
        %6511 = vmatprep.mubr.f32.mxu0 %v6442
        %6512 = vmatmul.mubr.f32.gmra.mrb[0].mxu0 %v5507
        %v6513 = vpop.f32.mrb[0].mxu0
        %v6514 = vadd.f32 0.0, %v6513
        %v6515 = vpop.f32.mrb[0].mxu0
        %v6516 = vadd.f32 0.0, %v6515
        %6517 = vmatprep.mubr.f32.mxu0 %v6445
        %6518 = vmatmul.mubr.f32.gmra.mrb[0].mxu0 %v5509
        %v6519 = vpop.f32.mrb[0].mxu0
        %v6520 = vadd.f32 0.0, %v6519
        %v6521 = vpop.f32.mrb[0].mxu0
        %v6522 = vadd.f32 0.0, %v6521
        %6523 = vdwg.mxu0
        %6524 = vmatprep.subr.mxu0 %v6344
        %6525 = vmatpush1.msra.mxu0 %v6343
        %6526 = vmatprep.subr.mxu0 %v6348
        %6527 = vmatpush1.msra.mxu0 %v6347
        %6528 = vmatprep.subr.mxu0 %v6352
        %6529 = vmatpush1.msra.mxu0 %v6351
        %6530 = vmatprep.subr.mxu0 %v6356
        %6531 = vmatpush1.msra.mxu0 %v6355
        %6532 = vmatprep.subr.mxu0 %v6360
        %6533 = vmatpush1.msra.mxu0 %v6359
        %6534 = vmatprep.subr.mxu0 %v6364
        %6535 = vmatpush1.msra.mxu0 %v6363
        %6536 = vmatprep.subr.mxu0 %v6368
        %6537 = vmatpush1.msra.mxu0 %v6367
        %6538 = vmatprep.subr.mxu0 %v6372
        %6539 = vmatpush1.msra.mxu0 %v6371
        %6540 = vmatprep.subr.mxu0 %v6376
        %6541 = vmatpush1.msra.mxu0 %v6375
        %6542 = vmatprep.subr.mxu0 %v6380
        %6543 = vmatpush1.msra.mxu0 %v6379
        %6544 = vmatprep.subr.mxu0 %v6384
        %6545 = vmatpush1.msra.mxu0 %v6383
        %6546 = vmatprep.subr.mxu0 %v6388
        %6547 = vmatpush1.msra.mxu0 %v6387
        %6548 = vmatprep.subr.mxu0 %v6392
        %6549 = vmatpush1.msra.mxu0 %v6391
        %6550 = vmatprep.subr.mxu0 %v6396
        %6551 = vmatpush1.msra.mxu0 %v6395
        %6552 = vmatprep.subr.mxu0 %v6400
        %6553 = vmatpush1.msra.mxu0 %v6399
        %6554 = vmatprep.subr.mxu0 %v6404
        %6555 = vmatpush1.msra.mxu0 %v6403
        %6556 = vmatprep.subr.mxu0 %v6408
        %6557 = vmatpush1.msra.mxu0 %v6407
        %6558 = vmatprep.subr.mxu0 %v6412
        %6559 = vmatpush1.msra.mxu0 %v6411
        %6560 = vmatprep.subr.mxu0 %v6416
        %6561 = vmatpush1.msra.mxu0 %v6415
        %6562 = vmatprep.subr.mxu0 %v6420
        %6563 = vmatpush1.msra.mxu0 %v6419
        %6564 = vmatprep.subr.mxu0 %v6424
        %6565 = vmatpush1.msra.mxu0 %v6423
        %6566 = vmatprep.subr.mxu0 %v6428
        %6567 = vmatpush1.msra.mxu0 %v6427
        %6568 = vmatprep.subr.mxu0 %v6432
        %6569 = vmatpush1.msra.mxu0 %v6431
        %6570 = vmatprep.subr.mxu0 %v6436
        %6571 = vmatpush1.msra.mxu0 %v6435
        %6572 = vmatprep.subr.mxu0 %v6440
        %6573 = vmatpush1.msra.mxu0 %v6439
        %6574 = vmatprep.subr.mxu0 0.0
        %6575 = vmatpush1.msra.mxu0 0.0
        %6576 = vmatprep.subr.mxu0 0.0
        %6577 = vmatpush1.msra.mxu0 0.0
        %6578 = vmatprep.subr.mxu0 0.0
        %6579 = vmatpush1.msra.mxu0 0.0
        %6580 = vmatprep.subr.mxu0 0.0
        %6581 = vmatpush1.msra.mxu0 0.0
        %6582 = vmatprep.subr.mxu0 0.0
        %6583 = vmatpush1.msra.mxu0 0.0
        %6584 = vmatprep.subr.mxu0 0.0
        %6585 = vmatpush1.msra.mxu0 0.0
        %6586 = vmatprep.subr.mxu0 0.0
        %6587 = vmatpush1.msra.mxu0 0.0
        %6588 = vmatprep.mubr.f32.mxu0 %v6442
        %6589 = vmatmul.mubr.f32.gmra.mrb[0].mxu0 %v5507
        %v6590 = vpop.f32.mrb[0].mxu0
        %v6591 = vadd.f32 0.0, %v6590
        %v6592 = vpop.f32.mrb[0].mxu0
        %v6593 = vadd.f32 0.0, %v6592
        %6594 = vmatprep.mubr.f32.mxu0 %v6445
        %6595 = vmatmul.mubr.f32.gmra.mrb[0].mxu0 %v5509
        %v6596 = vpop.f32.mrb[0].mxu0
        %v6597 = vadd.f32 0.0, %v6596
        %v6598 = vpop.f32.mrb[0].mxu0
        %v6599 = vadd.f32 0.0, %v6598
        %6600 = vdwg.mxu0
        %v6601 = vadd.f32 %v6332, %v6514
        %v6602 = vadd.f32 %v6333, %v6516
        %v6603 = vadd.f32 %v6334, %v6591
        %v6604 = vadd.f32 %v6335, %v6593
        %v6605 = vadd.f32 %v6336, %v6520
        %v6606 = vadd.f32 %v6337, %v6522
        %v6607 = vadd.f32 %v6338, %v6597
        %v6608 = vadd.f32 %v6339, %v6599
        %v6609 = vmax.f32 %v6601, 0.0
        %v6610 = vmax.f32 %v6602, 0.0
        %v6611 = vmax.f32 %v6603, 0.0
        %v6612 = vmax.f32 %v6604, 0.0
        %v6613 = vmax.f32 %v6605, 0.0
        %v6614 = vmax.f32 %v6606, 0.0
        %v6615 = vmax.f32 %v6607, 0.0
        %v6616 = vmax.f32 %v6608, 0.0
        %v6617 = vld [vmem:[%s7] sm:$0xff]
        %v6618 = vld [vmem:[%s7 + $0x8] sm:$0xff]
        %v6619 = vld [vmem:[%s7 + $0x10] sm:$0xff]
        %v6620 = vld [vmem:[%s7 + $0x18] sm:$0xff]
        %v6621 = vld [vmem:[%s7 + $0x20] sm:$0xff]
        %v6622 = vld [vmem:[%s7 + $0x28] sm:$0xff]
        %v6623 = vld [vmem:[%s7 + $0x30] sm:$0xff]
        %v6624 = vld [vmem:[%s7 + $0x38] sm:$0xff]
        %v6625 = vld [vmem:[%s7 + $0x40] sm:$0xff]
        %v6626 = vld [vmem:[%s7 + $0x48] sm:$0xff]
        %v6627 = vld [vmem:[%s7 + $0x50] sm:$0xff]
        %v6628 = vld [vmem:[%s7 + $0x58] sm:$0xff]
        %v6629 = vld [vmem:[%s7 + $0x60] sm:$0xff]
        %v6630 = vld [vmem:[%s7 + $0x68] sm:$0xff]
        %v6631 = vld [vmem:[%s7 + $0x70] sm:$0xff]
        %v6632 = vld [vmem:[%s7 + $0x78] sm:$0xff]
        %v6633 = vld [vmem:[%s7 + $0x80] sm:$0xff]
        %v6634 = vld [vmem:[%s7 + $0x88] sm:$0xff]
        %v6635 = vld [vmem:[%s7 + $0x90] sm:$0xff]
        %v6636 = vld [vmem:[%s7 + $0x98] sm:$0xff]
        %v6637 = vld [vmem:[%s7 + $0xa0] sm:$0xff]
        %v6638 = vld [vmem:[%s7 + $0xa8] sm:$0xff]
        %v6639 = vld [vmem:[%s7 + $0xb0] sm:$0xff]
        %v6640 = vld [vmem:[%s7 + $0xb8] sm:$0xff]
        %v6641 = vld [vmem:[%s7 + $0xc0] sm:$0xff]
        %v6642 = vld [vmem:[%s7 + $0xc8] sm:$0xff]
        %v6643 = vld [vmem:[%s7 + $0xd0] sm:$0xff]
        %v6644 = vld [vmem:[%s7 + $0xd8] sm:$0xff]
        %v6645 = vld [vmem:[%s7 + $0xe0] sm:$0xff]
        %v6646 = vld [vmem:[%s7 + $0xe8] sm:$0xff]
        %v6647 = vld [vmem:[%s7 + $0xf0] sm:$0xff]
        %v6648 = vld [vmem:[%s7 + $0xf8] sm:$0xff]
        %v6649 = vld [vmem:[%s7 + $0x100] sm:$0xff]
        %v6650 = vld [vmem:[%s7 + $0x108] sm:$0xff]
        %v6651 = vld [vmem:[%s7 + $0x110] sm:$0xff]
        %v6652 = vld [vmem:[%s7 + $0x118] sm:$0xff]
        %v6653 = vld [vmem:[%s7 + $0x120] sm:$0xff]
        %v6654 = vld [vmem:[%s7 + $0x128] sm:$0xff]
        %v6655 = vld [vmem:[%s7 + $0x130] sm:$0xff]
        %v6656 = vld [vmem:[%s7 + $0x138] sm:$0xff]
        %v6657 = vld [vmem:[%s7 + $0x140] sm:$0xff]
        %v6658 = vld [vmem:[%s7 + $0x148] sm:$0xff]
        %v6659 = vld [vmem:[%s7 + $0x150] sm:$0xff]
        %v6660 = vld [vmem:[%s7 + $0x158] sm:$0xff]
        %v6661 = vld [vmem:[%s7 + $0x160] sm:$0xff]
        %v6662 = vld [vmem:[%s7 + $0x168] sm:$0xff]
        %v6663 = vld [vmem:[%s7 + $0x170] sm:$0xff]
        %v6664 = vld [vmem:[%s7 + $0x178] sm:$0xff]
        %v6665 = vld [vmem:[%s7 + $0x180] sm:$0xff]
        %v6666 = vld [vmem:[%s7 + $0x188] sm:$0xff]
        %v6667 = vld [vmem:[%s7 + $0x190] sm:$0xff]
        %v6668 = vld [vmem:[%s7 + $0x198] sm:$0xff]
        %v6669 = vld [vmem:[%s7 + $0x1a0] sm:$0xff]
        %v6670 = vld [vmem:[%s7 + $0x1a8] sm:$0xff]
        %v6671 = vld [vmem:[%s7 + $0x1b0] sm:$0xff]
        %v6672 = vld [vmem:[%s7 + $0x1b8] sm:$0xff]
        %v6673 = vld [vmem:[%s7 + $0x1c0] sm:$0xff]
        %v6674 = vld [vmem:[%s7 + $0x1c8] sm:$0xff]
        %v6675 = vld [vmem:[%s7 + $0x1d0] sm:$0xff]
        %v6676 = vld [vmem:[%s7 + $0x1d8] sm:$0xff]
        %v6677 = vld [vmem:[%s7 + $0x1e0] sm:$0xff]
        %v6678 = vld [vmem:[%s7 + $0x1e8] sm:$0xff]
        %v6679 = vld [vmem:[%s7 + $0x1f0] sm:$0xff]
        %v6680 = vld [vmem:[%s7 + $0x1f8] sm:$0xff]
        %v6681 = vld [vmem:[%s8] sm:$0x1]
        %v6683 = vlaneseq
        %v6684 = vshrl.u32 %v6683, 7
        %v6685 = vsub.s32 0, %v6684
        %v6686 = vrot.slane %v6681, %v6685
        %6688 = vmatprep.subr.mxu0 0.0
        %6689 = vmatpush1.msra.mxu0 %v6617
        %6690 = vmatprep.subr.mxu0 0.0
        %6691 = vmatpush1.msra.mxu0 %v6618
        %6692 = vmatprep.subr.mxu0 0.0
        %6693 = vmatpush1.msra.mxu0 %v6619
        %6694 = vmatprep.subr.mxu0 0.0
        %6695 = vmatpush1.msra.mxu0 %v6620
        %6696 = vmatprep.subr.mxu0 0.0
        %6697 = vmatpush1.msra.mxu0 %v6621
        %6698 = vmatprep.subr.mxu0 0.0
        %6699 = vmatpush1.msra.mxu0 %v6622
        %6700 = vmatprep.subr.mxu0 0.0
        %6701 = vmatpush1.msra.mxu0 %v6623
        %6702 = vmatprep.subr.mxu0 0.0
        %6703 = vmatpush1.msra.mxu0 %v6624
        %6704 = vmatprep.subr.mxu0 0.0
        %6705 = vmatpush1.msra.mxu0 %v6625
        %6706 = vmatprep.subr.mxu0 0.0
        %6707 = vmatpush1.msra.mxu0 %v6626
        %6708 = vmatprep.subr.mxu0 0.0
        %6709 = vmatpush1.msra.mxu0 %v6627
        %6710 = vmatprep.subr.mxu0 0.0
        %6711 = vmatpush1.msra.mxu0 %v6628
        %6712 = vmatprep.subr.mxu0 0.0
        %6713 = vmatpush1.msra.mxu0 %v6629
        %6714 = vmatprep.subr.mxu0 0.0
        %6715 = vmatpush1.msra.mxu0 %v6630
        %6716 = vmatprep.subr.mxu0 0.0
        %6717 = vmatpush1.msra.mxu0 %v6631
        %6718 = vmatprep.subr.mxu0 0.0
        %6719 = vmatpush1.msra.mxu0 %v6632
        %6720 = vmatprep.subr.mxu0 0.0
        %6721 = vmatpush1.msra.mxu0 %v6633
        %6722 = vmatprep.subr.mxu0 0.0
        %6723 = vmatpush1.msra.mxu0 %v6634
        %6724 = vmatprep.subr.mxu0 0.0
        %6725 = vmatpush1.msra.mxu0 %v6635
        %6726 = vmatprep.subr.mxu0 0.0
        %6727 = vmatpush1.msra.mxu0 %v6636
        %6728 = vmatprep.subr.mxu0 0.0
        %6729 = vmatpush1.msra.mxu0 %v6637
        %6730 = vmatprep.subr.mxu0 0.0
        %6731 = vmatpush1.msra.mxu0 %v6638
        %6732 = vmatprep.subr.mxu0 0.0
        %6733 = vmatpush1.msra.mxu0 %v6639
        %6734 = vmatprep.subr.mxu0 0.0
        %6735 = vmatpush1.msra.mxu0 %v6640
        %6736 = vmatprep.subr.mxu0 0.0
        %6737 = vmatpush1.msra.mxu0 %v6641
        %6738 = vmatprep.subr.mxu0 0.0
        %6739 = vmatpush1.msra.mxu0 %v6642
        %6740 = vmatprep.subr.mxu0 0.0
        %6741 = vmatpush1.msra.mxu0 %v6643
        %6742 = vmatprep.subr.mxu0 0.0
        %6743 = vmatpush1.msra.mxu0 %v6644
        %6744 = vmatprep.subr.mxu0 0.0
        %6745 = vmatpush1.msra.mxu0 %v6645
        %6746 = vmatprep.subr.mxu0 0.0
        %6747 = vmatpush1.msra.mxu0 %v6646
        %6748 = vmatprep.subr.mxu0 0.0
        %6749 = vmatpush1.msra.mxu0 %v6647
        %6750 = vmatprep.subr.mxu0 0.0
        %6751 = vmatpush1.msra.mxu0 %v6648
        %6752 = vmatprep.mubr.f32.mxu0 %v6610
        %6753 = vmatmul.mubr.f32.gmra.mrb[0].mxu0 %v6609
        %v6754 = vpop.f32.mrb[0].mxu0
        %v6755 = vadd.f32 %v6686, %v6754
        %v6756 = vpop.f32.mrb[0].mxu0
        %6757 = vmatprep.mubr.f32.mxu0 %v6614
        %6758 = vmatmul.mubr.f32.gmra.mrb[0].mxu0 %v6613
        %v6759 = vpop.f32.mrb[0].mxu0
        %v6760 = vadd.f32 %v6686, %v6759
        %v6761 = vpop.f32.mrb[0].mxu0
        %6762 = vdwg.mxu0
        %6763 = vmatprep.subr.mxu0 0.0
        %6764 = vmatpush1.msra.mxu0 %v6649
        %6765 = vmatprep.subr.mxu0 0.0
        %6766 = vmatpush1.msra.mxu0 %v6650
        %6767 = vmatprep.subr.mxu0 0.0
        %6768 = vmatpush1.msra.mxu0 %v6651
        %6769 = vmatprep.subr.mxu0 0.0
        %6770 = vmatpush1.msra.mxu0 %v6652
        %6771 = vmatprep.subr.mxu0 0.0
        %6772 = vmatpush1.msra.mxu0 %v6653
        %6773 = vmatprep.subr.mxu0 0.0
        %6774 = vmatpush1.msra.mxu0 %v6654
        %6775 = vmatprep.subr.mxu0 0.0
        %6776 = vmatpush1.msra.mxu0 %v6655
        %6777 = vmatprep.subr.mxu0 0.0
        %6778 = vmatpush1.msra.mxu0 %v6656
        %6779 = vmatprep.subr.mxu0 0.0
        %6780 = vmatpush1.msra.mxu0 %v6657
        %6781 = vmatprep.subr.mxu0 0.0
        %6782 = vmatpush1.msra.mxu0 %v6658
        %6783 = vmatprep.subr.mxu0 0.0
        %6784 = vmatpush1.msra.mxu0 %v6659
        %6785 = vmatprep.subr.mxu0 0.0
        %6786 = vmatpush1.msra.mxu0 %v6660
        %6787 = vmatprep.subr.mxu0 0.0
        %6788 = vmatpush1.msra.mxu0 %v6661
        %6789 = vmatprep.subr.mxu0 0.0
        %6790 = vmatpush1.msra.mxu0 %v6662
        %6791 = vmatprep.subr.mxu0 0.0
        %6792 = vmatpush1.msra.mxu0 %v6663
        %6793 = vmatprep.subr.mxu0 0.0
        %6794 = vmatpush1.msra.mxu0 %v6664
        %6795 = vmatprep.subr.mxu0 0.0
        %6796 = vmatpush1.msra.mxu0 %v6665
        %6797 = vmatprep.subr.mxu0 0.0
        %6798 = vmatpush1.msra.mxu0 %v6666
        %6799 = vmatprep.subr.mxu0 0.0
        %6800 = vmatpush1.msra.mxu0 %v6667
        %6801 = vmatprep.subr.mxu0 0.0
        %6802 = vmatpush1.msra.mxu0 %v6668
        %6803 = vmatprep.subr.mxu0 0.0
        %6804 = vmatpush1.msra.mxu0 %v6669
        %6805 = vmatprep.subr.mxu0 0.0
        %6806 = vmatpush1.msra.mxu0 %v6670
        %6807 = vmatprep.subr.mxu0 0.0
        %6808 = vmatpush1.msra.mxu0 %v6671
        %6809 = vmatprep.subr.mxu0 0.0
        %6810 = vmatpush1.msra.mxu0 %v6672
        %6811 = vmatprep.subr.mxu0 0.0
        %6812 = vmatpush1.msra.mxu0 %v6673
        %6813 = vmatprep.subr.mxu0 0.0
        %6814 = vmatpush1.msra.mxu0 %v6674
        %6815 = vmatprep.subr.mxu0 0.0
        %6816 = vmatpush1.msra.mxu0 %v6675
        %6817 = vmatprep.subr.mxu0 0.0
        %6818 = vmatpush1.msra.mxu0 %v6676
        %6819 = vmatprep.subr.mxu0 0.0
        %6820 = vmatpush1.msra.mxu0 %v6677
        %6821 = vmatprep.subr.mxu0 0.0
        %6822 = vmatpush1.msra.mxu0 %v6678
        %6823 = vmatprep.subr.mxu0 0.0
        %6824 = vmatpush1.msra.mxu0 %v6679
        %6825 = vmatprep.subr.mxu0 0.0
        %6826 = vmatpush1.msra.mxu0 %v6680
        %6827 = vmatprep.mubr.f32.mxu0 %v6612
        %6828 = vmatmul.mubr.f32.gmra.mrb[0].mxu0 %v6611
        %v6829 = vpop.f32.mrb[0].mxu0
        %v6830 = vadd.f32 %v6755, %v6829
        %v6831 = vpop.f32.mrb[0].mxu0
        %6832 = vmatprep.mubr.f32.mxu0 %v6616
        %6833 = vmatmul.mubr.f32.gmra.mrb[0].mxu0 %v6615
        %v6834 = vpop.f32.mrb[0].mxu0
        %v6835 = vadd.f32 %v6760, %v6834
        %v6836 = vpop.f32.mrb[0].mxu0
        %6837 = vdwg.mxu0
        %6838 = vmax.xlane.f32.xlu0 %v6830
        %v6839 = vpop.xlane.xlu0 %6838
        %6840 = vmax.xlane.f32.xlu0 %v6835
        %v6841 = vpop.xlane.xlu0 %6840
        %v6842 = vsub.f32 %v6830, %v6839
        %v6843 = vsub.f32 %v6835, %v6841
        %v6844 = vmul.f32 %v6842, 1.442695
        %v6845 = vpow.pop %v6844
        %v6846 = vmul.f32 %v6843, 1.442695
        %v6847 = vpow.pop %v6846
        %6848 = vadd.xlane.f32.xlu0 %v6845
        %v6849 = vpop.xlane.xlu0 %6848
        %6850 = vadd.xlane.f32.xlu0 %v6847
        %v6851 = vpop.xlane.xlu0 %6850
        %v6852 = vlog2.pop %v6849
        %v6853 = vmul.f32 %v6852, 0.6931472
        %v6854 = vlog2.pop %v6851
        %v6855 = vmul.f32 %v6854, 0.6931472
        %v6856 = vsub.f32 %v6842, %v6853
        %v6857 = vsub.f32 %v6843, %v6855
        %6858 = vst [vmem:[%s544] sm:$0xff] %v6856
        %6859 = vst [vmem:[%s544 + $0x8] sm:$0xff] %v6857
        %s6860 = smul.u32 2, %s20
        %p6861 = scmp.lt.s32.totalorder %s6860, 5
        %s6862 = scalar_select %p6861, %s6860, 5
        %s6863 = smul.addr %s6862, 8
        %s6864 = scalar_lea.vmem %s9, %s6863
        // Predicated region
        $region80: #{_lambda_.1} parent=74 // pred_check
          %p6865 = pneg %p232
        $region81: #{_lambda_.1} parent=74 // pred_check_branch
          %6867 = sbr.rel (%p6865) target = $region83
        $region82: #{_lambda_.1} parent=74 // pred_region
          %s6868 = smul.u32 2, %s20
        $region83: #{_lambda_.1} parent=74 // pred_fallthru
          _
      $region75: #{_lambda_.1} parent=5 // pred_fallthru
        _
      %p6869 = scmp.le.s32.totalorder 2, %s15
      // Predicated region
      $region84: #{_lambda_.1} parent=5 // pred_check
        %p6870 = pneg %p6869
      $region85: #{_lambda_.1} parent=5 // pred_check_branch
        %6872 = sbr.rel (%p6870) target = $region87
      $region86: #{_lambda_.1} parent=5 // pred_region
        %s6873 = ssub.s32 %s15, 2
        // Predicated region
        $region88: #{_lambda_.1} parent=86 // pred_check
          %p6874 = pneg %p238
        $region89: #{_lambda_.1} parent=86 // pred_check_branch
          %6876 = sbr.rel (%p6874) target = $region91
        $region90: #{_lambda_.1} parent=86 // pred_region
          %s6877 = smul.u32 2, %s21
          %p6878 = scmp.lt.s32.totalorder %s6877, 5
          %s6879 = scalar_select %p6878, %s6877, 5
          %s6880 = smul.addr %s6879, 8
          %s6881 = scalar_lea.vmem %s9, %s6880
        $region91: #{_lambda_.1} parent=86 // pred_fallthru
          _
      $region87: #{_lambda_.1} parent=5 // pred_fallthru
        _
    $region6: #{_lambda_.1} parent=1 // loop_footer
      %s19 = sadd.s32 1, %s15
    $region7: #{_lambda_.1} parent=1 // loop_footer_branch
      %14 = sbr.rel target = $region3
    $region8: #{_lambda_.1} parent=1 // loop_exit
      _

</llo_original>
